<compile_context>
chip_gen: v7x
topology: tpu7x:2x2x1
jax: 0.10.0
libtpu: 0.0.40
codegen_flags: <defaults>
</compile_context>

<pallas_src>
import functools

import jax
import jax.numpy as jnp
from jax.experimental import pallas as pl
from jax.experimental.pallas import tpu as pltpu

RATIO = 16          # ChannelAttention ratio
KSIZE = 7           # SpatialAttention kernel size
PAD = KSIZE // 2
_VMEM_LIMIT = 48 * 1024 * 1024


def _pick_s_tile(S, C, max_bytes=2 * 1024 * 1024, max_lanes=2048):
    """Largest multiple-of-128 divisor of S within the lane/byte budget (else S)."""
    cap = min(S, max_lanes, max(128, max_bytes // (4 * C)))
    best = 0
    for t in range(128, cap + 1, 128):
        if S % t == 0:
            best = t
    return best if best else S


# ---------------------------------------------------------------------------
# Pass 1: per-(N,C) global sum / max of x (S tiled as a reduction axis)
# ---------------------------------------------------------------------------
def _pool_kernel(x_ref, sum_ref, max_ref):
    x = x_ref[0].astype(jnp.float32)                     # (C, TS)
    psum = jnp.sum(x, axis=1, keepdims=True)             # (C, 1)
    pmax = jnp.max(x, axis=1, keepdims=True)             # (C, 1)

    @pl.when(pl.program_id(1) == 0)
    def _():
        sum_ref[0] = psum
        max_ref[0] = pmax

    @pl.when(pl.program_id(1) != 0)
    def _():
        sum_ref[0] = sum_ref[0] + psum
        max_ref[0] = jnp.maximum(max_ref[0], pmax)


# ---------------------------------------------------------------------------
# Pass 2: channel mean / max maps of x*scale (x_ca recomputed, never stored)
# ---------------------------------------------------------------------------
def _maps_kernel(x_ref, scale_ref, avg_ref, max_ref):
    x_ca = x_ref[0].astype(jnp.float32) * scale_ref[0]   # (C, TS) * (C, 1)
    avg_ref[0] = jnp.mean(x_ca, axis=0, keepdims=True)   # (1, TS)
    max_ref[0] = jnp.max(x_ca, axis=0, keepdims=True)    # (1, TS)


# ---------------------------------------------------------------------------
# Pass 3: 7x7x7 conv over the [avg, max] map, entirely in-kernel.
#   p_ref[0] is the padded map with (channel, kh) pre-folded onto the lane
#   axis: p[dp*H + h, (c*7 + kh)*Wp + wp] = pad[c, dp, h+kh, wp].
#   kw is folded into banded (Wp, W) weight blocks stacked the same way, so
#   the whole conv is KSIZE matmuls, kd being a static sublane row offset.
# ---------------------------------------------------------------------------
def _spatial_conv_kernel(p_ref, m_ref, avg_ref, attn_ref, amap_ref, *, D, H):
    acc = jnp.zeros(attn_ref.shape[1:], jnp.float32)            # (D*H, W)
    for kd in range(KSIZE):
        slab = p_ref[0, kd * H:(kd + D) * H, :]                  # (D*H, 2*7*Wp)
        acc = acc + jnp.dot(slab, m_ref[kd],
                            preferred_element_type=jnp.float32)
    sig = jax.nn.sigmoid(acc)
    attn_ref[0] = sig
    # mean_C(x_ca * sig) == sig * mean_C(x_ca): reuse the avg map for attention_map.
    amap_ref[0] = (avg_ref[0] * sig).astype(amap_ref.dtype)


# ---------------------------------------------------------------------------
# Pass 4: y = x * channel_scale * spatial_attention (x_ca recomputed on the fly)
# ---------------------------------------------------------------------------
def _apply_kernel(x_ref, scale_ref, attn_ref, y_ref):
    x = x_ref[0].astype(jnp.float32)                     # (C, TS)
    y = x * scale_ref[0] * attn_ref[0]                   # (C,1) and (1,TS) broadcast
    y_ref[0] = y.astype(y_ref.dtype)


# ---------------------------------------------------------------------------
# Wrapper
# ---------------------------------------------------------------------------
def cbam3d_forward(x, w1, w2, w_sa):
    """x: (N, C, D, H, W); w1: (C//16, C); w2: (C, C//16); w_sa: (1, 2, 7, 7, 7)."""
    N, C, D, H, W = x.shape
    S = D * H * W
    Dp, Hp, Wp = D + 2 * PAD, H + 2 * PAD, W + 2 * PAD
    TS = _pick_s_tile(S, C)
    nS = S // TS
    x_flat = x.reshape(N, C, S)

    # ---- pass 1: global per-channel sum / max --------------------------------
    chan_sum, chan_max = pl.pallas_call(
        _pool_kernel,
        out_shape=(jax.ShapeDtypeStruct((N, C, 1), jnp.float32),
                   jax.ShapeDtypeStruct((N, C, 1), jnp.float32)),
        grid=(N, nS),
        in_specs=[pl.BlockSpec((1, C, TS), lambda n, s: (n, 0, s))],
        out_specs=(pl.BlockSpec((1, C, 1), lambda n, s: (n, 0, 0)),
                   pl.BlockSpec((1, C, 1), lambda n, s: (n, 0, 0))),
        compiler_params=pltpu.CompilerParams(
            dimension_semantics=("parallel", "arbitrary"),
            vmem_limit_bytes=_VMEM_LIMIT),
    )(x_flat)

    # ---- tiny FC (Conv1x1-ReLU-Conv1x1, no bias) on pooled (N,C): plain JAX ----
    pooled = jnp.concatenate([chan_sum[:, :, 0] / S, chan_max[:, :, 0]], axis=0)   # (2N, C)
    hidden = jnp.maximum(pooled @ w1.astype(jnp.float32).T, 0.0)
    fc_out = hidden @ w2.astype(jnp.float32).T                                     # (2N, C)
    scale = jax.nn.sigmoid(fc_out[:N] + fc_out[N:])[:, :, None]                    # (N, C, 1) f32

    # ---- pass 2: channel mean/max maps of x*scale ----------------------------
    avg_map, max_map = pl.pallas_call(
        _maps_kernel,
        out_shape=(jax.ShapeDtypeStruct((N, 1, S), jnp.float32),
                   jax.ShapeDtypeStruct((N, 1, S), jnp.float32)),
        grid=(N, nS),
        in_specs=[pl.BlockSpec((1, C, TS), lambda n, s: (n, 0, s)),
                  pl.BlockSpec((1, C, 1), lambda n, s: (n, 0, 0))],
        out_specs=(pl.BlockSpec((1, 1, TS), lambda n, s: (n, 0, s)),
                   pl.BlockSpec((1, 1, TS), lambda n, s: (n, 0, s))),
        compiler_params=pltpu.CompilerParams(
            dimension_semantics=("parallel", "parallel"),
            vmem_limit_bytes=_VMEM_LIMIT),
    )(x_flat, scale)

    # ---- glue for pass 3: pad the tiny 2-channel map, fold (channel, kh) onto
    #      the lane axis (~14x of a single (1,S) map, negligible vs x), and
    #      build the matching banded kw weight blocks ---------------------------
    maps = jnp.stack([avg_map.reshape(N, D, H, W), max_map.reshape(N, D, H, W)], axis=1)
    pads = jnp.pad(maps, ((0, 0), (0, 0), (PAD, PAD), (PAD, PAD), (PAD, PAD)))
    # (N, 2, 7, Dp, H, Wp): p_planes[n,c,kh,dp,h,wp] = pads[n,c,dp,h+kh,wp]
    p_planes = jnp.stack([pads[:, :, :, kh:kh + H, :] for kh in range(KSIZE)], axis=2)
    # fold (c, kh, wp) into the lane axis, (dp, h) into the sublane axis
    p_cat = p_planes.transpose(0, 3, 4, 1, 2, 5).reshape(N, Dp * H, 2 * KSIZE * Wp)

    wt = w_sa[0].astype(jnp.float32)                               # (2, 7, 7, 7) = (c,kd,kh,kw)
    kw_idx = jnp.arange(Wp)[:, None] - jnp.arange(W)[None, :]      # (Wp, W)
    valid = (kw_idx >= 0) & (kw_idx < KSIZE)
    m_banded = jnp.where(valid[None, None, None],
                         wt[:, :, :, jnp.clip(kw_idx, 0, KSIZE - 1)], 0.0)  # (2,7,7,Wp,W)
    # (kd, (c,kh,wp), W) -- lane-contraction layout matching p_cat
    m_cat = m_banded.transpose(1, 0, 2, 3, 4).reshape(KSIZE, 2 * KSIZE * Wp, W)

    # ---- pass 3: spatial-attention conv + sigmoid + attention_map (per batch) ----
    attn2d, amap2d = pl.pallas_call(
        functools.partial(_spatial_conv_kernel, D=D, H=H),
        out_shape=(jax.ShapeDtypeStruct((N, D * H, W), jnp.float32),
                   jax.ShapeDtypeStruct((N, D * H, W), x.dtype)),
        grid=(N,),
        in_specs=[pl.BlockSpec((1, Dp * H, 2 * KSIZE * Wp), lambda n: (n, 0, 0)),
                  pl.BlockSpec((KSIZE, 2 * KSIZE * Wp, W), lambda n: (0, 0, 0)),
                  pl.BlockSpec((1, D * H, W), lambda n: (n, 0, 0))],
        out_specs=(pl.BlockSpec((1, D * H, W), lambda n: (n, 0, 0)),
                   pl.BlockSpec((1, D * H, W), lambda n: (n, 0, 0))),
        compiler_params=pltpu.CompilerParams(
            dimension_semantics=("parallel",),
            vmem_limit_bytes=_VMEM_LIMIT),
    )(p_cat, m_cat, avg_map.reshape(N, D * H, W))

    # ---- pass 4: y = x * scale * sigmoid(attn) --------------------------------
    y_flat = pl.pallas_call(
        _apply_kernel,
        out_shape=jax.ShapeDtypeStruct((N, C, S), x.dtype),
        grid=(N, nS),
        in_specs=[pl.BlockSpec((1, C, TS), lambda n, s: (n, 0, s)),
                  pl.BlockSpec((1, C, 1), lambda n, s: (n, 0, 0)),
                  pl.BlockSpec((1, 1, TS), lambda n, s: (n, 0, s))],
        out_specs=pl.BlockSpec((1, C, TS), lambda n, s: (n, 0, s)),
        compiler_params=pltpu.CompilerParams(
            dimension_semantics=("parallel", "parallel"),
            vmem_limit_bytes=_VMEM_LIMIT),
    )(x_flat, scale, attn2d.reshape(N, 1, S))

    return y_flat.reshape(N, C, D, H, W), amap2d.reshape(N, 1, D, H, W)


# ---------------------------------------------------------------------------
# Pure-JAX reference (correctness check only)
# ---------------------------------------------------------------------------
def cbam3d_reference(x, w1, w2, w_sa):
    xf = x.astype(jnp.float32)
    avg = jnp.mean(xf, axis=(2, 3, 4))
    mx = jnp.max(xf, axis=(2, 3, 4))

    def fc(p):
        return jnp.maximum(p @ w1.T, 0.0) @ w2.T

    scale = jax.nn.sigmoid(fc(avg) + fc(mx))
    x_ca = xf * scale[:, :, None, None, None]
    avg_c = jnp.mean(x_ca, axis=1, keepdims=True)
    max_c = jnp.max(x_ca, axis=1, keepdims=True)
    cat = jnp.concatenate([avg_c, max_c], axis=1)
    attn = jax.lax.conv_general_dilated(
        cat, w_sa.astype(jnp.float32),
        window_strides=(1, 1, 1), padding=[(PAD, PAD)] * 3,
        dimension_numbers=("NCDHW", "OIDHW", "NCDHW"))
    y = x_ca * jax.nn.sigmoid(attn)
    amap = jnp.mean(y, axis=1, keepdims=True)
    return y, amap


if __name__ == "__main__":
    N, C, D, H, W = 2, 32, 8, 16, 32          # in_planes=32, ratio=16 -> hidden=2; S=4096 -> 2 S-tiles
    Ch = C // RATIO

    key = jax.random.PRNGKey(0)
    k_x, k_w1, k_w2, k_ws = jax.random.split(key, 4)
    x = jax.random.normal(k_x, (N, C, D, H, W), dtype=jnp.float32)
    w1 = jax.random.normal(k_w1, (Ch, C), dtype=jnp.float32) * 0.1          # Conv3d(C, C//16, 1)
    w2 = jax.random.normal(k_w2, (C, Ch), dtype=jnp.float32) * 0.1          # Conv3d(C//16, C, 1)
    w_sa = jax.random.normal(k_ws, (1, 2, KSIZE, KSIZE, KSIZE), dtype=jnp.float32) * 0.05

    y, amap = jax.jit(cbam3d_forward)(x, w1, w2, w_sa)
    jax.block_until_ready((y, amap))

    y_ref, amap_ref = cbam3d_reference(x, w1, w2, w_sa)
    assert y.shape == (N, C, D, H, W) and amap.shape == (N, 1, D, H, W)
    err_y = float(jnp.max(jnp.abs(y - y_ref)))
    err_a = float(jnp.max(jnp.abs(amap - amap_ref)))
    assert err_y < 1e-3, err_y
    assert err_a < 1e-3, err_a
    print("KERNEL_OK")
</pallas_src>

<mosaic_0001>
module attributes {stable_mosaic.version = 11 : i64} {
  func.func @_pool_kernel(%arg0: i32, %arg1: i32, %arg2: memref<1x32x2048xf32, #tpu.memory_space<vmem>>, %arg3: memref<1x32x1xf32, #tpu.memory_space<vmem>>, %arg4: memref<1x32x1xf32, #tpu.memory_space<vmem>>) attributes {dimension_semantics = [#tpu.dimension_semantics<parallel>, #tpu.dimension_semantics<arbitrary>], iteration_bounds = array<i64: 2, 2>, scalar_prefetch = 0 : i64, scratch_operands = 0 : i64, tpu.core_type = #tpu.core_type<tc>, window_params = [{transform_indices = @transform_0, window_bounds = array<i64: 1, 32, 2048>}, {transform_indices = @transform_1, window_bounds = array<i64: 1, 32, 1>}, {transform_indices = @transform_2, window_bounds = array<i64: 1, 32, 1>}]} {
    %c0 = arith.constant 0 : index
    %c0_0 = arith.constant 0 : index
    %c0_1 = arith.constant 0 : index
    %0 = vector.load %arg2[%c0, %c0_0, %c0_1] : memref<1x32x2048xf32, #tpu.memory_space<vmem>>, vector<1x32x2048xf32>
    %1 = vector.shape_cast %0 : vector<1x32x2048xf32> to vector<32x2048xf32>
    %cst = arith.constant dense<0.000000e+00> : vector<32xf32>
    %2 = vector.multi_reduction <add>, %1, %cst [1] : vector<32x2048xf32> to vector<32xf32>
    %3 = vector.shape_cast %2 : vector<32xf32> to vector<32x1xf32>
    %cst_2 = arith.constant dense<0xFF800000> : vector<32xf32>
    %4 = vector.multi_reduction <maximumf>, %1, %cst_2 [1] : vector<32x2048xf32> to vector<32xf32>
    %5 = vector.shape_cast %4 : vector<32xf32> to vector<32x1xf32>
    %c0_i32 = arith.constant 0 : i32
    %6 = arith.cmpi eq, %arg1, %c0_i32 : i32
    %7 = arith.extui %6 : i1 to i32
    %c0_i32_3 = arith.constant 0 : i32
    %8 = arith.cmpi ne, %7, %c0_i32_3 : i32
    scf.if %8 {
      %c0_6 = arith.constant 0 : index
      %c0_7 = arith.constant 0 : index
      %c0_8 = arith.constant 0 : index
      %12 = vector.load %arg3[%c0_6, %c0_7, %c0_8] : memref<1x32x1xf32, #tpu.memory_space<vmem>>, vector<1x32x1xf32>
      %13 = vector.shape_cast %12 : vector<1x32x1xf32> to vector<32x1xf32>
      %14 = vector.shape_cast %3 : vector<32x1xf32> to vector<1x32x1xf32>
      tpu.vector_store %arg3[%c0_6, %c0_7, %c0_8], %14 {strides = array<i32>} : memref<1x32x1xf32, #tpu.memory_space<vmem>>, vector<1x32x1xf32>,
      %c0_9 = arith.constant 0 : index
      %c0_10 = arith.constant 0 : index
      %c0_11 = arith.constant 0 : index
      %15 = vector.load %arg4[%c0_9, %c0_10, %c0_11] : memref<1x32x1xf32, #tpu.memory_space<vmem>>, vector<1x32x1xf32>
      %16 = vector.shape_cast %15 : vector<1x32x1xf32> to vector<32x1xf32>
      %17 = vector.shape_cast %5 : vector<32x1xf32> to vector<1x32x1xf32>
      tpu.vector_store %arg4[%c0_9, %c0_10, %c0_11], %17 {strides = array<i32>} : memref<1x32x1xf32, #tpu.memory_space<vmem>>, vector<1x32x1xf32>,
    } else {
    }
    %c0_i32_4 = arith.constant 0 : i32
    %9 = arith.cmpi ne, %arg1, %c0_i32_4 : i32
    %10 = arith.extui %9 : i1 to i32
    %c0_i32_5 = arith.constant 0 : i32
    %11 = arith.cmpi ne, %10, %c0_i32_5 : i32
    scf.if %11 {
      %c0_6 = arith.constant 0 : index
      %c0_7 = arith.constant 0 : index
      %c0_8 = arith.constant 0 : index
      %12 = vector.load %arg3[%c0_6, %c0_7, %c0_8] : memref<1x32x1xf32, #tpu.memory_space<vmem>>, vector<1x32x1xf32>
      %13 = vector.shape_cast %12 : vector<1x32x1xf32> to vector<32x1xf32>
      %14 = arith.addf %13, %3 : vector<32x1xf32>
      %c0_9 = arith.constant 0 : index
      %c0_10 = arith.constant 0 : index
      %c0_11 = arith.constant 0 : index
      %15 = vector.load %arg3[%c0_9, %c0_10, %c0_11] : memref<1x32x1xf32, #tpu.memory_space<vmem>>, vector<1x32x1xf32>
      %16 = vector.shape_cast %15 : vector<1x32x1xf32> to vector<32x1xf32>
      %17 = vector.shape_cast %14 : vector<32x1xf32> to vector<1x32x1xf32>
      tpu.vector_store %arg3[%c0_9, %c0_10, %c0_11], %17 {strides = array<i32>} : memref<1x32x1xf32, #tpu.memory_space<vmem>>, vector<1x32x1xf32>,
      %c0_12 = arith.constant 0 : index
      %c0_13 = arith.constant 0 : index
      %c0_14 = arith.constant 0 : index
      %18 = vector.load %arg4[%c0_12, %c0_13, %c0_14] : memref<1x32x1xf32, #tpu.memory_space<vmem>>, vector<1x32x1xf32>
      %19 = vector.shape_cast %18 : vector<1x32x1xf32> to vector<32x1xf32>
      %20 = arith.maximumf %19, %5 : vector<32x1xf32>
      %c0_15 = arith.constant 0 : index
      %c0_16 = arith.constant 0 : index
      %c0_17 = arith.constant 0 : index
      %21 = vector.load %arg4[%c0_15, %c0_16, %c0_17] : memref<1x32x1xf32, #tpu.memory_space<vmem>>, vector<1x32x1xf32>
      %22 = vector.shape_cast %21 : vector<1x32x1xf32> to vector<32x1xf32>
      %23 = vector.shape_cast %20 : vector<32x1xf32> to vector<1x32x1xf32>
      tpu.vector_store %arg4[%c0_15, %c0_16, %c0_17], %23 {strides = array<i32>} : memref<1x32x1xf32, #tpu.memory_space<vmem>>, vector<1x32x1xf32>,
    } else {
    }
    return
  }
  func.func @transform_0(%arg0: i32, %arg1: i32) -> (i32, i32, i32) {
    %c0_i32 = arith.constant 0 : i32
    %c0_i32_0 = arith.constant 0 : i32
    return %arg0, %c0_i32, %arg1 : i32, i32, i32
  }
  func.func @transform_1(%arg0: i32, %arg1: i32) -> (i32, i32, i32) {
    %c0_i32 = arith.constant 0 : i32
    %c0_i32_0 = arith.constant 0 : i32
    %c0_i32_1 = arith.constant 0 : i32
    return %arg0, %c0_i32, %c0_i32_0 : i32, i32, i32
  }
  func.func @transform_2(%arg0: i32, %arg1: i32) -> (i32, i32, i32) {
    %c0_i32 = arith.constant 0 : i32
    %c0_i32_0 = arith.constant 0 : i32
    %c0_i32_1 = arith.constant 0 : i32
    return %arg0, %c0_i32, %c0_i32_0 : i32, i32, i32
  }
}

module attributes {stable_mosaic.version = 11 : i64} {
  func.func @_maps_kernel(%arg0: i32, %arg1: i32, %arg2: memref<1x32x2048xf32, #tpu.memory_space<vmem>>, %arg3: memref<1x32x1xf32, #tpu.memory_space<vmem>>, %arg4: memref<1x1x2048xf32, #tpu.memory_space<vmem>>, %arg5: memref<1x1x2048xf32, #tpu.memory_space<vmem>>) attributes {dimension_semantics = [#tpu.dimension_semantics<parallel>, #tpu.dimension_semantics<parallel>], iteration_bounds = array<i64: 2, 2>, scalar_prefetch = 0 : i64, scratch_operands = 0 : i64, tpu.core_type = #tpu.core_type<tc>, window_params = [{transform_indices = @transform_0, window_bounds = array<i64: 1, 32, 2048>}, {transform_indices = @transform_1, window_bounds = array<i64: 1, 32, 1>}, {transform_indices = @transform_2, window_bounds = array<i64: 1, 1, 2048>}, {transform_indices = @transform_3, window_bounds = array<i64: 1, 1, 2048>}]} {
    %c0 = arith.constant 0 : index
    %c0_0 = arith.constant 0 : index
    %c0_1 = arith.constant 0 : index
    %0 = vector.load %arg2[%c0, %c0_0, %c0_1] : memref<1x32x2048xf32, #tpu.memory_space<vmem>>, vector<1x32x2048xf32>
    %1 = vector.shape_cast %0 : vector<1x32x2048xf32> to vector<32x2048xf32>
    %c0_2 = arith.constant 0 : index
    %c0_3 = arith.constant 0 : index
    %c0_4 = arith.constant 0 : index
    %2 = vector.load %arg3[%c0_2, %c0_3, %c0_4] : memref<1x32x1xf32, #tpu.memory_space<vmem>>, vector<1x32x1xf32>
    %3 = vector.shape_cast %2 : vector<1x32x1xf32> to vector<32x1xf32>
    %4 = vector.broadcast %3 : vector<32x1xf32> to vector<32x2048xf32>
    %5 = arith.mulf %1, %4 : vector<32x2048xf32>
    %cst = arith.constant dense<0.000000e+00> : vector<2048xf32>
    %6 = vector.multi_reduction <add>, %5, %cst [0] : vector<32x2048xf32> to vector<2048xf32>
    %7 = vector.shape_cast %6 : vector<2048xf32> to vector<1x2048xf32>
    %cst_5 = arith.constant 3.200000e+01 : f32
    %8 = vector.broadcast %cst_5 : f32 to vector<1x2048xf32>
    %9 = arith.divf %7, %8 : vector<1x2048xf32>
    %c0_6 = arith.constant 0 : index
    %c0_7 = arith.constant 0 : index
    %c0_8 = arith.constant 0 : index
    %10 = vector.load %arg4[%c0_6, %c0_7, %c0_8] : memref<1x1x2048xf32, #tpu.memory_space<vmem>>, vector<1x1x2048xf32>
    %11 = vector.shape_cast %10 : vector<1x1x2048xf32> to vector<1x2048xf32>
    %12 = vector.shape_cast %9 : vector<1x2048xf32> to vector<1x1x2048xf32>
    tpu.vector_store %arg4[%c0_6, %c0_7, %c0_8], %12 {strides = array<i32>} : memref<1x1x2048xf32, #tpu.memory_space<vmem>>, vector<1x1x2048xf32>,
    %cst_9 = arith.constant dense<0xFF800000> : vector<2048xf32>
    %13 = vector.multi_reduction <maximumf>, %5, %cst_9 [0] : vector<32x2048xf32> to vector<2048xf32>
    %14 = vector.shape_cast %13 : vector<2048xf32> to vector<1x2048xf32>
    %c0_10 = arith.constant 0 : index
    %c0_11 = arith.constant 0 : index
    %c0_12 = arith.constant 0 : index
    %15 = vector.load %arg5[%c0_10, %c0_11, %c0_12] : memref<1x1x2048xf32, #tpu.memory_space<vmem>>, vector<1x1x2048xf32>
    %16 = vector.shape_cast %15 : vector<1x1x2048xf32> to vector<1x2048xf32>
    %17 = vector.shape_cast %14 : vector<1x2048xf32> to vector<1x1x2048xf32>
    tpu.vector_store %arg5[%c0_10, %c0_11, %c0_12], %17 {strides = array<i32>} : memref<1x1x2048xf32, #tpu.memory_space<vmem>>, vector<1x1x2048xf32>,
    return
  }
  func.func @transform_0(%arg0: i32, %arg1: i32) -> (i32, i32, i32) {
    %c0_i32 = arith.constant 0 : i32
    %c0_i32_0 = arith.constant 0 : i32
    return %arg0, %c0_i32, %arg1 : i32, i32, i32
  }
  func.func @transform_1(%arg0: i32, %arg1: i32) -> (i32, i32, i32) {
    %c0_i32 = arith.constant 0 : i32
    %c0_i32_0 = arith.constant 0 : i32
    %c0_i32_1 = arith.constant 0 : i32
    return %arg0, %c0_i32, %c0_i32_0 : i32, i32, i32
  }
  func.func @transform_2(%arg0: i32, %arg1: i32) -> (i32, i32, i32) {
    %c0_i32 = arith.constant 0 : i32
    %c0_i32_0 = arith.constant 0 : i32
    return %arg0, %c0_i32, %arg1 : i32, i32, i32
  }
  func.func @transform_3(%arg0: i32, %arg1: i32) -> (i32, i32, i32) {
    %c0_i32 = arith.constant 0 : i32
    %c0_i32_0 = arith.constant 0 : i32
    return %arg0, %c0_i32, %arg1 : i32, i32, i32
  }
}

module attributes {stable_mosaic.version = 11 : i64} {
  func.func @_spatial_conv_kernel(%arg0: i32, %arg1: memref<1x224x532xf32, #tpu.memory_space<vmem>>, %arg2: memref<7x532x32xf32, #tpu.memory_space<vmem>>, %arg3: memref<1x128x32xf32, #tpu.memory_space<vmem>>, %arg4: memref<1x128x32xf32, #tpu.memory_space<vmem>>, %arg5: memref<1x128x32xf32, #tpu.memory_space<vmem>>) attributes {dimension_semantics = [#tpu.dimension_semantics<parallel>], iteration_bounds = array<i64: 2>, scalar_prefetch = 0 : i64, scratch_operands = 0 : i64, tpu.core_type = #tpu.core_type<tc>, window_params = [{transform_indices = @transform_0, window_bounds = array<i64: 1, 224, 532>}, {pipeline_mode = #tpu.pipeline_mode<synchronous>, transform_indices = @transform_1, window_bounds = array<i64: 7, 532, 32>}, {transform_indices = @transform_2, window_bounds = array<i64: 1, 128, 32>}, {transform_indices = @transform_3, window_bounds = array<i64: 1, 128, 32>}, {transform_indices = @transform_4, window_bounds = array<i64: 1, 128, 32>}]} {
    %cst = arith.constant 0.000000e+00 : f32
    %0 = vector.broadcast %cst : f32 to vector<128x32xf32>
    %c0 = arith.constant 0 : index
    %c0_0 = arith.constant 0 : index
    %c0_1 = arith.constant 0 : index
    %1 = vector.load %arg1[%c0, %c0_0, %c0_1] : memref<1x224x532xf32, #tpu.memory_space<vmem>>, vector<1x128x532xf32>
    %2 = vector.shape_cast %1 : vector<1x128x532xf32> to vector<128x532xf32>
    %c0_2 = arith.constant 0 : index
    %c0_3 = arith.constant 0 : index
    %c0_4 = arith.constant 0 : index
    %3 = vector.load %arg2[%c0_2, %c0_3, %c0_4] : memref<7x532x32xf32, #tpu.memory_space<vmem>>, vector<1x532x32xf32>
    %4 = vector.shape_cast %3 : vector<1x532x32xf32> to vector<532x32xf32>
    %cst_5 = arith.constant dense<0.000000e+00> : vector<128x32xf32>
    %5 = tpu.matmul %2, %4, %cst_5 {dimension_numbers = #tpu.dot_dimension_numbers<[1], [0], [0], [1], [0, 0, 1, 1], [], []>} : vector<128x532xf32>, vector<532x32xf32>, vector<128x32xf32> -> vector<128x32xf32>
    %6 = arith.addf %0, %5 : vector<128x32xf32>
    %c0_6 = arith.constant 0 : index
    %c16 = arith.constant 16 : index
    %c0_7 = arith.constant 0 : index
    %7 = vector.load %arg1[%c0_6, %c16, %c0_7] : memref<1x224x532xf32, #tpu.memory_space<vmem>>, vector<1x128x532xf32>
    %8 = vector.shape_cast %7 : vector<1x128x532xf32> to vector<128x532xf32>
    %c1 = arith.constant 1 : index
    %c0_8 = arith.constant 0 : index
    %c0_9 = arith.constant 0 : index
    %9 = vector.load %arg2[%c1, %c0_8, %c0_9] : memref<7x532x32xf32, #tpu.memory_space<vmem>>, vector<1x532x32xf32>
    %10 = vector.shape_cast %9 : vector<1x532x32xf32> to vector<532x32xf32>
    %cst_10 = arith.constant dense<0.000000e+00> : vector<128x32xf32>
    %11 = tpu.matmul %8, %10, %cst_10 {dimension_numbers = #tpu.dot_dimension_numbers<[1], [0], [0], [1], [0, 0, 1, 1], [], []>} : vector<128x532xf32>, vector<532x32xf32>, vector<128x32xf32> -> vector<128x32xf32>
    %12 = arith.addf %6, %11 : vector<128x32xf32>
    %c0_11 = arith.constant 0 : index
    %c32 = arith.constant 32 : index
    %c0_12 = arith.constant 0 : index
    %13 = vector.load %arg1[%c0_11, %c32, %c0_12] : memref<1x224x532xf32, #tpu.memory_space<vmem>>, vector<1x128x532xf32>
    %14 = vector.shape_cast %13 : vector<1x128x532xf32> to vector<128x532xf32>
    %c2 = arith.constant 2 : index
    %c0_13 = arith.constant 0 : index
    %c0_14 = arith.constant 0 : index
    %15 = vector.load %arg2[%c2, %c0_13, %c0_14] : memref<7x532x32xf32, #tpu.memory_space<vmem>>, vector<1x532x32xf32>
    %16 = vector.shape_cast %15 : vector<1x532x32xf32> to vector<532x32xf32>
    %cst_15 = arith.constant dense<0.000000e+00> : vector<128x32xf32>
    %17 = tpu.matmul %14, %16, %cst_15 {dimension_numbers = #tpu.dot_dimension_numbers<[1], [0], [0], [1], [0, 0, 1, 1], [], []>} : vector<128x532xf32>, vector<532x32xf32>, vector<128x32xf32> -> vector<128x32xf32>
    %18 = arith.addf %12, %17 : vector<128x32xf32>
    %c0_16 = arith.constant 0 : index
    %c48 = arith.constant 48 : index
    %c0_17 = arith.constant 0 : index
    %19 = vector.load %arg1[%c0_16, %c48, %c0_17] : memref<1x224x532xf32, #tpu.memory_space<vmem>>, vector<1x128x532xf32>
    %20 = vector.shape_cast %19 : vector<1x128x532xf32> to vector<128x532xf32>
    %c3 = arith.constant 3 : index
    %c0_18 = arith.constant 0 : index
    %c0_19 = arith.constant 0 : index
    %21 = vector.load %arg2[%c3, %c0_18, %c0_19] : memref<7x532x32xf32, #tpu.memory_space<vmem>>, vector<1x532x32xf32>
    %22 = vector.shape_cast %21 : vector<1x532x32xf32> to vector<532x32xf32>
    %cst_20 = arith.constant dense<0.000000e+00> : vector<128x32xf32>
    %23 = tpu.matmul %20, %22, %cst_20 {dimension_numbers = #tpu.dot_dimension_numbers<[1], [0], [0], [1], [0, 0, 1, 1], [], []>} : vector<128x532xf32>, vector<532x32xf32>, vector<128x32xf32> -> vector<128x32xf32>
    %24 = arith.addf %18, %23 : vector<128x32xf32>
    %c0_21 = arith.constant 0 : index
    %c64 = arith.constant 64 : index
    %c0_22 = arith.constant 0 : index
    %25 = vector.load %arg1[%c0_21, %c64, %c0_22] : memref<1x224x532xf32, #tpu.memory_space<vmem>>, vector<1x128x532xf32>
    %26 = vector.shape_cast %25 : vector<1x128x532xf32> to vector<128x532xf32>
    %c4 = arith.constant 4 : index
    %c0_23 = arith.constant 0 : index
    %c0_24 = arith.constant 0 : index
    %27 = vector.load %arg2[%c4, %c0_23, %c0_24] : memref<7x532x32xf32, #tpu.memory_space<vmem>>, vector<1x532x32xf32>
    %28 = vector.shape_cast %27 : vector<1x532x32xf32> to vector<532x32xf32>
    %cst_25 = arith.constant dense<0.000000e+00> : vector<128x32xf32>
    %29 = tpu.matmul %26, %28, %cst_25 {dimension_numbers = #tpu.dot_dimension_numbers<[1], [0], [0], [1], [0, 0, 1, 1], [], []>} : vector<128x532xf32>, vector<532x32xf32>, vector<128x32xf32> -> vector<128x32xf32>
    %30 = arith.addf %24, %29 : vector<128x32xf32>
    %c0_26 = arith.constant 0 : index
    %c80 = arith.constant 80 : index
    %c0_27 = arith.constant 0 : index
    %31 = vector.load %arg1[%c0_26, %c80, %c0_27] : memref<1x224x532xf32, #tpu.memory_space<vmem>>, vector<1x128x532xf32>
    %32 = vector.shape_cast %31 : vector<1x128x532xf32> to vector<128x532xf32>
    %c5 = arith.constant 5 : index
    %c0_28 = arith.constant 0 : index
    %c0_29 = arith.constant 0 : index
    %33 = vector.load %arg2[%c5, %c0_28, %c0_29] : memref<7x532x32xf32, #tpu.memory_space<vmem>>, vector<1x532x32xf32>
    %34 = vector.shape_cast %33 : vector<1x532x32xf32> to vector<532x32xf32>
    %cst_30 = arith.constant dense<0.000000e+00> : vector<128x32xf32>
    %35 = tpu.matmul %32, %34, %cst_30 {dimension_numbers = #tpu.dot_dimension_numbers<[1], [0], [0], [1], [0, 0, 1, 1], [], []>} : vector<128x532xf32>, vector<532x32xf32>, vector<128x32xf32> -> vector<128x32xf32>
    %36 = arith.addf %30, %35 : vector<128x32xf32>
    %c0_31 = arith.constant 0 : index
    %c96 = arith.constant 96 : index
    %c0_32 = arith.constant 0 : index
    %37 = vector.load %arg1[%c0_31, %c96, %c0_32] : memref<1x224x532xf32, #tpu.memory_space<vmem>>, vector<1x128x532xf32>
    %38 = vector.shape_cast %37 : vector<1x128x532xf32> to vector<128x532xf32>
    %c6 = arith.constant 6 : index
    %c0_33 = arith.constant 0 : index
    %c0_34 = arith.constant 0 : index
    %39 = vector.load %arg2[%c6, %c0_33, %c0_34] : memref<7x532x32xf32, #tpu.memory_space<vmem>>, vector<1x532x32xf32>
    %40 = vector.shape_cast %39 : vector<1x532x32xf32> to vector<532x32xf32>
    %cst_35 = arith.constant dense<0.000000e+00> : vector<128x32xf32>
    %41 = tpu.matmul %38, %40, %cst_35 {dimension_numbers = #tpu.dot_dimension_numbers<[1], [0], [0], [1], [0, 0, 1, 1], [], []>} : vector<128x532xf32>, vector<532x32xf32>, vector<128x32xf32> -> vector<128x32xf32>
    %42 = arith.addf %36, %41 : vector<128x32xf32>
    %43 = arith.negf %42 : vector<128x32xf32>
    %44 = math.exp %43 : vector<128x32xf32>
    %cst_36 = arith.constant 1.000000e+00 : f32
    %45 = vector.broadcast %cst_36 : f32 to vector<128x32xf32>
    %46 = arith.addf %45, %44 : vector<128x32xf32>
    %47 = arith.divf %45, %46 : vector<128x32xf32>
    %c0_37 = arith.constant 0 : index
    %c0_38 = arith.constant 0 : index
    %c0_39 = arith.constant 0 : index
    %48 = vector.load %arg4[%c0_37, %c0_38, %c0_39] : memref<1x128x32xf32, #tpu.memory_space<vmem>>, vector<1x128x32xf32>
    %49 = vector.shape_cast %48 : vector<1x128x32xf32> to vector<128x32xf32>
    %50 = vector.shape_cast %47 : vector<128x32xf32> to vector<1x128x32xf32>
    tpu.vector_store %arg4[%c0_37, %c0_38, %c0_39], %50 {strides = array<i32>} : memref<1x128x32xf32, #tpu.memory_space<vmem>>, vector<1x128x32xf32>,
    %c0_40 = arith.constant 0 : index
    %c0_41 = arith.constant 0 : index
    %c0_42 = arith.constant 0 : index
    %51 = vector.load %arg3[%c0_40, %c0_41, %c0_42] : memref<1x128x32xf32, #tpu.memory_space<vmem>>, vector<1x128x32xf32>
    %52 = vector.shape_cast %51 : vector<1x128x32xf32> to vector<128x32xf32>
    %53 = arith.mulf %52, %47 : vector<128x32xf32>
    %c0_43 = arith.constant 0 : index
    %c0_44 = arith.constant 0 : index
    %c0_45 = arith.constant 0 : index
    %54 = vector.load %arg5[%c0_43, %c0_44, %c0_45] : memref<1x128x32xf32, #tpu.memory_space<vmem>>, vector<1x128x32xf32>
    %55 = vector.shape_cast %54 : vector<1x128x32xf32> to vector<128x32xf32>
    %56 = vector.shape_cast %53 : vector<128x32xf32> to vector<1x128x32xf32>
    tpu.vector_store %arg5[%c0_43, %c0_44, %c0_45], %56 {strides = array<i32>} : memref<1x128x32xf32, #tpu.memory_space<vmem>>, vector<1x128x32xf32>,
    return
  }
  func.func @transform_0(%arg0: i32) -> (i32, i32, i32) {
    %c0_i32 = arith.constant 0 : i32
    %c0_i32_0 = arith.constant 0 : i32
    %c0_i32_1 = arith.constant 0 : i32
    return %arg0, %c0_i32, %c0_i32_0 : i32, i32, i32
  }
  func.func @transform_1(%arg0: i32) -> (i32, i32, i32) {
    %c0_i32 = arith.constant 0 : i32
    %c0_i32_0 = arith.constant 0 : i32
    %c0_i32_1 = arith.constant 0 : i32
    %c0_i32_2 = arith.constant 0 : i32
    return %c0_i32, %c0_i32_0, %c0_i32_1 : i32, i32, i32
  }
  func.func @transform_2(%arg0: i32) -> (i32, i32, i32) {
    %c0_i32 = arith.constant 0 : i32
    %c0_i32_0 = arith.constant 0 : i32
    %c0_i32_1 = arith.constant 0 : i32
    return %arg0, %c0_i32, %c0_i32_0 : i32, i32, i32
  }
  func.func @transform_3(%arg0: i32) -> (i32, i32, i32) {
    %c0_i32 = arith.constant 0 : i32
    %c0_i32_0 = arith.constant 0 : i32
    %c0_i32_1 = arith.constant 0 : i32
    return %arg0, %c0_i32, %c0_i32_0 : i32, i32, i32
  }
  func.func @transform_4(%arg0: i32) -> (i32, i32, i32) {
    %c0_i32 = arith.constant 0 : i32
    %c0_i32_0 = arith.constant 0 : i32
    %c0_i32_1 = arith.constant 0 : i32
    return %arg0, %c0_i32, %c0_i32_0 : i32, i32, i32
  }
}

module attributes {stable_mosaic.version = 11 : i64} {
  func.func @_apply_kernel(%arg0: i32, %arg1: i32, %arg2: memref<1x32x2048xf32, #tpu.memory_space<vmem>>, %arg3: memref<1x32x1xf32, #tpu.memory_space<vmem>>, %arg4: memref<1x1x2048xf32, #tpu.memory_space<vmem>>, %arg5: memref<1x32x2048xf32, #tpu.memory_space<vmem>>) attributes {dimension_semantics = [#tpu.dimension_semantics<parallel>, #tpu.dimension_semantics<parallel>], iteration_bounds = array<i64: 2, 2>, scalar_prefetch = 0 : i64, scratch_operands = 0 : i64, tpu.core_type = #tpu.core_type<tc>, window_params = [{transform_indices = @transform_0, window_bounds = array<i64: 1, 32, 2048>}, {transform_indices = @transform_1, window_bounds = array<i64: 1, 32, 1>}, {transform_indices = @transform_2, window_bounds = array<i64: 1, 1, 2048>}, {transform_indices = @transform_3, window_bounds = array<i64: 1, 32, 2048>}]} {
    %c0 = arith.constant 0 : index
    %c0_0 = arith.constant 0 : index
    %c0_1 = arith.constant 0 : index
    %0 = vector.load %arg2[%c0, %c0_0, %c0_1] : memref<1x32x2048xf32, #tpu.memory_space<vmem>>, vector<1x32x2048xf32>
    %1 = vector.shape_cast %0 : vector<1x32x2048xf32> to vector<32x2048xf32>
    %c0_2 = arith.constant 0 : index
    %c0_3 = arith.constant 0 : index
    %c0_4 = arith.constant 0 : index
    %2 = vector.load %arg3[%c0_2, %c0_3, %c0_4] : memref<1x32x1xf32, #tpu.memory_space<vmem>>, vector<1x32x1xf32>
    %3 = vector.shape_cast %2 : vector<1x32x1xf32> to vector<32x1xf32>
    %4 = vector.broadcast %3 : vector<32x1xf32> to vector<32x2048xf32>
    %5 = arith.mulf %1, %4 : vector<32x2048xf32>
    %c0_5 = arith.constant 0 : index
    %c0_6 = arith.constant 0 : index
    %c0_7 = arith.constant 0 : index
    %6 = vector.load %arg4[%c0_5, %c0_6, %c0_7] : memref<1x1x2048xf32, #tpu.memory_space<vmem>>, vector<1x1x2048xf32>
    %7 = vector.shape_cast %6 : vector<1x1x2048xf32> to vector<1x2048xf32>
    %8 = vector.broadcast %7 : vector<1x2048xf32> to vector<32x2048xf32>
    %9 = arith.mulf %5, %8 : vector<32x2048xf32>
    %c0_8 = arith.constant 0 : index
    %c0_9 = arith.constant 0 : index
    %c0_10 = arith.constant 0 : index
    %10 = vector.load %arg5[%c0_8, %c0_9, %c0_10] : memref<1x32x2048xf32, #tpu.memory_space<vmem>>, vector<1x32x2048xf32>
    %11 = vector.shape_cast %10 : vector<1x32x2048xf32> to vector<32x2048xf32>
    %12 = vector.shape_cast %9 : vector<32x2048xf32> to vector<1x32x2048xf32>
    tpu.vector_store %arg5[%c0_8, %c0_9, %c0_10], %12 {strides = array<i32>} : memref<1x32x2048xf32, #tpu.memory_space<vmem>>, vector<1x32x2048xf32>,
    return
  }
  func.func @transform_0(%arg0: i32, %arg1: i32) -> (i32, i32, i32) {
    %c0_i32 = arith.constant 0 : i32
    %c0_i32_0 = arith.constant 0 : i32
    return %arg0, %c0_i32, %arg1 : i32, i32, i32
  }
  func.func @transform_1(%arg0: i32, %arg1: i32) -> (i32, i32, i32) {
    %c0_i32 = arith.constant 0 : i32
    %c0_i32_0 = arith.constant 0 : i32
    %c0_i32_1 = arith.constant 0 : i32
    return %arg0, %c0_i32, %c0_i32_0 : i32, i32, i32
  }
  func.func @transform_2(%arg0: i32, %arg1: i32) -> (i32, i32, i32) {
    %c0_i32 = arith.constant 0 : i32
    %c0_i32_0 = arith.constant 0 : i32
    return %arg0, %c0_i32, %arg1 : i32, i32, i32
  }
  func.func @transform_3(%arg0: i32, %arg1: i32) -> (i32, i32, i32) {
    %c0_i32 = arith.constant 0 : i32
    %c0_i32_0 = arith.constant 0 : i32
    return %arg0, %c0_i32, %arg1 : i32, i32, i32
  }
}

</mosaic_0001>

<llo_original>
// kernel: cbam3d_forward.4
$region0: #{cbam3d_forward.4}
  #allocation0 [shape = 'u32[]', space=smem, size = 0x4, offset = 0x4, fixed_abs, tag = 'smem constant byte address 0x4 - core index']
  #allocation1 [shape = 'u32[144,128]{1,0:T(1,128)}', space=vmem, size = 0x12000, scoped, tag = 'internal scratch']
  %s0 = inlined_call_operand.vmem [shape: f32[2,32,4096], index: 0, kind: input, shape index: {}]
  %s1 = inlined_call_operand.vmem [shape: f32[2,32,1], index: 1, kind: output, shape index: {0}]
  %s2 = inlined_call_operand.vmem [shape: f32[2,32,1], index: 2, kind: output, shape index: {1}]
  %3 = xla_tuple %s1, %s2
  %s4 = sld [smem:[#allocation0]]
  $region76: #{cbam3d_forward.4} parent=0
    _
  %s6 = ssub.s32 1, %s4
  %s7 = scalar_select 0, %s6, %s4
  $region1: #{cbam3d_forward.4} parent=0
    #allocation2 [shape = 'u8[524288]{0}', space=vmem, size = 0x80000, scoped, tag = 'input window, operand 0']
    loop: start=0, step=1, limit=6
    $region2: #{cbam3d_forward.4} parent=1 // loop_pre_header
      _
    $region3: #{cbam3d_forward.4} parent=1 // loop_header
      %s9 = sphi 0, %s13
      %p10 = scmp.ge.s32.totalorder %s9, 6
      %s16 = sphi 0, %s28
      %s17 = sphi 0, %s24
      %s18 = sphi 0, %s16
      %s19 = sphi 0, %s17
      %s20 = sphi 0, %s18
      %s21 = sphi 0, %s19
      %s33 = sphi 0, %s35
      %s36 = sphi 0, %s33
      %s37 = sphi 0, %s36
      %s53 = sphi 0, %s37
      %s59 = sphi 0, %s61
      %s62 = sphi 0, %s59
      %s63 = sphi 0, %s62
      %s79 = sphi 0, %s63
      %s85 = sphi 0, %s87
      %s88 = sphi 0, %s85
      %s89 = sphi 0, %s88
      %s105 = sphi 0, %s89
    $region4: #{cbam3d_forward.4} parent=1 // loop_header_branch
      %12 = sbr.rel (%p10) target = $region8
    $region5: #{cbam3d_forward.4} parent=1 // loop_body
      %s14 = ssub.s32 %s9, 1
      %s15 = ssub.s32 %s9, 2
      %s22 = sadd.s32 1, %s17
      %p23 = scmp.ge.s32.totalorder %s22, 2
      %s24 = scalar_select %p23, 0, %s22
      %s25 = sadd.s32 1, %s16
      %s26 = scalar_select %p23, %s25, %s16
      %p27 = scmp.ge.s32.totalorder %s26, 2
      %s28 = scalar_select %p27, 0, %s26
      %s29 = ssub.s32 %s16, %s28
      %s30 = ssub.s32 %s17, %s24
      %s31 = sor.u32 %s29, %s30
      %p32 = scmp.eq.s32.totalorder %s31, 0
      %s34 = sadd.s32 %s33, 1
      %s35 = scalar_select %p32, %s33, %s34
      %p38 = pneg %p32
      %p39 = scmp.eq.s32.totalorder %s9, 3
      %p40 = por %p38, %p39
      %p41 = scmp.ne.s32.totalorder %s33, %s36
      %p42 = scmp.eq.s32.totalorder %s9, 0
      %p43 = por %p41, %p42
      %p44 = scmp.ne.s32.totalorder %s33, %s36
      %p45 = scmp.eq.s32.totalorder %s14, 3
      %p46 = por %p44, %p45
      %p47 = scmp.ne.s32.totalorder %s36, %s37
      %p48 = scmp.eq.s32.totalorder %s14, 0
      %p49 = por %p47, %p48
      %p50 = scmp.ne.s32.totalorder %s36, %s37
      %p51 = scmp.eq.s32.totalorder %s15, 3
      %p52 = por %p50, %p51
      %p54 = scmp.ne.s32.totalorder %s37, %s53
      %p55 = scmp.eq.s32.totalorder %s15, 0
      %p56 = por %p54, %p55
      %s57 = ssub.s32 %s16, %s28
      %p58 = scmp.eq.s32.totalorder %s57, 0
      %s60 = sadd.s32 %s59, 1
      %s61 = scalar_select %p58, %s59, %s60
      %p64 = pneg %p58
      %p65 = scmp.eq.s32.totalorder %s9, 3
      %p66 = por %p64, %p65
      %p67 = scmp.ne.s32.totalorder %s59, %s62
      %p68 = scmp.eq.s32.totalorder %s9, 0
      %p69 = por %p67, %p68
      %p70 = scmp.ne.s32.totalorder %s59, %s62
      %p71 = scmp.eq.s32.totalorder %s14, 3
      %p72 = por %p70, %p71
      %p73 = scmp.ne.s32.totalorder %s62, %s63
      %p74 = scmp.eq.s32.totalorder %s14, 0
      %p75 = por %p73, %p74
      %p76 = scmp.ne.s32.totalorder %s62, %s63
      %p77 = scmp.eq.s32.totalorder %s15, 3
      %p78 = por %p76, %p77
      %p80 = scmp.ne.s32.totalorder %s63, %s79
      %p81 = scmp.eq.s32.totalorder %s15, 0
      %p82 = por %p80, %p81
      %s83 = ssub.s32 %s16, %s28
      %p84 = scmp.eq.s32.totalorder %s83, 0
      %s86 = sadd.s32 %s85, 1
      %s87 = scalar_select %p84, %s85, %s86
      %p90 = pneg %p84
      %p91 = scmp.eq.s32.totalorder %s9, 3
      %p92 = por %p90, %p91
      %p93 = scmp.ne.s32.totalorder %s85, %s88
      %p94 = scmp.eq.s32.totalorder %s9, 0
      %p95 = por %p93, %p94
      %p96 = scmp.ne.s32.totalorder %s85, %s88
      %p97 = scmp.eq.s32.totalorder %s14, 3
      %p98 = por %p96, %p97
      %p99 = scmp.ne.s32.totalorder %s88, %s89
      %p100 = scmp.eq.s32.totalorder %s14, 0
      %p101 = por %p99, %p100
      %p102 = scmp.ne.s32.totalorder %s88, %s89
      %p103 = scmp.eq.s32.totalorder %s15, 3
      %p104 = por %p102, %p103
      %p106 = scmp.ne.s32.totalorder %s89, %s105
      %p107 = scmp.eq.s32.totalorder %s15, 0
      %p108 = por %p106, %p107
      %p109 = scmp.le.s32.totalorder 1, %s9
      %p110 = scmp.lt.s32.totalorder %s9, 5
      %p111 = pnand %p109, %p110
      %p112 = pneg %p111
      // Predicated region
      $region9: #{cbam3d_forward.4} parent=5 // pred_check
        _
      $region10: #{cbam3d_forward.4} parent=5 // pred_check_branch
        %114 = sbr.rel (%p111) target = $region12
      $region11: #{cbam3d_forward.4} parent=5 // pred_region
        %s115 = ssub.s32 %s9, 1
      $region12: #{cbam3d_forward.4} parent=5 // pred_fallthru
        _
      %p116 = scmp.lt.s32.totalorder %s9, 4
      // Predicated region
      $region13: #{cbam3d_forward.4} parent=5 // pred_check
        %p117 = pneg %p116
      $region14: #{cbam3d_forward.4} parent=5 // pred_check_branch
        %119 = sbr.rel (%p117) target = $region16
      $region15: #{cbam3d_forward.4} parent=5 // pred_region
        // Predicated region
        $region17: #{cbam3d_forward.4} parent=15 // pred_check
          %p120 = pneg %p43
        $region18: #{cbam3d_forward.4} parent=15 // pred_check_branch
          %122 = sbr.rel (%p120) target = $region20
        $region19: #{cbam3d_forward.4} parent=15 // pred_region
          %s123 = sand.u32 %s33, 1
          %s124 = sand.u32 %s33, 1
          %s125 = smul.addr %s124, 512
          %s126 = scalar_lea.vmem [#allocation2], %s125
          %s127 = smul.u32 16, %s17
          %s128 = smul.addr %s16, 128
          %s129 = sadd.s32 %s127, %s128
          %s130 = smul.addr %s129, 8
          %s131 = scalar_lea.vmem %s0, %s130
          // Predicated region
          $region21: #{cbam3d_forward.4} parent=19 // pred_check
            _
          $region22: #{cbam3d_forward.4} parent=19 // pred_check_branch
            %133 = sbr.rel (0) target = $region24
          $region23: #{cbam3d_forward.4} parent=19 // pred_region
            // Predicated region
            $region25: #{cbam3d_forward.4} parent=23 // pred_check
              _
            $region26: #{cbam3d_forward.4} parent=23 // pred_check_branch
              %135 = sbr.rel (0) target = $region28
            $region27: #{cbam3d_forward.4} parent=23 // pred_region
              loop: start=0, step=1, limit=1
              $region29: #{cbam3d_forward.4} parent=27 // loop_pre_header
                _
              $region30: #{cbam3d_forward.4} parent=27 // loop_header
                %s137 = sphi 0, %s141
                %p138 = scmp.ge.s32.totalorder %s137, 1
                %s142 = sphi %s131, %s131
                %s143 = sphi %s126, %s126
              $region31: #{cbam3d_forward.4} parent=27 // loop_header_branch
                %140 = sbr.rel (%p138) target = $region35
              $region32: #{cbam3d_forward.4} parent=27 // loop_body
                %v144 = vld [vmem:[%s142] sm:$0xff]
                %145 = vst [vmem:[%s143] sm:$0xff] %v144
                %v146 = vld [vmem:[%s142 + $0x8] sm:$0xff]
                %147 = vst [vmem:[%s143 + $0x8] sm:$0xff] %v146
                %v148 = vld [vmem:[%s142 + $0x10] sm:$0xff]
                %149 = vst [vmem:[%s143 + $0x10] sm:$0xff] %v148
                %v150 = vld [vmem:[%s142 + $0x18] sm:$0xff]
                %151 = vst [vmem:[%s143 + $0x18] sm:$0xff] %v150
                %v152 = vld [vmem:[%s142 + $0x20] sm:$0xff]
                %153 = vst [vmem:[%s143 + $0x20] sm:$0xff] %v152
                %v154 = vld [vmem:[%s142 + $0x28] sm:$0xff]
                %155 = vst [vmem:[%s143 + $0x28] sm:$0xff] %v154
                %v156 = vld [vmem:[%s142 + $0x30] sm:$0xff]
                %157 = vst [vmem:[%s143 + $0x30] sm:$0xff] %v156
                %v158 = vld [vmem:[%s142 + $0x38] sm:$0xff]
                %159 = vst [vmem:[%s143 + $0x38] sm:$0xff] %v158
                %v160 = vld [vmem:[%s142 + $0x40] sm:$0xff]
                %161 = vst [vmem:[%s143 + $0x40] sm:$0xff] %v160
                %v162 = vld [vmem:[%s142 + $0x48] sm:$0xff]
                %163 = vst [vmem:[%s143 + $0x48] sm:$0xff] %v162
                %v164 = vld [vmem:[%s142 + $0x50] sm:$0xff]
                %165 = vst [vmem:[%s143 + $0x50] sm:$0xff] %v164
                %v166 = vld [vmem:[%s142 + $0x58] sm:$0xff]
                %167 = vst [vmem:[%s143 + $0x58] sm:$0xff] %v166
                %v168 = vld [vmem:[%s142 + $0x60] sm:$0xff]
                %169 = vst [vmem:[%s143 + $0x60] sm:$0xff] %v168
                %v170 = vld [vmem:[%s142 + $0x68] sm:$0xff]
                %171 = vst [vmem:[%s143 + $0x68] sm:$0xff] %v170
                %v172 = vld [vmem:[%s142 + $0x70] sm:$0xff]
                %173 = vst [vmem:[%s143 + $0x70] sm:$0xff] %v172
                %v174 = vld [vmem:[%s142 + $0x78] sm:$0xff]
                %175 = vst [vmem:[%s143 + $0x78] sm:$0xff] %v174
                %v176 = vld [vmem:[%s142 + $0x100] sm:$0xff]
                %177 = vst [vmem:[%s143 + $0x80] sm:$0xff] %v176
                %v178 = vld [vmem:[%s142 + $0x108] sm:$0xff]
                %179 = vst [vmem:[%s143 + $0x88] sm:$0xff] %v178
                %v180 = vld [vmem:[%s142 + $0x110] sm:$0xff]
                %181 = vst [vmem:[%s143 + $0x90] sm:$0xff] %v180
                %v182 = vld [vmem:[%s142 + $0x118] sm:$0xff]
                %183 = vst [vmem:[%s143 + $0x98] sm:$0xff] %v182
                %v184 = vld [vmem:[%s142 + $0x120] sm:$0xff]
                %185 = vst [vmem:[%s143 + $0xa0] sm:$0xff] %v184
                %v186 = vld [vmem:[%s142 + $0x128] sm:$0xff]
                %187 = vst [vmem:[%s143 + $0xa8] sm:$0xff] %v186
                %v188 = vld [vmem:[%s142 + $0x130] sm:$0xff]
                %189 = vst [vmem:[%s143 + $0xb0] sm:$0xff] %v188
                %v190 = vld [vmem:[%s142 + $0x138] sm:$0xff]
                %191 = vst [vmem:[%s143 + $0xb8] sm:$0xff] %v190
                %v192 = vld [vmem:[%s142 + $0x140] sm:$0xff]
                %193 = vst [vmem:[%s143 + $0xc0] sm:$0xff] %v192
                %v194 = vld [vmem:[%s142 + $0x148] sm:$0xff]
                %195 = vst [vmem:[%s143 + $0xc8] sm:$0xff] %v194
                %v196 = vld [vmem:[%s142 + $0x150] sm:$0xff]
                %197 = vst [vmem:[%s143 + $0xd0] sm:$0xff] %v196
                %v198 = vld [vmem:[%s142 + $0x158] sm:$0xff]
                %199 = vst [vmem:[%s143 + $0xd8] sm:$0xff] %v198
                %v200 = vld [vmem:[%s142 + $0x160] sm:$0xff]
                %201 = vst [vmem:[%s143 + $0xe0] sm:$0xff] %v200
                %v202 = vld [vmem:[%s142 + $0x168] sm:$0xff]
                %203 = vst [vmem:[%s143 + $0xe8] sm:$0xff] %v202
                %v204 = vld [vmem:[%s142 + $0x170] sm:$0xff]
                %205 = vst [vmem:[%s143 + $0xf0] sm:$0xff] %v204
                %v206 = vld [vmem:[%s142 + $0x178] sm:$0xff]
                %207 = vst [vmem:[%s143 + $0xf8] sm:$0xff] %v206
                %v208 = vld [vmem:[%s142 + $0x200] sm:$0xff]
                %209 = vst [vmem:[%s143 + $0x100] sm:$0xff] %v208
                %v210 = vld [vmem:[%s142 + $0x208] sm:$0xff]
                %211 = vst [vmem:[%s143 + $0x108] sm:$0xff] %v210
                %v212 = vld [vmem:[%s142 + $0x210] sm:$0xff]
                %213 = vst [vmem:[%s143 + $0x110] sm:$0xff] %v212
                %v214 = vld [vmem:[%s142 + $0x218] sm:$0xff]
                %215 = vst [vmem:[%s143 + $0x118] sm:$0xff] %v214
                %v216 = vld [vmem:[%s142 + $0x220] sm:$0xff]
                %217 = vst [vmem:[%s143 + $0x120] sm:$0xff] %v216
                %v218 = vld [vmem:[%s142 + $0x228] sm:$0xff]
                %219 = vst [vmem:[%s143 + $0x128] sm:$0xff] %v218
                %v220 = vld [vmem:[%s142 + $0x230] sm:$0xff]
                %221 = vst [vmem:[%s143 + $0x130] sm:$0xff] %v220
                %v222 = vld [vmem:[%s142 + $0x238] sm:$0xff]
                %223 = vst [vmem:[%s143 + $0x138] sm:$0xff] %v222
                %v224 = vld [vmem:[%s142 + $0x240] sm:$0xff]
                %225 = vst [vmem:[%s143 + $0x140] sm:$0xff] %v224
                %v226 = vld [vmem:[%s142 + $0x248] sm:$0xff]
                %227 = vst [vmem:[%s143 + $0x148] sm:$0xff] %v226
                %v228 = vld [vmem:[%s142 + $0x250] sm:$0xff]
                %229 = vst [vmem:[%s143 + $0x150] sm:$0xff] %v228
                %v230 = vld [vmem:[%s142 + $0x258] sm:$0xff]
                %231 = vst [vmem:[%s143 + $0x158] sm:$0xff] %v230
                %v232 = vld [vmem:[%s142 + $0x260] sm:$0xff]
                %233 = vst [vmem:[%s143 + $0x160] sm:$0xff] %v232
                %v234 = vld [vmem:[%s142 + $0x268] sm:$0xff]
                %235 = vst [vmem:[%s143 + $0x168] sm:$0xff] %v234
                %v236 = vld [vmem:[%s142 + $0x270] sm:$0xff]
                %237 = vst [vmem:[%s143 + $0x170] sm:$0xff] %v236
                %v238 = vld [vmem:[%s142 + $0x278] sm:$0xff]
                %239 = vst [vmem:[%s143 + $0x178] sm:$0xff] %v238
                %v240 = vld [vmem:[%s142 + $0x300] sm:$0xff]
                %241 = vst [vmem:[%s143 + $0x180] sm:$0xff] %v240
                %v242 = vld [vmem:[%s142 + $0x308] sm:$0xff]
                %243 = vst [vmem:[%s143 + $0x188] sm:$0xff] %v242
                %v244 = vld [vmem:[%s142 + $0x310] sm:$0xff]
                %245 = vst [vmem:[%s143 + $0x190] sm:$0xff] %v244
                %v246 = vld [vmem:[%s142 + $0x318] sm:$0xff]
                %247 = vst [vmem:[%s143 + $0x198] sm:$0xff] %v246
                %v248 = vld [vmem:[%s142 + $0x320] sm:$0xff]
                %249 = vst [vmem:[%s143 + $0x1a0] sm:$0xff] %v248
                %v250 = vld [vmem:[%s142 + $0x328] sm:$0xff]
                %251 = vst [vmem:[%s143 + $0x1a8] sm:$0xff] %v250
                %v252 = vld [vmem:[%s142 + $0x330] sm:$0xff]
                %253 = vst [vmem:[%s143 + $0x1b0] sm:$0xff] %v252
                %v254 = vld [vmem:[%s142 + $0x338] sm:$0xff]
                %255 = vst [vmem:[%s143 + $0x1b8] sm:$0xff] %v254
                %v256 = vld [vmem:[%s142 + $0x340] sm:$0xff]
                %257 = vst [vmem:[%s143 + $0x1c0] sm:$0xff] %v256
                %v258 = vld [vmem:[%s142 + $0x348] sm:$0xff]
                %259 = vst [vmem:[%s143 + $0x1c8] sm:$0xff] %v258
                %v260 = vld [vmem:[%s142 + $0x350] sm:$0xff]
                %261 = vst [vmem:[%s143 + $0x1d0] sm:$0xff] %v260
                %v262 = vld [vmem:[%s142 + $0x358] sm:$0xff]
                %263 = vst [vmem:[%s143 + $0x1d8] sm:$0xff] %v262
                %v264 = vld [vmem:[%s142 + $0x360] sm:$0xff]
                %265 = vst [vmem:[%s143 + $0x1e0] sm:$0xff] %v264
                %v266 = vld [vmem:[%s142 + $0x368] sm:$0xff]
                %267 = vst [vmem:[%s143 + $0x1e8] sm:$0xff] %v266
                %v268 = vld [vmem:[%s142 + $0x370] sm:$0xff]
                %269 = vst [vmem:[%s143 + $0x1f0] sm:$0xff] %v268
                %v270 = vld [vmem:[%s142 + $0x378] sm:$0xff]
                %271 = vst [vmem:[%s143 + $0x1f8] sm:$0xff] %v270
              $region33: #{cbam3d_forward.4} parent=27 // loop_footer
                %s141 = sadd.s32 1, %s137
              $region34: #{cbam3d_forward.4} parent=27 // loop_footer_branch
                %136 = sbr.rel target = $region30
              $region35: #{cbam3d_forward.4} parent=27 // loop_exit
                _
            $region28: #{cbam3d_forward.4} parent=23 // pred_fallthru
              _
            // Predicated region
            $region36: #{cbam3d_forward.4} parent=23 // pred_check
              _
            $region37: #{cbam3d_forward.4} parent=23 // pred_check_branch
              %273 = sbr.rel target = $region39
            $region38: #{cbam3d_forward.4} parent=23 // pred_region
              _
            $region39: #{cbam3d_forward.4} parent=23 // pred_fallthru
              _
          $region24: #{cbam3d_forward.4} parent=19 // pred_fallthru
            _
          %274 = vnop
        $region20: #{cbam3d_forward.4} parent=15 // pred_fallthru
          _
      $region16: #{cbam3d_forward.4} parent=5 // pred_fallthru
        _
      %p275 = scmp.le.s32.totalorder 1, %s9
      %p276 = scmp.lt.s32.totalorder %s9, 5
      %p277 = pnand %p275, %p276
      %p278 = pneg %p277
      // Predicated region
      $region40: #{cbam3d_forward.4} parent=5 // pred_check
        _
      $region41: #{cbam3d_forward.4} parent=5 // pred_check_branch
        %280 = sbr.rel (%p277) target = $region43
      $region42: #{cbam3d_forward.4} parent=5 // pred_region
        %s281 = ssub.s32 %s9, 1
        %s282 = sand.u32 %s36, 1
        %s283 = sand.u32 %s36, 1
        %s284 = smul.addr %s283, 512
        %s285 = scalar_lea.vmem [#allocation2], %s284
        // Predicated region
        $region44: #{cbam3d_forward.4} parent=42 // pred_check
          %p286 = pneg %p49
        $region45: #{cbam3d_forward.4} parent=42 // pred_check_branch
          %288 = sbr.rel (%p286) target = $region47
        $region46: #{cbam3d_forward.4} parent=42 // pred_region
          _
        $region47: #{cbam3d_forward.4} parent=42 // pred_fallthru
          _
        %s289 = sand.u32 %s36, 1
        %s290 = sand.u32 %s36, 1
        %s291 = smul.addr %s290, 512
        %s292 = scalar_lea.vmem [#allocation2], %s291
        %p293 = pneg %p49
        %p294 = pneg %p46
        %p295 = pneg %p75
        %p296 = pneg %p72
        %p297 = scmp.lt.s32.totalorder %s18, 1
        %s298 = scalar_select %p297, %s18, 1
        %s299 = smul.addr %s298, 4
        %s300 = smul.addr %s299, 8
        %s301 = scalar_lea.vmem %s1, %s300
        %p302 = pneg %p101
        %p303 = pneg %p98
        %p304 = scmp.lt.s32.totalorder %s18, 1
        %s305 = scalar_select %p304, %s18, 1
        %s306 = smul.addr %s305, 4
        %s307 = smul.addr %s306, 8
        %s308 = scalar_lea.vmem %s2, %s307
        %s309 = smul.u32 16, %s19
        %p310 = scmp.lt.s32.totalorder %s18, 1
        %s311 = scalar_select %p310, %s18, 1
        %s312 = smul.addr %s311, 4
        %s313 = smul.addr %s312, 8
        %s314 = scalar_lea.vmem %s1, %s313
        %p315 = scmp.lt.s32.totalorder %s18, 1
        %s316 = scalar_select %p315, %s18, 1
        %s317 = smul.addr %s316, 4
        %s318 = smul.addr %s317, 8
        %s319 = scalar_lea.vmem %s2, %s318
        %v320 = vld [vmem:[%s285] sm:$0xff]
        %v321 = vld [vmem:[%s285 + $0x8] sm:$0xff]
        %v322 = vld [vmem:[%s285 + $0x10] sm:$0xff]
        %v323 = vld [vmem:[%s285 + $0x18] sm:$0xff]
        %v324 = vld [vmem:[%s285 + $0x20] sm:$0xff]
        %v325 = vld [vmem:[%s285 + $0x28] sm:$0xff]
        %v326 = vld [vmem:[%s285 + $0x30] sm:$0xff]
        %v327 = vld [vmem:[%s285 + $0x38] sm:$0xff]
        %v328 = vld [vmem:[%s285 + $0x40] sm:$0xff]
        %v329 = vld [vmem:[%s285 + $0x48] sm:$0xff]
        %v330 = vld [vmem:[%s285 + $0x50] sm:$0xff]
        %v331 = vld [vmem:[%s285 + $0x58] sm:$0xff]
        %v332 = vld [vmem:[%s285 + $0x60] sm:$0xff]
        %v333 = vld [vmem:[%s285 + $0x68] sm:$0xff]
        %v334 = vld [vmem:[%s285 + $0x70] sm:$0xff]
        %v335 = vld [vmem:[%s285 + $0x78] sm:$0xff]
        %v336 = vld [vmem:[%s285 + $0x80] sm:$0xff]
        %v337 = vld [vmem:[%s285 + $0x88] sm:$0xff]
        %v338 = vld [vmem:[%s285 + $0x90] sm:$0xff]
        %v339 = vld [vmem:[%s285 + $0x98] sm:$0xff]
        %v340 = vld [vmem:[%s285 + $0xa0] sm:$0xff]
        %v341 = vld [vmem:[%s285 + $0xa8] sm:$0xff]
        %v342 = vld [vmem:[%s285 + $0xb0] sm:$0xff]
        %v343 = vld [vmem:[%s285 + $0xb8] sm:$0xff]
        %v344 = vld [vmem:[%s285 + $0xc0] sm:$0xff]
        %v345 = vld [vmem:[%s285 + $0xc8] sm:$0xff]
        %v346 = vld [vmem:[%s285 + $0xd0] sm:$0xff]
        %v347 = vld [vmem:[%s285 + $0xd8] sm:$0xff]
        %v348 = vld [vmem:[%s285 + $0xe0] sm:$0xff]
        %v349 = vld [vmem:[%s285 + $0xe8] sm:$0xff]
        %v350 = vld [vmem:[%s285 + $0xf0] sm:$0xff]
        %v351 = vld [vmem:[%s285 + $0xf8] sm:$0xff]
        %v352 = vld [vmem:[%s285 + $0x100] sm:$0xff]
        %v353 = vld [vmem:[%s285 + $0x108] sm:$0xff]
        %v354 = vld [vmem:[%s285 + $0x110] sm:$0xff]
        %v355 = vld [vmem:[%s285 + $0x118] sm:$0xff]
        %v356 = vld [vmem:[%s285 + $0x120] sm:$0xff]
        %v357 = vld [vmem:[%s285 + $0x128] sm:$0xff]
        %v358 = vld [vmem:[%s285 + $0x130] sm:$0xff]
        %v359 = vld [vmem:[%s285 + $0x138] sm:$0xff]
        %v360 = vld [vmem:[%s285 + $0x140] sm:$0xff]
        %v361 = vld [vmem:[%s285 + $0x148] sm:$0xff]
        %v362 = vld [vmem:[%s285 + $0x150] sm:$0xff]
        %v363 = vld [vmem:[%s285 + $0x158] sm:$0xff]
        %v364 = vld [vmem:[%s285 + $0x160] sm:$0xff]
        %v365 = vld [vmem:[%s285 + $0x168] sm:$0xff]
        %v366 = vld [vmem:[%s285 + $0x170] sm:$0xff]
        %v367 = vld [vmem:[%s285 + $0x178] sm:$0xff]
        %v368 = vld [vmem:[%s285 + $0x180] sm:$0xff]
        %v369 = vld [vmem:[%s285 + $0x188] sm:$0xff]
        %v370 = vld [vmem:[%s285 + $0x190] sm:$0xff]
        %v371 = vld [vmem:[%s285 + $0x198] sm:$0xff]
        %v372 = vld [vmem:[%s285 + $0x1a0] sm:$0xff]
        %v373 = vld [vmem:[%s285 + $0x1a8] sm:$0xff]
        %v374 = vld [vmem:[%s285 + $0x1b0] sm:$0xff]
        %v375 = vld [vmem:[%s285 + $0x1b8] sm:$0xff]
        %v376 = vld [vmem:[%s285 + $0x1c0] sm:$0xff]
        %v377 = vld [vmem:[%s285 + $0x1c8] sm:$0xff]
        %v378 = vld [vmem:[%s285 + $0x1d0] sm:$0xff]
        %v379 = vld [vmem:[%s285 + $0x1d8] sm:$0xff]
        %v380 = vld [vmem:[%s285 + $0x1e0] sm:$0xff]
        %v381 = vld [vmem:[%s285 + $0x1e8] sm:$0xff]
        %v382 = vld [vmem:[%s285 + $0x1f0] sm:$0xff]
        %v383 = vld [vmem:[%s285 + $0x1f8] sm:$0xff]
        %v384 = vadd.f32 %v320, %v321
        %v385 = vadd.f32 %v384, %v322
        %v386 = vadd.f32 %v385, %v323
        %v387 = vadd.f32 %v386, %v324
        %v388 = vadd.f32 %v387, %v325
        %v389 = vadd.f32 %v388, %v326
        %v390 = vadd.f32 %v389, %v327
        %v391 = vadd.f32 %v390, %v328
        %v392 = vadd.f32 %v391, %v329
        %v393 = vadd.f32 %v392, %v330
        %v394 = vadd.f32 %v393, %v331
        %v395 = vadd.f32 %v394, %v332
        %v396 = vadd.f32 %v395, %v333
        %v397 = vadd.f32 %v396, %v334
        %v398 = vadd.f32 %v397, %v335
        %399 = vadd.xlane.f32.xlu0 %v398
        %v400 = vpop.xlane.xlu0 %399
        %v401 = vadd.f32 %v336, %v337
        %v402 = vadd.f32 %v401, %v338
        %v403 = vadd.f32 %v402, %v339
        %v404 = vadd.f32 %v403, %v340
        %v405 = vadd.f32 %v404, %v341
        %v406 = vadd.f32 %v405, %v342
        %v407 = vadd.f32 %v406, %v343
        %v408 = vadd.f32 %v407, %v344
        %v409 = vadd.f32 %v408, %v345
        %v410 = vadd.f32 %v409, %v346
        %v411 = vadd.f32 %v410, %v347
        %v412 = vadd.f32 %v411, %v348
        %v413 = vadd.f32 %v412, %v349
        %v414 = vadd.f32 %v413, %v350
        %v415 = vadd.f32 %v414, %v351
        %416 = vadd.xlane.f32.xlu0 %v415
        %v417 = vpop.xlane.xlu0 %416
        %v418 = vadd.f32 %v352, %v353
        %v419 = vadd.f32 %v418, %v354
        %v420 = vadd.f32 %v419, %v355
        %v421 = vadd.f32 %v420, %v356
        %v422 = vadd.f32 %v421, %v357
        %v423 = vadd.f32 %v422, %v358
        %v424 = vadd.f32 %v423, %v359
        %v425 = vadd.f32 %v424, %v360
        %v426 = vadd.f32 %v425, %v361
        %v427 = vadd.f32 %v426, %v362
        %v428 = vadd.f32 %v427, %v363
        %v429 = vadd.f32 %v428, %v364
        %v430 = vadd.f32 %v429, %v365
        %v431 = vadd.f32 %v430, %v366
        %v432 = vadd.f32 %v431, %v367
        %433 = vadd.xlane.f32.xlu0 %v432
        %v434 = vpop.xlane.xlu0 %433
        %v435 = vadd.f32 %v368, %v369
        %v436 = vadd.f32 %v435, %v370
        %v437 = vadd.f32 %v436, %v371
        %v438 = vadd.f32 %v437, %v372
        %v439 = vadd.f32 %v438, %v373
        %v440 = vadd.f32 %v439, %v374
        %v441 = vadd.f32 %v440, %v375
        %v442 = vadd.f32 %v441, %v376
        %v443 = vadd.f32 %v442, %v377
        %v444 = vadd.f32 %v443, %v378
        %v445 = vadd.f32 %v444, %v379
        %v446 = vadd.f32 %v445, %v380
        %v447 = vadd.f32 %v446, %v381
        %v448 = vadd.f32 %v447, %v382
        %v449 = vadd.f32 %v448, %v383
        %450 = vadd.xlane.f32.xlu0 %v449
        %v451 = vpop.xlane.xlu0 %450
        %v452 = vmax.f32 %v320, %v321
        %v453 = vmax.f32 %v452, %v322
        %v454 = vmax.f32 %v453, %v323
        %v455 = vmax.f32 %v454, %v324
        %v456 = vmax.f32 %v455, %v325
        %v457 = vmax.f32 %v456, %v326
        %v458 = vmax.f32 %v457, %v327
        %v459 = vmax.f32 %v458, %v328
        %v460 = vmax.f32 %v459, %v329
        %v461 = vmax.f32 %v460, %v330
        %v462 = vmax.f32 %v461, %v331
        %v463 = vmax.f32 %v462, %v332
        %v464 = vmax.f32 %v463, %v333
        %v465 = vmax.f32 %v464, %v334
        %v466 = vmax.f32 %v465, %v335
        %467 = vmax.xlane.f32.xlu0 %v466
        %v468 = vpop.xlane.xlu0 %467
        %v469 = vmax.f32 %v336, %v337
        %v470 = vmax.f32 %v469, %v338
        %v471 = vmax.f32 %v470, %v339
        %v472 = vmax.f32 %v471, %v340
        %v473 = vmax.f32 %v472, %v341
        %v474 = vmax.f32 %v473, %v342
        %v475 = vmax.f32 %v474, %v343
        %v476 = vmax.f32 %v475, %v344
        %v477 = vmax.f32 %v476, %v345
        %v478 = vmax.f32 %v477, %v346
        %v479 = vmax.f32 %v478, %v347
        %v480 = vmax.f32 %v479, %v348
        %v481 = vmax.f32 %v480, %v349
        %v482 = vmax.f32 %v481, %v350
        %v483 = vmax.f32 %v482, %v351
        %484 = vmax.xlane.f32.xlu0 %v483
        %v485 = vpop.xlane.xlu0 %484
        %v486 = vmax.f32 %v352, %v353
        %v487 = vmax.f32 %v486, %v354
        %v488 = vmax.f32 %v487, %v355
        %v489 = vmax.f32 %v488, %v356
        %v490 = vmax.f32 %v489, %v357
        %v491 = vmax.f32 %v490, %v358
        %v492 = vmax.f32 %v491, %v359
        %v493 = vmax.f32 %v492, %v360
        %v494 = vmax.f32 %v493, %v361
        %v495 = vmax.f32 %v494, %v362
        %v496 = vmax.f32 %v495, %v363
        %v497 = vmax.f32 %v496, %v364
        %v498 = vmax.f32 %v497, %v365
        %v499 = vmax.f32 %v498, %v366
        %v500 = vmax.f32 %v499, %v367
        %501 = vmax.xlane.f32.xlu0 %v500
        %v502 = vpop.xlane.xlu0 %501
        %v503 = vmax.f32 %v368, %v369
        %v504 = vmax.f32 %v503, %v370
        %v505 = vmax.f32 %v504, %v371
        %v506 = vmax.f32 %v505, %v372
        %v507 = vmax.f32 %v506, %v373
        %v508 = vmax.f32 %v507, %v374
        %v509 = vmax.f32 %v508, %v375
        %v510 = vmax.f32 %v509, %v376
        %v511 = vmax.f32 %v510, %v377
        %v512 = vmax.f32 %v511, %v378
        %v513 = vmax.f32 %v512, %v379
        %v514 = vmax.f32 %v513, %v380
        %v515 = vmax.f32 %v514, %v381
        %v516 = vmax.f32 %v515, %v382
        %v517 = vmax.f32 %v516, %v383
        %518 = vmax.xlane.f32.xlu0 %v517
        %v519 = vpop.xlane.xlu0 %518
        %p520 = scmp.eq.s32.totalorder %s19, 0
        // Predicated region
        $region48: #{cbam3d_forward.4} parent=42 // pred_check
          %p521 = pneg %p520
        $region49: #{cbam3d_forward.4} parent=42 // pred_check_branch
          %523 = sbr.rel (%p521) target = $region51
        $region50: #{cbam3d_forward.4} parent=42 // pred_region
          %vm524 = vcmask 7168
          %525 = vst.msk [vmem:[%s314] sm:$0xff] %vm524, %v400
          %526 = vst.msk [vmem:[%s314 + $0x8] sm:$0xff] %vm524, %v417
          %527 = vst.msk [vmem:[%s314 + $0x10] sm:$0xff] %vm524, %v434
          %528 = vst.msk [vmem:[%s314 + $0x18] sm:$0xff] %vm524, %v451
          %529 = vst.msk [vmem:[%s319] sm:$0xff] %vm524, %v468
          %530 = vst.msk [vmem:[%s319 + $0x8] sm:$0xff] %vm524, %v485
          %531 = vst.msk [vmem:[%s319 + $0x10] sm:$0xff] %vm524, %v502
          %532 = vst.msk [vmem:[%s319 + $0x18] sm:$0xff] %vm524, %v519
        $region51: #{cbam3d_forward.4} parent=42 // pred_fallthru
          _
        %p533 = scmp.ne.s32.totalorder %s19, 0
        // Predicated region
        $region52: #{cbam3d_forward.4} parent=42 // pred_check
          %p534 = pneg %p533
        $region53: #{cbam3d_forward.4} parent=42 // pred_check_branch
          %536 = sbr.rel (%p534) target = $region55
        $region54: #{cbam3d_forward.4} parent=42 // pred_region
          %v537 = vld [vmem:[%s314] sm:$0xff]
          %v538 = vld [vmem:[%s314 + $0x8] sm:$0xff]
          %v539 = vld [vmem:[%s314 + $0x10] sm:$0xff]
          %v540 = vld [vmem:[%s314 + $0x18] sm:$0xff]
          %v541 = vadd.f32 %v537, %v400
          %v542 = vadd.f32 %v538, %v417
          %v543 = vadd.f32 %v539, %v434
          %v544 = vadd.f32 %v540, %v451
          %vm545 = vcmask 7168
          %546 = vst.msk [vmem:[%s314] sm:$0xff] %vm545, %v541
          %547 = vst.msk [vmem:[%s314 + $0x8] sm:$0xff] %vm545, %v542
          %548 = vst.msk [vmem:[%s314 + $0x10] sm:$0xff] %vm545, %v543
          %549 = vst.msk [vmem:[%s314 + $0x18] sm:$0xff] %vm545, %v544
          %v550 = vld [vmem:[%s319] sm:$0xff]
          %v551 = vld [vmem:[%s319 + $0x8] sm:$0xff]
          %v552 = vld [vmem:[%s319 + $0x10] sm:$0xff]
          %v553 = vld [vmem:[%s319 + $0x18] sm:$0xff]
          %v554 = vmax.f32 %v550, %v468
          %v555 = vmax.f32 %v551, %v485
          %v556 = vmax.f32 %v552, %v502
          %v557 = vmax.f32 %v553, %v519
          %558 = vst.msk [vmem:[%s319] sm:$0xff] %vm545, %v554
          %559 = vst.msk [vmem:[%s319 + $0x8] sm:$0xff] %vm545, %v555
          %560 = vst.msk [vmem:[%s319 + $0x10] sm:$0xff] %vm545, %v556
          %561 = vst.msk [vmem:[%s319 + $0x18] sm:$0xff] %vm545, %v557
        $region55: #{cbam3d_forward.4} parent=42 // pred_fallthru
          _
        %p562 = scmp.lt.s32.totalorder %s18, 1
        %s563 = scalar_select %p562, %s18, 1
        %s564 = smul.addr %s563, 4
        %s565 = smul.addr %s564, 8
        %s566 = scalar_lea.vmem %s1, %s565
        %p567 = scmp.lt.s32.totalorder %s18, 1
        %s568 = scalar_select %p567, %s18, 1
        %s569 = smul.addr %s568, 4
        %s570 = smul.addr %s569, 8
        %s571 = scalar_lea.vmem %s2, %s570
        // Predicated region
        $region56: #{cbam3d_forward.4} parent=42 // pred_check
          %p572 = pneg %p72
        $region57: #{cbam3d_forward.4} parent=42 // pred_check_branch
          %574 = sbr.rel (%p572) target = $region59
        $region58: #{cbam3d_forward.4} parent=42 // pred_region
          _
        $region59: #{cbam3d_forward.4} parent=42 // pred_fallthru
          _
        // Predicated region
        $region60: #{cbam3d_forward.4} parent=42 // pred_check
          %p575 = pneg %p98
        $region61: #{cbam3d_forward.4} parent=42 // pred_check_branch
          %577 = sbr.rel (%p575) target = $region63
        $region62: #{cbam3d_forward.4} parent=42 // pred_region
          _
        $region63: #{cbam3d_forward.4} parent=42 // pred_fallthru
          _
      $region43: #{cbam3d_forward.4} parent=5 // pred_fallthru
        _
      %p578 = scmp.le.s32.totalorder 2, %s9
      // Predicated region
      $region64: #{cbam3d_forward.4} parent=5 // pred_check
        %p579 = pneg %p578
      $region65: #{cbam3d_forward.4} parent=5 // pred_check_branch
        %581 = sbr.rel (%p579) target = $region67
      $region66: #{cbam3d_forward.4} parent=5 // pred_region
        %s582 = ssub.s32 %s9, 2
        // Predicated region
        $region68: #{cbam3d_forward.4} parent=66 // pred_check
          %p583 = pneg %p78
        $region69: #{cbam3d_forward.4} parent=66 // pred_check_branch
          %585 = sbr.rel (%p583) target = $region71
        $region70: #{cbam3d_forward.4} parent=66 // pred_region
          %p586 = scmp.lt.s32.totalorder %s20, 1
          %s587 = scalar_select %p586, %s20, 1
          %s588 = smul.addr %s587, 4
          %s589 = smul.addr %s588, 8
          %s590 = scalar_lea.vmem %s1, %s589
        $region71: #{cbam3d_forward.4} parent=66 // pred_fallthru
          _
        // Predicated region
        $region72: #{cbam3d_forward.4} parent=66 // pred_check
          %p591 = pneg %p104
        $region73: #{cbam3d_forward.4} parent=66 // pred_check_branch
          %593 = sbr.rel (%p591) target = $region75
        $region74: #{cbam3d_forward.4} parent=66 // pred_region
          %p594 = scmp.lt.s32.totalorder %s20, 1
          %s595 = scalar_select %p594, %s20, 1
          %s596 = smul.addr %s595, 4
          %s597 = smul.addr %s596, 8
          %s598 = scalar_lea.vmem %s2, %s597
        $region75: #{cbam3d_forward.4} parent=66 // pred_fallthru
          _
      $region67: #{cbam3d_forward.4} parent=5 // pred_fallthru
        _
    $region6: #{cbam3d_forward.4} parent=1 // loop_footer
      %s13 = sadd.s32 1, %s9
    $region7: #{cbam3d_forward.4} parent=1 // loop_footer_branch
      %8 = sbr.rel target = $region3
    $region8: #{cbam3d_forward.4} parent=1 // loop_exit
      _

// kernel: cbam3d_forward.5
$region0: #{cbam3d_forward.5}
  #allocation0 [shape = 'u32[]', space=smem, size = 0x4, offset = 0x4, fixed_abs, tag = 'smem constant byte address 0x4 - core index']
  #allocation1 [shape = 'u32[144,128]{1,0:T(1,128)}', space=vmem, size = 0x12000, scoped, tag = 'internal scratch']
  %s0 = inlined_call_operand.vmem [shape: f32[2,32,4096], index: 0, kind: input, shape index: {}]
  %s1 = inlined_call_operand.vmem [shape: f32[2,32,1], index: 1, kind: input, shape index: {}]
  %s2 = inlined_call_operand.vmem [shape: f32[2,1,4096], index: 2, kind: output, shape index: {0}]
  %s3 = inlined_call_operand.vmem [shape: f32[2,1,4096], index: 3, kind: output, shape index: {1}]
  %4 = xla_tuple %s2, %s3
  %s5 = sld [smem:[#allocation0]]
  $region72: #{cbam3d_forward.5} parent=0
    _
  %s7 = ssub.s32 1, %s5
  %s8 = scalar_select 0, %s7, %s5
  $region1: #{cbam3d_forward.5} parent=0
    #allocation2 [shape = 'u8[524288]{0}', space=vmem, size = 0x80000, scoped, tag = 'input window, operand 0']
    loop: start=0, step=1, limit=6
    $region2: #{cbam3d_forward.5} parent=1 // loop_pre_header
      _
    $region3: #{cbam3d_forward.5} parent=1 // loop_header
      %s10 = sphi 0, %s14
      %p11 = scmp.ge.s32.totalorder %s10, 6
      %s17 = sphi 0, %s29
      %s18 = sphi 0, %s25
      %s19 = sphi 0, %s17
      %s20 = sphi 0, %s18
      %s21 = sphi 0, %s19
      %s22 = sphi 0, %s20
      %s34 = sphi 0, %s36
      %s37 = sphi 0, %s34
      %s38 = sphi 0, %s37
      %s54 = sphi 0, %s38
      %s60 = sphi 0, %s62
      %s63 = sphi 0, %s60
      %s64 = sphi 0, %s63
      %s80 = sphi 0, %s64
      %s88 = sphi 0, %s90
      %s91 = sphi 0, %s88
      %s92 = sphi 0, %s91
      %s108 = sphi 0, %s92
      %s116 = sphi 0, %s118
      %s119 = sphi 0, %s116
      %s120 = sphi 0, %s119
      %s136 = sphi 0, %s120
    $region4: #{cbam3d_forward.5} parent=1 // loop_header_branch
      %13 = sbr.rel (%p11) target = $region8
    $region5: #{cbam3d_forward.5} parent=1 // loop_body
      %s15 = ssub.s32 %s10, 1
      %s16 = ssub.s32 %s10, 2
      %s23 = sadd.s32 1, %s18
      %p24 = scmp.ge.s32.totalorder %s23, 2
      %s25 = scalar_select %p24, 0, %s23
      %s26 = sadd.s32 1, %s17
      %s27 = scalar_select %p24, %s26, %s17
      %p28 = scmp.ge.s32.totalorder %s27, 2
      %s29 = scalar_select %p28, 0, %s27
      %s30 = ssub.s32 %s17, %s29
      %s31 = ssub.s32 %s18, %s25
      %s32 = sor.u32 %s30, %s31
      %p33 = scmp.eq.s32.totalorder %s32, 0
      %s35 = sadd.s32 %s34, 1
      %s36 = scalar_select %p33, %s34, %s35
      %p39 = pneg %p33
      %p40 = scmp.eq.s32.totalorder %s10, 3
      %p41 = por %p39, %p40
      %p42 = scmp.ne.s32.totalorder %s34, %s37
      %p43 = scmp.eq.s32.totalorder %s10, 0
      %p44 = por %p42, %p43
      %p45 = scmp.ne.s32.totalorder %s34, %s37
      %p46 = scmp.eq.s32.totalorder %s15, 3
      %p47 = por %p45, %p46
      %p48 = scmp.ne.s32.totalorder %s37, %s38
      %p49 = scmp.eq.s32.totalorder %s15, 0
      %p50 = por %p48, %p49
      %p51 = scmp.ne.s32.totalorder %s37, %s38
      %p52 = scmp.eq.s32.totalorder %s16, 3
      %p53 = por %p51, %p52
      %p55 = scmp.ne.s32.totalorder %s38, %s54
      %p56 = scmp.eq.s32.totalorder %s16, 0
      %p57 = por %p55, %p56
      %s58 = ssub.s32 %s17, %s29
      %p59 = scmp.eq.s32.totalorder %s58, 0
      %s61 = sadd.s32 %s60, 1
      %s62 = scalar_select %p59, %s60, %s61
      %p65 = pneg %p59
      %p66 = scmp.eq.s32.totalorder %s10, 3
      %p67 = por %p65, %p66
      %p68 = scmp.ne.s32.totalorder %s60, %s63
      %p69 = scmp.eq.s32.totalorder %s10, 0
      %p70 = por %p68, %p69
      %p71 = scmp.ne.s32.totalorder %s60, %s63
      %p72 = scmp.eq.s32.totalorder %s15, 3
      %p73 = por %p71, %p72
      %p74 = scmp.ne.s32.totalorder %s63, %s64
      %p75 = scmp.eq.s32.totalorder %s15, 0
      %p76 = por %p74, %p75
      %p77 = scmp.ne.s32.totalorder %s63, %s64
      %p78 = scmp.eq.s32.totalorder %s16, 3
      %p79 = por %p77, %p78
      %p81 = scmp.ne.s32.totalorder %s64, %s80
      %p82 = scmp.eq.s32.totalorder %s16, 0
      %p83 = por %p81, %p82
      %s84 = ssub.s32 %s17, %s29
      %s85 = ssub.s32 %s18, %s25
      %s86 = sor.u32 %s84, %s85
      %p87 = scmp.eq.s32.totalorder %s86, 0
      %s89 = sadd.s32 %s88, 1
      %s90 = scalar_select %p87, %s88, %s89
      %p93 = pneg %p87
      %p94 = scmp.eq.s32.totalorder %s10, 3
      %p95 = por %p93, %p94
      %p96 = scmp.ne.s32.totalorder %s88, %s91
      %p97 = scmp.eq.s32.totalorder %s10, 0
      %p98 = por %p96, %p97
      %p99 = scmp.ne.s32.totalorder %s88, %s91
      %p100 = scmp.eq.s32.totalorder %s15, 3
      %p101 = por %p99, %p100
      %p102 = scmp.ne.s32.totalorder %s91, %s92
      %p103 = scmp.eq.s32.totalorder %s15, 0
      %p104 = por %p102, %p103
      %p105 = scmp.ne.s32.totalorder %s91, %s92
      %p106 = scmp.eq.s32.totalorder %s16, 3
      %p107 = por %p105, %p106
      %p109 = scmp.ne.s32.totalorder %s92, %s108
      %p110 = scmp.eq.s32.totalorder %s16, 0
      %p111 = por %p109, %p110
      %s112 = ssub.s32 %s17, %s29
      %s113 = ssub.s32 %s18, %s25
      %s114 = sor.u32 %s112, %s113
      %p115 = scmp.eq.s32.totalorder %s114, 0
      %s117 = sadd.s32 %s116, 1
      %s118 = scalar_select %p115, %s116, %s117
      %p121 = pneg %p115
      %p122 = scmp.eq.s32.totalorder %s10, 3
      %p123 = por %p121, %p122
      %p124 = scmp.ne.s32.totalorder %s116, %s119
      %p125 = scmp.eq.s32.totalorder %s10, 0
      %p126 = por %p124, %p125
      %p127 = scmp.ne.s32.totalorder %s116, %s119
      %p128 = scmp.eq.s32.totalorder %s15, 3
      %p129 = por %p127, %p128
      %p130 = scmp.ne.s32.totalorder %s119, %s120
      %p131 = scmp.eq.s32.totalorder %s15, 0
      %p132 = por %p130, %p131
      %p133 = scmp.ne.s32.totalorder %s119, %s120
      %p134 = scmp.eq.s32.totalorder %s16, 3
      %p135 = por %p133, %p134
      %p137 = scmp.ne.s32.totalorder %s120, %s136
      %p138 = scmp.eq.s32.totalorder %s16, 0
      %p139 = por %p137, %p138
      %p140 = scmp.le.s32.totalorder 1, %s10
      %p141 = scmp.lt.s32.totalorder %s10, 5
      %p142 = pnand %p140, %p141
      %p143 = pneg %p142
      // Predicated region
      $region9: #{cbam3d_forward.5} parent=5 // pred_check
        _
      $region10: #{cbam3d_forward.5} parent=5 // pred_check_branch
        %145 = sbr.rel (%p142) target = $region12
      $region11: #{cbam3d_forward.5} parent=5 // pred_region
        %s146 = ssub.s32 %s10, 1
      $region12: #{cbam3d_forward.5} parent=5 // pred_fallthru
        _
      %p147 = scmp.lt.s32.totalorder %s10, 4
      // Predicated region
      $region13: #{cbam3d_forward.5} parent=5 // pred_check
        %p148 = pneg %p147
      $region14: #{cbam3d_forward.5} parent=5 // pred_check_branch
        %150 = sbr.rel (%p148) target = $region16
      $region15: #{cbam3d_forward.5} parent=5 // pred_region
        // Predicated region
        $region17: #{cbam3d_forward.5} parent=15 // pred_check
          %p151 = pneg %p44
        $region18: #{cbam3d_forward.5} parent=15 // pred_check_branch
          %153 = sbr.rel (%p151) target = $region20
        $region19: #{cbam3d_forward.5} parent=15 // pred_region
          %s154 = sand.u32 %s34, 1
          %s155 = sand.u32 %s34, 1
          %s156 = smul.addr %s155, 512
          %s157 = scalar_lea.vmem [#allocation2], %s156
          %s158 = smul.u32 16, %s18
          %s159 = smul.addr %s17, 128
          %s160 = sadd.s32 %s158, %s159
          %s161 = smul.addr %s160, 8
          %s162 = scalar_lea.vmem %s0, %s161
          // Predicated region
          $region21: #{cbam3d_forward.5} parent=19 // pred_check
            _
          $region22: #{cbam3d_forward.5} parent=19 // pred_check_branch
            %164 = sbr.rel (0) target = $region24
          $region23: #{cbam3d_forward.5} parent=19 // pred_region
            // Predicated region
            $region25: #{cbam3d_forward.5} parent=23 // pred_check
              _
            $region26: #{cbam3d_forward.5} parent=23 // pred_check_branch
              %166 = sbr.rel (0) target = $region28
            $region27: #{cbam3d_forward.5} parent=23 // pred_region
              loop: start=0, step=1, limit=1
              $region29: #{cbam3d_forward.5} parent=27 // loop_pre_header
                _
              $region30: #{cbam3d_forward.5} parent=27 // loop_header
                %s168 = sphi 0, %s172
                %p169 = scmp.ge.s32.totalorder %s168, 1
                %s173 = sphi %s162, %s162
                %s174 = sphi %s157, %s157
              $region31: #{cbam3d_forward.5} parent=27 // loop_header_branch
                %171 = sbr.rel (%p169) target = $region35
              $region32: #{cbam3d_forward.5} parent=27 // loop_body
                %v175 = vld [vmem:[%s173] sm:$0xff]
                %176 = vst [vmem:[%s174] sm:$0xff] %v175
                %v177 = vld [vmem:[%s173 + $0x8] sm:$0xff]
                %178 = vst [vmem:[%s174 + $0x8] sm:$0xff] %v177
                %v179 = vld [vmem:[%s173 + $0x10] sm:$0xff]
                %180 = vst [vmem:[%s174 + $0x10] sm:$0xff] %v179
                %v181 = vld [vmem:[%s173 + $0x18] sm:$0xff]
                %182 = vst [vmem:[%s174 + $0x18] sm:$0xff] %v181
                %v183 = vld [vmem:[%s173 + $0x20] sm:$0xff]
                %184 = vst [vmem:[%s174 + $0x20] sm:$0xff] %v183
                %v185 = vld [vmem:[%s173 + $0x28] sm:$0xff]
                %186 = vst [vmem:[%s174 + $0x28] sm:$0xff] %v185
                %v187 = vld [vmem:[%s173 + $0x30] sm:$0xff]
                %188 = vst [vmem:[%s174 + $0x30] sm:$0xff] %v187
                %v189 = vld [vmem:[%s173 + $0x38] sm:$0xff]
                %190 = vst [vmem:[%s174 + $0x38] sm:$0xff] %v189
                %v191 = vld [vmem:[%s173 + $0x40] sm:$0xff]
                %192 = vst [vmem:[%s174 + $0x40] sm:$0xff] %v191
                %v193 = vld [vmem:[%s173 + $0x48] sm:$0xff]
                %194 = vst [vmem:[%s174 + $0x48] sm:$0xff] %v193
                %v195 = vld [vmem:[%s173 + $0x50] sm:$0xff]
                %196 = vst [vmem:[%s174 + $0x50] sm:$0xff] %v195
                %v197 = vld [vmem:[%s173 + $0x58] sm:$0xff]
                %198 = vst [vmem:[%s174 + $0x58] sm:$0xff] %v197
                %v199 = vld [vmem:[%s173 + $0x60] sm:$0xff]
                %200 = vst [vmem:[%s174 + $0x60] sm:$0xff] %v199
                %v201 = vld [vmem:[%s173 + $0x68] sm:$0xff]
                %202 = vst [vmem:[%s174 + $0x68] sm:$0xff] %v201
                %v203 = vld [vmem:[%s173 + $0x70] sm:$0xff]
                %204 = vst [vmem:[%s174 + $0x70] sm:$0xff] %v203
                %v205 = vld [vmem:[%s173 + $0x78] sm:$0xff]
                %206 = vst [vmem:[%s174 + $0x78] sm:$0xff] %v205
                %v207 = vld [vmem:[%s173 + $0x100] sm:$0xff]
                %208 = vst [vmem:[%s174 + $0x80] sm:$0xff] %v207
                %v209 = vld [vmem:[%s173 + $0x108] sm:$0xff]
                %210 = vst [vmem:[%s174 + $0x88] sm:$0xff] %v209
                %v211 = vld [vmem:[%s173 + $0x110] sm:$0xff]
                %212 = vst [vmem:[%s174 + $0x90] sm:$0xff] %v211
                %v213 = vld [vmem:[%s173 + $0x118] sm:$0xff]
                %214 = vst [vmem:[%s174 + $0x98] sm:$0xff] %v213
                %v215 = vld [vmem:[%s173 + $0x120] sm:$0xff]
                %216 = vst [vmem:[%s174 + $0xa0] sm:$0xff] %v215
                %v217 = vld [vmem:[%s173 + $0x128] sm:$0xff]
                %218 = vst [vmem:[%s174 + $0xa8] sm:$0xff] %v217
                %v219 = vld [vmem:[%s173 + $0x130] sm:$0xff]
                %220 = vst [vmem:[%s174 + $0xb0] sm:$0xff] %v219
                %v221 = vld [vmem:[%s173 + $0x138] sm:$0xff]
                %222 = vst [vmem:[%s174 + $0xb8] sm:$0xff] %v221
                %v223 = vld [vmem:[%s173 + $0x140] sm:$0xff]
                %224 = vst [vmem:[%s174 + $0xc0] sm:$0xff] %v223
                %v225 = vld [vmem:[%s173 + $0x148] sm:$0xff]
                %226 = vst [vmem:[%s174 + $0xc8] sm:$0xff] %v225
                %v227 = vld [vmem:[%s173 + $0x150] sm:$0xff]
                %228 = vst [vmem:[%s174 + $0xd0] sm:$0xff] %v227
                %v229 = vld [vmem:[%s173 + $0x158] sm:$0xff]
                %230 = vst [vmem:[%s174 + $0xd8] sm:$0xff] %v229
                %v231 = vld [vmem:[%s173 + $0x160] sm:$0xff]
                %232 = vst [vmem:[%s174 + $0xe0] sm:$0xff] %v231
                %v233 = vld [vmem:[%s173 + $0x168] sm:$0xff]
                %234 = vst [vmem:[%s174 + $0xe8] sm:$0xff] %v233
                %v235 = vld [vmem:[%s173 + $0x170] sm:$0xff]
                %236 = vst [vmem:[%s174 + $0xf0] sm:$0xff] %v235
                %v237 = vld [vmem:[%s173 + $0x178] sm:$0xff]
                %238 = vst [vmem:[%s174 + $0xf8] sm:$0xff] %v237
                %v239 = vld [vmem:[%s173 + $0x200] sm:$0xff]
                %240 = vst [vmem:[%s174 + $0x100] sm:$0xff] %v239
                %v241 = vld [vmem:[%s173 + $0x208] sm:$0xff]
                %242 = vst [vmem:[%s174 + $0x108] sm:$0xff] %v241
                %v243 = vld [vmem:[%s173 + $0x210] sm:$0xff]
                %244 = vst [vmem:[%s174 + $0x110] sm:$0xff] %v243
                %v245 = vld [vmem:[%s173 + $0x218] sm:$0xff]
                %246 = vst [vmem:[%s174 + $0x118] sm:$0xff] %v245
                %v247 = vld [vmem:[%s173 + $0x220] sm:$0xff]
                %248 = vst [vmem:[%s174 + $0x120] sm:$0xff] %v247
                %v249 = vld [vmem:[%s173 + $0x228] sm:$0xff]
                %250 = vst [vmem:[%s174 + $0x128] sm:$0xff] %v249
                %v251 = vld [vmem:[%s173 + $0x230] sm:$0xff]
                %252 = vst [vmem:[%s174 + $0x130] sm:$0xff] %v251
                %v253 = vld [vmem:[%s173 + $0x238] sm:$0xff]
                %254 = vst [vmem:[%s174 + $0x138] sm:$0xff] %v253
                %v255 = vld [vmem:[%s173 + $0x240] sm:$0xff]
                %256 = vst [vmem:[%s174 + $0x140] sm:$0xff] %v255
                %v257 = vld [vmem:[%s173 + $0x248] sm:$0xff]
                %258 = vst [vmem:[%s174 + $0x148] sm:$0xff] %v257
                %v259 = vld [vmem:[%s173 + $0x250] sm:$0xff]
                %260 = vst [vmem:[%s174 + $0x150] sm:$0xff] %v259
                %v261 = vld [vmem:[%s173 + $0x258] sm:$0xff]
                %262 = vst [vmem:[%s174 + $0x158] sm:$0xff] %v261
                %v263 = vld [vmem:[%s173 + $0x260] sm:$0xff]
                %264 = vst [vmem:[%s174 + $0x160] sm:$0xff] %v263
                %v265 = vld [vmem:[%s173 + $0x268] sm:$0xff]
                %266 = vst [vmem:[%s174 + $0x168] sm:$0xff] %v265
                %v267 = vld [vmem:[%s173 + $0x270] sm:$0xff]
                %268 = vst [vmem:[%s174 + $0x170] sm:$0xff] %v267
                %v269 = vld [vmem:[%s173 + $0x278] sm:$0xff]
                %270 = vst [vmem:[%s174 + $0x178] sm:$0xff] %v269
                %v271 = vld [vmem:[%s173 + $0x300] sm:$0xff]
                %272 = vst [vmem:[%s174 + $0x180] sm:$0xff] %v271
                %v273 = vld [vmem:[%s173 + $0x308] sm:$0xff]
                %274 = vst [vmem:[%s174 + $0x188] sm:$0xff] %v273
                %v275 = vld [vmem:[%s173 + $0x310] sm:$0xff]
                %276 = vst [vmem:[%s174 + $0x190] sm:$0xff] %v275
                %v277 = vld [vmem:[%s173 + $0x318] sm:$0xff]
                %278 = vst [vmem:[%s174 + $0x198] sm:$0xff] %v277
                %v279 = vld [vmem:[%s173 + $0x320] sm:$0xff]
                %280 = vst [vmem:[%s174 + $0x1a0] sm:$0xff] %v279
                %v281 = vld [vmem:[%s173 + $0x328] sm:$0xff]
                %282 = vst [vmem:[%s174 + $0x1a8] sm:$0xff] %v281
                %v283 = vld [vmem:[%s173 + $0x330] sm:$0xff]
                %284 = vst [vmem:[%s174 + $0x1b0] sm:$0xff] %v283
                %v285 = vld [vmem:[%s173 + $0x338] sm:$0xff]
                %286 = vst [vmem:[%s174 + $0x1b8] sm:$0xff] %v285
                %v287 = vld [vmem:[%s173 + $0x340] sm:$0xff]
                %288 = vst [vmem:[%s174 + $0x1c0] sm:$0xff] %v287
                %v289 = vld [vmem:[%s173 + $0x348] sm:$0xff]
                %290 = vst [vmem:[%s174 + $0x1c8] sm:$0xff] %v289
                %v291 = vld [vmem:[%s173 + $0x350] sm:$0xff]
                %292 = vst [vmem:[%s174 + $0x1d0] sm:$0xff] %v291
                %v293 = vld [vmem:[%s173 + $0x358] sm:$0xff]
                %294 = vst [vmem:[%s174 + $0x1d8] sm:$0xff] %v293
                %v295 = vld [vmem:[%s173 + $0x360] sm:$0xff]
                %296 = vst [vmem:[%s174 + $0x1e0] sm:$0xff] %v295
                %v297 = vld [vmem:[%s173 + $0x368] sm:$0xff]
                %298 = vst [vmem:[%s174 + $0x1e8] sm:$0xff] %v297
                %v299 = vld [vmem:[%s173 + $0x370] sm:$0xff]
                %300 = vst [vmem:[%s174 + $0x1f0] sm:$0xff] %v299
                %v301 = vld [vmem:[%s173 + $0x378] sm:$0xff]
                %302 = vst [vmem:[%s174 + $0x1f8] sm:$0xff] %v301
              $region33: #{cbam3d_forward.5} parent=27 // loop_footer
                %s172 = sadd.s32 1, %s168
              $region34: #{cbam3d_forward.5} parent=27 // loop_footer_branch
                %167 = sbr.rel target = $region30
              $region35: #{cbam3d_forward.5} parent=27 // loop_exit
                _
            $region28: #{cbam3d_forward.5} parent=23 // pred_fallthru
              _
            // Predicated region
            $region36: #{cbam3d_forward.5} parent=23 // pred_check
              _
            $region37: #{cbam3d_forward.5} parent=23 // pred_check_branch
              %304 = sbr.rel target = $region39
            $region38: #{cbam3d_forward.5} parent=23 // pred_region
              _
            $region39: #{cbam3d_forward.5} parent=23 // pred_fallthru
              _
          $region24: #{cbam3d_forward.5} parent=19 // pred_fallthru
            _
          %305 = vnop
        $region20: #{cbam3d_forward.5} parent=15 // pred_fallthru
          _
        // Predicated region
        $region40: #{cbam3d_forward.5} parent=15 // pred_check
          %p306 = pneg %p70
        $region41: #{cbam3d_forward.5} parent=15 // pred_check_branch
          %308 = sbr.rel (%p306) target = $region43
        $region42: #{cbam3d_forward.5} parent=15 // pred_region
          %p309 = scmp.lt.s32.totalorder %s17, 1
          %s310 = scalar_select %p309, %s17, 1
          %s311 = smul.addr %s310, 4
          %s312 = smul.addr %s311, 8
          %s313 = scalar_lea.vmem %s1, %s312
        $region43: #{cbam3d_forward.5} parent=15 // pred_fallthru
          _
      $region16: #{cbam3d_forward.5} parent=5 // pred_fallthru
        _
      %p314 = scmp.le.s32.totalorder 1, %s10
      %p315 = scmp.lt.s32.totalorder %s10, 5
      %p316 = pnand %p314, %p315
      %p317 = pneg %p316
      // Predicated region
      $region44: #{cbam3d_forward.5} parent=5 // pred_check
        _
      $region45: #{cbam3d_forward.5} parent=5 // pred_check_branch
        %319 = sbr.rel (%p316) target = $region47
      $region46: #{cbam3d_forward.5} parent=5 // pred_region
        %s320 = ssub.s32 %s10, 1
        %s321 = sand.u32 %s37, 1
        %s322 = sand.u32 %s37, 1
        %s323 = smul.addr %s322, 512
        %s324 = scalar_lea.vmem [#allocation2], %s323
        // Predicated region
        $region48: #{cbam3d_forward.5} parent=46 // pred_check
          %p325 = pneg %p50
        $region49: #{cbam3d_forward.5} parent=46 // pred_check_branch
          %327 = sbr.rel (%p325) target = $region51
        $region50: #{cbam3d_forward.5} parent=46 // pred_region
          _
        $region51: #{cbam3d_forward.5} parent=46 // pred_fallthru
          _
        %s328 = sand.u32 %s37, 1
        %s329 = sand.u32 %s37, 1
        %s330 = smul.addr %s329, 512
        %s331 = scalar_lea.vmem [#allocation2], %s330
        %p332 = pneg %p50
        %p333 = pneg %p47
        %p334 = scmp.lt.s32.totalorder %s19, 1
        %s335 = scalar_select %p334, %s19, 1
        %s336 = smul.addr %s335, 4
        %s337 = smul.addr %s336, 8
        %s338 = scalar_lea.vmem %s1, %s337
        %p339 = pneg %p76
        %p340 = pneg %p73
        %p341 = pneg %p104
        %p342 = pneg %p101
        %s343 = smul.u32 16, %s20
        %p344 = scmp.lt.s32.totalorder %s19, 1
        %s345 = scalar_select %p344, %s19, 1
        %p346 = scmp.lt.s32.totalorder %s343, 31
        %s347 = scalar_select %p346, %s343, 31
        %s348 = smul.addr %s345, 32
        %s349 = sadd.s32 %s347, %s348
        %s350 = scalar_lea.vmem %s2, %s349
        %p351 = pneg %p132
        %p352 = pneg %p129
        %s353 = smul.u32 16, %s20
        %p354 = scmp.lt.s32.totalorder %s19, 1
        %s355 = scalar_select %p354, %s19, 1
        %p356 = scmp.lt.s32.totalorder %s353, 31
        %s357 = scalar_select %p356, %s353, 31
        %s358 = smul.addr %s355, 32
        %s359 = sadd.s32 %s357, %s358
        %s360 = scalar_lea.vmem %s3, %s359
        %s361 = smul.u32 16, %s20
        %p362 = scmp.lt.s32.totalorder %s19, 1
        %s363 = scalar_select %p362, %s19, 1
        %s364 = smul.addr %s363, 4
        %s365 = smul.addr %s364, 8
        %s366 = scalar_lea.vmem %s1, %s365
        %s367 = smul.u32 16, %s20
        %p368 = scmp.lt.s32.totalorder %s19, 1
        %s369 = scalar_select %p368, %s19, 1
        %p370 = scmp.lt.s32.totalorder %s367, 31
        %s371 = scalar_select %p370, %s367, 31
        %s372 = smul.addr %s369, 32
        %s373 = sadd.s32 %s371, %s372
        %s374 = scalar_lea.vmem %s2, %s373
        %s375 = smul.u32 16, %s20
        %s376 = smul.u32 16, %s20
        %p377 = scmp.lt.s32.totalorder %s19, 1
        %s378 = scalar_select %p377, %s19, 1
        %p379 = scmp.lt.s32.totalorder %s376, 31
        %s380 = scalar_select %p379, %s376, 31
        %s381 = smul.addr %s378, 32
        %s382 = sadd.s32 %s380, %s381
        %s383 = scalar_lea.vmem %s3, %s382
        %s384 = smul.u32 16, %s20
        %v385 = vld [vmem:[%s324] sm:$0xff]
        %v386 = vld [vmem:[%s324 + $0x8] sm:$0xff]
        %v387 = vld [vmem:[%s324 + $0x10] sm:$0xff]
        %v388 = vld [vmem:[%s324 + $0x18] sm:$0xff]
        %v389 = vld [vmem:[%s324 + $0x20] sm:$0xff]
        %v390 = vld [vmem:[%s324 + $0x28] sm:$0xff]
        %v391 = vld [vmem:[%s324 + $0x30] sm:$0xff]
        %v392 = vld [vmem:[%s324 + $0x38] sm:$0xff]
        %v393 = vld [vmem:[%s324 + $0x40] sm:$0xff]
        %v394 = vld [vmem:[%s324 + $0x48] sm:$0xff]
        %v395 = vld [vmem:[%s324 + $0x50] sm:$0xff]
        %v396 = vld [vmem:[%s324 + $0x58] sm:$0xff]
        %v397 = vld [vmem:[%s324 + $0x60] sm:$0xff]
        %v398 = vld [vmem:[%s324 + $0x68] sm:$0xff]
        %v399 = vld [vmem:[%s324 + $0x70] sm:$0xff]
        %v400 = vld [vmem:[%s324 + $0x78] sm:$0xff]
        %v401 = vld [vmem:[%s324 + $0x80] sm:$0xff]
        %v402 = vld [vmem:[%s324 + $0x88] sm:$0xff]
        %v403 = vld [vmem:[%s324 + $0x90] sm:$0xff]
        %v404 = vld [vmem:[%s324 + $0x98] sm:$0xff]
        %v405 = vld [vmem:[%s324 + $0xa0] sm:$0xff]
        %v406 = vld [vmem:[%s324 + $0xa8] sm:$0xff]
        %v407 = vld [vmem:[%s324 + $0xb0] sm:$0xff]
        %v408 = vld [vmem:[%s324 + $0xb8] sm:$0xff]
        %v409 = vld [vmem:[%s324 + $0xc0] sm:$0xff]
        %v410 = vld [vmem:[%s324 + $0xc8] sm:$0xff]
        %v411 = vld [vmem:[%s324 + $0xd0] sm:$0xff]
        %v412 = vld [vmem:[%s324 + $0xd8] sm:$0xff]
        %v413 = vld [vmem:[%s324 + $0xe0] sm:$0xff]
        %v414 = vld [vmem:[%s324 + $0xe8] sm:$0xff]
        %v415 = vld [vmem:[%s324 + $0xf0] sm:$0xff]
        %v416 = vld [vmem:[%s324 + $0xf8] sm:$0xff]
        %v417 = vld [vmem:[%s324 + $0x100] sm:$0xff]
        %v418 = vld [vmem:[%s324 + $0x108] sm:$0xff]
        %v419 = vld [vmem:[%s324 + $0x110] sm:$0xff]
        %v420 = vld [vmem:[%s324 + $0x118] sm:$0xff]
        %v421 = vld [vmem:[%s324 + $0x120] sm:$0xff]
        %v422 = vld [vmem:[%s324 + $0x128] sm:$0xff]
        %v423 = vld [vmem:[%s324 + $0x130] sm:$0xff]
        %v424 = vld [vmem:[%s324 + $0x138] sm:$0xff]
        %v425 = vld [vmem:[%s324 + $0x140] sm:$0xff]
        %v426 = vld [vmem:[%s324 + $0x148] sm:$0xff]
        %v427 = vld [vmem:[%s324 + $0x150] sm:$0xff]
        %v428 = vld [vmem:[%s324 + $0x158] sm:$0xff]
        %v429 = vld [vmem:[%s324 + $0x160] sm:$0xff]
        %v430 = vld [vmem:[%s324 + $0x168] sm:$0xff]
        %v431 = vld [vmem:[%s324 + $0x170] sm:$0xff]
        %v432 = vld [vmem:[%s324 + $0x178] sm:$0xff]
        %v433 = vld [vmem:[%s324 + $0x180] sm:$0xff]
        %v434 = vld [vmem:[%s324 + $0x188] sm:$0xff]
        %v435 = vld [vmem:[%s324 + $0x190] sm:$0xff]
        %v436 = vld [vmem:[%s324 + $0x198] sm:$0xff]
        %v437 = vld [vmem:[%s324 + $0x1a0] sm:$0xff]
        %v438 = vld [vmem:[%s324 + $0x1a8] sm:$0xff]
        %v439 = vld [vmem:[%s324 + $0x1b0] sm:$0xff]
        %v440 = vld [vmem:[%s324 + $0x1b8] sm:$0xff]
        %v441 = vld [vmem:[%s324 + $0x1c0] sm:$0xff]
        %v442 = vld [vmem:[%s324 + $0x1c8] sm:$0xff]
        %v443 = vld [vmem:[%s324 + $0x1d0] sm:$0xff]
        %v444 = vld [vmem:[%s324 + $0x1d8] sm:$0xff]
        %v445 = vld [vmem:[%s324 + $0x1e0] sm:$0xff]
        %v446 = vld [vmem:[%s324 + $0x1e8] sm:$0xff]
        %v447 = vld [vmem:[%s324 + $0x1f0] sm:$0xff]
        %v448 = vld [vmem:[%s324 + $0x1f8] sm:$0xff]
        %v449 = vld [vmem:[%s366] sm:$0xff]
        %v450 = vld [vmem:[%s366 + $0x8] sm:$0xff]
        %v451 = vld [vmem:[%s366 + $0x10] sm:$0xff]
        %v452 = vld [vmem:[%s366 + $0x18] sm:$0xff]
        %454 = vset.pattern.permute.xlu0 0
        %455 = vperm.xlu0 %454, %v449
        %v456 = vpop.permute.xlu0 %455
        %459 = vset.pattern.permute.xlu0 0
        %460 = vperm.xlu0 %459, %v450
        %v461 = vpop.permute.xlu0 %460
        %464 = vset.pattern.permute.xlu0 0
        %465 = vperm.xlu0 %464, %v451
        %v466 = vpop.permute.xlu0 %465
        %469 = vset.pattern.permute.xlu0 0
        %470 = vperm.xlu0 %469, %v452
        %v471 = vpop.permute.xlu0 %470
        %v473 = vmul.f32 %v385, %v456
        %v474 = vmul.f32 %v386, %v456
        %v475 = vmul.f32 %v387, %v456
        %v476 = vmul.f32 %v388, %v456
        %v477 = vmul.f32 %v389, %v456
        %v478 = vmul.f32 %v390, %v456
        %v479 = vmul.f32 %v391, %v456
        %v480 = vmul.f32 %v392, %v456
        %v481 = vmul.f32 %v393, %v456
        %v482 = vmul.f32 %v394, %v456
        %v483 = vmul.f32 %v395, %v456
        %v484 = vmul.f32 %v396, %v456
        %v485 = vmul.f32 %v397, %v456
        %v486 = vmul.f32 %v398, %v456
        %v487 = vmul.f32 %v399, %v456
        %v488 = vmul.f32 %v400, %v456
        %v489 = vmul.f32 %v401, %v461
        %v490 = vmul.f32 %v402, %v461
        %v491 = vmul.f32 %v403, %v461
        %v492 = vmul.f32 %v404, %v461
        %v493 = vmul.f32 %v405, %v461
        %v494 = vmul.f32 %v406, %v461
        %v495 = vmul.f32 %v407, %v461
        %v496 = vmul.f32 %v408, %v461
        %v497 = vmul.f32 %v409, %v461
        %v498 = vmul.f32 %v410, %v461
        %v499 = vmul.f32 %v411, %v461
        %v500 = vmul.f32 %v412, %v461
        %v501 = vmul.f32 %v413, %v461
        %v502 = vmul.f32 %v414, %v461
        %v503 = vmul.f32 %v415, %v461
        %v504 = vmul.f32 %v416, %v461
        %v505 = vmul.f32 %v417, %v466
        %v506 = vmul.f32 %v418, %v466
        %v507 = vmul.f32 %v419, %v466
        %v508 = vmul.f32 %v420, %v466
        %v509 = vmul.f32 %v421, %v466
        %v510 = vmul.f32 %v422, %v466
        %v511 = vmul.f32 %v423, %v466
        %v512 = vmul.f32 %v424, %v466
        %v513 = vmul.f32 %v425, %v466
        %v514 = vmul.f32 %v426, %v466
        %v515 = vmul.f32 %v427, %v466
        %v516 = vmul.f32 %v428, %v466
        %v517 = vmul.f32 %v429, %v466
        %v518 = vmul.f32 %v430, %v466
        %v519 = vmul.f32 %v431, %v466
        %v520 = vmul.f32 %v432, %v466
        %v521 = vmul.f32 %v433, %v471
        %v522 = vmul.f32 %v434, %v471
        %v523 = vmul.f32 %v435, %v471
        %v524 = vmul.f32 %v436, %v471
        %v525 = vmul.f32 %v437, %v471
        %v526 = vmul.f32 %v438, %v471
        %v527 = vmul.f32 %v439, %v471
        %v528 = vmul.f32 %v440, %v471
        %v529 = vmul.f32 %v441, %v471
        %v530 = vmul.f32 %v442, %v471
        %v531 = vmul.f32 %v443, %v471
        %v532 = vmul.f32 %v444, %v471
        %v533 = vmul.f32 %v445, %v471
        %v534 = vmul.f32 %v446, %v471
        %v535 = vmul.f32 %v447, %v471
        %v536 = vmul.f32 %v448, %v471
        %v537 = vadd.f32 %v473, %v489
        %v538 = vadd.f32 %v537, %v505
        %v539 = vadd.f32 %v538, %v521
        %v540 = vrot.slane %v539, 4
        %v541 = vadd.f32 %v539, %v540
        %v542 = vrot.slane %v541, 2
        %v543 = vadd.f32 %v541, %v542
        %v544 = vrot.slane %v543, 1
        %v545 = vadd.f32 %v543, %v544
        %v546 = vadd.f32 %v474, %v490
        %v547 = vadd.f32 %v546, %v506
        %v548 = vadd.f32 %v547, %v522
        %v549 = vrot.slane %v548, 4
        %v550 = vadd.f32 %v548, %v549
        %v551 = vrot.slane %v550, 2
        %v552 = vadd.f32 %v550, %v551
        %v553 = vrot.slane %v552, 1
        %v554 = vadd.f32 %v552, %v553
        %v555 = vadd.f32 %v475, %v491
        %v556 = vadd.f32 %v555, %v507
        %v557 = vadd.f32 %v556, %v523
        %v558 = vrot.slane %v557, 4
        %v559 = vadd.f32 %v557, %v558
        %v560 = vrot.slane %v559, 2
        %v561 = vadd.f32 %v559, %v560
        %v562 = vrot.slane %v561, 1
        %v563 = vadd.f32 %v561, %v562
        %v564 = vadd.f32 %v476, %v492
        %v565 = vadd.f32 %v564, %v508
        %v566 = vadd.f32 %v565, %v524
        %v567 = vrot.slane %v566, 4
        %v568 = vadd.f32 %v566, %v567
        %v569 = vrot.slane %v568, 2
        %v570 = vadd.f32 %v568, %v569
        %v571 = vrot.slane %v570, 1
        %v572 = vadd.f32 %v570, %v571
        %v573 = vadd.f32 %v477, %v493
        %v574 = vadd.f32 %v573, %v509
        %v575 = vadd.f32 %v574, %v525
        %v576 = vrot.slane %v575, 4
        %v577 = vadd.f32 %v575, %v576
        %v578 = vrot.slane %v577, 2
        %v579 = vadd.f32 %v577, %v578
        %v580 = vrot.slane %v579, 1
        %v581 = vadd.f32 %v579, %v580
        %v582 = vadd.f32 %v478, %v494
        %v583 = vadd.f32 %v582, %v510
        %v584 = vadd.f32 %v583, %v526
        %v585 = vrot.slane %v584, 4
        %v586 = vadd.f32 %v584, %v585
        %v587 = vrot.slane %v586, 2
        %v588 = vadd.f32 %v586, %v587
        %v589 = vrot.slane %v588, 1
        %v590 = vadd.f32 %v588, %v589
        %v591 = vadd.f32 %v479, %v495
        %v592 = vadd.f32 %v591, %v511
        %v593 = vadd.f32 %v592, %v527
        %v594 = vrot.slane %v593, 4
        %v595 = vadd.f32 %v593, %v594
        %v596 = vrot.slane %v595, 2
        %v597 = vadd.f32 %v595, %v596
        %v598 = vrot.slane %v597, 1
        %v599 = vadd.f32 %v597, %v598
        %v600 = vadd.f32 %v480, %v496
        %v601 = vadd.f32 %v600, %v512
        %v602 = vadd.f32 %v601, %v528
        %v603 = vrot.slane %v602, 4
        %v604 = vadd.f32 %v602, %v603
        %v605 = vrot.slane %v604, 2
        %v606 = vadd.f32 %v604, %v605
        %v607 = vrot.slane %v606, 1
        %v608 = vadd.f32 %v606, %v607
        %v609 = vadd.f32 %v481, %v497
        %v610 = vadd.f32 %v609, %v513
        %v611 = vadd.f32 %v610, %v529
        %v612 = vrot.slane %v611, 4
        %v613 = vadd.f32 %v611, %v612
        %v614 = vrot.slane %v613, 2
        %v615 = vadd.f32 %v613, %v614
        %v616 = vrot.slane %v615, 1
        %v617 = vadd.f32 %v615, %v616
        %v618 = vadd.f32 %v482, %v498
        %v619 = vadd.f32 %v618, %v514
        %v620 = vadd.f32 %v619, %v530
        %v621 = vrot.slane %v620, 4
        %v622 = vadd.f32 %v620, %v621
        %v623 = vrot.slane %v622, 2
        %v624 = vadd.f32 %v622, %v623
        %v625 = vrot.slane %v624, 1
        %v626 = vadd.f32 %v624, %v625
        %v627 = vadd.f32 %v483, %v499
        %v628 = vadd.f32 %v627, %v515
        %v629 = vadd.f32 %v628, %v531
        %v630 = vrot.slane %v629, 4
        %v631 = vadd.f32 %v629, %v630
        %v632 = vrot.slane %v631, 2
        %v633 = vadd.f32 %v631, %v632
        %v634 = vrot.slane %v633, 1
        %v635 = vadd.f32 %v633, %v634
        %v636 = vadd.f32 %v484, %v500
        %v637 = vadd.f32 %v636, %v516
        %v638 = vadd.f32 %v637, %v532
        %v639 = vrot.slane %v638, 4
        %v640 = vadd.f32 %v638, %v639
        %v641 = vrot.slane %v640, 2
        %v642 = vadd.f32 %v640, %v641
        %v643 = vrot.slane %v642, 1
        %v644 = vadd.f32 %v642, %v643
        %v645 = vadd.f32 %v485, %v501
        %v646 = vadd.f32 %v645, %v517
        %v647 = vadd.f32 %v646, %v533
        %v648 = vrot.slane %v647, 4
        %v649 = vadd.f32 %v647, %v648
        %v650 = vrot.slane %v649, 2
        %v651 = vadd.f32 %v649, %v650
        %v652 = vrot.slane %v651, 1
        %v653 = vadd.f32 %v651, %v652
        %v654 = vadd.f32 %v486, %v502
        %v655 = vadd.f32 %v654, %v518
        %v656 = vadd.f32 %v655, %v534
        %v657 = vrot.slane %v656, 4
        %v658 = vadd.f32 %v656, %v657
        %v659 = vrot.slane %v658, 2
        %v660 = vadd.f32 %v658, %v659
        %v661 = vrot.slane %v660, 1
        %v662 = vadd.f32 %v660, %v661
        %v663 = vadd.f32 %v487, %v503
        %v664 = vadd.f32 %v663, %v519
        %v665 = vadd.f32 %v664, %v535
        %v666 = vrot.slane %v665, 4
        %v667 = vadd.f32 %v665, %v666
        %v668 = vrot.slane %v667, 2
        %v669 = vadd.f32 %v667, %v668
        %v670 = vrot.slane %v669, 1
        %v671 = vadd.f32 %v669, %v670
        %v672 = vadd.f32 %v488, %v504
        %v673 = vadd.f32 %v672, %v520
        %v674 = vadd.f32 %v673, %v536
        %v675 = vrot.slane %v674, 4
        %v676 = vadd.f32 %v674, %v675
        %v677 = vrot.slane %v676, 2
        %v678 = vadd.f32 %v676, %v677
        %v679 = vrot.slane %v678, 1
        %v680 = vadd.f32 %v678, %v679
        %v681 = vrcp.pop 32.0
        %v682 = vmul.f32 %v545, %v681
        %v683 = vmul.f32 %v554, %v681
        %v684 = vmul.f32 %v563, %v681
        %v685 = vmul.f32 %v572, %v681
        %v686 = vmul.f32 %v581, %v681
        %v687 = vmul.f32 %v590, %v681
        %v688 = vmul.f32 %v599, %v681
        %v689 = vmul.f32 %v608, %v681
        %v690 = vmul.f32 %v617, %v681
        %v691 = vmul.f32 %v626, %v681
        %v692 = vmul.f32 %v635, %v681
        %v693 = vmul.f32 %v644, %v681
        %v694 = vmul.f32 %v653, %v681
        %v695 = vmul.f32 %v662, %v681
        %v696 = vmul.f32 %v671, %v681
        %v697 = vmul.f32 %v680, %v681
        %v714 = vcombine.low %v682, %v683
        %v715 = vcombine.low %v684, %v685
        %v716 = vcombine.low %v686, %v687
        %v717 = vcombine.low %v688, %v689
        %v719 = vunpack.c.l.s4 1966171168
        %v720 = vunpack.c.0.s8 %v719
        %v721 = vlaneseq
        %v722 = vshrl.u32 %v721, 7
        %v723 = vsub.s32 %v720, %v722
        %v724 = vrot.slane %v714, %v723
        %v726 = vunpack.c.l.s4 1966171168
        %v727 = vunpack.c.0.s8 %v726
        %v728 = vlaneseq
        %v729 = vshrl.u32 %v728, 7
        %v730 = vsub.s32 %v727, %v729
        %v731 = vrot.slane %v715, %v730
        %v733 = vunpack.c.l.s4 1966171168
        %v734 = vunpack.c.0.s8 %v733
        %v735 = vlaneseq
        %v736 = vshrl.u32 %v735, 7
        %v737 = vsub.s32 %v734, %v736
        %v738 = vrot.slane %v716, %v737
        %v740 = vunpack.c.l.s4 1966171168
        %v741 = vunpack.c.0.s8 %v740
        %v742 = vlaneseq
        %v743 = vshrl.u32 %v742, 7
        %v744 = vsub.s32 %v741, %v743
        %v745 = vrot.slane %v717, %v744
        %v746 = vcombine.low %v724, %v731
        %v747 = vcombine.low %v738, %v745
        %v749 = vunpack.c.l.s4 1966171168
        %v750 = vunpack.c.0.s8 %v749
        %v751 = vlaneseq
        %v752 = vshrl.u32 %v751, 7
        %v753 = vsub.s32 %v750, %v752
        %v754 = vrot.slane %v746, %v753
        %v756 = vunpack.c.l.s4 1966171168
        %v757 = vunpack.c.0.s8 %v756
        %v758 = vlaneseq
        %v759 = vshrl.u32 %v758, 7
        %v760 = vsub.s32 %v757, %v759
        %v761 = vrot.slane %v747, %v760
        %v762 = vcombine.low %v754, %v761
        %v763 = vcombine.low %v690, %v691
        %v764 = vcombine.low %v692, %v693
        %v765 = vcombine.low %v694, %v695
        %v766 = vcombine.low %v696, %v697
        %v768 = vunpack.c.l.s4 1966171168
        %v769 = vunpack.c.0.s8 %v768
        %v770 = vlaneseq
        %v771 = vshrl.u32 %v770, 7
        %v772 = vsub.s32 %v769, %v771
        %v773 = vrot.slane %v763, %v772
        %v775 = vunpack.c.l.s4 1966171168
        %v776 = vunpack.c.0.s8 %v775
        %v777 = vlaneseq
        %v778 = vshrl.u32 %v777, 7
        %v779 = vsub.s32 %v776, %v778
        %v780 = vrot.slane %v764, %v779
        %v782 = vunpack.c.l.s4 1966171168
        %v783 = vunpack.c.0.s8 %v782
        %v784 = vlaneseq
        %v785 = vshrl.u32 %v784, 7
        %v786 = vsub.s32 %v783, %v785
        %v787 = vrot.slane %v765, %v786
        %v789 = vunpack.c.l.s4 1966171168
        %v790 = vunpack.c.0.s8 %v789
        %v791 = vlaneseq
        %v792 = vshrl.u32 %v791, 7
        %v793 = vsub.s32 %v790, %v792
        %v794 = vrot.slane %v766, %v793
        %v795 = vcombine.low %v773, %v780
        %v796 = vcombine.low %v787, %v794
        %v798 = vunpack.c.l.s4 1966171168
        %v799 = vunpack.c.0.s8 %v798
        %v800 = vlaneseq
        %v801 = vshrl.u32 %v800, 7
        %v802 = vsub.s32 %v799, %v801
        %v803 = vrot.slane %v795, %v802
        %v805 = vunpack.c.l.s4 1966171168
        %v806 = vunpack.c.0.s8 %v805
        %v807 = vlaneseq
        %v808 = vshrl.u32 %v807, 7
        %v809 = vsub.s32 %v806, %v808
        %v810 = vrot.slane %v796, %v809
        %v811 = vcombine.low %v803, %v810
        %814 = vst [vmem:[%s374] sm:$0xff] %v762
        %815 = vst [vmem:[%s374 + $0x8] sm:$0xff] %v811
        %v816 = vmax.f32 %v473, %v489
        %v817 = vmax.f32 %v816, %v505
        %v818 = vmax.f32 %v817, %v521
        %v819 = vrot.slane %v818, 4
        %v820 = vmax.f32 %v818, %v819
        %v821 = vrot.slane %v820, 2
        %v822 = vmax.f32 %v820, %v821
        %v823 = vrot.slane %v822, 1
        %v824 = vmax.f32 %v822, %v823
        %v825 = vmax.f32 %v474, %v490
        %v826 = vmax.f32 %v825, %v506
        %v827 = vmax.f32 %v826, %v522
        %v828 = vrot.slane %v827, 4
        %v829 = vmax.f32 %v827, %v828
        %v830 = vrot.slane %v829, 2
        %v831 = vmax.f32 %v829, %v830
        %v832 = vrot.slane %v831, 1
        %v833 = vmax.f32 %v831, %v832
        %v834 = vmax.f32 %v475, %v491
        %v835 = vmax.f32 %v834, %v507
        %v836 = vmax.f32 %v835, %v523
        %v837 = vrot.slane %v836, 4
        %v838 = vmax.f32 %v836, %v837
        %v839 = vrot.slane %v838, 2
        %v840 = vmax.f32 %v838, %v839
        %v841 = vrot.slane %v840, 1
        %v842 = vmax.f32 %v840, %v841
        %v843 = vmax.f32 %v476, %v492
        %v844 = vmax.f32 %v843, %v508
        %v845 = vmax.f32 %v844, %v524
        %v846 = vrot.slane %v845, 4
        %v847 = vmax.f32 %v845, %v846
        %v848 = vrot.slane %v847, 2
        %v849 = vmax.f32 %v847, %v848
        %v850 = vrot.slane %v849, 1
        %v851 = vmax.f32 %v849, %v850
        %v852 = vmax.f32 %v477, %v493
        %v853 = vmax.f32 %v852, %v509
        %v854 = vmax.f32 %v853, %v525
        %v855 = vrot.slane %v854, 4
        %v856 = vmax.f32 %v854, %v855
        %v857 = vrot.slane %v856, 2
        %v858 = vmax.f32 %v856, %v857
        %v859 = vrot.slane %v858, 1
        %v860 = vmax.f32 %v858, %v859
        %v861 = vmax.f32 %v478, %v494
        %v862 = vmax.f32 %v861, %v510
        %v863 = vmax.f32 %v862, %v526
        %v864 = vrot.slane %v863, 4
        %v865 = vmax.f32 %v863, %v864
        %v866 = vrot.slane %v865, 2
        %v867 = vmax.f32 %v865, %v866
        %v868 = vrot.slane %v867, 1
        %v869 = vmax.f32 %v867, %v868
        %v870 = vmax.f32 %v479, %v495
        %v871 = vmax.f32 %v870, %v511
        %v872 = vmax.f32 %v871, %v527
        %v873 = vrot.slane %v872, 4
        %v874 = vmax.f32 %v872, %v873
        %v875 = vrot.slane %v874, 2
        %v876 = vmax.f32 %v874, %v875
        %v877 = vrot.slane %v876, 1
        %v878 = vmax.f32 %v876, %v877
        %v879 = vmax.f32 %v480, %v496
        %v880 = vmax.f32 %v879, %v512
        %v881 = vmax.f32 %v880, %v528
        %v882 = vrot.slane %v881, 4
        %v883 = vmax.f32 %v881, %v882
        %v884 = vrot.slane %v883, 2
        %v885 = vmax.f32 %v883, %v884
        %v886 = vrot.slane %v885, 1
        %v887 = vmax.f32 %v885, %v886
        %v888 = vmax.f32 %v481, %v497
        %v889 = vmax.f32 %v888, %v513
        %v890 = vmax.f32 %v889, %v529
        %v891 = vrot.slane %v890, 4
        %v892 = vmax.f32 %v890, %v891
        %v893 = vrot.slane %v892, 2
        %v894 = vmax.f32 %v892, %v893
        %v895 = vrot.slane %v894, 1
        %v896 = vmax.f32 %v894, %v895
        %v897 = vmax.f32 %v482, %v498
        %v898 = vmax.f32 %v897, %v514
        %v899 = vmax.f32 %v898, %v530
        %v900 = vrot.slane %v899, 4
        %v901 = vmax.f32 %v899, %v900
        %v902 = vrot.slane %v901, 2
        %v903 = vmax.f32 %v901, %v902
        %v904 = vrot.slane %v903, 1
        %v905 = vmax.f32 %v903, %v904
        %v906 = vmax.f32 %v483, %v499
        %v907 = vmax.f32 %v906, %v515
        %v908 = vmax.f32 %v907, %v531
        %v909 = vrot.slane %v908, 4
        %v910 = vmax.f32 %v908, %v909
        %v911 = vrot.slane %v910, 2
        %v912 = vmax.f32 %v910, %v911
        %v913 = vrot.slane %v912, 1
        %v914 = vmax.f32 %v912, %v913
        %v915 = vmax.f32 %v484, %v500
        %v916 = vmax.f32 %v915, %v516
        %v917 = vmax.f32 %v916, %v532
        %v918 = vrot.slane %v917, 4
        %v919 = vmax.f32 %v917, %v918
        %v920 = vrot.slane %v919, 2
        %v921 = vmax.f32 %v919, %v920
        %v922 = vrot.slane %v921, 1
        %v923 = vmax.f32 %v921, %v922
        %v924 = vmax.f32 %v485, %v501
        %v925 = vmax.f32 %v924, %v517
        %v926 = vmax.f32 %v925, %v533
        %v927 = vrot.slane %v926, 4
        %v928 = vmax.f32 %v926, %v927
        %v929 = vrot.slane %v928, 2
        %v930 = vmax.f32 %v928, %v929
        %v931 = vrot.slane %v930, 1
        %v932 = vmax.f32 %v930, %v931
        %v933 = vmax.f32 %v486, %v502
        %v934 = vmax.f32 %v933, %v518
        %v935 = vmax.f32 %v934, %v534
        %v936 = vrot.slane %v935, 4
        %v937 = vmax.f32 %v935, %v936
        %v938 = vrot.slane %v937, 2
        %v939 = vmax.f32 %v937, %v938
        %v940 = vrot.slane %v939, 1
        %v941 = vmax.f32 %v939, %v940
        %v942 = vmax.f32 %v487, %v503
        %v943 = vmax.f32 %v942, %v519
        %v944 = vmax.f32 %v943, %v535
        %v945 = vrot.slane %v944, 4
        %v946 = vmax.f32 %v944, %v945
        %v947 = vrot.slane %v946, 2
        %v948 = vmax.f32 %v946, %v947
        %v949 = vrot.slane %v948, 1
        %v950 = vmax.f32 %v948, %v949
        %v951 = vmax.f32 %v488, %v504
        %v952 = vmax.f32 %v951, %v520
        %v953 = vmax.f32 %v952, %v536
        %v954 = vrot.slane %v953, 4
        %v955 = vmax.f32 %v953, %v954
        %v956 = vrot.slane %v955, 2
        %v957 = vmax.f32 %v955, %v956
        %v958 = vrot.slane %v957, 1
        %v959 = vmax.f32 %v957, %v958
        %v976 = vcombine.low %v824, %v833
        %v977 = vcombine.low %v842, %v851
        %v978 = vcombine.low %v860, %v869
        %v979 = vcombine.low %v878, %v887
        %v981 = vunpack.c.l.s4 1966171168
        %v982 = vunpack.c.0.s8 %v981
        %v983 = vlaneseq
        %v984 = vshrl.u32 %v983, 7
        %v985 = vsub.s32 %v982, %v984
        %v986 = vrot.slane %v976, %v985
        %v988 = vunpack.c.l.s4 1966171168
        %v989 = vunpack.c.0.s8 %v988
        %v990 = vlaneseq
        %v991 = vshrl.u32 %v990, 7
        %v992 = vsub.s32 %v989, %v991
        %v993 = vrot.slane %v977, %v992
        %v995 = vunpack.c.l.s4 1966171168
        %v996 = vunpack.c.0.s8 %v995
        %v997 = vlaneseq
        %v998 = vshrl.u32 %v997, 7
        %v999 = vsub.s32 %v996, %v998
        %v1000 = vrot.slane %v978, %v999
        %v1002 = vunpack.c.l.s4 1966171168
        %v1003 = vunpack.c.0.s8 %v1002
        %v1004 = vlaneseq
        %v1005 = vshrl.u32 %v1004, 7
        %v1006 = vsub.s32 %v1003, %v1005
        %v1007 = vrot.slane %v979, %v1006
        %v1008 = vcombine.low %v986, %v993
        %v1009 = vcombine.low %v1000, %v1007
        %v1011 = vunpack.c.l.s4 1966171168
        %v1012 = vunpack.c.0.s8 %v1011
        %v1013 = vlaneseq
        %v1014 = vshrl.u32 %v1013, 7
        %v1015 = vsub.s32 %v1012, %v1014
        %v1016 = vrot.slane %v1008, %v1015
        %v1018 = vunpack.c.l.s4 1966171168
        %v1019 = vunpack.c.0.s8 %v1018
        %v1020 = vlaneseq
        %v1021 = vshrl.u32 %v1020, 7
        %v1022 = vsub.s32 %v1019, %v1021
        %v1023 = vrot.slane %v1009, %v1022
        %v1024 = vcombine.low %v1016, %v1023
        %v1025 = vcombine.low %v896, %v905
        %v1026 = vcombine.low %v914, %v923
        %v1027 = vcombine.low %v932, %v941
        %v1028 = vcombine.low %v950, %v959
        %v1030 = vunpack.c.l.s4 1966171168
        %v1031 = vunpack.c.0.s8 %v1030
        %v1032 = vlaneseq
        %v1033 = vshrl.u32 %v1032, 7
        %v1034 = vsub.s32 %v1031, %v1033
        %v1035 = vrot.slane %v1025, %v1034
        %v1037 = vunpack.c.l.s4 1966171168
        %v1038 = vunpack.c.0.s8 %v1037
        %v1039 = vlaneseq
        %v1040 = vshrl.u32 %v1039, 7
        %v1041 = vsub.s32 %v1038, %v1040
        %v1042 = vrot.slane %v1026, %v1041
        %v1044 = vunpack.c.l.s4 1966171168
        %v1045 = vunpack.c.0.s8 %v1044
        %v1046 = vlaneseq
        %v1047 = vshrl.u32 %v1046, 7
        %v1048 = vsub.s32 %v1045, %v1047
        %v1049 = vrot.slane %v1027, %v1048
        %v1051 = vunpack.c.l.s4 1966171168
        %v1052 = vunpack.c.0.s8 %v1051
        %v1053 = vlaneseq
        %v1054 = vshrl.u32 %v1053, 7
        %v1055 = vsub.s32 %v1052, %v1054
        %v1056 = vrot.slane %v1028, %v1055
        %v1057 = vcombine.low %v1035, %v1042
        %v1058 = vcombine.low %v1049, %v1056
        %v1060 = vunpack.c.l.s4 1966171168
        %v1061 = vunpack.c.0.s8 %v1060
        %v1062 = vlaneseq
        %v1063 = vshrl.u32 %v1062, 7
        %v1064 = vsub.s32 %v1061, %v1063
        %v1065 = vrot.slane %v1057, %v1064
        %v1067 = vunpack.c.l.s4 1966171168
        %v1068 = vunpack.c.0.s8 %v1067
        %v1069 = vlaneseq
        %v1070 = vshrl.u32 %v1069, 7
        %v1071 = vsub.s32 %v1068, %v1070
        %v1072 = vrot.slane %v1058, %v1071
        %v1073 = vcombine.low %v1065, %v1072
        %1076 = vst [vmem:[%s383] sm:$0xff] %v1024
        %1077 = vst [vmem:[%s383 + $0x8] sm:$0xff] %v1073
        %s1078 = smul.u32 16, %s20
        %p1079 = scmp.lt.s32.totalorder %s19, 1
        %s1080 = scalar_select %p1079, %s19, 1
        %p1081 = scmp.lt.s32.totalorder %s1078, 31
        %s1082 = scalar_select %p1081, %s1078, 31
        %s1083 = smul.addr %s1080, 32
        %s1084 = sadd.s32 %s1082, %s1083
        %s1085 = scalar_lea.vmem %s2, %s1084
        %s1086 = smul.u32 16, %s20
        %p1087 = scmp.lt.s32.totalorder %s19, 1
        %s1088 = scalar_select %p1087, %s19, 1
        %p1089 = scmp.lt.s32.totalorder %s1086, 31
        %s1090 = scalar_select %p1089, %s1086, 31
        %s1091 = smul.addr %s1088, 32
        %s1092 = sadd.s32 %s1090, %s1091
        %s1093 = scalar_lea.vmem %s3, %s1092
        // Predicated region
        $region52: #{cbam3d_forward.5} parent=46 // pred_check
          %p1094 = pneg %p101
        $region53: #{cbam3d_forward.5} parent=46 // pred_check_branch
          %1096 = sbr.rel (%p1094) target = $region55
        $region54: #{cbam3d_forward.5} parent=46 // pred_region
          %s1097 = smul.u32 16, %s20
        $region55: #{cbam3d_forward.5} parent=46 // pred_fallthru
          _
        // Predicated region
        $region56: #{cbam3d_forward.5} parent=46 // pred_check
          %p1098 = pneg %p129
        $region57: #{cbam3d_forward.5} parent=46 // pred_check_branch
          %1100 = sbr.rel (%p1098) target = $region59
        $region58: #{cbam3d_forward.5} parent=46 // pred_region
          %s1101 = smul.u32 16, %s20
        $region59: #{cbam3d_forward.5} parent=46 // pred_fallthru
          _
      $region47: #{cbam3d_forward.5} parent=5 // pred_fallthru
        _
      %p1102 = scmp.le.s32.totalorder 2, %s10
      // Predicated region
      $region60: #{cbam3d_forward.5} parent=5 // pred_check
        %p1103 = pneg %p1102
      $region61: #{cbam3d_forward.5} parent=5 // pred_check_branch
        %1105 = sbr.rel (%p1103) target = $region63
      $region62: #{cbam3d_forward.5} parent=5 // pred_region
        %s1106 = ssub.s32 %s10, 2
        // Predicated region
        $region64: #{cbam3d_forward.5} parent=62 // pred_check
          %p1107 = pneg %p107
        $region65: #{cbam3d_forward.5} parent=62 // pred_check_branch
          %1109 = sbr.rel (%p1107) target = $region67
        $region66: #{cbam3d_forward.5} parent=62 // pred_region
          %s1110 = smul.u32 16, %s22
          %p1111 = scmp.lt.s32.totalorder %s21, 1
          %s1112 = scalar_select %p1111, %s21, 1
          %p1113 = scmp.lt.s32.totalorder %s1110, 31
          %s1114 = scalar_select %p1113, %s1110, 31
          %s1115 = smul.addr %s1112, 32
          %s1116 = sadd.s32 %s1114, %s1115
          %s1117 = scalar_lea.vmem %s2, %s1116
        $region67: #{cbam3d_forward.5} parent=62 // pred_fallthru
          _
        // Predicated region
        $region68: #{cbam3d_forward.5} parent=62 // pred_check
          %p1118 = pneg %p135
        $region69: #{cbam3d_forward.5} parent=62 // pred_check_branch
          %1120 = sbr.rel (%p1118) target = $region71
        $region70: #{cbam3d_forward.5} parent=62 // pred_region
          %s1121 = smul.u32 16, %s22
          %p1122 = scmp.lt.s32.totalorder %s21, 1
          %s1123 = scalar_select %p1122, %s21, 1
          %p1124 = scmp.lt.s32.totalorder %s1121, 31
          %s1125 = scalar_select %p1124, %s1121, 31
          %s1126 = smul.addr %s1123, 32
          %s1127 = sadd.s32 %s1125, %s1126
          %s1128 = scalar_lea.vmem %s3, %s1127
        $region71: #{cbam3d_forward.5} parent=62 // pred_fallthru
          _
      $region63: #{cbam3d_forward.5} parent=5 // pred_fallthru
        _
    $region6: #{cbam3d_forward.5} parent=1 // loop_footer
      %s14 = sadd.s32 1, %s10
    $region7: #{cbam3d_forward.5} parent=1 // loop_footer_branch
      %9 = sbr.rel target = $region3
    $region8: #{cbam3d_forward.5} parent=1 // loop_exit
      _

// kernel: cbam3d_forward.7
$region0: #{cbam3d_forward.7}
  #allocation0 [shape = 'u32[]', space=smem, size = 0x4, offset = 0x4, fixed_abs, tag = 'smem constant byte address 0x4 - core index']
  #allocation1 [shape = 'u32[144,128]{1,0:T(1,128)}', space=vmem, size = 0x12000, scoped, tag = 'internal scratch']
  %s0 = inlined_call_operand.vmem [shape: f32[2,32,4096], index: 0, kind: input, shape index: {}]
  %s1 = inlined_call_operand.vmem [shape: f32[2,32,1], index: 1, kind: input, shape index: {}]
  %s2 = inlined_call_operand.vmem [shape: f32[2,1,4096], index: 2, kind: input, shape index: {}]
  %s3 = inlined_call_operand.vmem [shape: f32[2,32,4096], index: 3, kind: output, shape index: {}]
  %s4 = sld [smem:[#allocation0]]
  $region87: #{cbam3d_forward.7} parent=0
    _
  %s6 = ssub.s32 1, %s4
  %s7 = scalar_select 0, %s6, %s4
  $region1: #{cbam3d_forward.7} parent=0
    #allocation2 [shape = 'u8[524288]{0}', space=vmem, size = 0x80000, scoped, tag = 'input window, operand 0']
    #allocation3 [shape = 'u8[524288]{0}', space=vmem, size = 0x80000, scoped, tag = 'output window, operand 0']
    loop: start=0, step=1, limit=6
    $region2: #{cbam3d_forward.7} parent=1 // loop_pre_header
      _
    $region3: #{cbam3d_forward.7} parent=1 // loop_header
      %s9 = sphi 0, %s13
      %p10 = scmp.ge.s32.totalorder %s9, 6
      %s16 = sphi 0, %s28
      %s17 = sphi 0, %s24
      %s18 = sphi 0, %s16
      %s19 = sphi 0, %s17
      %s20 = sphi 0, %s18
      %s21 = sphi 0, %s19
      %s33 = sphi 0, %s35
      %s36 = sphi 0, %s33
      %s37 = sphi 0, %s36
      %s53 = sphi 0, %s37
      %s59 = sphi 0, %s61
      %s62 = sphi 0, %s59
      %s63 = sphi 0, %s62
      %s79 = sphi 0, %s63
      %s87 = sphi 0, %s89
      %s90 = sphi 0, %s87
      %s91 = sphi 0, %s90
      %s107 = sphi 0, %s91
      %s115 = sphi 0, %s117
      %s118 = sphi 0, %s115
      %s119 = sphi 0, %s118
      %s135 = sphi 0, %s119
    $region4: #{cbam3d_forward.7} parent=1 // loop_header_branch
      %12 = sbr.rel (%p10) target = $region8
    $region5: #{cbam3d_forward.7} parent=1 // loop_body
      %s14 = ssub.s32 %s9, 1
      %s15 = ssub.s32 %s9, 2
      %s22 = sadd.s32 1, %s17
      %p23 = scmp.ge.s32.totalorder %s22, 2
      %s24 = scalar_select %p23, 0, %s22
      %s25 = sadd.s32 1, %s16
      %s26 = scalar_select %p23, %s25, %s16
      %p27 = scmp.ge.s32.totalorder %s26, 2
      %s28 = scalar_select %p27, 0, %s26
      %s29 = ssub.s32 %s16, %s28
      %s30 = ssub.s32 %s17, %s24
      %s31 = sor.u32 %s29, %s30
      %p32 = scmp.eq.s32.totalorder %s31, 0
      %s34 = sadd.s32 %s33, 1
      %s35 = scalar_select %p32, %s33, %s34
      %p38 = pneg %p32
      %p39 = scmp.eq.s32.totalorder %s9, 3
      %p40 = por %p38, %p39
      %p41 = scmp.ne.s32.totalorder %s33, %s36
      %p42 = scmp.eq.s32.totalorder %s9, 0
      %p43 = por %p41, %p42
      %p44 = scmp.ne.s32.totalorder %s33, %s36
      %p45 = scmp.eq.s32.totalorder %s14, 3
      %p46 = por %p44, %p45
      %p47 = scmp.ne.s32.totalorder %s36, %s37
      %p48 = scmp.eq.s32.totalorder %s14, 0
      %p49 = por %p47, %p48
      %p50 = scmp.ne.s32.totalorder %s36, %s37
      %p51 = scmp.eq.s32.totalorder %s15, 3
      %p52 = por %p50, %p51
      %p54 = scmp.ne.s32.totalorder %s37, %s53
      %p55 = scmp.eq.s32.totalorder %s15, 0
      %p56 = por %p54, %p55
      %s57 = ssub.s32 %s16, %s28
      %p58 = scmp.eq.s32.totalorder %s57, 0
      %s60 = sadd.s32 %s59, 1
      %s61 = scalar_select %p58, %s59, %s60
      %p64 = pneg %p58
      %p65 = scmp.eq.s32.totalorder %s9, 3
      %p66 = por %p64, %p65
      %p67 = scmp.ne.s32.totalorder %s59, %s62
      %p68 = scmp.eq.s32.totalorder %s9, 0
      %p69 = por %p67, %p68
      %p70 = scmp.ne.s32.totalorder %s59, %s62
      %p71 = scmp.eq.s32.totalorder %s14, 3
      %p72 = por %p70, %p71
      %p73 = scmp.ne.s32.totalorder %s62, %s63
      %p74 = scmp.eq.s32.totalorder %s14, 0
      %p75 = por %p73, %p74
      %p76 = scmp.ne.s32.totalorder %s62, %s63
      %p77 = scmp.eq.s32.totalorder %s15, 3
      %p78 = por %p76, %p77
      %p80 = scmp.ne.s32.totalorder %s63, %s79
      %p81 = scmp.eq.s32.totalorder %s15, 0
      %p82 = por %p80, %p81
      %s83 = ssub.s32 %s16, %s28
      %s84 = ssub.s32 %s17, %s24
      %s85 = sor.u32 %s83, %s84
      %p86 = scmp.eq.s32.totalorder %s85, 0
      %s88 = sadd.s32 %s87, 1
      %s89 = scalar_select %p86, %s87, %s88
      %p92 = pneg %p86
      %p93 = scmp.eq.s32.totalorder %s9, 3
      %p94 = por %p92, %p93
      %p95 = scmp.ne.s32.totalorder %s87, %s90
      %p96 = scmp.eq.s32.totalorder %s9, 0
      %p97 = por %p95, %p96
      %p98 = scmp.ne.s32.totalorder %s87, %s90
      %p99 = scmp.eq.s32.totalorder %s14, 3
      %p100 = por %p98, %p99
      %p101 = scmp.ne.s32.totalorder %s90, %s91
      %p102 = scmp.eq.s32.totalorder %s14, 0
      %p103 = por %p101, %p102
      %p104 = scmp.ne.s32.totalorder %s90, %s91
      %p105 = scmp.eq.s32.totalorder %s15, 3
      %p106 = por %p104, %p105
      %p108 = scmp.ne.s32.totalorder %s91, %s107
      %p109 = scmp.eq.s32.totalorder %s15, 0
      %p110 = por %p108, %p109
      %s111 = ssub.s32 %s16, %s28
      %s112 = ssub.s32 %s17, %s24
      %s113 = sor.u32 %s111, %s112
      %p114 = scmp.eq.s32.totalorder %s113, 0
      %s116 = sadd.s32 %s115, 1
      %s117 = scalar_select %p114, %s115, %s116
      %p120 = pneg %p114
      %p121 = scmp.eq.s32.totalorder %s9, 3
      %p122 = por %p120, %p121
      %p123 = scmp.ne.s32.totalorder %s115, %s118
      %p124 = scmp.eq.s32.totalorder %s9, 0
      %p125 = por %p123, %p124
      %p126 = scmp.ne.s32.totalorder %s115, %s118
      %p127 = scmp.eq.s32.totalorder %s14, 3
      %p128 = por %p126, %p127
      %p129 = scmp.ne.s32.totalorder %s118, %s119
      %p130 = scmp.eq.s32.totalorder %s14, 0
      %p131 = por %p129, %p130
      %p132 = scmp.ne.s32.totalorder %s118, %s119
      %p133 = scmp.eq.s32.totalorder %s15, 3
      %p134 = por %p132, %p133
      %p136 = scmp.ne.s32.totalorder %s119, %s135
      %p137 = scmp.eq.s32.totalorder %s15, 0
      %p138 = por %p136, %p137
      %p139 = scmp.le.s32.totalorder 1, %s9
      %p140 = scmp.lt.s32.totalorder %s9, 5
      %p141 = pnand %p139, %p140
      %p142 = pneg %p141
      // Predicated region
      $region9: #{cbam3d_forward.7} parent=5 // pred_check
        _
      $region10: #{cbam3d_forward.7} parent=5 // pred_check_branch
        %144 = sbr.rel (%p141) target = $region12
      $region11: #{cbam3d_forward.7} parent=5 // pred_region
        %s145 = ssub.s32 %s9, 1
      $region12: #{cbam3d_forward.7} parent=5 // pred_fallthru
        _
      %p146 = scmp.lt.s32.totalorder %s9, 4
      // Predicated region
      $region13: #{cbam3d_forward.7} parent=5 // pred_check
        %p147 = pneg %p146
      $region14: #{cbam3d_forward.7} parent=5 // pred_check_branch
        %149 = sbr.rel (%p147) target = $region16
      $region15: #{cbam3d_forward.7} parent=5 // pred_region
        // Predicated region
        $region17: #{cbam3d_forward.7} parent=15 // pred_check
          %p150 = pneg %p43
        $region18: #{cbam3d_forward.7} parent=15 // pred_check_branch
          %152 = sbr.rel (%p150) target = $region20
        $region19: #{cbam3d_forward.7} parent=15 // pred_region
          %s153 = sand.u32 %s33, 1
          %s154 = sand.u32 %s33, 1
          %s155 = smul.addr %s154, 512
          %s156 = scalar_lea.vmem [#allocation2], %s155
          %s157 = smul.u32 16, %s17
          %s158 = smul.addr %s16, 128
          %s159 = sadd.s32 %s157, %s158
          %s160 = smul.addr %s159, 8
          %s161 = scalar_lea.vmem %s0, %s160
          // Predicated region
          $region21: #{cbam3d_forward.7} parent=19 // pred_check
            _
          $region22: #{cbam3d_forward.7} parent=19 // pred_check_branch
            %163 = sbr.rel (0) target = $region24
          $region23: #{cbam3d_forward.7} parent=19 // pred_region
            // Predicated region
            $region25: #{cbam3d_forward.7} parent=23 // pred_check
              _
            $region26: #{cbam3d_forward.7} parent=23 // pred_check_branch
              %165 = sbr.rel (0) target = $region28
            $region27: #{cbam3d_forward.7} parent=23 // pred_region
              loop: start=0, step=1, limit=1
              $region29: #{cbam3d_forward.7} parent=27 // loop_pre_header
                _
              $region30: #{cbam3d_forward.7} parent=27 // loop_header
                %s167 = sphi 0, %s171
                %p168 = scmp.ge.s32.totalorder %s167, 1
                %s172 = sphi %s161, %s161
                %s173 = sphi %s156, %s156
              $region31: #{cbam3d_forward.7} parent=27 // loop_header_branch
                %170 = sbr.rel (%p168) target = $region35
              $region32: #{cbam3d_forward.7} parent=27 // loop_body
                %v174 = vld [vmem:[%s172] sm:$0xff]
                %175 = vst [vmem:[%s173] sm:$0xff] %v174
                %v176 = vld [vmem:[%s172 + $0x8] sm:$0xff]
                %177 = vst [vmem:[%s173 + $0x8] sm:$0xff] %v176
                %v178 = vld [vmem:[%s172 + $0x10] sm:$0xff]
                %179 = vst [vmem:[%s173 + $0x10] sm:$0xff] %v178
                %v180 = vld [vmem:[%s172 + $0x18] sm:$0xff]
                %181 = vst [vmem:[%s173 + $0x18] sm:$0xff] %v180
                %v182 = vld [vmem:[%s172 + $0x20] sm:$0xff]
                %183 = vst [vmem:[%s173 + $0x20] sm:$0xff] %v182
                %v184 = vld [vmem:[%s172 + $0x28] sm:$0xff]
                %185 = vst [vmem:[%s173 + $0x28] sm:$0xff] %v184
                %v186 = vld [vmem:[%s172 + $0x30] sm:$0xff]
                %187 = vst [vmem:[%s173 + $0x30] sm:$0xff] %v186
                %v188 = vld [vmem:[%s172 + $0x38] sm:$0xff]
                %189 = vst [vmem:[%s173 + $0x38] sm:$0xff] %v188
                %v190 = vld [vmem:[%s172 + $0x40] sm:$0xff]
                %191 = vst [vmem:[%s173 + $0x40] sm:$0xff] %v190
                %v192 = vld [vmem:[%s172 + $0x48] sm:$0xff]
                %193 = vst [vmem:[%s173 + $0x48] sm:$0xff] %v192
                %v194 = vld [vmem:[%s172 + $0x50] sm:$0xff]
                %195 = vst [vmem:[%s173 + $0x50] sm:$0xff] %v194
                %v196 = vld [vmem:[%s172 + $0x58] sm:$0xff]
                %197 = vst [vmem:[%s173 + $0x58] sm:$0xff] %v196
                %v198 = vld [vmem:[%s172 + $0x60] sm:$0xff]
                %199 = vst [vmem:[%s173 + $0x60] sm:$0xff] %v198
                %v200 = vld [vmem:[%s172 + $0x68] sm:$0xff]
                %201 = vst [vmem:[%s173 + $0x68] sm:$0xff] %v200
                %v202 = vld [vmem:[%s172 + $0x70] sm:$0xff]
                %203 = vst [vmem:[%s173 + $0x70] sm:$0xff] %v202
                %v204 = vld [vmem:[%s172 + $0x78] sm:$0xff]
                %205 = vst [vmem:[%s173 + $0x78] sm:$0xff] %v204
                %v206 = vld [vmem:[%s172 + $0x100] sm:$0xff]
                %207 = vst [vmem:[%s173 + $0x80] sm:$0xff] %v206
                %v208 = vld [vmem:[%s172 + $0x108] sm:$0xff]
                %209 = vst [vmem:[%s173 + $0x88] sm:$0xff] %v208
                %v210 = vld [vmem:[%s172 + $0x110] sm:$0xff]
                %211 = vst [vmem:[%s173 + $0x90] sm:$0xff] %v210
                %v212 = vld [vmem:[%s172 + $0x118] sm:$0xff]
                %213 = vst [vmem:[%s173 + $0x98] sm:$0xff] %v212
                %v214 = vld [vmem:[%s172 + $0x120] sm:$0xff]
                %215 = vst [vmem:[%s173 + $0xa0] sm:$0xff] %v214
                %v216 = vld [vmem:[%s172 + $0x128] sm:$0xff]
                %217 = vst [vmem:[%s173 + $0xa8] sm:$0xff] %v216
                %v218 = vld [vmem:[%s172 + $0x130] sm:$0xff]
                %219 = vst [vmem:[%s173 + $0xb0] sm:$0xff] %v218
                %v220 = vld [vmem:[%s172 + $0x138] sm:$0xff]
                %221 = vst [vmem:[%s173 + $0xb8] sm:$0xff] %v220
                %v222 = vld [vmem:[%s172 + $0x140] sm:$0xff]
                %223 = vst [vmem:[%s173 + $0xc0] sm:$0xff] %v222
                %v224 = vld [vmem:[%s172 + $0x148] sm:$0xff]
                %225 = vst [vmem:[%s173 + $0xc8] sm:$0xff] %v224
                %v226 = vld [vmem:[%s172 + $0x150] sm:$0xff]
                %227 = vst [vmem:[%s173 + $0xd0] sm:$0xff] %v226
                %v228 = vld [vmem:[%s172 + $0x158] sm:$0xff]
                %229 = vst [vmem:[%s173 + $0xd8] sm:$0xff] %v228
                %v230 = vld [vmem:[%s172 + $0x160] sm:$0xff]
                %231 = vst [vmem:[%s173 + $0xe0] sm:$0xff] %v230
                %v232 = vld [vmem:[%s172 + $0x168] sm:$0xff]
                %233 = vst [vmem:[%s173 + $0xe8] sm:$0xff] %v232
                %v234 = vld [vmem:[%s172 + $0x170] sm:$0xff]
                %235 = vst [vmem:[%s173 + $0xf0] sm:$0xff] %v234
                %v236 = vld [vmem:[%s172 + $0x178] sm:$0xff]
                %237 = vst [vmem:[%s173 + $0xf8] sm:$0xff] %v236
                %v238 = vld [vmem:[%s172 + $0x200] sm:$0xff]
                %239 = vst [vmem:[%s173 + $0x100] sm:$0xff] %v238
                %v240 = vld [vmem:[%s172 + $0x208] sm:$0xff]
                %241 = vst [vmem:[%s173 + $0x108] sm:$0xff] %v240
                %v242 = vld [vmem:[%s172 + $0x210] sm:$0xff]
                %243 = vst [vmem:[%s173 + $0x110] sm:$0xff] %v242
                %v244 = vld [vmem:[%s172 + $0x218] sm:$0xff]
                %245 = vst [vmem:[%s173 + $0x118] sm:$0xff] %v244
                %v246 = vld [vmem:[%s172 + $0x220] sm:$0xff]
                %247 = vst [vmem:[%s173 + $0x120] sm:$0xff] %v246
                %v248 = vld [vmem:[%s172 + $0x228] sm:$0xff]
                %249 = vst [vmem:[%s173 + $0x128] sm:$0xff] %v248
                %v250 = vld [vmem:[%s172 + $0x230] sm:$0xff]
                %251 = vst [vmem:[%s173 + $0x130] sm:$0xff] %v250
                %v252 = vld [vmem:[%s172 + $0x238] sm:$0xff]
                %253 = vst [vmem:[%s173 + $0x138] sm:$0xff] %v252
                %v254 = vld [vmem:[%s172 + $0x240] sm:$0xff]
                %255 = vst [vmem:[%s173 + $0x140] sm:$0xff] %v254
                %v256 = vld [vmem:[%s172 + $0x248] sm:$0xff]
                %257 = vst [vmem:[%s173 + $0x148] sm:$0xff] %v256
                %v258 = vld [vmem:[%s172 + $0x250] sm:$0xff]
                %259 = vst [vmem:[%s173 + $0x150] sm:$0xff] %v258
                %v260 = vld [vmem:[%s172 + $0x258] sm:$0xff]
                %261 = vst [vmem:[%s173 + $0x158] sm:$0xff] %v260
                %v262 = vld [vmem:[%s172 + $0x260] sm:$0xff]
                %263 = vst [vmem:[%s173 + $0x160] sm:$0xff] %v262
                %v264 = vld [vmem:[%s172 + $0x268] sm:$0xff]
                %265 = vst [vmem:[%s173 + $0x168] sm:$0xff] %v264
                %v266 = vld [vmem:[%s172 + $0x270] sm:$0xff]
                %267 = vst [vmem:[%s173 + $0x170] sm:$0xff] %v266
                %v268 = vld [vmem:[%s172 + $0x278] sm:$0xff]
                %269 = vst [vmem:[%s173 + $0x178] sm:$0xff] %v268
                %v270 = vld [vmem:[%s172 + $0x300] sm:$0xff]
                %271 = vst [vmem:[%s173 + $0x180] sm:$0xff] %v270
                %v272 = vld [vmem:[%s172 + $0x308] sm:$0xff]
                %273 = vst [vmem:[%s173 + $0x188] sm:$0xff] %v272
                %v274 = vld [vmem:[%s172 + $0x310] sm:$0xff]
                %275 = vst [vmem:[%s173 + $0x190] sm:$0xff] %v274
                %v276 = vld [vmem:[%s172 + $0x318] sm:$0xff]
                %277 = vst [vmem:[%s173 + $0x198] sm:$0xff] %v276
                %v278 = vld [vmem:[%s172 + $0x320] sm:$0xff]
                %279 = vst [vmem:[%s173 + $0x1a0] sm:$0xff] %v278
                %v280 = vld [vmem:[%s172 + $0x328] sm:$0xff]
                %281 = vst [vmem:[%s173 + $0x1a8] sm:$0xff] %v280
                %v282 = vld [vmem:[%s172 + $0x330] sm:$0xff]
                %283 = vst [vmem:[%s173 + $0x1b0] sm:$0xff] %v282
                %v284 = vld [vmem:[%s172 + $0x338] sm:$0xff]
                %285 = vst [vmem:[%s173 + $0x1b8] sm:$0xff] %v284
                %v286 = vld [vmem:[%s172 + $0x340] sm:$0xff]
                %287 = vst [vmem:[%s173 + $0x1c0] sm:$0xff] %v286
                %v288 = vld [vmem:[%s172 + $0x348] sm:$0xff]
                %289 = vst [vmem:[%s173 + $0x1c8] sm:$0xff] %v288
                %v290 = vld [vmem:[%s172 + $0x350] sm:$0xff]
                %291 = vst [vmem:[%s173 + $0x1d0] sm:$0xff] %v290
                %v292 = vld [vmem:[%s172 + $0x358] sm:$0xff]
                %293 = vst [vmem:[%s173 + $0x1d8] sm:$0xff] %v292
                %v294 = vld [vmem:[%s172 + $0x360] sm:$0xff]
                %295 = vst [vmem:[%s173 + $0x1e0] sm:$0xff] %v294
                %v296 = vld [vmem:[%s172 + $0x368] sm:$0xff]
                %297 = vst [vmem:[%s173 + $0x1e8] sm:$0xff] %v296
                %v298 = vld [vmem:[%s172 + $0x370] sm:$0xff]
                %299 = vst [vmem:[%s173 + $0x1f0] sm:$0xff] %v298
                %v300 = vld [vmem:[%s172 + $0x378] sm:$0xff]
                %301 = vst [vmem:[%s173 + $0x1f8] sm:$0xff] %v300
              $region33: #{cbam3d_forward.7} parent=27 // loop_footer
                %s171 = sadd.s32 1, %s167
              $region34: #{cbam3d_forward.7} parent=27 // loop_footer_branch
                %166 = sbr.rel target = $region30
              $region35: #{cbam3d_forward.7} parent=27 // loop_exit
                _
            $region28: #{cbam3d_forward.7} parent=23 // pred_fallthru
              _
            // Predicated region
            $region36: #{cbam3d_forward.7} parent=23 // pred_check
              _
            $region37: #{cbam3d_forward.7} parent=23 // pred_check_branch
              %303 = sbr.rel target = $region39
            $region38: #{cbam3d_forward.7} parent=23 // pred_region
              _
            $region39: #{cbam3d_forward.7} parent=23 // pred_fallthru
              _
          $region24: #{cbam3d_forward.7} parent=19 // pred_fallthru
            _
          %304 = vnop
        $region20: #{cbam3d_forward.7} parent=15 // pred_fallthru
          _
        // Predicated region
        $region40: #{cbam3d_forward.7} parent=15 // pred_check
          %p305 = pneg %p69
        $region41: #{cbam3d_forward.7} parent=15 // pred_check_branch
          %307 = sbr.rel (%p305) target = $region43
        $region42: #{cbam3d_forward.7} parent=15 // pred_region
          %p308 = scmp.lt.s32.totalorder %s16, 1
          %s309 = scalar_select %p308, %s16, 1
          %s310 = smul.addr %s309, 4
          %s311 = smul.addr %s310, 8
          %s312 = scalar_lea.vmem %s1, %s311
        $region43: #{cbam3d_forward.7} parent=15 // pred_fallthru
          _
        // Predicated region
        $region44: #{cbam3d_forward.7} parent=15 // pred_check
          %p313 = pneg %p97
        $region45: #{cbam3d_forward.7} parent=15 // pred_check_branch
          %315 = sbr.rel (%p313) target = $region47
        $region46: #{cbam3d_forward.7} parent=15 // pred_region
          %s316 = smul.u32 16, %s17
          %p317 = scmp.lt.s32.totalorder %s16, 1
          %s318 = scalar_select %p317, %s16, 1
          %p319 = scmp.lt.s32.totalorder %s316, 31
          %s320 = scalar_select %p319, %s316, 31
          %s321 = smul.addr %s318, 32
          %s322 = sadd.s32 %s320, %s321
          %s323 = scalar_lea.vmem %s2, %s322
          %s324 = smul.u32 16, %s17
        $region47: #{cbam3d_forward.7} parent=15 // pred_fallthru
          _
      $region16: #{cbam3d_forward.7} parent=5 // pred_fallthru
        _
      %p325 = scmp.le.s32.totalorder 1, %s9
      %p326 = scmp.lt.s32.totalorder %s9, 5
      %p327 = pnand %p325, %p326
      %p328 = pneg %p327
      // Predicated region
      $region48: #{cbam3d_forward.7} parent=5 // pred_check
        _
      $region49: #{cbam3d_forward.7} parent=5 // pred_check_branch
        %330 = sbr.rel (%p327) target = $region51
      $region50: #{cbam3d_forward.7} parent=5 // pred_region
        %s331 = ssub.s32 %s9, 1
        %s332 = sand.u32 %s36, 1
        %s333 = sand.u32 %s36, 1
        %s334 = smul.addr %s333, 512
        %s335 = scalar_lea.vmem [#allocation2], %s334
        // Predicated region
        $region52: #{cbam3d_forward.7} parent=50 // pred_check
          %p336 = pneg %p49
        $region53: #{cbam3d_forward.7} parent=50 // pred_check_branch
          %338 = sbr.rel (%p336) target = $region55
        $region54: #{cbam3d_forward.7} parent=50 // pred_region
          _
        $region55: #{cbam3d_forward.7} parent=50 // pred_fallthru
          _
        %s339 = sand.u32 %s36, 1
        %s340 = sand.u32 %s36, 1
        %s341 = smul.addr %s340, 512
        %s342 = scalar_lea.vmem [#allocation2], %s341
        %p343 = pneg %p49
        %p344 = pneg %p46
        %p345 = scmp.lt.s32.totalorder %s18, 1
        %s346 = scalar_select %p345, %s18, 1
        %s347 = smul.addr %s346, 4
        %s348 = smul.addr %s347, 8
        %s349 = scalar_lea.vmem %s1, %s348
        %p350 = pneg %p75
        %p351 = pneg %p72
        %s352 = smul.u32 16, %s19
        %p353 = scmp.lt.s32.totalorder %s18, 1
        %s354 = scalar_select %p353, %s18, 1
        %p355 = scmp.lt.s32.totalorder %s352, 31
        %s356 = scalar_select %p355, %s352, 31
        %s357 = smul.addr %s354, 32
        %s358 = sadd.s32 %s356, %s357
        %s359 = scalar_lea.vmem %s2, %s358
        %p360 = pneg %p103
        %p361 = pneg %p100
        %p362 = pneg %p131
        %p363 = pneg %p128
        %s364 = sand.u32 %s118, 1
        %s365 = sand.u32 %s118, 1
        %s366 = smul.addr %s365, 512
        %s367 = scalar_lea.vmem [#allocation3], %s366
        %s368 = smul.u32 16, %s19
        %p369 = scmp.lt.s32.totalorder %s18, 1
        %s370 = scalar_select %p369, %s18, 1
        %s371 = smul.addr %s370, 4
        %s372 = smul.addr %s371, 8
        %s373 = scalar_lea.vmem %s1, %s372
        %s374 = smul.u32 16, %s19
        %p375 = scmp.lt.s32.totalorder %s18, 1
        %s376 = scalar_select %p375, %s18, 1
        %p377 = scmp.lt.s32.totalorder %s374, 31
        %s378 = scalar_select %p377, %s374, 31
        %s379 = smul.addr %s376, 32
        %s380 = sadd.s32 %s378, %s379
        %s381 = scalar_lea.vmem %s2, %s380
        %s382 = smul.u32 16, %s19
        %s383 = smul.u32 16, %s19
        %v384 = vld [vmem:[%s335] sm:$0xff]
        %v385 = vld [vmem:[%s335 + $0x8] sm:$0xff]
        %v386 = vld [vmem:[%s335 + $0x10] sm:$0xff]
        %v387 = vld [vmem:[%s335 + $0x18] sm:$0xff]
        %v388 = vld [vmem:[%s335 + $0x20] sm:$0xff]
        %v389 = vld [vmem:[%s335 + $0x28] sm:$0xff]
        %v390 = vld [vmem:[%s335 + $0x30] sm:$0xff]
        %v391 = vld [vmem:[%s335 + $0x38] sm:$0xff]
        %v392 = vld [vmem:[%s335 + $0x40] sm:$0xff]
        %v393 = vld [vmem:[%s335 + $0x48] sm:$0xff]
        %v394 = vld [vmem:[%s335 + $0x50] sm:$0xff]
        %v395 = vld [vmem:[%s335 + $0x58] sm:$0xff]
        %v396 = vld [vmem:[%s335 + $0x60] sm:$0xff]
        %v397 = vld [vmem:[%s335 + $0x68] sm:$0xff]
        %v398 = vld [vmem:[%s335 + $0x70] sm:$0xff]
        %v399 = vld [vmem:[%s335 + $0x78] sm:$0xff]
        %v400 = vld [vmem:[%s335 + $0x80] sm:$0xff]
        %v401 = vld [vmem:[%s335 + $0x88] sm:$0xff]
        %v402 = vld [vmem:[%s335 + $0x90] sm:$0xff]
        %v403 = vld [vmem:[%s335 + $0x98] sm:$0xff]
        %v404 = vld [vmem:[%s335 + $0xa0] sm:$0xff]
        %v405 = vld [vmem:[%s335 + $0xa8] sm:$0xff]
        %v406 = vld [vmem:[%s335 + $0xb0] sm:$0xff]
        %v407 = vld [vmem:[%s335 + $0xb8] sm:$0xff]
        %v408 = vld [vmem:[%s335 + $0xc0] sm:$0xff]
        %v409 = vld [vmem:[%s335 + $0xc8] sm:$0xff]
        %v410 = vld [vmem:[%s335 + $0xd0] sm:$0xff]
        %v411 = vld [vmem:[%s335 + $0xd8] sm:$0xff]
        %v412 = vld [vmem:[%s335 + $0xe0] sm:$0xff]
        %v413 = vld [vmem:[%s335 + $0xe8] sm:$0xff]
        %v414 = vld [vmem:[%s335 + $0xf0] sm:$0xff]
        %v415 = vld [vmem:[%s335 + $0xf8] sm:$0xff]
        %v416 = vld [vmem:[%s335 + $0x100] sm:$0xff]
        %v417 = vld [vmem:[%s335 + $0x108] sm:$0xff]
        %v418 = vld [vmem:[%s335 + $0x110] sm:$0xff]
        %v419 = vld [vmem:[%s335 + $0x118] sm:$0xff]
        %v420 = vld [vmem:[%s335 + $0x120] sm:$0xff]
        %v421 = vld [vmem:[%s335 + $0x128] sm:$0xff]
        %v422 = vld [vmem:[%s335 + $0x130] sm:$0xff]
        %v423 = vld [vmem:[%s335 + $0x138] sm:$0xff]
        %v424 = vld [vmem:[%s335 + $0x140] sm:$0xff]
        %v425 = vld [vmem:[%s335 + $0x148] sm:$0xff]
        %v426 = vld [vmem:[%s335 + $0x150] sm:$0xff]
        %v427 = vld [vmem:[%s335 + $0x158] sm:$0xff]
        %v428 = vld [vmem:[%s335 + $0x160] sm:$0xff]
        %v429 = vld [vmem:[%s335 + $0x168] sm:$0xff]
        %v430 = vld [vmem:[%s335 + $0x170] sm:$0xff]
        %v431 = vld [vmem:[%s335 + $0x178] sm:$0xff]
        %v432 = vld [vmem:[%s335 + $0x180] sm:$0xff]
        %v433 = vld [vmem:[%s335 + $0x188] sm:$0xff]
        %v434 = vld [vmem:[%s335 + $0x190] sm:$0xff]
        %v435 = vld [vmem:[%s335 + $0x198] sm:$0xff]
        %v436 = vld [vmem:[%s335 + $0x1a0] sm:$0xff]
        %v437 = vld [vmem:[%s335 + $0x1a8] sm:$0xff]
        %v438 = vld [vmem:[%s335 + $0x1b0] sm:$0xff]
        %v439 = vld [vmem:[%s335 + $0x1b8] sm:$0xff]
        %v440 = vld [vmem:[%s335 + $0x1c0] sm:$0xff]
        %v441 = vld [vmem:[%s335 + $0x1c8] sm:$0xff]
        %v442 = vld [vmem:[%s335 + $0x1d0] sm:$0xff]
        %v443 = vld [vmem:[%s335 + $0x1d8] sm:$0xff]
        %v444 = vld [vmem:[%s335 + $0x1e0] sm:$0xff]
        %v445 = vld [vmem:[%s335 + $0x1e8] sm:$0xff]
        %v446 = vld [vmem:[%s335 + $0x1f0] sm:$0xff]
        %v447 = vld [vmem:[%s335 + $0x1f8] sm:$0xff]
        %v448 = vld [vmem:[%s373] sm:$0xff]
        %v449 = vld [vmem:[%s373 + $0x8] sm:$0xff]
        %v450 = vld [vmem:[%s373 + $0x10] sm:$0xff]
        %v451 = vld [vmem:[%s373 + $0x18] sm:$0xff]
        %453 = vset.pattern.permute.xlu0 0
        %454 = vperm.xlu0 %453, %v448
        %v455 = vpop.permute.xlu0 %454
        %458 = vset.pattern.permute.xlu0 0
        %459 = vperm.xlu0 %458, %v449
        %v460 = vpop.permute.xlu0 %459
        %463 = vset.pattern.permute.xlu0 0
        %464 = vperm.xlu0 %463, %v450
        %v465 = vpop.permute.xlu0 %464
        %468 = vset.pattern.permute.xlu0 0
        %469 = vperm.xlu0 %468, %v451
        %v470 = vpop.permute.xlu0 %469
        %v472 = vmul.f32 %v384, %v455
        %v473 = vmul.f32 %v385, %v455
        %v474 = vmul.f32 %v386, %v455
        %v475 = vmul.f32 %v387, %v455
        %v476 = vmul.f32 %v388, %v455
        %v477 = vmul.f32 %v389, %v455
        %v478 = vmul.f32 %v390, %v455
        %v479 = vmul.f32 %v391, %v455
        %v480 = vmul.f32 %v392, %v455
        %v481 = vmul.f32 %v393, %v455
        %v482 = vmul.f32 %v394, %v455
        %v483 = vmul.f32 %v395, %v455
        %v484 = vmul.f32 %v396, %v455
        %v485 = vmul.f32 %v397, %v455
        %v486 = vmul.f32 %v398, %v455
        %v487 = vmul.f32 %v399, %v455
        %v488 = vmul.f32 %v400, %v460
        %v489 = vmul.f32 %v401, %v460
        %v490 = vmul.f32 %v402, %v460
        %v491 = vmul.f32 %v403, %v460
        %v492 = vmul.f32 %v404, %v460
        %v493 = vmul.f32 %v405, %v460
        %v494 = vmul.f32 %v406, %v460
        %v495 = vmul.f32 %v407, %v460
        %v496 = vmul.f32 %v408, %v460
        %v497 = vmul.f32 %v409, %v460
        %v498 = vmul.f32 %v410, %v460
        %v499 = vmul.f32 %v411, %v460
        %v500 = vmul.f32 %v412, %v460
        %v501 = vmul.f32 %v413, %v460
        %v502 = vmul.f32 %v414, %v460
        %v503 = vmul.f32 %v415, %v460
        %v504 = vmul.f32 %v416, %v465
        %v505 = vmul.f32 %v417, %v465
        %v506 = vmul.f32 %v418, %v465
        %v507 = vmul.f32 %v419, %v465
        %v508 = vmul.f32 %v420, %v465
        %v509 = vmul.f32 %v421, %v465
        %v510 = vmul.f32 %v422, %v465
        %v511 = vmul.f32 %v423, %v465
        %v512 = vmul.f32 %v424, %v465
        %v513 = vmul.f32 %v425, %v465
        %v514 = vmul.f32 %v426, %v465
        %v515 = vmul.f32 %v427, %v465
        %v516 = vmul.f32 %v428, %v465
        %v517 = vmul.f32 %v429, %v465
        %v518 = vmul.f32 %v430, %v465
        %v519 = vmul.f32 %v431, %v465
        %v520 = vmul.f32 %v432, %v470
        %v521 = vmul.f32 %v433, %v470
        %v522 = vmul.f32 %v434, %v470
        %v523 = vmul.f32 %v435, %v470
        %v524 = vmul.f32 %v436, %v470
        %v525 = vmul.f32 %v437, %v470
        %v526 = vmul.f32 %v438, %v470
        %v527 = vmul.f32 %v439, %v470
        %v528 = vmul.f32 %v440, %v470
        %v529 = vmul.f32 %v441, %v470
        %v530 = vmul.f32 %v442, %v470
        %v531 = vmul.f32 %v443, %v470
        %v532 = vmul.f32 %v444, %v470
        %v533 = vmul.f32 %v445, %v470
        %v534 = vmul.f32 %v446, %v470
        %v535 = vmul.f32 %v447, %v470
        %v536 = vld [vmem:[%s381] sm:$0xff]
        %v537 = vld [vmem:[%s381 + $0x8] sm:$0xff]
        %v540 = vlaneseq
        %v541 = vshrl.u32 %v540, 7
        %v542 = vsub.s32 0, %v541
        %v543 = vrot.slane %v536, %v542
        %v544 = vlaneseq
        %v545 = vshrl.u32 %v544, 7
        %v546 = vsub.s32 1, %v545
        %v547 = vrot.slane %v536, %v546
        %v548 = vlaneseq
        %v549 = vshrl.u32 %v548, 7
        %v550 = vsub.s32 2, %v549
        %v551 = vrot.slane %v536, %v550
        %v552 = vlaneseq
        %v553 = vshrl.u32 %v552, 7
        %v554 = vsub.s32 3, %v553
        %v555 = vrot.slane %v536, %v554
        %v556 = vlaneseq
        %v557 = vshrl.u32 %v556, 7
        %v558 = vsub.s32 4, %v557
        %v559 = vrot.slane %v536, %v558
        %v560 = vlaneseq
        %v561 = vshrl.u32 %v560, 7
        %v562 = vsub.s32 5, %v561
        %v563 = vrot.slane %v536, %v562
        %v564 = vlaneseq
        %v565 = vshrl.u32 %v564, 7
        %v566 = vsub.s32 6, %v565
        %v567 = vrot.slane %v536, %v566
        %v568 = vlaneseq
        %v569 = vshrl.u32 %v568, 7
        %v570 = vsub.s32 7, %v569
        %v571 = vrot.slane %v536, %v570
        %v572 = vlaneseq
        %v573 = vshrl.u32 %v572, 7
        %v574 = vsub.s32 0, %v573
        %v575 = vrot.slane %v537, %v574
        %v576 = vlaneseq
        %v577 = vshrl.u32 %v576, 7
        %v578 = vsub.s32 1, %v577
        %v579 = vrot.slane %v537, %v578
        %v580 = vlaneseq
        %v581 = vshrl.u32 %v580, 7
        %v582 = vsub.s32 2, %v581
        %v583 = vrot.slane %v537, %v582
        %v584 = vlaneseq
        %v585 = vshrl.u32 %v584, 7
        %v586 = vsub.s32 3, %v585
        %v587 = vrot.slane %v537, %v586
        %v588 = vlaneseq
        %v589 = vshrl.u32 %v588, 7
        %v590 = vsub.s32 4, %v589
        %v591 = vrot.slane %v537, %v590
        %v592 = vlaneseq
        %v593 = vshrl.u32 %v592, 7
        %v594 = vsub.s32 5, %v593
        %v595 = vrot.slane %v537, %v594
        %v596 = vlaneseq
        %v597 = vshrl.u32 %v596, 7
        %v598 = vsub.s32 6, %v597
        %v599 = vrot.slane %v537, %v598
        %v600 = vlaneseq
        %v601 = vshrl.u32 %v600, 7
        %v602 = vsub.s32 7, %v601
        %v603 = vrot.slane %v537, %v602
        %v620 = vmul.f32 %v472, %v543
        %v621 = vmul.f32 %v473, %v547
        %v622 = vmul.f32 %v474, %v551
        %v623 = vmul.f32 %v475, %v555
        %v624 = vmul.f32 %v476, %v559
        %v625 = vmul.f32 %v477, %v563
        %v626 = vmul.f32 %v478, %v567
        %v627 = vmul.f32 %v479, %v571
        %v628 = vmul.f32 %v480, %v575
        %v629 = vmul.f32 %v481, %v579
        %v630 = vmul.f32 %v482, %v583
        %v631 = vmul.f32 %v483, %v587
        %v632 = vmul.f32 %v484, %v591
        %v633 = vmul.f32 %v485, %v595
        %v634 = vmul.f32 %v486, %v599
        %v635 = vmul.f32 %v487, %v603
        %v636 = vmul.f32 %v488, %v543
        %v637 = vmul.f32 %v489, %v547
        %v638 = vmul.f32 %v490, %v551
        %v639 = vmul.f32 %v491, %v555
        %v640 = vmul.f32 %v492, %v559
        %v641 = vmul.f32 %v493, %v563
        %v642 = vmul.f32 %v494, %v567
        %v643 = vmul.f32 %v495, %v571
        %v644 = vmul.f32 %v496, %v575
        %v645 = vmul.f32 %v497, %v579
        %v646 = vmul.f32 %v498, %v583
        %v647 = vmul.f32 %v499, %v587
        %v648 = vmul.f32 %v500, %v591
        %v649 = vmul.f32 %v501, %v595
        %v650 = vmul.f32 %v502, %v599
        %v651 = vmul.f32 %v503, %v603
        %v652 = vmul.f32 %v504, %v543
        %v653 = vmul.f32 %v505, %v547
        %v654 = vmul.f32 %v506, %v551
        %v655 = vmul.f32 %v507, %v555
        %v656 = vmul.f32 %v508, %v559
        %v657 = vmul.f32 %v509, %v563
        %v658 = vmul.f32 %v510, %v567
        %v659 = vmul.f32 %v511, %v571
        %v660 = vmul.f32 %v512, %v575
        %v661 = vmul.f32 %v513, %v579
        %v662 = vmul.f32 %v514, %v583
        %v663 = vmul.f32 %v515, %v587
        %v664 = vmul.f32 %v516, %v591
        %v665 = vmul.f32 %v517, %v595
        %v666 = vmul.f32 %v518, %v599
        %v667 = vmul.f32 %v519, %v603
        %v668 = vmul.f32 %v520, %v543
        %v669 = vmul.f32 %v521, %v547
        %v670 = vmul.f32 %v522, %v551
        %v671 = vmul.f32 %v523, %v555
        %v672 = vmul.f32 %v524, %v559
        %v673 = vmul.f32 %v525, %v563
        %v674 = vmul.f32 %v526, %v567
        %v675 = vmul.f32 %v527, %v571
        %v676 = vmul.f32 %v528, %v575
        %v677 = vmul.f32 %v529, %v579
        %v678 = vmul.f32 %v530, %v583
        %v679 = vmul.f32 %v531, %v587
        %v680 = vmul.f32 %v532, %v591
        %v681 = vmul.f32 %v533, %v595
        %v682 = vmul.f32 %v534, %v599
        %v683 = vmul.f32 %v535, %v603
        %684 = vst [vmem:[%s367] sm:$0xff] %v620
        %685 = vst [vmem:[%s367 + $0x8] sm:$0xff] %v621
        %686 = vst [vmem:[%s367 + $0x10] sm:$0xff] %v622
        %687 = vst [vmem:[%s367 + $0x18] sm:$0xff] %v623
        %688 = vst [vmem:[%s367 + $0x20] sm:$0xff] %v624
        %689 = vst [vmem:[%s367 + $0x28] sm:$0xff] %v625
        %690 = vst [vmem:[%s367 + $0x30] sm:$0xff] %v626
        %691 = vst [vmem:[%s367 + $0x38] sm:$0xff] %v627
        %692 = vst [vmem:[%s367 + $0x40] sm:$0xff] %v628
        %693 = vst [vmem:[%s367 + $0x48] sm:$0xff] %v629
        %694 = vst [vmem:[%s367 + $0x50] sm:$0xff] %v630
        %695 = vst [vmem:[%s367 + $0x58] sm:$0xff] %v631
        %696 = vst [vmem:[%s367 + $0x60] sm:$0xff] %v632
        %697 = vst [vmem:[%s367 + $0x68] sm:$0xff] %v633
        %698 = vst [vmem:[%s367 + $0x70] sm:$0xff] %v634
        %699 = vst [vmem:[%s367 + $0x78] sm:$0xff] %v635
        %700 = vst [vmem:[%s367 + $0x80] sm:$0xff] %v636
        %701 = vst [vmem:[%s367 + $0x88] sm:$0xff] %v637
        %702 = vst [vmem:[%s367 + $0x90] sm:$0xff] %v638
        %703 = vst [vmem:[%s367 + $0x98] sm:$0xff] %v639
        %704 = vst [vmem:[%s367 + $0xa0] sm:$0xff] %v640
        %705 = vst [vmem:[%s367 + $0xa8] sm:$0xff] %v641
        %706 = vst [vmem:[%s367 + $0xb0] sm:$0xff] %v642
        %707 = vst [vmem:[%s367 + $0xb8] sm:$0xff] %v643
        %708 = vst [vmem:[%s367 + $0xc0] sm:$0xff] %v644
        %709 = vst [vmem:[%s367 + $0xc8] sm:$0xff] %v645
        %710 = vst [vmem:[%s367 + $0xd0] sm:$0xff] %v646
        %711 = vst [vmem:[%s367 + $0xd8] sm:$0xff] %v647
        %712 = vst [vmem:[%s367 + $0xe0] sm:$0xff] %v648
        %713 = vst [vmem:[%s367 + $0xe8] sm:$0xff] %v649
        %714 = vst [vmem:[%s367 + $0xf0] sm:$0xff] %v650
        %715 = vst [vmem:[%s367 + $0xf8] sm:$0xff] %v651
        %716 = vst [vmem:[%s367 + $0x100] sm:$0xff] %v652
        %717 = vst [vmem:[%s367 + $0x108] sm:$0xff] %v653
        %718 = vst [vmem:[%s367 + $0x110] sm:$0xff] %v654
        %719 = vst [vmem:[%s367 + $0x118] sm:$0xff] %v655
        %720 = vst [vmem:[%s367 + $0x120] sm:$0xff] %v656
        %721 = vst [vmem:[%s367 + $0x128] sm:$0xff] %v657
        %722 = vst [vmem:[%s367 + $0x130] sm:$0xff] %v658
        %723 = vst [vmem:[%s367 + $0x138] sm:$0xff] %v659
        %724 = vst [vmem:[%s367 + $0x140] sm:$0xff] %v660
        %725 = vst [vmem:[%s367 + $0x148] sm:$0xff] %v661
        %726 = vst [vmem:[%s367 + $0x150] sm:$0xff] %v662
        %727 = vst [vmem:[%s367 + $0x158] sm:$0xff] %v663
        %728 = vst [vmem:[%s367 + $0x160] sm:$0xff] %v664
        %729 = vst [vmem:[%s367 + $0x168] sm:$0xff] %v665
        %730 = vst [vmem:[%s367 + $0x170] sm:$0xff] %v666
        %731 = vst [vmem:[%s367 + $0x178] sm:$0xff] %v667
        %732 = vst [vmem:[%s367 + $0x180] sm:$0xff] %v668
        %733 = vst [vmem:[%s367 + $0x188] sm:$0xff] %v669
        %734 = vst [vmem:[%s367 + $0x190] sm:$0xff] %v670
        %735 = vst [vmem:[%s367 + $0x198] sm:$0xff] %v671
        %736 = vst [vmem:[%s367 + $0x1a0] sm:$0xff] %v672
        %737 = vst [vmem:[%s367 + $0x1a8] sm:$0xff] %v673
        %738 = vst [vmem:[%s367 + $0x1b0] sm:$0xff] %v674
        %739 = vst [vmem:[%s367 + $0x1b8] sm:$0xff] %v675
        %740 = vst [vmem:[%s367 + $0x1c0] sm:$0xff] %v676
        %741 = vst [vmem:[%s367 + $0x1c8] sm:$0xff] %v677
        %742 = vst [vmem:[%s367 + $0x1d0] sm:$0xff] %v678
        %743 = vst [vmem:[%s367 + $0x1d8] sm:$0xff] %v679
        %744 = vst [vmem:[%s367 + $0x1e0] sm:$0xff] %v680
        %745 = vst [vmem:[%s367 + $0x1e8] sm:$0xff] %v681
        %746 = vst [vmem:[%s367 + $0x1f0] sm:$0xff] %v682
        %747 = vst [vmem:[%s367 + $0x1f8] sm:$0xff] %v683
        %s748 = sand.u32 %s118, 1
        %s749 = sand.u32 %s118, 1
        %s750 = smul.addr %s749, 512
        %s751 = scalar_lea.vmem [#allocation3], %s750
        // Predicated region
        $region56: #{cbam3d_forward.7} parent=50 // pred_check
          %p752 = pneg %p128
        $region57: #{cbam3d_forward.7} parent=50 // pred_check_branch
          %754 = sbr.rel (%p752) target = $region59
        $region58: #{cbam3d_forward.7} parent=50 // pred_region
          %s755 = smul.u32 16, %s19
          %s756 = smul.addr %s18, 128
          %s757 = sadd.s32 %s755, %s756
          %s758 = smul.addr %s757, 8
          %s759 = scalar_lea.vmem %s3, %s758
          // Predicated region
          $region60: #{cbam3d_forward.7} parent=58 // pred_check
            _
          $region61: #{cbam3d_forward.7} parent=58 // pred_check_branch
            %761 = sbr.rel (0) target = $region63
          $region62: #{cbam3d_forward.7} parent=58 // pred_region
            // Predicated region
            $region64: #{cbam3d_forward.7} parent=62 // pred_check
              _
            $region65: #{cbam3d_forward.7} parent=62 // pred_check_branch
              %763 = sbr.rel (0) target = $region67
            $region66: #{cbam3d_forward.7} parent=62 // pred_region
              loop: start=0, step=1, limit=1
              $region68: #{cbam3d_forward.7} parent=66 // loop_pre_header
                _
              $region69: #{cbam3d_forward.7} parent=66 // loop_header
                %s765 = sphi 0, %s769
                %p766 = scmp.ge.s32.totalorder %s765, 1
                %s770 = sphi %s751, %s751
                %s771 = sphi %s759, %s759
              $region70: #{cbam3d_forward.7} parent=66 // loop_header_branch
                %768 = sbr.rel (%p766) target = $region74
              $region71: #{cbam3d_forward.7} parent=66 // loop_body
                %v772 = vld [vmem:[%s770] sm:$0xff]
                %773 = vst [vmem:[%s771] sm:$0xff] %v772
                %v774 = vld [vmem:[%s770 + $0x8] sm:$0xff]
                %775 = vst [vmem:[%s771 + $0x8] sm:$0xff] %v774
                %v776 = vld [vmem:[%s770 + $0x10] sm:$0xff]
                %777 = vst [vmem:[%s771 + $0x10] sm:$0xff] %v776
                %v778 = vld [vmem:[%s770 + $0x18] sm:$0xff]
                %779 = vst [vmem:[%s771 + $0x18] sm:$0xff] %v778
                %v780 = vld [vmem:[%s770 + $0x20] sm:$0xff]
                %781 = vst [vmem:[%s771 + $0x20] sm:$0xff] %v780
                %v782 = vld [vmem:[%s770 + $0x28] sm:$0xff]
                %783 = vst [vmem:[%s771 + $0x28] sm:$0xff] %v782
                %v784 = vld [vmem:[%s770 + $0x30] sm:$0xff]
                %785 = vst [vmem:[%s771 + $0x30] sm:$0xff] %v784
                %v786 = vld [vmem:[%s770 + $0x38] sm:$0xff]
                %787 = vst [vmem:[%s771 + $0x38] sm:$0xff] %v786
                %v788 = vld [vmem:[%s770 + $0x40] sm:$0xff]
                %789 = vst [vmem:[%s771 + $0x40] sm:$0xff] %v788
                %v790 = vld [vmem:[%s770 + $0x48] sm:$0xff]
                %791 = vst [vmem:[%s771 + $0x48] sm:$0xff] %v790
                %v792 = vld [vmem:[%s770 + $0x50] sm:$0xff]
                %793 = vst [vmem:[%s771 + $0x50] sm:$0xff] %v792
                %v794 = vld [vmem:[%s770 + $0x58] sm:$0xff]
                %795 = vst [vmem:[%s771 + $0x58] sm:$0xff] %v794
                %v796 = vld [vmem:[%s770 + $0x60] sm:$0xff]
                %797 = vst [vmem:[%s771 + $0x60] sm:$0xff] %v796
                %v798 = vld [vmem:[%s770 + $0x68] sm:$0xff]
                %799 = vst [vmem:[%s771 + $0x68] sm:$0xff] %v798
                %v800 = vld [vmem:[%s770 + $0x70] sm:$0xff]
                %801 = vst [vmem:[%s771 + $0x70] sm:$0xff] %v800
                %v802 = vld [vmem:[%s770 + $0x78] sm:$0xff]
                %803 = vst [vmem:[%s771 + $0x78] sm:$0xff] %v802
                %v804 = vld [vmem:[%s770 + $0x80] sm:$0xff]
                %805 = vst [vmem:[%s771 + $0x100] sm:$0xff] %v804
                %v806 = vld [vmem:[%s770 + $0x88] sm:$0xff]
                %807 = vst [vmem:[%s771 + $0x108] sm:$0xff] %v806
                %v808 = vld [vmem:[%s770 + $0x90] sm:$0xff]
                %809 = vst [vmem:[%s771 + $0x110] sm:$0xff] %v808
                %v810 = vld [vmem:[%s770 + $0x98] sm:$0xff]
                %811 = vst [vmem:[%s771 + $0x118] sm:$0xff] %v810
                %v812 = vld [vmem:[%s770 + $0xa0] sm:$0xff]
                %813 = vst [vmem:[%s771 + $0x120] sm:$0xff] %v812
                %v814 = vld [vmem:[%s770 + $0xa8] sm:$0xff]
                %815 = vst [vmem:[%s771 + $0x128] sm:$0xff] %v814
                %v816 = vld [vmem:[%s770 + $0xb0] sm:$0xff]
                %817 = vst [vmem:[%s771 + $0x130] sm:$0xff] %v816
                %v818 = vld [vmem:[%s770 + $0xb8] sm:$0xff]
                %819 = vst [vmem:[%s771 + $0x138] sm:$0xff] %v818
                %v820 = vld [vmem:[%s770 + $0xc0] sm:$0xff]
                %821 = vst [vmem:[%s771 + $0x140] sm:$0xff] %v820
                %v822 = vld [vmem:[%s770 + $0xc8] sm:$0xff]
                %823 = vst [vmem:[%s771 + $0x148] sm:$0xff] %v822
                %v824 = vld [vmem:[%s770 + $0xd0] sm:$0xff]
                %825 = vst [vmem:[%s771 + $0x150] sm:$0xff] %v824
                %v826 = vld [vmem:[%s770 + $0xd8] sm:$0xff]
                %827 = vst [vmem:[%s771 + $0x158] sm:$0xff] %v826
                %v828 = vld [vmem:[%s770 + $0xe0] sm:$0xff]
                %829 = vst [vmem:[%s771 + $0x160] sm:$0xff] %v828
                %v830 = vld [vmem:[%s770 + $0xe8] sm:$0xff]
                %831 = vst [vmem:[%s771 + $0x168] sm:$0xff] %v830
                %v832 = vld [vmem:[%s770 + $0xf0] sm:$0xff]
                %833 = vst [vmem:[%s771 + $0x170] sm:$0xff] %v832
                %v834 = vld [vmem:[%s770 + $0xf8] sm:$0xff]
                %835 = vst [vmem:[%s771 + $0x178] sm:$0xff] %v834
                %v836 = vld [vmem:[%s770 + $0x100] sm:$0xff]
                %837 = vst [vmem:[%s771 + $0x200] sm:$0xff] %v836
                %v838 = vld [vmem:[%s770 + $0x108] sm:$0xff]
                %839 = vst [vmem:[%s771 + $0x208] sm:$0xff] %v838
                %v840 = vld [vmem:[%s770 + $0x110] sm:$0xff]
                %841 = vst [vmem:[%s771 + $0x210] sm:$0xff] %v840
                %v842 = vld [vmem:[%s770 + $0x118] sm:$0xff]
                %843 = vst [vmem:[%s771 + $0x218] sm:$0xff] %v842
                %v844 = vld [vmem:[%s770 + $0x120] sm:$0xff]
                %845 = vst [vmem:[%s771 + $0x220] sm:$0xff] %v844
                %v846 = vld [vmem:[%s770 + $0x128] sm:$0xff]
                %847 = vst [vmem:[%s771 + $0x228] sm:$0xff] %v846
                %v848 = vld [vmem:[%s770 + $0x130] sm:$0xff]
                %849 = vst [vmem:[%s771 + $0x230] sm:$0xff] %v848
                %v850 = vld [vmem:[%s770 + $0x138] sm:$0xff]
                %851 = vst [vmem:[%s771 + $0x238] sm:$0xff] %v850
                %v852 = vld [vmem:[%s770 + $0x140] sm:$0xff]
                %853 = vst [vmem:[%s771 + $0x240] sm:$0xff] %v852
                %v854 = vld [vmem:[%s770 + $0x148] sm:$0xff]
                %855 = vst [vmem:[%s771 + $0x248] sm:$0xff] %v854
                %v856 = vld [vmem:[%s770 + $0x150] sm:$0xff]
                %857 = vst [vmem:[%s771 + $0x250] sm:$0xff] %v856
                %v858 = vld [vmem:[%s770 + $0x158] sm:$0xff]
                %859 = vst [vmem:[%s771 + $0x258] sm:$0xff] %v858
                %v860 = vld [vmem:[%s770 + $0x160] sm:$0xff]
                %861 = vst [vmem:[%s771 + $0x260] sm:$0xff] %v860
                %v862 = vld [vmem:[%s770 + $0x168] sm:$0xff]
                %863 = vst [vmem:[%s771 + $0x268] sm:$0xff] %v862
                %v864 = vld [vmem:[%s770 + $0x170] sm:$0xff]
                %865 = vst [vmem:[%s771 + $0x270] sm:$0xff] %v864
                %v866 = vld [vmem:[%s770 + $0x178] sm:$0xff]
                %867 = vst [vmem:[%s771 + $0x278] sm:$0xff] %v866
                %v868 = vld [vmem:[%s770 + $0x180] sm:$0xff]
                %869 = vst [vmem:[%s771 + $0x300] sm:$0xff] %v868
                %v870 = vld [vmem:[%s770 + $0x188] sm:$0xff]
                %871 = vst [vmem:[%s771 + $0x308] sm:$0xff] %v870
                %v872 = vld [vmem:[%s770 + $0x190] sm:$0xff]
                %873 = vst [vmem:[%s771 + $0x310] sm:$0xff] %v872
                %v874 = vld [vmem:[%s770 + $0x198] sm:$0xff]
                %875 = vst [vmem:[%s771 + $0x318] sm:$0xff] %v874
                %v876 = vld [vmem:[%s770 + $0x1a0] sm:$0xff]
                %877 = vst [vmem:[%s771 + $0x320] sm:$0xff] %v876
                %v878 = vld [vmem:[%s770 + $0x1a8] sm:$0xff]
                %879 = vst [vmem:[%s771 + $0x328] sm:$0xff] %v878
                %v880 = vld [vmem:[%s770 + $0x1b0] sm:$0xff]
                %881 = vst [vmem:[%s771 + $0x330] sm:$0xff] %v880
                %v882 = vld [vmem:[%s770 + $0x1b8] sm:$0xff]
                %883 = vst [vmem:[%s771 + $0x338] sm:$0xff] %v882
                %v884 = vld [vmem:[%s770 + $0x1c0] sm:$0xff]
                %885 = vst [vmem:[%s771 + $0x340] sm:$0xff] %v884
                %v886 = vld [vmem:[%s770 + $0x1c8] sm:$0xff]
                %887 = vst [vmem:[%s771 + $0x348] sm:$0xff] %v886
                %v888 = vld [vmem:[%s770 + $0x1d0] sm:$0xff]
                %889 = vst [vmem:[%s771 + $0x350] sm:$0xff] %v888
                %v890 = vld [vmem:[%s770 + $0x1d8] sm:$0xff]
                %891 = vst [vmem:[%s771 + $0x358] sm:$0xff] %v890
                %v892 = vld [vmem:[%s770 + $0x1e0] sm:$0xff]
                %893 = vst [vmem:[%s771 + $0x360] sm:$0xff] %v892
                %v894 = vld [vmem:[%s770 + $0x1e8] sm:$0xff]
                %895 = vst [vmem:[%s771 + $0x368] sm:$0xff] %v894
                %v896 = vld [vmem:[%s770 + $0x1f0] sm:$0xff]
                %897 = vst [vmem:[%s771 + $0x370] sm:$0xff] %v896
                %v898 = vld [vmem:[%s770 + $0x1f8] sm:$0xff]
                %899 = vst [vmem:[%s771 + $0x378] sm:$0xff] %v898
              $region72: #{cbam3d_forward.7} parent=66 // loop_footer
                %s769 = sadd.s32 1, %s765
              $region73: #{cbam3d_forward.7} parent=66 // loop_footer_branch
                %764 = sbr.rel target = $region69
              $region74: #{cbam3d_forward.7} parent=66 // loop_exit
                _
            $region67: #{cbam3d_forward.7} parent=62 // pred_fallthru
              _
            // Predicated region
            $region75: #{cbam3d_forward.7} parent=62 // pred_check
              _
            $region76: #{cbam3d_forward.7} parent=62 // pred_check_branch
              %901 = sbr.rel target = $region78
            $region77: #{cbam3d_forward.7} parent=62 // pred_region
              _
            $region78: #{cbam3d_forward.7} parent=62 // pred_fallthru
              _
          $region63: #{cbam3d_forward.7} parent=58 // pred_fallthru
            _
          %902 = vnop
        $region59: #{cbam3d_forward.7} parent=50 // pred_fallthru
          _
      $region51: #{cbam3d_forward.7} parent=5 // pred_fallthru
        _
      %p903 = scmp.le.s32.totalorder 2, %s9
      // Predicated region
      $region79: #{cbam3d_forward.7} parent=5 // pred_check
        %p904 = pneg %p903
      $region80: #{cbam3d_forward.7} parent=5 // pred_check_branch
        %906 = sbr.rel (%p904) target = $region82
      $region81: #{cbam3d_forward.7} parent=5 // pred_region
        %s907 = ssub.s32 %s9, 2
        // Predicated region
        $region83: #{cbam3d_forward.7} parent=81 // pred_check
          %p908 = pneg %p134
        $region84: #{cbam3d_forward.7} parent=81 // pred_check_branch
          %910 = sbr.rel (%p908) target = $region86
        $region85: #{cbam3d_forward.7} parent=81 // pred_region
          %s911 = sand.u32 %s119, 1
          %s912 = sand.u32 %s119, 1
          %s913 = smul.addr %s912, 512
          %s914 = scalar_lea.vmem [#allocation3], %s913
        $region86: #{cbam3d_forward.7} parent=81 // pred_fallthru
          _
      $region82: #{cbam3d_forward.7} parent=5 // pred_fallthru
        _
    $region6: #{cbam3d_forward.7} parent=1 // loop_footer
      %s13 = sadd.s32 1, %s9
    $region7: #{cbam3d_forward.7} parent=1 // loop_footer_branch
      %8 = sbr.rel target = $region3
    $region8: #{cbam3d_forward.7} parent=1 // loop_exit
      _

// kernel: cbam3d_forward.6
$region0: #{cbam3d_forward.6}
  #allocation0 [shape = 'u32[]', space=smem, size = 0x4, offset = 0x4, fixed_abs, tag = 'smem constant byte address 0x4 - core index']
  #allocation1 [shape = 'u32[144,128]{1,0:T(1,128)}', space=vmem, size = 0x12000, scoped, tag = 'internal scratch']
  %s0 = inlined_call_operand.vmem [shape: f32[2,224,532], index: 0, kind: input, shape index: {}]
  %s1 = inlined_call_operand.vmem [shape: f32[7,532,32], index: 1, kind: input, shape index: {}]
  %s2 = inlined_call_operand.vmem [shape: f32[2,128,32], index: 2, kind: input, shape index: {}]
  %s3 = inlined_call_operand.vmem [shape: f32[2,128,32], index: 3, kind: output, shape index: {0}]
  %s4 = inlined_call_operand.hbm [shape: f32[2,128,32], index: 4, kind: output, shape index: {1}]
  %5 = xla_tuple %s3, %s4
  %s6 = sld [smem:[#allocation0]]
  $region53: #{cbam3d_forward.6} parent=0
    _
  %s8 = ssub.s32 1, %s6
  %s9 = scalar_select 0, %s8, %s6
  $region1: #{cbam3d_forward.6} parent=0
    #allocation2 [shape = 'u8[131072]{0}', space=vmem, size = 0x20000, scoped, tag = 'output window, operand 1']
    #allocation3 [shape = 's32[2]{0}', space=sflag, size = 0x8, scoped, tag = 'scoped memory for cbam3d_forward.6']
    %10 = vsyncpa [#allocation3], 0
    %s11 = scalar_lea.sflag [#allocation3], 1
    %12 = vsyncpa %s11, 0
    loop: start=0, step=1, limit=4
    $region2: #{cbam3d_forward.6} parent=1 // loop_pre_header
      _
    $region3: #{cbam3d_forward.6} parent=1 // loop_header
      %s14 = sphi 0, %s18
      %p15 = scmp.ge.s32.totalorder %s14, 4
      %s24 = sphi 0, %s26
      %s27 = sphi 0, %s24
      %s28 = sphi 0, %s27
      %s44 = sphi 0, %s28
      %s48 = sphi 0, %s48
      %s50 = sphi 0, %s48
      %s51 = sphi 0, %s50
      %s65 = sphi 0, %s51
      %s71 = sphi 0, %s73
      %s74 = sphi 0, %s71
      %s75 = sphi 0, %s74
      %s91 = sphi 0, %s75
      %s97 = sphi 0, %s99
      %s100 = sphi 0, %s97
      %s101 = sphi 0, %s100
      %s117 = sphi 0, %s101
      %s123 = sphi 0, %s125
      %s126 = sphi 0, %s123
      %s127 = sphi 0, %s126
      %s143 = sphi 0, %s127
    $region4: #{cbam3d_forward.6} parent=1 // loop_header_branch
      %17 = sbr.rel (%p15) target = $region8
    $region5: #{cbam3d_forward.6} parent=1 // loop_body
      %s19 = ssub.s32 %s14, 1
      %s20 = ssub.s32 %s14, 2
      %s21 = sadd.s32 %s14, 1
      %s22 = ssub.s32 %s14, %s21
      %p23 = scmp.eq.s32.totalorder %s22, 0
      %s25 = sadd.s32 %s24, 1
      %s26 = scalar_select %p23, %s24, %s25
      %p29 = pneg %p23
      %p30 = scmp.eq.s32.totalorder %s14, 1
      %p31 = por %p29, %p30
      %p32 = scmp.ne.s32.totalorder %s24, %s27
      %p33 = scmp.eq.s32.totalorder %s14, 0
      %p34 = por %p32, %p33
      %p35 = scmp.ne.s32.totalorder %s24, %s27
      %p36 = scmp.eq.s32.totalorder %s19, 1
      %p37 = por %p35, %p36
      %p38 = scmp.ne.s32.totalorder %s27, %s28
      %p39 = scmp.eq.s32.totalorder %s19, 0
      %p40 = por %p38, %p39
      %p41 = scmp.ne.s32.totalorder %s27, %s28
      %p42 = scmp.eq.s32.totalorder %s20, 1
      %p43 = por %p41, %p42
      %p45 = scmp.ne.s32.totalorder %s28, %s44
      %p46 = scmp.eq.s32.totalorder %s20, 0
      %p47 = por %p45, %p46
      %s49 = sadd.s32 %s48, 1
      %p52 = scmp.eq.s32.totalorder %s14, 1
      %p53 = scmp.ne.s32.totalorder %s48, %s50
      %p54 = scmp.eq.s32.totalorder %s14, 0
      %p55 = por %p53, %p54
      %p56 = scmp.ne.s32.totalorder %s48, %s50
      %p57 = scmp.eq.s32.totalorder %s19, 1
      %p58 = por %p56, %p57
      %p59 = scmp.ne.s32.totalorder %s50, %s51
      %p60 = scmp.eq.s32.totalorder %s19, 0
      %p61 = por %p59, %p60
      %p62 = scmp.ne.s32.totalorder %s50, %s51
      %p63 = scmp.eq.s32.totalorder %s20, 1
      %p64 = por %p62, %p63
      %p66 = scmp.ne.s32.totalorder %s51, %s65
      %p67 = scmp.eq.s32.totalorder %s20, 0
      %p68 = por %p66, %p67
      %s69 = ssub.s32 %s14, %s21
      %p70 = scmp.eq.s32.totalorder %s69, 0
      %s72 = sadd.s32 %s71, 1
      %s73 = scalar_select %p70, %s71, %s72
      %p76 = pneg %p70
      %p77 = scmp.eq.s32.totalorder %s14, 1
      %p78 = por %p76, %p77
      %p79 = scmp.ne.s32.totalorder %s71, %s74
      %p80 = scmp.eq.s32.totalorder %s14, 0
      %p81 = por %p79, %p80
      %p82 = scmp.ne.s32.totalorder %s71, %s74
      %p83 = scmp.eq.s32.totalorder %s19, 1
      %p84 = por %p82, %p83
      %p85 = scmp.ne.s32.totalorder %s74, %s75
      %p86 = scmp.eq.s32.totalorder %s19, 0
      %p87 = por %p85, %p86
      %p88 = scmp.ne.s32.totalorder %s74, %s75
      %p89 = scmp.eq.s32.totalorder %s20, 1
      %p90 = por %p88, %p89
      %p92 = scmp.ne.s32.totalorder %s75, %s91
      %p93 = scmp.eq.s32.totalorder %s20, 0
      %p94 = por %p92, %p93
      %s95 = ssub.s32 %s14, %s21
      %p96 = scmp.eq.s32.totalorder %s95, 0
      %s98 = sadd.s32 %s97, 1
      %s99 = scalar_select %p96, %s97, %s98
      %p102 = pneg %p96
      %p103 = scmp.eq.s32.totalorder %s14, 1
      %p104 = por %p102, %p103
      %p105 = scmp.ne.s32.totalorder %s97, %s100
      %p106 = scmp.eq.s32.totalorder %s14, 0
      %p107 = por %p105, %p106
      %p108 = scmp.ne.s32.totalorder %s97, %s100
      %p109 = scmp.eq.s32.totalorder %s19, 1
      %p110 = por %p108, %p109
      %p111 = scmp.ne.s32.totalorder %s100, %s101
      %p112 = scmp.eq.s32.totalorder %s19, 0
      %p113 = por %p111, %p112
      %p114 = scmp.ne.s32.totalorder %s100, %s101
      %p115 = scmp.eq.s32.totalorder %s20, 1
      %p116 = por %p114, %p115
      %p118 = scmp.ne.s32.totalorder %s101, %s117
      %p119 = scmp.eq.s32.totalorder %s20, 0
      %p120 = por %p118, %p119
      %s121 = ssub.s32 %s14, %s21
      %p122 = scmp.eq.s32.totalorder %s121, 0
      %s124 = sadd.s32 %s123, 1
      %s125 = scalar_select %p122, %s123, %s124
      %p128 = pneg %p122
      %p129 = scmp.eq.s32.totalorder %s14, 1
      %p130 = por %p128, %p129
      %p131 = scmp.ne.s32.totalorder %s123, %s126
      %p132 = scmp.eq.s32.totalorder %s14, 0
      %p133 = por %p131, %p132
      %p134 = scmp.ne.s32.totalorder %s123, %s126
      %p135 = scmp.eq.s32.totalorder %s19, 1
      %p136 = por %p134, %p135
      %p137 = scmp.ne.s32.totalorder %s126, %s127
      %p138 = scmp.eq.s32.totalorder %s19, 0
      %p139 = por %p137, %p138
      %p140 = scmp.ne.s32.totalorder %s126, %s127
      %p141 = scmp.eq.s32.totalorder %s20, 1
      %p142 = por %p140, %p141
      %p144 = scmp.ne.s32.totalorder %s127, %s143
      %p145 = scmp.eq.s32.totalorder %s20, 0
      %p146 = por %p144, %p145
      %p147 = scmp.le.s32.totalorder 1, %s14
      %p148 = scmp.lt.s32.totalorder %s14, 3
      %p149 = pnand %p147, %p148
      %p150 = pneg %p149
      // Predicated region
      $region9: #{cbam3d_forward.6} parent=5 // pred_check
        _
      $region10: #{cbam3d_forward.6} parent=5 // pred_check_branch
        %152 = sbr.rel (%p149) target = $region12
      $region11: #{cbam3d_forward.6} parent=5 // pred_region
        %s153 = ssub.s32 %s14, 1
        // Predicated region
        $region13: #{cbam3d_forward.6} parent=11 // pred_check
          %p154 = pneg %p61
        $region14: #{cbam3d_forward.6} parent=11 // pred_check_branch
          %156 = sbr.rel (%p154) target = $region16
        $region15: #{cbam3d_forward.6} parent=11 // pred_region
          _
        $region16: #{cbam3d_forward.6} parent=11 // pred_fallthru
          _
      $region12: #{cbam3d_forward.6} parent=5 // pred_fallthru
        _
      %p157 = scmp.lt.s32.totalorder %s14, 2
      // Predicated region
      $region17: #{cbam3d_forward.6} parent=5 // pred_check
        %p158 = pneg %p157
      $region18: #{cbam3d_forward.6} parent=5 // pred_check_branch
        %160 = sbr.rel (%p158) target = $region20
      $region19: #{cbam3d_forward.6} parent=5 // pred_region
        // Predicated region
        $region21: #{cbam3d_forward.6} parent=19 // pred_check
          %p161 = pneg %p34
        $region22: #{cbam3d_forward.6} parent=19 // pred_check_branch
          %163 = sbr.rel (%p161) target = $region24
        $region23: #{cbam3d_forward.6} parent=19 // pred_region
          %p164 = scmp.lt.s32.totalorder %s14, 1
          %s165 = scalar_select %p164, %s14, 1
          %s166 = smul.addr %s165, 140
          %s167 = smul.addr %s166, 8
          %s168 = scalar_lea.vmem %s0, %s167
        $region24: #{cbam3d_forward.6} parent=19 // pred_fallthru
          _
        // Predicated region
        $region25: #{cbam3d_forward.6} parent=19 // pred_check
          %p169 = pneg %p81
        $region26: #{cbam3d_forward.6} parent=19 // pred_check_branch
          %171 = sbr.rel (%p169) target = $region28
        $region27: #{cbam3d_forward.6} parent=19 // pred_region
          %p172 = scmp.lt.s32.totalorder %s14, 1
          %s173 = scalar_select %p172, %s14, 1
          %s174 = smul.addr %s173, 16
          %s175 = smul.addr %s174, 8
          %s176 = scalar_lea.vmem %s2, %s175
        $region28: #{cbam3d_forward.6} parent=19 // pred_fallthru
          _
      $region20: #{cbam3d_forward.6} parent=5 // pred_fallthru
        _
      %p177 = scmp.le.s32.totalorder 1, %s14
      %p178 = scmp.lt.s32.totalorder %s14, 3
      %p179 = pnand %p177, %p178
      %p180 = pneg %p179
      // Predicated region
      $region29: #{cbam3d_forward.6} parent=5 // pred_check
        _
      $region30: #{cbam3d_forward.6} parent=5 // pred_check_branch
        %182 = sbr.rel (%p179) target = $region32
      $region31: #{cbam3d_forward.6} parent=5 // pred_region
        %s183 = ssub.s32 %s14, 1
        %p184 = scmp.lt.s32.totalorder %s19, 1
        %s185 = scalar_select %p184, %s19, 1
        %s186 = smul.addr %s185, 140
        %s187 = smul.addr %s186, 8
        %s188 = scalar_lea.vmem %s0, %s187
        %p189 = pneg %p40
        %p190 = pneg %p37
        %p191 = pneg %p61
        %p192 = pneg %p58
        %p193 = scmp.lt.s32.totalorder %s19, 1
        %s194 = scalar_select %p193, %s19, 1
        %s195 = smul.addr %s194, 16
        %s196 = smul.addr %s195, 8
        %s197 = scalar_lea.vmem %s2, %s196
        %p198 = pneg %p87
        %p199 = pneg %p84
        %p200 = pneg %p113
        %p201 = pneg %p110
        %p202 = scmp.lt.s32.totalorder %s19, 1
        %s203 = scalar_select %p202, %s19, 1
        %s204 = smul.addr %s203, 16
        %s205 = smul.addr %s204, 8
        %s206 = scalar_lea.vmem %s3, %s205
        %p207 = pneg %p139
        %p208 = pneg %p136
        %s209 = sand.u32 %s126, 1
        %s210 = scalar_lea.sflag [#allocation3], %s209
        %s211 = sand.u32 %s126, 1
        %s212 = smul.addr %s211, 128
        %s213 = scalar_lea.vmem [#allocation2], %s212
        %p214 = scmp.lt.s32.totalorder %s19, 1
        %s215 = scalar_select %p214, %s19, 1
        %s216 = smul.addr %s215, 140
        %s217 = smul.addr %s216, 8
        %s218 = scalar_lea.vmem %s0, %s217
        %p219 = scmp.lt.s32.totalorder %s19, 1
        %s220 = scalar_select %p219, %s19, 1
        %s221 = smul.addr %s220, 16
        %s222 = smul.addr %s221, 8
        %s223 = scalar_lea.vmem %s2, %s222
        %p224 = scmp.lt.s32.totalorder %s19, 1
        %s225 = scalar_select %p224, %s19, 1
        %s226 = smul.addr %s225, 16
        %s227 = smul.addr %s226, 8
        %s228 = scalar_lea.vmem %s3, %s227
        %v229 = vld [vmem:[%s218] sm:$0xff]
        %v230 = vld [vmem:[%s218 + $0x8] sm:$0xff]
        %v231 = vld [vmem:[%s218 + $0x10] sm:$0xff]
        %v232 = vld [vmem:[%s218 + $0x18] sm:$0xff]
        %v233 = vld [vmem:[%s218 + $0x20] sm:$0xff]
        %v234 = vld [vmem:[%s218 + $0x28] sm:$0xff]
        %v235 = vld [vmem:[%s218 + $0x30] sm:$0xff]
        %v236 = vld [vmem:[%s218 + $0x38] sm:$0xff]
        %v237 = vld [vmem:[%s218 + $0x40] sm:$0xff]
        %v238 = vld [vmem:[%s218 + $0x48] sm:$0xff]
        %v239 = vld [vmem:[%s218 + $0x50] sm:$0xff]
        %v240 = vld [vmem:[%s218 + $0x58] sm:$0xff]
        %v241 = vld [vmem:[%s218 + $0x60] sm:$0xff]
        %v242 = vld [vmem:[%s218 + $0x68] sm:$0xff]
        %v243 = vld [vmem:[%s218 + $0x70] sm:$0xff]
        %v244 = vld [vmem:[%s218 + $0x78] sm:$0xff]
        %v245 = vld [vmem:[%s218 + $0x80] sm:$0xff]
        %v246 = vld [vmem:[%s218 + $0x88] sm:$0xff]
        %v247 = vld [vmem:[%s218 + $0x90] sm:$0xff]
        %v248 = vld [vmem:[%s218 + $0x98] sm:$0xff]
        %v249 = vld [vmem:[%s218 + $0xa0] sm:$0xff]
        %v250 = vld [vmem:[%s218 + $0xa8] sm:$0xff]
        %v251 = vld [vmem:[%s218 + $0xb0] sm:$0xff]
        %v252 = vld [vmem:[%s218 + $0xb8] sm:$0xff]
        %v253 = vld [vmem:[%s218 + $0xc0] sm:$0xff]
        %v254 = vld [vmem:[%s218 + $0xc8] sm:$0xff]
        %v255 = vld [vmem:[%s218 + $0xd0] sm:$0xff]
        %v256 = vld [vmem:[%s218 + $0xd8] sm:$0xff]
        %v257 = vld [vmem:[%s218 + $0xe0] sm:$0xff]
        %v258 = vld [vmem:[%s218 + $0xe8] sm:$0xff]
        %v259 = vld [vmem:[%s218 + $0xf0] sm:$0xff]
        %v260 = vld [vmem:[%s218 + $0xf8] sm:$0xff]
        %v261 = vld [vmem:[%s218 + $0x100] sm:$0xff]
        %v262 = vld [vmem:[%s218 + $0x108] sm:$0xff]
        %v263 = vld [vmem:[%s218 + $0x110] sm:$0xff]
        %v264 = vld [vmem:[%s218 + $0x118] sm:$0xff]
        %v265 = vld [vmem:[%s218 + $0x120] sm:$0xff]
        %v266 = vld [vmem:[%s218 + $0x128] sm:$0xff]
        %v267 = vld [vmem:[%s218 + $0x130] sm:$0xff]
        %v268 = vld [vmem:[%s218 + $0x138] sm:$0xff]
        %v269 = vld [vmem:[%s218 + $0x140] sm:$0xff]
        %v270 = vld [vmem:[%s218 + $0x148] sm:$0xff]
        %v271 = vld [vmem:[%s218 + $0x150] sm:$0xff]
        %v272 = vld [vmem:[%s218 + $0x158] sm:$0xff]
        %v273 = vld [vmem:[%s218 + $0x160] sm:$0xff]
        %v274 = vld [vmem:[%s218 + $0x168] sm:$0xff]
        %v275 = vld [vmem:[%s218 + $0x170] sm:$0xff]
        %v276 = vld [vmem:[%s218 + $0x178] sm:$0xff]
        %v277 = vld [vmem:[%s218 + $0x180] sm:$0xff]
        %v278 = vld [vmem:[%s218 + $0x188] sm:$0xff]
        %v279 = vld [vmem:[%s218 + $0x190] sm:$0xff]
        %v280 = vld [vmem:[%s218 + $0x198] sm:$0xff]
        %v281 = vld [vmem:[%s218 + $0x1a0] sm:$0xff]
        %v282 = vld [vmem:[%s218 + $0x1a8] sm:$0xff]
        %v283 = vld [vmem:[%s218 + $0x1b0] sm:$0xff]
        %v284 = vld [vmem:[%s218 + $0x1b8] sm:$0xff]
        %v285 = vld [vmem:[%s218 + $0x1c0] sm:$0xff]
        %v286 = vld [vmem:[%s218 + $0x1c8] sm:$0xff]
        %v287 = vld [vmem:[%s218 + $0x1d0] sm:$0xff]
        %v288 = vld [vmem:[%s218 + $0x1d8] sm:$0xff]
        %v289 = vld [vmem:[%s218 + $0x1e0] sm:$0xff]
        %v290 = vld [vmem:[%s218 + $0x1e8] sm:$0xff]
        %v291 = vld [vmem:[%s218 + $0x1f0] sm:$0xff]
        %v292 = vld [vmem:[%s218 + $0x1f8] sm:$0xff]
        %v293 = vld [vmem:[%s218 + $0x200] sm:$0xff]
        %v294 = vld [vmem:[%s218 + $0x208] sm:$0xff]
        %v295 = vld [vmem:[%s218 + $0x210] sm:$0xff]
        %v296 = vld [vmem:[%s218 + $0x218] sm:$0xff]
        %v297 = vld [vmem:[%s218 + $0x220] sm:$0xff]
        %v298 = vld [vmem:[%s218 + $0x228] sm:$0xff]
        %v299 = vld [vmem:[%s218 + $0x230] sm:$0xff]
        %v300 = vld [vmem:[%s218 + $0x238] sm:$0xff]
        %v301 = vld [vmem:[%s218 + $0x240] sm:$0xff]
        %v302 = vld [vmem:[%s218 + $0x248] sm:$0xff]
        %v303 = vld [vmem:[%s218 + $0x250] sm:$0xff]
        %v304 = vld [vmem:[%s218 + $0x258] sm:$0xff]
        %v305 = vld [vmem:[%s218 + $0x260] sm:$0xff]
        %v306 = vld [vmem:[%s218 + $0x268] sm:$0xff]
        %v307 = vld [vmem:[%s218 + $0x270] sm:$0xff]
        %v308 = vld [vmem:[%s218 + $0x278] sm:$0xff]
        %v309 = vld [vmem:[%s1] sm:$0xff]
        %v310 = vld [vmem:[%s1 + $0x8] sm:$0xff]
        %v311 = vld [vmem:[%s1 + $0x10] sm:$0xff]
        %v312 = vld [vmem:[%s1 + $0x18] sm:$0xff]
        %v313 = vld [vmem:[%s1 + $0x20] sm:$0xff]
        %v314 = vld [vmem:[%s1 + $0x28] sm:$0xff]
        %v315 = vld [vmem:[%s1 + $0x30] sm:$0xff]
        %v316 = vld [vmem:[%s1 + $0x38] sm:$0xff]
        %v317 = vld [vmem:[%s1 + $0x40] sm:$0xff]
        %v318 = vld [vmem:[%s1 + $0x48] sm:$0xff]
        %v319 = vld [vmem:[%s1 + $0x50] sm:$0xff]
        %v320 = vld [vmem:[%s1 + $0x58] sm:$0xff]
        %v321 = vld [vmem:[%s1 + $0x60] sm:$0xff]
        %v322 = vld [vmem:[%s1 + $0x68] sm:$0xff]
        %v323 = vld [vmem:[%s1 + $0x70] sm:$0xff]
        %v324 = vld [vmem:[%s1 + $0x78] sm:$0xff]
        %v325 = vld [vmem:[%s1 + $0x80] sm:$0xff]
        %v326 = vld [vmem:[%s1 + $0x88] sm:$0xff]
        %v327 = vld [vmem:[%s1 + $0x90] sm:$0xff]
        %v328 = vld [vmem:[%s1 + $0x98] sm:$0xff]
        %v329 = vld [vmem:[%s1 + $0xa0] sm:$0xff]
        %v330 = vld [vmem:[%s1 + $0xa8] sm:$0xff]
        %v331 = vld [vmem:[%s1 + $0xb0] sm:$0xff]
        %v332 = vld [vmem:[%s1 + $0xb8] sm:$0xff]
        %v333 = vld [vmem:[%s1 + $0xc0] sm:$0xff]
        %v334 = vld [vmem:[%s1 + $0xc8] sm:$0xff]
        %v335 = vld [vmem:[%s1 + $0xd0] sm:$0xff]
        %v336 = vld [vmem:[%s1 + $0xd8] sm:$0xff]
        %v337 = vld [vmem:[%s1 + $0xe0] sm:$0xff]
        %v338 = vld [vmem:[%s1 + $0xe8] sm:$0xff]
        %v339 = vld [vmem:[%s1 + $0xf0] sm:$0xff]
        %v340 = vld [vmem:[%s1 + $0xf8] sm:$0xff]
        %v341 = vld [vmem:[%s1 + $0x100] sm:$0xff]
        %v342 = vld [vmem:[%s1 + $0x108] sm:$0xff]
        %v343 = vld [vmem:[%s1 + $0x110] sm:$0xff]
        %v344 = vld [vmem:[%s1 + $0x118] sm:$0xff]
        %v345 = vld [vmem:[%s1 + $0x120] sm:$0xff]
        %v346 = vld [vmem:[%s1 + $0x128] sm:$0xff]
        %v347 = vld [vmem:[%s1 + $0x130] sm:$0xff]
        %v348 = vld [vmem:[%s1 + $0x138] sm:$0xff]
        %v349 = vld [vmem:[%s1 + $0x140] sm:$0xff]
        %v350 = vld [vmem:[%s1 + $0x148] sm:$0xff]
        %v351 = vld [vmem:[%s1 + $0x150] sm:$0xff]
        %v352 = vld [vmem:[%s1 + $0x158] sm:$0xff]
        %v353 = vld [vmem:[%s1 + $0x160] sm:$0xff]
        %v354 = vld [vmem:[%s1 + $0x168] sm:$0xff]
        %v355 = vld [vmem:[%s1 + $0x170] sm:$0xff]
        %v356 = vld [vmem:[%s1 + $0x178] sm:$0xff]
        %v357 = vld [vmem:[%s1 + $0x180] sm:$0xff]
        %v358 = vld [vmem:[%s1 + $0x188] sm:$0xff]
        %v359 = vld [vmem:[%s1 + $0x190] sm:$0xff]
        %v360 = vld [vmem:[%s1 + $0x198] sm:$0xff]
        %v361 = vld [vmem:[%s1 + $0x1a0] sm:$0xff]
        %v362 = vld [vmem:[%s1 + $0x1a8] sm:$0xff]
        %v363 = vld [vmem:[%s1 + $0x1b0] sm:$0xff]
        %v364 = vld [vmem:[%s1 + $0x1b8] sm:$0xff]
        %v365 = vld [vmem:[%s1 + $0x1c0] sm:$0xff]
        %v366 = vld [vmem:[%s1 + $0x1c8] sm:$0xff]
        %v367 = vld [vmem:[%s1 + $0x1d0] sm:$0xff]
        %v368 = vld [vmem:[%s1 + $0x1d8] sm:$0xff]
        %v369 = vld [vmem:[%s1 + $0x1e0] sm:$0xff]
        %v370 = vld [vmem:[%s1 + $0x1e8] sm:$0xff]
        %v371 = vld [vmem:[%s1 + $0x1f0] sm:$0xff]
        %v372 = vld [vmem:[%s1 + $0x1f8] sm:$0xff]
        %v373 = vld [vmem:[%s1 + $0x200] sm:$0xff]
        %v374 = vld [vmem:[%s1 + $0x208] sm:$0xff]
        %v375 = vld [vmem:[%s1 + $0x210] sm:$0xf]
        %v376 = vld [vmem:[%s218 + $0x280] sm:$0xff]
        %v377 = vld [vmem:[%s218 + $0x288] sm:$0xff]
        %v378 = vld [vmem:[%s218 + $0x290] sm:$0xff]
        %v379 = vld [vmem:[%s218 + $0x298] sm:$0xff]
        %v380 = vld [vmem:[%s218 + $0x2a0] sm:$0xff]
        %v381 = vld [vmem:[%s218 + $0x2a8] sm:$0xff]
        %v382 = vld [vmem:[%s218 + $0x2b0] sm:$0xff]
        %v383 = vld [vmem:[%s218 + $0x2b8] sm:$0xff]
        %v384 = vld [vmem:[%s218 + $0x2c0] sm:$0xff]
        %v385 = vld [vmem:[%s218 + $0x2c8] sm:$0xff]
        %s386 = scalar_lea.vmem %s1, 536
        %v387 = vld [vmem:[%s386] sm:$0xff]
        %v388 = vld [vmem:[%s386 + $0x8] sm:$0xff]
        %v389 = vld [vmem:[%s386 + $0x10] sm:$0xff]
        %v390 = vld [vmem:[%s386 + $0x18] sm:$0xff]
        %v391 = vld [vmem:[%s386 + $0x20] sm:$0xff]
        %v392 = vld [vmem:[%s386 + $0x28] sm:$0xff]
        %v393 = vld [vmem:[%s386 + $0x30] sm:$0xff]
        %v394 = vld [vmem:[%s386 + $0x38] sm:$0xff]
        %v395 = vld [vmem:[%s386 + $0x40] sm:$0xff]
        %v396 = vld [vmem:[%s386 + $0x48] sm:$0xff]
        %v397 = vld [vmem:[%s386 + $0x50] sm:$0xff]
        %v398 = vld [vmem:[%s386 + $0x58] sm:$0xff]
        %v399 = vld [vmem:[%s386 + $0x60] sm:$0xff]
        %v400 = vld [vmem:[%s386 + $0x68] sm:$0xff]
        %v401 = vld [vmem:[%s386 + $0x70] sm:$0xff]
        %v402 = vld [vmem:[%s386 + $0x78] sm:$0xff]
        %v403 = vld [vmem:[%s386 + $0x80] sm:$0xff]
        %v404 = vld [vmem:[%s386 + $0x88] sm:$0xff]
        %v405 = vld [vmem:[%s386 + $0x90] sm:$0xff]
        %v406 = vld [vmem:[%s386 + $0x98] sm:$0xff]
        %v407 = vld [vmem:[%s386 + $0xa0] sm:$0xff]
        %v408 = vld [vmem:[%s386 + $0xa8] sm:$0xff]
        %v409 = vld [vmem:[%s386 + $0xb0] sm:$0xff]
        %v410 = vld [vmem:[%s386 + $0xb8] sm:$0xff]
        %v411 = vld [vmem:[%s386 + $0xc0] sm:$0xff]
        %v412 = vld [vmem:[%s386 + $0xc8] sm:$0xff]
        %v413 = vld [vmem:[%s386 + $0xd0] sm:$0xff]
        %v414 = vld [vmem:[%s386 + $0xd8] sm:$0xff]
        %v415 = vld [vmem:[%s386 + $0xe0] sm:$0xff]
        %v416 = vld [vmem:[%s386 + $0xe8] sm:$0xff]
        %v417 = vld [vmem:[%s386 + $0xf0] sm:$0xff]
        %v418 = vld [vmem:[%s386 + $0xf8] sm:$0xff]
        %v419 = vld [vmem:[%s386 + $0x100] sm:$0xff]
        %v420 = vld [vmem:[%s386 + $0x108] sm:$0xff]
        %v421 = vld [vmem:[%s386 + $0x110] sm:$0xff]
        %v422 = vld [vmem:[%s386 + $0x118] sm:$0xff]
        %v423 = vld [vmem:[%s386 + $0x120] sm:$0xff]
        %v424 = vld [vmem:[%s386 + $0x128] sm:$0xff]
        %v425 = vld [vmem:[%s386 + $0x130] sm:$0xff]
        %v426 = vld [vmem:[%s386 + $0x138] sm:$0xff]
        %v427 = vld [vmem:[%s386 + $0x140] sm:$0xff]
        %v428 = vld [vmem:[%s386 + $0x148] sm:$0xff]
        %v429 = vld [vmem:[%s386 + $0x150] sm:$0xff]
        %v430 = vld [vmem:[%s386 + $0x158] sm:$0xff]
        %v431 = vld [vmem:[%s386 + $0x160] sm:$0xff]
        %v432 = vld [vmem:[%s386 + $0x168] sm:$0xff]
        %v433 = vld [vmem:[%s386 + $0x170] sm:$0xff]
        %v434 = vld [vmem:[%s386 + $0x178] sm:$0xff]
        %v435 = vld [vmem:[%s386 + $0x180] sm:$0xff]
        %v436 = vld [vmem:[%s386 + $0x188] sm:$0xff]
        %v437 = vld [vmem:[%s386 + $0x190] sm:$0xff]
        %v438 = vld [vmem:[%s386 + $0x198] sm:$0xff]
        %v439 = vld [vmem:[%s386 + $0x1a0] sm:$0xff]
        %v440 = vld [vmem:[%s386 + $0x1a8] sm:$0xff]
        %v441 = vld [vmem:[%s386 + $0x1b0] sm:$0xff]
        %v442 = vld [vmem:[%s386 + $0x1b8] sm:$0xff]
        %v443 = vld [vmem:[%s386 + $0x1c0] sm:$0xff]
        %v444 = vld [vmem:[%s386 + $0x1c8] sm:$0xff]
        %v445 = vld [vmem:[%s386 + $0x1d0] sm:$0xff]
        %v446 = vld [vmem:[%s386 + $0x1d8] sm:$0xff]
        %v447 = vld [vmem:[%s386 + $0x1e0] sm:$0xff]
        %v448 = vld [vmem:[%s386 + $0x1e8] sm:$0xff]
        %v449 = vld [vmem:[%s386 + $0x1f0] sm:$0xff]
        %v450 = vld [vmem:[%s386 + $0x1f8] sm:$0xff]
        %v451 = vld [vmem:[%s386 + $0x200] sm:$0xff]
        %v452 = vld [vmem:[%s386 + $0x208] sm:$0xff]
        %v453 = vld [vmem:[%s386 + $0x210] sm:$0xf]
        %vm454 = vcmask 162816
        %v456 = vsel %vm454, %v243, 0
        %v459 = vsel %vm454, %v248, 0
        %v462 = vsel %vm454, %v253, 0
        %v465 = vsel %vm454, %v258, 0
        %v468 = vsel %vm454, %v263, 0
        %v471 = vsel %vm454, %v268, 0
        %v474 = vsel %vm454, %v273, 0
        %v477 = vsel %vm454, %v278, 0
        %v480 = vsel %vm454, %v283, 0
        %v483 = vsel %vm454, %v288, 0
        %v486 = vsel %vm454, %v293, 0
        %v489 = vsel %vm454, %v298, 0
        %v492 = vsel %vm454, %v303, 0
        %v495 = vsel %vm454, %v308, 0
        %v498 = vsel %vm454, %v380, 0
        %v501 = vsel %vm454, %v385, 0
        %vm503 = vcmask 1043456
        %v505 = vsel %vm503, %v453, 0
        %507 = vmatprep.subr.mxu0 0.0
        %508 = vmatpush1.msra.mxu0 %v387
        %509 = vmatprep.subr.mxu0 0.0
        %510 = vmatpush1.msra.mxu0 %v388
        %511 = vmatprep.subr.mxu0 0.0
        %512 = vmatpush1.msra.mxu0 %v389
        %513 = vmatprep.subr.mxu0 0.0
        %514 = vmatpush1.msra.mxu0 %v390
        %515 = vmatprep.subr.mxu0 0.0
        %516 = vmatpush1.msra.mxu0 %v391
        %517 = vmatprep.subr.mxu0 0.0
        %518 = vmatpush1.msra.mxu0 %v392
        %519 = vmatprep.subr.mxu0 0.0
        %520 = vmatpush1.msra.mxu0 %v393
        %521 = vmatprep.subr.mxu0 0.0
        %522 = vmatpush1.msra.mxu0 %v394
        %523 = vmatprep.subr.mxu0 0.0
        %524 = vmatpush1.msra.mxu0 %v395
        %525 = vmatprep.subr.mxu0 0.0
        %526 = vmatpush1.msra.mxu0 %v396
        %527 = vmatprep.subr.mxu0 0.0
        %528 = vmatpush1.msra.mxu0 %v397
        %529 = vmatprep.subr.mxu0 0.0
        %530 = vmatpush1.msra.mxu0 %v398
        %531 = vmatprep.subr.mxu0 0.0
        %532 = vmatpush1.msra.mxu0 %v399
        %533 = vmatprep.subr.mxu0 0.0
        %534 = vmatpush1.msra.mxu0 %v400
        %535 = vmatprep.subr.mxu0 0.0
        %536 = vmatpush1.msra.mxu0 %v401
        %537 = vmatprep.subr.mxu0 0.0
        %538 = vmatpush1.msra.mxu0 %v402
        %539 = vmatprep.subr.mxu0 0.0
        %540 = vmatpush1.msra.mxu0 %v403
        %541 = vmatprep.subr.mxu0 0.0
        %542 = vmatpush1.msra.mxu0 %v404
        %543 = vmatprep.subr.mxu0 0.0
        %544 = vmatpush1.msra.mxu0 %v405
        %545 = vmatprep.subr.mxu0 0.0
        %546 = vmatpush1.msra.mxu0 %v406
        %547 = vmatprep.subr.mxu0 0.0
        %548 = vmatpush1.msra.mxu0 %v407
        %549 = vmatprep.subr.mxu0 0.0
        %550 = vmatpush1.msra.mxu0 %v408
        %551 = vmatprep.subr.mxu0 0.0
        %552 = vmatpush1.msra.mxu0 %v409
        %553 = vmatprep.subr.mxu0 0.0
        %554 = vmatpush1.msra.mxu0 %v410
        %555 = vmatprep.subr.mxu0 0.0
        %556 = vmatpush1.msra.mxu0 %v411
        %557 = vmatprep.subr.mxu0 0.0
        %558 = vmatpush1.msra.mxu0 %v412
        %559 = vmatprep.subr.mxu0 0.0
        %560 = vmatpush1.msra.mxu0 %v413
        %561 = vmatprep.subr.mxu0 0.0
        %562 = vmatpush1.msra.mxu0 %v414
        %563 = vmatprep.subr.mxu0 0.0
        %564 = vmatpush1.msra.mxu0 %v415
        %565 = vmatprep.subr.mxu0 0.0
        %566 = vmatpush1.msra.mxu0 %v416
        %567 = vmatprep.subr.mxu0 0.0
        %568 = vmatpush1.msra.mxu0 %v417
        %569 = vmatprep.subr.mxu0 0.0
        %570 = vmatpush1.msra.mxu0 %v418
        %571 = vmatprep.mubr.f32.mxu0 %v240
        %572 = vmatmul.mubr.f32.gmra.mrb[0].mxu0 %v239
        %v573 = vpop.f32.mrb[0].mxu0
        %v574 = vadd.f32 0.0, %v573
        %v575 = vpop.f32.mrb[0].mxu0
        %576 = vmatprep.mubr.f32.mxu0 %v245
        %577 = vmatmul.mubr.f32.gmra.mrb[0].mxu0 %v244
        %v578 = vpop.f32.mrb[0].mxu0
        %v579 = vadd.f32 0.0, %v578
        %v580 = vpop.f32.mrb[0].mxu0
        %581 = vmatprep.mubr.f32.mxu0 %v250
        %582 = vmatmul.mubr.f32.gmra.mrb[0].mxu0 %v249
        %v583 = vpop.f32.mrb[0].mxu0
        %v584 = vadd.f32 0.0, %v583
        %v585 = vpop.f32.mrb[0].mxu0
        %586 = vmatprep.mubr.f32.mxu0 %v255
        %587 = vmatmul.mubr.f32.gmra.mrb[0].mxu0 %v254
        %v588 = vpop.f32.mrb[0].mxu0
        %v589 = vadd.f32 0.0, %v588
        %v590 = vpop.f32.mrb[0].mxu0
        %591 = vmatprep.mubr.f32.mxu0 %v260
        %592 = vmatmul.mubr.f32.gmra.mrb[0].mxu0 %v259
        %v593 = vpop.f32.mrb[0].mxu0
        %v594 = vadd.f32 0.0, %v593
        %v595 = vpop.f32.mrb[0].mxu0
        %596 = vmatprep.mubr.f32.mxu0 %v265
        %597 = vmatmul.mubr.f32.gmra.mrb[0].mxu0 %v264
        %v598 = vpop.f32.mrb[0].mxu0
        %v599 = vadd.f32 0.0, %v598
        %v600 = vpop.f32.mrb[0].mxu0
        %601 = vmatprep.mubr.f32.mxu0 %v270
        %602 = vmatmul.mubr.f32.gmra.mrb[0].mxu0 %v269
        %v603 = vpop.f32.mrb[0].mxu0
        %v604 = vadd.f32 0.0, %v603
        %v605 = vpop.f32.mrb[0].mxu0
        %606 = vmatprep.mubr.f32.mxu0 %v275
        %607 = vmatmul.mubr.f32.gmra.mrb[0].mxu0 %v274
        %v608 = vpop.f32.mrb[0].mxu0
        %v609 = vadd.f32 0.0, %v608
        %v610 = vpop.f32.mrb[0].mxu0
        %611 = vmatprep.mubr.f32.mxu0 %v280
        %612 = vmatmul.mubr.f32.gmra.mrb[0].mxu0 %v279
        %v613 = vpop.f32.mrb[0].mxu0
        %v614 = vadd.f32 0.0, %v613
        %v615 = vpop.f32.mrb[0].mxu0
        %616 = vmatprep.mubr.f32.mxu0 %v285
        %617 = vmatmul.mubr.f32.gmra.mrb[0].mxu0 %v284
        %v618 = vpop.f32.mrb[0].mxu0
        %v619 = vadd.f32 0.0, %v618
        %v620 = vpop.f32.mrb[0].mxu0
        %621 = vmatprep.mubr.f32.mxu0 %v290
        %622 = vmatmul.mubr.f32.gmra.mrb[0].mxu0 %v289
        %v623 = vpop.f32.mrb[0].mxu0
        %v624 = vadd.f32 0.0, %v623
        %v625 = vpop.f32.mrb[0].mxu0
        %626 = vmatprep.mubr.f32.mxu0 %v295
        %627 = vmatmul.mubr.f32.gmra.mrb[0].mxu0 %v294
        %v628 = vpop.f32.mrb[0].mxu0
        %v629 = vadd.f32 0.0, %v628
        %v630 = vpop.f32.mrb[0].mxu0
        %631 = vmatprep.mubr.f32.mxu0 %v300
        %632 = vmatmul.mubr.f32.gmra.mrb[0].mxu0 %v299
        %v633 = vpop.f32.mrb[0].mxu0
        %v634 = vadd.f32 0.0, %v633
        %v635 = vpop.f32.mrb[0].mxu0
        %636 = vmatprep.mubr.f32.mxu0 %v305
        %637 = vmatmul.mubr.f32.gmra.mrb[0].mxu0 %v304
        %v638 = vpop.f32.mrb[0].mxu0
        %v639 = vadd.f32 0.0, %v638
        %v640 = vpop.f32.mrb[0].mxu0
        %641 = vmatprep.mubr.f32.mxu0 %v377
        %642 = vmatmul.mubr.f32.gmra.mrb[0].mxu0 %v376
        %v643 = vpop.f32.mrb[0].mxu0
        %v644 = vadd.f32 0.0, %v643
        %v645 = vpop.f32.mrb[0].mxu0
        %646 = vmatprep.mubr.f32.mxu0 %v382
        %647 = vmatmul.mubr.f32.gmra.mrb[0].mxu0 %v381
        %v648 = vpop.f32.mrb[0].mxu0
        %v649 = vadd.f32 0.0, %v648
        %v650 = vpop.f32.mrb[0].mxu0
        %651 = vdwg.mxu0
        %652 = vmatprep.subr.mxu0 0.0
        %653 = vmatpush1.msra.mxu0 %v419
        %654 = vmatprep.subr.mxu0 0.0
        %655 = vmatpush1.msra.mxu0 %v420
        %656 = vmatprep.subr.mxu0 0.0
        %657 = vmatpush1.msra.mxu0 %v421
        %658 = vmatprep.subr.mxu0 0.0
        %659 = vmatpush1.msra.mxu0 %v422
        %660 = vmatprep.subr.mxu0 0.0
        %661 = vmatpush1.msra.mxu0 %v423
        %662 = vmatprep.subr.mxu0 0.0
        %663 = vmatpush1.msra.mxu0 %v424
        %664 = vmatprep.subr.mxu0 0.0
        %665 = vmatpush1.msra.mxu0 %v425
        %666 = vmatprep.subr.mxu0 0.0
        %667 = vmatpush1.msra.mxu0 %v426
        %668 = vmatprep.subr.mxu0 0.0
        %669 = vmatpush1.msra.mxu0 %v427
        %670 = vmatprep.subr.mxu0 0.0
        %671 = vmatpush1.msra.mxu0 %v428
        %672 = vmatprep.subr.mxu0 0.0
        %673 = vmatpush1.msra.mxu0 %v429
        %674 = vmatprep.subr.mxu0 0.0
        %675 = vmatpush1.msra.mxu0 %v430
        %676 = vmatprep.subr.mxu0 0.0
        %677 = vmatpush1.msra.mxu0 %v431
        %678 = vmatprep.subr.mxu0 0.0
        %679 = vmatpush1.msra.mxu0 %v432
        %680 = vmatprep.subr.mxu0 0.0
        %681 = vmatpush1.msra.mxu0 %v433
        %682 = vmatprep.subr.mxu0 0.0
        %683 = vmatpush1.msra.mxu0 %v434
        %684 = vmatprep.subr.mxu0 0.0
        %685 = vmatpush1.msra.mxu0 %v435
        %686 = vmatprep.subr.mxu0 0.0
        %687 = vmatpush1.msra.mxu0 %v436
        %688 = vmatprep.subr.mxu0 0.0
        %689 = vmatpush1.msra.mxu0 %v437
        %690 = vmatprep.subr.mxu0 0.0
        %691 = vmatpush1.msra.mxu0 %v438
        %692 = vmatprep.subr.mxu0 0.0
        %693 = vmatpush1.msra.mxu0 %v439
        %694 = vmatprep.subr.mxu0 0.0
        %695 = vmatpush1.msra.mxu0 %v440
        %696 = vmatprep.subr.mxu0 0.0
        %697 = vmatpush1.msra.mxu0 %v441
        %698 = vmatprep.subr.mxu0 0.0
        %699 = vmatpush1.msra.mxu0 %v442
        %700 = vmatprep.subr.mxu0 0.0
        %701 = vmatpush1.msra.mxu0 %v443
        %702 = vmatprep.subr.mxu0 0.0
        %703 = vmatpush1.msra.mxu0 %v444
        %704 = vmatprep.subr.mxu0 0.0
        %705 = vmatpush1.msra.mxu0 %v445
        %706 = vmatprep.subr.mxu0 0.0
        %707 = vmatpush1.msra.mxu0 %v446
        %708 = vmatprep.subr.mxu0 0.0
        %709 = vmatpush1.msra.mxu0 %v447
        %710 = vmatprep.subr.mxu0 0.0
        %711 = vmatpush1.msra.mxu0 %v448
        %712 = vmatprep.subr.mxu0 0.0
        %713 = vmatpush1.msra.mxu0 %v449
        %714 = vmatprep.subr.mxu0 0.0
        %715 = vmatpush1.msra.mxu0 %v450
        %716 = vmatprep.mubr.f32.mxu0 %v242
        %717 = vmatmul.mubr.f32.gmra.mrb[0].mxu0 %v241
        %v718 = vpop.f32.mrb[0].mxu0
        %v719 = vadd.f32 %v574, %v718
        %v720 = vpop.f32.mrb[0].mxu0
        %721 = vmatprep.mubr.f32.mxu0 %v247
        %722 = vmatmul.mubr.f32.gmra.mrb[0].mxu0 %v246
        %v723 = vpop.f32.mrb[0].mxu0
        %v724 = vadd.f32 %v579, %v723
        %v725 = vpop.f32.mrb[0].mxu0
        %726 = vmatprep.mubr.f32.mxu0 %v252
        %727 = vmatmul.mubr.f32.gmra.mrb[0].mxu0 %v251
        %v728 = vpop.f32.mrb[0].mxu0
        %v729 = vadd.f32 %v584, %v728
        %v730 = vpop.f32.mrb[0].mxu0
        %731 = vmatprep.mubr.f32.mxu0 %v257
        %732 = vmatmul.mubr.f32.gmra.mrb[0].mxu0 %v256
        %v733 = vpop.f32.mrb[0].mxu0
        %v734 = vadd.f32 %v589, %v733
        %v735 = vpop.f32.mrb[0].mxu0
        %736 = vmatprep.mubr.f32.mxu0 %v262
        %737 = vmatmul.mubr.f32.gmra.mrb[0].mxu0 %v261
        %v738 = vpop.f32.mrb[0].mxu0
        %v739 = vadd.f32 %v594, %v738
        %v740 = vpop.f32.mrb[0].mxu0
        %741 = vmatprep.mubr.f32.mxu0 %v267
        %742 = vmatmul.mubr.f32.gmra.mrb[0].mxu0 %v266
        %v743 = vpop.f32.mrb[0].mxu0
        %v744 = vadd.f32 %v599, %v743
        %v745 = vpop.f32.mrb[0].mxu0
        %746 = vmatprep.mubr.f32.mxu0 %v272
        %747 = vmatmul.mubr.f32.gmra.mrb[0].mxu0 %v271
        %v748 = vpop.f32.mrb[0].mxu0
        %v749 = vadd.f32 %v604, %v748
        %v750 = vpop.f32.mrb[0].mxu0
        %751 = vmatprep.mubr.f32.mxu0 %v277
        %752 = vmatmul.mubr.f32.gmra.mrb[0].mxu0 %v276
        %v753 = vpop.f32.mrb[0].mxu0
        %v754 = vadd.f32 %v609, %v753
        %v755 = vpop.f32.mrb[0].mxu0
        %756 = vmatprep.mubr.f32.mxu0 %v282
        %757 = vmatmul.mubr.f32.gmra.mrb[0].mxu0 %v281
        %v758 = vpop.f32.mrb[0].mxu0
        %v759 = vadd.f32 %v614, %v758
        %v760 = vpop.f32.mrb[0].mxu0
        %761 = vmatprep.mubr.f32.mxu0 %v287
        %762 = vmatmul.mubr.f32.gmra.mrb[0].mxu0 %v286
        %v763 = vpop.f32.mrb[0].mxu0
        %v764 = vadd.f32 %v619, %v763
        %v765 = vpop.f32.mrb[0].mxu0
        %766 = vmatprep.mubr.f32.mxu0 %v292
        %767 = vmatmul.mubr.f32.gmra.mrb[0].mxu0 %v291
        %v768 = vpop.f32.mrb[0].mxu0
        %v769 = vadd.f32 %v624, %v768
        %v770 = vpop.f32.mrb[0].mxu0
        %771 = vmatprep.mubr.f32.mxu0 %v297
        %772 = vmatmul.mubr.f32.gmra.mrb[0].mxu0 %v296
        %v773 = vpop.f32.mrb[0].mxu0
        %v774 = vadd.f32 %v629, %v773
        %v775 = vpop.f32.mrb[0].mxu0
        %776 = vmatprep.mubr.f32.mxu0 %v302
        %777 = vmatmul.mubr.f32.gmra.mrb[0].mxu0 %v301
        %v778 = vpop.f32.mrb[0].mxu0
        %v779 = vadd.f32 %v634, %v778
        %v780 = vpop.f32.mrb[0].mxu0
        %781 = vmatprep.mubr.f32.mxu0 %v307
        %782 = vmatmul.mubr.f32.gmra.mrb[0].mxu0 %v306
        %v783 = vpop.f32.mrb[0].mxu0
        %v784 = vadd.f32 %v639, %v783
        %v785 = vpop.f32.mrb[0].mxu0
        %786 = vmatprep.mubr.f32.mxu0 %v379
        %787 = vmatmul.mubr.f32.gmra.mrb[0].mxu0 %v378
        %v788 = vpop.f32.mrb[0].mxu0
        %v789 = vadd.f32 %v644, %v788
        %v790 = vpop.f32.mrb[0].mxu0
        %791 = vmatprep.mubr.f32.mxu0 %v384
        %792 = vmatmul.mubr.f32.gmra.mrb[0].mxu0 %v383
        %v793 = vpop.f32.mrb[0].mxu0
        %v794 = vadd.f32 %v649, %v793
        %v795 = vpop.f32.mrb[0].mxu0
        %796 = vdwg.mxu0
        %797 = vmatprep.subr.mxu0 0.0
        %798 = vmatpush1.msra.mxu0 %v451
        %799 = vmatprep.subr.mxu0 0.0
        %800 = vmatpush1.msra.mxu0 %v452
        %801 = vmatprep.subr.mxu0 0.0
        %802 = vmatpush1.msra.mxu0 %v505
        %803 = vmatprep.subr.mxu0 0.0
        %804 = vmatpush1.msra.mxu0 0.0
        %805 = vmatprep.subr.mxu0 0.0
        %806 = vmatpush1.msra.mxu0 0.0
        %807 = vmatprep.subr.mxu0 0.0
        %808 = vmatpush1.msra.mxu0 0.0
        %809 = vmatprep.subr.mxu0 0.0
        %810 = vmatpush1.msra.mxu0 0.0
        %811 = vmatprep.subr.mxu0 0.0
        %812 = vmatpush1.msra.mxu0 0.0
        %813 = vmatprep.subr.mxu0 0.0
        %814 = vmatpush1.msra.mxu0 0.0
        %815 = vmatprep.subr.mxu0 0.0
        %816 = vmatpush1.msra.mxu0 0.0
        %817 = vmatprep.subr.mxu0 0.0
        %818 = vmatpush1.msra.mxu0 0.0
        %819 = vmatprep.subr.mxu0 0.0
        %820 = vmatpush1.msra.mxu0 0.0
        %821 = vmatprep.subr.mxu0 0.0
        %822 = vmatpush1.msra.mxu0 0.0
        %823 = vmatprep.subr.mxu0 0.0
        %824 = vmatpush1.msra.mxu0 0.0
        %825 = vmatprep.subr.mxu0 0.0
        %826 = vmatpush1.msra.mxu0 0.0
        %827 = vmatprep.subr.mxu0 0.0
        %828 = vmatpush1.msra.mxu0 0.0
        %829 = vmatprep.subr.mxu0 0.0
        %830 = vmatpush1.msra.mxu0 0.0
        %831 = vmatprep.subr.mxu0 0.0
        %832 = vmatpush1.msra.mxu0 0.0
        %833 = vmatprep.subr.mxu0 0.0
        %834 = vmatpush1.msra.mxu0 0.0
        %835 = vmatprep.subr.mxu0 0.0
        %836 = vmatpush1.msra.mxu0 0.0
        %837 = vmatprep.subr.mxu0 0.0
        %838 = vmatpush1.msra.mxu0 0.0
        %839 = vmatprep.subr.mxu0 0.0
        %840 = vmatpush1.msra.mxu0 0.0
        %841 = vmatprep.subr.mxu0 0.0
        %842 = vmatpush1.msra.mxu0 0.0
        %843 = vmatprep.subr.mxu0 0.0
        %844 = vmatpush1.msra.mxu0 0.0
        %845 = vmatprep.subr.mxu0 0.0
        %846 = vmatpush1.msra.mxu0 0.0
        %847 = vmatprep.subr.mxu0 0.0
        %848 = vmatpush1.msra.mxu0 0.0
        %849 = vmatprep.subr.mxu0 0.0
        %850 = vmatpush1.msra.mxu0 0.0
        %851 = vmatprep.subr.mxu0 0.0
        %852 = vmatpush1.msra.mxu0 0.0
        %853 = vmatprep.subr.mxu0 0.0
        %854 = vmatpush1.msra.mxu0 0.0
        %855 = vmatprep.subr.mxu0 0.0
        %856 = vmatpush1.msra.mxu0 0.0
        %857 = vmatprep.subr.mxu0 0.0
        %858 = vmatpush1.msra.mxu0 0.0
        %859 = vmatprep.subr.mxu0 0.0
        %860 = vmatpush1.msra.mxu0 0.0
        %861 = vmatprep.mubr.f32.mxu0 0.0
        %862 = vmatmul.mubr.f32.gmra.mrb[0].mxu0 %v456
        %v863 = vpop.f32.mrb[0].mxu0
        %v864 = vadd.f32 %v719, %v863
        %v865 = vpop.f32.mrb[0].mxu0
        %866 = vmatprep.mubr.f32.mxu0 0.0
        %867 = vmatmul.mubr.f32.gmra.mrb[0].mxu0 %v459
        %v868 = vpop.f32.mrb[0].mxu0
        %v869 = vadd.f32 %v724, %v868
        %v870 = vpop.f32.mrb[0].mxu0
        %871 = vmatprep.mubr.f32.mxu0 0.0
        %872 = vmatmul.mubr.f32.gmra.mrb[0].mxu0 %v462
        %v873 = vpop.f32.mrb[0].mxu0
        %v874 = vadd.f32 %v729, %v873
        %v875 = vpop.f32.mrb[0].mxu0
        %876 = vmatprep.mubr.f32.mxu0 0.0
        %877 = vmatmul.mubr.f32.gmra.mrb[0].mxu0 %v465
        %v878 = vpop.f32.mrb[0].mxu0
        %v879 = vadd.f32 %v734, %v878
        %v880 = vpop.f32.mrb[0].mxu0
        %881 = vmatprep.mubr.f32.mxu0 0.0
        %882 = vmatmul.mubr.f32.gmra.mrb[0].mxu0 %v468
        %v883 = vpop.f32.mrb[0].mxu0
        %v884 = vadd.f32 %v739, %v883
        %v885 = vpop.f32.mrb[0].mxu0
        %886 = vmatprep.mubr.f32.mxu0 0.0
        %887 = vmatmul.mubr.f32.gmra.mrb[0].mxu0 %v471
        %v888 = vpop.f32.mrb[0].mxu0
        %v889 = vadd.f32 %v744, %v888
        %v890 = vpop.f32.mrb[0].mxu0
        %891 = vmatprep.mubr.f32.mxu0 0.0
        %892 = vmatmul.mubr.f32.gmra.mrb[0].mxu0 %v474
        %v893 = vpop.f32.mrb[0].mxu0
        %v894 = vadd.f32 %v749, %v893
        %v895 = vpop.f32.mrb[0].mxu0
        %896 = vmatprep.mubr.f32.mxu0 0.0
        %897 = vmatmul.mubr.f32.gmra.mrb[0].mxu0 %v477
        %v898 = vpop.f32.mrb[0].mxu0
        %v899 = vadd.f32 %v754, %v898
        %v900 = vpop.f32.mrb[0].mxu0
        %901 = vmatprep.mubr.f32.mxu0 0.0
        %902 = vmatmul.mubr.f32.gmra.mrb[0].mxu0 %v480
        %v903 = vpop.f32.mrb[0].mxu0
        %v904 = vadd.f32 %v759, %v903
        %v905 = vpop.f32.mrb[0].mxu0
        %906 = vmatprep.mubr.f32.mxu0 0.0
        %907 = vmatmul.mubr.f32.gmra.mrb[0].mxu0 %v483
        %v908 = vpop.f32.mrb[0].mxu0
        %v909 = vadd.f32 %v764, %v908
        %v910 = vpop.f32.mrb[0].mxu0
        %911 = vmatprep.mubr.f32.mxu0 0.0
        %912 = vmatmul.mubr.f32.gmra.mrb[0].mxu0 %v486
        %v913 = vpop.f32.mrb[0].mxu0
        %v914 = vadd.f32 %v769, %v913
        %v915 = vpop.f32.mrb[0].mxu0
        %916 = vmatprep.mubr.f32.mxu0 0.0
        %917 = vmatmul.mubr.f32.gmra.mrb[0].mxu0 %v489
        %v918 = vpop.f32.mrb[0].mxu0
        %v919 = vadd.f32 %v774, %v918
        %v920 = vpop.f32.mrb[0].mxu0
        %921 = vmatprep.mubr.f32.mxu0 0.0
        %922 = vmatmul.mubr.f32.gmra.mrb[0].mxu0 %v492
        %v923 = vpop.f32.mrb[0].mxu0
        %v924 = vadd.f32 %v779, %v923
        %v925 = vpop.f32.mrb[0].mxu0
        %926 = vmatprep.mubr.f32.mxu0 0.0
        %927 = vmatmul.mubr.f32.gmra.mrb[0].mxu0 %v495
        %v928 = vpop.f32.mrb[0].mxu0
        %v929 = vadd.f32 %v784, %v928
        %v930 = vpop.f32.mrb[0].mxu0
        %931 = vmatprep.mubr.f32.mxu0 0.0
        %932 = vmatmul.mubr.f32.gmra.mrb[0].mxu0 %v498
        %v933 = vpop.f32.mrb[0].mxu0
        %v934 = vadd.f32 %v789, %v933
        %v935 = vpop.f32.mrb[0].mxu0
        %936 = vmatprep.mubr.f32.mxu0 0.0
        %937 = vmatmul.mubr.f32.gmra.mrb[0].mxu0 %v501
        %v938 = vpop.f32.mrb[0].mxu0
        %v939 = vadd.f32 %v794, %v938
        %v940 = vpop.f32.mrb[0].mxu0
        %941 = vdwg.mxu0
        %v943 = vsel %vm454, %v233, 0
        %v946 = vsel %vm454, %v238, 0
        %v949 = vsel %vm503, %v375, 0
        %951 = vmatprep.subr.mxu0 0.0
        %952 = vmatpush1.msra.mxu0 %v309
        %953 = vmatprep.subr.mxu0 0.0
        %954 = vmatpush1.msra.mxu0 %v310
        %955 = vmatprep.subr.mxu0 0.0
        %956 = vmatpush1.msra.mxu0 %v311
        %957 = vmatprep.subr.mxu0 0.0
        %958 = vmatpush1.msra.mxu0 %v312
        %959 = vmatprep.subr.mxu0 0.0
        %960 = vmatpush1.msra.mxu0 %v313
        %961 = vmatprep.subr.mxu0 0.0
        %962 = vmatpush1.msra.mxu0 %v314
        %963 = vmatprep.subr.mxu0 0.0
        %964 = vmatpush1.msra.mxu0 %v315
        %965 = vmatprep.subr.mxu0 0.0
        %966 = vmatpush1.msra.mxu0 %v316
        %967 = vmatprep.subr.mxu0 0.0
        %968 = vmatpush1.msra.mxu0 %v317
        %969 = vmatprep.subr.mxu0 0.0
        %970 = vmatpush1.msra.mxu0 %v318
        %971 = vmatprep.subr.mxu0 0.0
        %972 = vmatpush1.msra.mxu0 %v319
        %973 = vmatprep.subr.mxu0 0.0
        %974 = vmatpush1.msra.mxu0 %v320
        %975 = vmatprep.subr.mxu0 0.0
        %976 = vmatpush1.msra.mxu0 %v321
        %977 = vmatprep.subr.mxu0 0.0
        %978 = vmatpush1.msra.mxu0 %v322
        %979 = vmatprep.subr.mxu0 0.0
        %980 = vmatpush1.msra.mxu0 %v323
        %981 = vmatprep.subr.mxu0 0.0
        %982 = vmatpush1.msra.mxu0 %v324
        %983 = vmatprep.subr.mxu0 0.0
        %984 = vmatpush1.msra.mxu0 %v325
        %985 = vmatprep.subr.mxu0 0.0
        %986 = vmatpush1.msra.mxu0 %v326
        %987 = vmatprep.subr.mxu0 0.0
        %988 = vmatpush1.msra.mxu0 %v327
        %989 = vmatprep.subr.mxu0 0.0
        %990 = vmatpush1.msra.mxu0 %v328
        %991 = vmatprep.subr.mxu0 0.0
        %992 = vmatpush1.msra.mxu0 %v329
        %993 = vmatprep.subr.mxu0 0.0
        %994 = vmatpush1.msra.mxu0 %v330
        %995 = vmatprep.subr.mxu0 0.0
        %996 = vmatpush1.msra.mxu0 %v331
        %997 = vmatprep.subr.mxu0 0.0
        %998 = vmatpush1.msra.mxu0 %v332
        %999 = vmatprep.subr.mxu0 0.0
        %1000 = vmatpush1.msra.mxu0 %v333
        %1001 = vmatprep.subr.mxu0 0.0
        %1002 = vmatpush1.msra.mxu0 %v334
        %1003 = vmatprep.subr.mxu0 0.0
        %1004 = vmatpush1.msra.mxu0 %v335
        %1005 = vmatprep.subr.mxu0 0.0
        %1006 = vmatpush1.msra.mxu0 %v336
        %1007 = vmatprep.subr.mxu0 0.0
        %1008 = vmatpush1.msra.mxu0 %v337
        %1009 = vmatprep.subr.mxu0 0.0
        %1010 = vmatpush1.msra.mxu0 %v338
        %1011 = vmatprep.subr.mxu0 0.0
        %1012 = vmatpush1.msra.mxu0 %v339
        %1013 = vmatprep.subr.mxu0 0.0
        %1014 = vmatpush1.msra.mxu0 %v340
        %1015 = vmatprep.mubr.f32.mxu0 %v230
        %1016 = vmatmul.mubr.f32.gmra.mrb[0].mxu0 %v229
        %v1017 = vpop.f32.mrb[0].mxu0
        %v1018 = vadd.f32 %v864, %v1017
        %v1019 = vpop.f32.mrb[0].mxu0
        %1020 = vmatprep.mubr.f32.mxu0 %v235
        %1021 = vmatmul.mubr.f32.gmra.mrb[0].mxu0 %v234
        %v1022 = vpop.f32.mrb[0].mxu0
        %v1023 = vadd.f32 %v869, %v1022
        %v1024 = vpop.f32.mrb[0].mxu0
        %1025 = vmatprep.mubr.f32.mxu0 %v240
        %1026 = vmatmul.mubr.f32.gmra.mrb[0].mxu0 %v239
        %v1027 = vpop.f32.mrb[0].mxu0
        %v1028 = vadd.f32 %v874, %v1027
        %v1029 = vpop.f32.mrb[0].mxu0
        %1030 = vmatprep.mubr.f32.mxu0 %v245
        %1031 = vmatmul.mubr.f32.gmra.mrb[0].mxu0 %v244
        %v1032 = vpop.f32.mrb[0].mxu0
        %v1033 = vadd.f32 %v879, %v1032
        %v1034 = vpop.f32.mrb[0].mxu0
        %1035 = vmatprep.mubr.f32.mxu0 %v250
        %1036 = vmatmul.mubr.f32.gmra.mrb[0].mxu0 %v249
        %v1037 = vpop.f32.mrb[0].mxu0
        %v1038 = vadd.f32 %v884, %v1037
        %v1039 = vpop.f32.mrb[0].mxu0
        %1040 = vmatprep.mubr.f32.mxu0 %v255
        %1041 = vmatmul.mubr.f32.gmra.mrb[0].mxu0 %v254
        %v1042 = vpop.f32.mrb[0].mxu0
        %v1043 = vadd.f32 %v889, %v1042
        %v1044 = vpop.f32.mrb[0].mxu0
        %1045 = vmatprep.mubr.f32.mxu0 %v260
        %1046 = vmatmul.mubr.f32.gmra.mrb[0].mxu0 %v259
        %v1047 = vpop.f32.mrb[0].mxu0
        %v1048 = vadd.f32 %v894, %v1047
        %v1049 = vpop.f32.mrb[0].mxu0
        %1050 = vmatprep.mubr.f32.mxu0 %v265
        %1051 = vmatmul.mubr.f32.gmra.mrb[0].mxu0 %v264
        %v1052 = vpop.f32.mrb[0].mxu0
        %v1053 = vadd.f32 %v899, %v1052
        %v1054 = vpop.f32.mrb[0].mxu0
        %1055 = vmatprep.mubr.f32.mxu0 %v270
        %1056 = vmatmul.mubr.f32.gmra.mrb[0].mxu0 %v269
        %v1057 = vpop.f32.mrb[0].mxu0
        %v1058 = vadd.f32 %v904, %v1057
        %v1059 = vpop.f32.mrb[0].mxu0
        %1060 = vmatprep.mubr.f32.mxu0 %v275
        %1061 = vmatmul.mubr.f32.gmra.mrb[0].mxu0 %v274
        %v1062 = vpop.f32.mrb[0].mxu0
        %v1063 = vadd.f32 %v909, %v1062
        %v1064 = vpop.f32.mrb[0].mxu0
        %1065 = vmatprep.mubr.f32.mxu0 %v280
        %1066 = vmatmul.mubr.f32.gmra.mrb[0].mxu0 %v279
        %v1067 = vpop.f32.mrb[0].mxu0
        %v1068 = vadd.f32 %v914, %v1067
        %v1069 = vpop.f32.mrb[0].mxu0
        %1070 = vmatprep.mubr.f32.mxu0 %v285
        %1071 = vmatmul.mubr.f32.gmra.mrb[0].mxu0 %v284
        %v1072 = vpop.f32.mrb[0].mxu0
        %v1073 = vadd.f32 %v919, %v1072
        %v1074 = vpop.f32.mrb[0].mxu0
        %1075 = vmatprep.mubr.f32.mxu0 %v290
        %1076 = vmatmul.mubr.f32.gmra.mrb[0].mxu0 %v289
        %v1077 = vpop.f32.mrb[0].mxu0
        %v1078 = vadd.f32 %v924, %v1077
        %v1079 = vpop.f32.mrb[0].mxu0
        %1080 = vmatprep.mubr.f32.mxu0 %v295
        %1081 = vmatmul.mubr.f32.gmra.mrb[0].mxu0 %v294
        %v1082 = vpop.f32.mrb[0].mxu0
        %v1083 = vadd.f32 %v929, %v1082
        %v1084 = vpop.f32.mrb[0].mxu0
        %1085 = vmatprep.mubr.f32.mxu0 %v300
        %1086 = vmatmul.mubr.f32.gmra.mrb[0].mxu0 %v299
        %v1087 = vpop.f32.mrb[0].mxu0
        %v1088 = vadd.f32 %v934, %v1087
        %v1089 = vpop.f32.mrb[0].mxu0
        %1090 = vmatprep.mubr.f32.mxu0 %v305
        %1091 = vmatmul.mubr.f32.gmra.mrb[0].mxu0 %v304
        %v1092 = vpop.f32.mrb[0].mxu0
        %v1093 = vadd.f32 %v939, %v1092
        %v1094 = vpop.f32.mrb[0].mxu0
        %1095 = vdwg.mxu0
        %1096 = vmatprep.subr.mxu0 0.0
        %1097 = vmatpush1.msra.mxu0 %v341
        %1098 = vmatprep.subr.mxu0 0.0
        %1099 = vmatpush1.msra.mxu0 %v342
        %1100 = vmatprep.subr.mxu0 0.0
        %1101 = vmatpush1.msra.mxu0 %v343
        %1102 = vmatprep.subr.mxu0 0.0
        %1103 = vmatpush1.msra.mxu0 %v344
        %1104 = vmatprep.subr.mxu0 0.0
        %1105 = vmatpush1.msra.mxu0 %v345
        %1106 = vmatprep.subr.mxu0 0.0
        %1107 = vmatpush1.msra.mxu0 %v346
        %1108 = vmatprep.subr.mxu0 0.0
        %1109 = vmatpush1.msra.mxu0 %v347
        %1110 = vmatprep.subr.mxu0 0.0
        %1111 = vmatpush1.msra.mxu0 %v348
        %1112 = vmatprep.subr.mxu0 0.0
        %1113 = vmatpush1.msra.mxu0 %v349
        %1114 = vmatprep.subr.mxu0 0.0
        %1115 = vmatpush1.msra.mxu0 %v350
        %1116 = vmatprep.subr.mxu0 0.0
        %1117 = vmatpush1.msra.mxu0 %v351
        %1118 = vmatprep.subr.mxu0 0.0
        %1119 = vmatpush1.msra.mxu0 %v352
        %1120 = vmatprep.subr.mxu0 0.0
        %1121 = vmatpush1.msra.mxu0 %v353
        %1122 = vmatprep.subr.mxu0 0.0
        %1123 = vmatpush1.msra.mxu0 %v354
        %1124 = vmatprep.subr.mxu0 0.0
        %1125 = vmatpush1.msra.mxu0 %v355
        %1126 = vmatprep.subr.mxu0 0.0
        %1127 = vmatpush1.msra.mxu0 %v356
        %1128 = vmatprep.subr.mxu0 0.0
        %1129 = vmatpush1.msra.mxu0 %v357
        %1130 = vmatprep.subr.mxu0 0.0
        %1131 = vmatpush1.msra.mxu0 %v358
        %1132 = vmatprep.subr.mxu0 0.0
        %1133 = vmatpush1.msra.mxu0 %v359
        %1134 = vmatprep.subr.mxu0 0.0
        %1135 = vmatpush1.msra.mxu0 %v360
        %1136 = vmatprep.subr.mxu0 0.0
        %1137 = vmatpush1.msra.mxu0 %v361
        %1138 = vmatprep.subr.mxu0 0.0
        %1139 = vmatpush1.msra.mxu0 %v362
        %1140 = vmatprep.subr.mxu0 0.0
        %1141 = vmatpush1.msra.mxu0 %v363
        %1142 = vmatprep.subr.mxu0 0.0
        %1143 = vmatpush1.msra.mxu0 %v364
        %1144 = vmatprep.subr.mxu0 0.0
        %1145 = vmatpush1.msra.mxu0 %v365
        %1146 = vmatprep.subr.mxu0 0.0
        %1147 = vmatpush1.msra.mxu0 %v366
        %1148 = vmatprep.subr.mxu0 0.0
        %1149 = vmatpush1.msra.mxu0 %v367
        %1150 = vmatprep.subr.mxu0 0.0
        %1151 = vmatpush1.msra.mxu0 %v368
        %1152 = vmatprep.subr.mxu0 0.0
        %1153 = vmatpush1.msra.mxu0 %v369
        %1154 = vmatprep.subr.mxu0 0.0
        %1155 = vmatpush1.msra.mxu0 %v370
        %1156 = vmatprep.subr.mxu0 0.0
        %1157 = vmatpush1.msra.mxu0 %v371
        %1158 = vmatprep.subr.mxu0 0.0
        %1159 = vmatpush1.msra.mxu0 %v372
        %1160 = vmatprep.mubr.f32.mxu0 %v232
        %1161 = vmatmul.mubr.f32.gmra.mrb[0].mxu0 %v231
        %v1162 = vpop.f32.mrb[0].mxu0
        %v1163 = vadd.f32 %v1018, %v1162
        %v1164 = vpop.f32.mrb[0].mxu0
        %1165 = vmatprep.mubr.f32.mxu0 %v237
        %1166 = vmatmul.mubr.f32.gmra.mrb[0].mxu0 %v236
        %v1167 = vpop.f32.mrb[0].mxu0
        %v1168 = vadd.f32 %v1023, %v1167
        %v1169 = vpop.f32.mrb[0].mxu0
        %1170 = vmatprep.mubr.f32.mxu0 %v242
        %1171 = vmatmul.mubr.f32.gmra.mrb[0].mxu0 %v241
        %v1172 = vpop.f32.mrb[0].mxu0
        %v1173 = vadd.f32 %v1028, %v1172
        %v1174 = vpop.f32.mrb[0].mxu0
        %1175 = vmatprep.mubr.f32.mxu0 %v247
        %1176 = vmatmul.mubr.f32.gmra.mrb[0].mxu0 %v246
        %v1177 = vpop.f32.mrb[0].mxu0
        %v1178 = vadd.f32 %v1033, %v1177
        %v1179 = vpop.f32.mrb[0].mxu0
        %1180 = vmatprep.mubr.f32.mxu0 %v252
        %1181 = vmatmul.mubr.f32.gmra.mrb[0].mxu0 %v251
        %v1182 = vpop.f32.mrb[0].mxu0
        %v1183 = vadd.f32 %v1038, %v1182
        %v1184 = vpop.f32.mrb[0].mxu0
        %1185 = vmatprep.mubr.f32.mxu0 %v257
        %1186 = vmatmul.mubr.f32.gmra.mrb[0].mxu0 %v256
        %v1187 = vpop.f32.mrb[0].mxu0
        %v1188 = vadd.f32 %v1043, %v1187
        %v1189 = vpop.f32.mrb[0].mxu0
        %1190 = vmatprep.mubr.f32.mxu0 %v262
        %1191 = vmatmul.mubr.f32.gmra.mrb[0].mxu0 %v261
        %v1192 = vpop.f32.mrb[0].mxu0
        %v1193 = vadd.f32 %v1048, %v1192
        %v1194 = vpop.f32.mrb[0].mxu0
        %1195 = vmatprep.mubr.f32.mxu0 %v267
        %1196 = vmatmul.mubr.f32.gmra.mrb[0].mxu0 %v266
        %v1197 = vpop.f32.mrb[0].mxu0
        %v1198 = vadd.f32 %v1053, %v1197
        %v1199 = vpop.f32.mrb[0].mxu0
        %1200 = vmatprep.mubr.f32.mxu0 %v272
        %1201 = vmatmul.mubr.f32.gmra.mrb[0].mxu0 %v271
        %v1202 = vpop.f32.mrb[0].mxu0
        %v1203 = vadd.f32 %v1058, %v1202
        %v1204 = vpop.f32.mrb[0].mxu0
        %1205 = vmatprep.mubr.f32.mxu0 %v277
        %1206 = vmatmul.mubr.f32.gmra.mrb[0].mxu0 %v276
        %v1207 = vpop.f32.mrb[0].mxu0
        %v1208 = vadd.f32 %v1063, %v1207
        %v1209 = vpop.f32.mrb[0].mxu0
        %1210 = vmatprep.mubr.f32.mxu0 %v282
        %1211 = vmatmul.mubr.f32.gmra.mrb[0].mxu0 %v281
        %v1212 = vpop.f32.mrb[0].mxu0
        %v1213 = vadd.f32 %v1068, %v1212
        %v1214 = vpop.f32.mrb[0].mxu0
        %1215 = vmatprep.mubr.f32.mxu0 %v287
        %1216 = vmatmul.mubr.f32.gmra.mrb[0].mxu0 %v286
        %v1217 = vpop.f32.mrb[0].mxu0
        %v1218 = vadd.f32 %v1073, %v1217
        %v1219 = vpop.f32.mrb[0].mxu0
        %1220 = vmatprep.mubr.f32.mxu0 %v292
        %1221 = vmatmul.mubr.f32.gmra.mrb[0].mxu0 %v291
        %v1222 = vpop.f32.mrb[0].mxu0
        %v1223 = vadd.f32 %v1078, %v1222
        %v1224 = vpop.f32.mrb[0].mxu0
        %1225 = vmatprep.mubr.f32.mxu0 %v297
        %1226 = vmatmul.mubr.f32.gmra.mrb[0].mxu0 %v296
        %v1227 = vpop.f32.mrb[0].mxu0
        %v1228 = vadd.f32 %v1083, %v1227
        %v1229 = vpop.f32.mrb[0].mxu0
        %1230 = vmatprep.mubr.f32.mxu0 %v302
        %1231 = vmatmul.mubr.f32.gmra.mrb[0].mxu0 %v301
        %v1232 = vpop.f32.mrb[0].mxu0
        %v1233 = vadd.f32 %v1088, %v1232
        %v1234 = vpop.f32.mrb[0].mxu0
        %1235 = vmatprep.mubr.f32.mxu0 %v307
        %1236 = vmatmul.mubr.f32.gmra.mrb[0].mxu0 %v306
        %v1237 = vpop.f32.mrb[0].mxu0
        %v1238 = vadd.f32 %v1093, %v1237
        %v1239 = vpop.f32.mrb[0].mxu0
        %1240 = vdwg.mxu0
        %1241 = vmatprep.subr.mxu0 0.0
        %1242 = vmatpush1.msra.mxu0 %v373
        %1243 = vmatprep.subr.mxu0 0.0
        %1244 = vmatpush1.msra.mxu0 %v374
        %1245 = vmatprep.subr.mxu0 0.0
        %1246 = vmatpush1.msra.mxu0 %v949
        %1247 = vmatprep.subr.mxu0 0.0
        %1248 = vmatpush1.msra.mxu0 0.0
        %1249 = vmatprep.subr.mxu0 0.0
        %1250 = vmatpush1.msra.mxu0 0.0
        %1251 = vmatprep.subr.mxu0 0.0
        %1252 = vmatpush1.msra.mxu0 0.0
        %1253 = vmatprep.subr.mxu0 0.0
        %1254 = vmatpush1.msra.mxu0 0.0
        %1255 = vmatprep.subr.mxu0 0.0
        %1256 = vmatpush1.msra.mxu0 0.0
        %1257 = vmatprep.subr.mxu0 0.0
        %1258 = vmatpush1.msra.mxu0 0.0
        %1259 = vmatprep.subr.mxu0 0.0
        %1260 = vmatpush1.msra.mxu0 0.0
        %1261 = vmatprep.subr.mxu0 0.0
        %1262 = vmatpush1.msra.mxu0 0.0
        %1263 = vmatprep.subr.mxu0 0.0
        %1264 = vmatpush1.msra.mxu0 0.0
        %1265 = vmatprep.subr.mxu0 0.0
        %1266 = vmatpush1.msra.mxu0 0.0
        %1267 = vmatprep.subr.mxu0 0.0
        %1268 = vmatpush1.msra.mxu0 0.0
        %1269 = vmatprep.subr.mxu0 0.0
        %1270 = vmatpush1.msra.mxu0 0.0
        %1271 = vmatprep.subr.mxu0 0.0
        %1272 = vmatpush1.msra.mxu0 0.0
        %1273 = vmatprep.subr.mxu0 0.0
        %1274 = vmatpush1.msra.mxu0 0.0
        %1275 = vmatprep.subr.mxu0 0.0
        %1276 = vmatpush1.msra.mxu0 0.0
        %1277 = vmatprep.subr.mxu0 0.0
        %1278 = vmatpush1.msra.mxu0 0.0
        %1279 = vmatprep.subr.mxu0 0.0
        %1280 = vmatpush1.msra.mxu0 0.0
        %1281 = vmatprep.subr.mxu0 0.0
        %1282 = vmatpush1.msra.mxu0 0.0
        %1283 = vmatprep.subr.mxu0 0.0
        %1284 = vmatpush1.msra.mxu0 0.0
        %1285 = vmatprep.subr.mxu0 0.0
        %1286 = vmatpush1.msra.mxu0 0.0
        %1287 = vmatprep.subr.mxu0 0.0
        %1288 = vmatpush1.msra.mxu0 0.0
        %1289 = vmatprep.subr.mxu0 0.0
        %1290 = vmatpush1.msra.mxu0 0.0
        %1291 = vmatprep.subr.mxu0 0.0
        %1292 = vmatpush1.msra.mxu0 0.0
        %1293 = vmatprep.subr.mxu0 0.0
        %1294 = vmatpush1.msra.mxu0 0.0
        %1295 = vmatprep.subr.mxu0 0.0
        %1296 = vmatpush1.msra.mxu0 0.0
        %1297 = vmatprep.subr.mxu0 0.0
        %1298 = vmatpush1.msra.mxu0 0.0
        %1299 = vmatprep.subr.mxu0 0.0
        %1300 = vmatpush1.msra.mxu0 0.0
        %1301 = vmatprep.subr.mxu0 0.0
        %1302 = vmatpush1.msra.mxu0 0.0
        %1303 = vmatprep.subr.mxu0 0.0
        %1304 = vmatpush1.msra.mxu0 0.0
        %1305 = vmatprep.mubr.f32.mxu0 0.0
        %1306 = vmatmul.mubr.f32.gmra.mrb[0].mxu0 %v943
        %v1307 = vpop.f32.mrb[0].mxu0
        %v1308 = vadd.f32 %v1163, %v1307
        %v1309 = vpop.f32.mrb[0].mxu0
        %1310 = vmatprep.mubr.f32.mxu0 0.0
        %1311 = vmatmul.mubr.f32.gmra.mrb[0].mxu0 %v946
        %v1312 = vpop.f32.mrb[0].mxu0
        %v1313 = vadd.f32 %v1168, %v1312
        %v1314 = vpop.f32.mrb[0].mxu0
        %1315 = vmatprep.mubr.f32.mxu0 0.0
        %1316 = vmatmul.mubr.f32.gmra.mrb[0].mxu0 %v456
        %v1317 = vpop.f32.mrb[0].mxu0
        %v1318 = vadd.f32 %v1173, %v1317
        %v1319 = vpop.f32.mrb[0].mxu0
        %1320 = vmatprep.mubr.f32.mxu0 0.0
        %1321 = vmatmul.mubr.f32.gmra.mrb[0].mxu0 %v459
        %v1322 = vpop.f32.mrb[0].mxu0
        %v1323 = vadd.f32 %v1178, %v1322
        %v1324 = vpop.f32.mrb[0].mxu0
        %1325 = vmatprep.mubr.f32.mxu0 0.0
        %1326 = vmatmul.mubr.f32.gmra.mrb[0].mxu0 %v462
        %v1327 = vpop.f32.mrb[0].mxu0
        %v1328 = vadd.f32 %v1183, %v1327
        %v1329 = vpop.f32.mrb[0].mxu0
        %1330 = vmatprep.mubr.f32.mxu0 0.0
        %1331 = vmatmul.mubr.f32.gmra.mrb[0].mxu0 %v465
        %v1332 = vpop.f32.mrb[0].mxu0
        %v1333 = vadd.f32 %v1188, %v1332
        %v1334 = vpop.f32.mrb[0].mxu0
        %1335 = vmatprep.mubr.f32.mxu0 0.0
        %1336 = vmatmul.mubr.f32.gmra.mrb[0].mxu0 %v468
        %v1337 = vpop.f32.mrb[0].mxu0
        %v1338 = vadd.f32 %v1193, %v1337
        %v1339 = vpop.f32.mrb[0].mxu0
        %1340 = vmatprep.mubr.f32.mxu0 0.0
        %1341 = vmatmul.mubr.f32.gmra.mrb[0].mxu0 %v471
        %v1342 = vpop.f32.mrb[0].mxu0
        %v1343 = vadd.f32 %v1198, %v1342
        %v1344 = vpop.f32.mrb[0].mxu0
        %1345 = vmatprep.mubr.f32.mxu0 0.0
        %1346 = vmatmul.mubr.f32.gmra.mrb[0].mxu0 %v474
        %v1347 = vpop.f32.mrb[0].mxu0
        %v1348 = vadd.f32 %v1203, %v1347
        %v1349 = vpop.f32.mrb[0].mxu0
        %1350 = vmatprep.mubr.f32.mxu0 0.0
        %1351 = vmatmul.mubr.f32.gmra.mrb[0].mxu0 %v477
        %v1352 = vpop.f32.mrb[0].mxu0
        %v1353 = vadd.f32 %v1208, %v1352
        %v1354 = vpop.f32.mrb[0].mxu0
        %1355 = vmatprep.mubr.f32.mxu0 0.0
        %1356 = vmatmul.mubr.f32.gmra.mrb[0].mxu0 %v480
        %v1357 = vpop.f32.mrb[0].mxu0
        %v1358 = vadd.f32 %v1213, %v1357
        %v1359 = vpop.f32.mrb[0].mxu0
        %1360 = vmatprep.mubr.f32.mxu0 0.0
        %1361 = vmatmul.mubr.f32.gmra.mrb[0].mxu0 %v483
        %v1362 = vpop.f32.mrb[0].mxu0
        %v1363 = vadd.f32 %v1218, %v1362
        %v1364 = vpop.f32.mrb[0].mxu0
        %1365 = vmatprep.mubr.f32.mxu0 0.0
        %1366 = vmatmul.mubr.f32.gmra.mrb[0].mxu0 %v486
        %v1367 = vpop.f32.mrb[0].mxu0
        %v1368 = vadd.f32 %v1223, %v1367
        %v1369 = vpop.f32.mrb[0].mxu0
        %1370 = vmatprep.mubr.f32.mxu0 0.0
        %1371 = vmatmul.mubr.f32.gmra.mrb[0].mxu0 %v489
        %v1372 = vpop.f32.mrb[0].mxu0
        %v1373 = vadd.f32 %v1228, %v1372
        %v1374 = vpop.f32.mrb[0].mxu0
        %1375 = vmatprep.mubr.f32.mxu0 0.0
        %1376 = vmatmul.mubr.f32.gmra.mrb[0].mxu0 %v492
        %v1377 = vpop.f32.mrb[0].mxu0
        %v1378 = vadd.f32 %v1233, %v1377
        %v1379 = vpop.f32.mrb[0].mxu0
        %1380 = vmatprep.mubr.f32.mxu0 0.0
        %1381 = vmatmul.mubr.f32.gmra.mrb[0].mxu0 %v495
        %v1382 = vpop.f32.mrb[0].mxu0
        %v1383 = vadd.f32 %v1238, %v1382
        %v1384 = vpop.f32.mrb[0].mxu0
        %1385 = vdwg.mxu0
        %v1386 = vld [vmem:[%s218 + $0xa0] sm:$0xff]
        %v1387 = vld [vmem:[%s218 + $0xa8] sm:$0xff]
        %v1388 = vld [vmem:[%s218 + $0xb0] sm:$0xff]
        %v1389 = vld [vmem:[%s218 + $0xb8] sm:$0xff]
        %v1390 = vld [vmem:[%s218 + $0xc0] sm:$0xff]
        %v1391 = vld [vmem:[%s218 + $0xc8] sm:$0xff]
        %v1392 = vld [vmem:[%s218 + $0xd0] sm:$0xff]
        %v1393 = vld [vmem:[%s218 + $0xd8] sm:$0xff]
        %v1394 = vld [vmem:[%s218 + $0xe0] sm:$0xff]
        %v1395 = vld [vmem:[%s218 + $0xe8] sm:$0xff]
        %v1396 = vld [vmem:[%s218 + $0xf0] sm:$0xff]
        %v1397 = vld [vmem:[%s218 + $0xf8] sm:$0xff]
        %v1398 = vld [vmem:[%s218 + $0x100] sm:$0xff]
        %v1399 = vld [vmem:[%s218 + $0x108] sm:$0xff]
        %v1400 = vld [vmem:[%s218 + $0x110] sm:$0xff]
        %v1401 = vld [vmem:[%s218 + $0x118] sm:$0xff]
        %v1402 = vld [vmem:[%s218 + $0x120] sm:$0xff]
        %v1403 = vld [vmem:[%s218 + $0x128] sm:$0xff]
        %v1404 = vld [vmem:[%s218 + $0x130] sm:$0xff]
        %v1405 = vld [vmem:[%s218 + $0x138] sm:$0xff]
        %v1406 = vld [vmem:[%s218 + $0x140] sm:$0xff]
        %v1407 = vld [vmem:[%s218 + $0x148] sm:$0xff]
        %v1408 = vld [vmem:[%s218 + $0x150] sm:$0xff]
        %v1409 = vld [vmem:[%s218 + $0x158] sm:$0xff]
        %v1410 = vld [vmem:[%s218 + $0x160] sm:$0xff]
        %v1411 = vld [vmem:[%s218 + $0x168] sm:$0xff]
        %v1412 = vld [vmem:[%s218 + $0x170] sm:$0xff]
        %v1413 = vld [vmem:[%s218 + $0x178] sm:$0xff]
        %v1414 = vld [vmem:[%s218 + $0x180] sm:$0xff]
        %v1415 = vld [vmem:[%s218 + $0x188] sm:$0xff]
        %v1416 = vld [vmem:[%s218 + $0x190] sm:$0xff]
        %v1417 = vld [vmem:[%s218 + $0x198] sm:$0xff]
        %v1418 = vld [vmem:[%s218 + $0x1a0] sm:$0xff]
        %v1419 = vld [vmem:[%s218 + $0x1a8] sm:$0xff]
        %v1420 = vld [vmem:[%s218 + $0x1b0] sm:$0xff]
        %v1421 = vld [vmem:[%s218 + $0x1b8] sm:$0xff]
        %v1422 = vld [vmem:[%s218 + $0x1c0] sm:$0xff]
        %v1423 = vld [vmem:[%s218 + $0x1c8] sm:$0xff]
        %v1424 = vld [vmem:[%s218 + $0x1d0] sm:$0xff]
        %v1425 = vld [vmem:[%s218 + $0x1d8] sm:$0xff]
        %v1426 = vld [vmem:[%s218 + $0x1e0] sm:$0xff]
        %v1427 = vld [vmem:[%s218 + $0x1e8] sm:$0xff]
        %v1428 = vld [vmem:[%s218 + $0x1f0] sm:$0xff]
        %v1429 = vld [vmem:[%s218 + $0x1f8] sm:$0xff]
        %v1430 = vld [vmem:[%s218 + $0x200] sm:$0xff]
        %v1431 = vld [vmem:[%s218 + $0x208] sm:$0xff]
        %v1432 = vld [vmem:[%s218 + $0x210] sm:$0xff]
        %v1433 = vld [vmem:[%s218 + $0x218] sm:$0xff]
        %v1434 = vld [vmem:[%s218 + $0x220] sm:$0xff]
        %v1435 = vld [vmem:[%s218 + $0x228] sm:$0xff]
        %v1436 = vld [vmem:[%s218 + $0x230] sm:$0xff]
        %v1437 = vld [vmem:[%s218 + $0x238] sm:$0xff]
        %v1438 = vld [vmem:[%s218 + $0x240] sm:$0xff]
        %v1439 = vld [vmem:[%s218 + $0x248] sm:$0xff]
        %v1440 = vld [vmem:[%s218 + $0x250] sm:$0xff]
        %v1441 = vld [vmem:[%s218 + $0x258] sm:$0xff]
        %v1442 = vld [vmem:[%s218 + $0x260] sm:$0xff]
        %v1443 = vld [vmem:[%s218 + $0x268] sm:$0xff]
        %v1444 = vld [vmem:[%s218 + $0x270] sm:$0xff]
        %v1445 = vld [vmem:[%s218 + $0x278] sm:$0xff]
        %v1446 = vld [vmem:[%s218 + $0x280] sm:$0xff]
        %v1447 = vld [vmem:[%s218 + $0x288] sm:$0xff]
        %v1448 = vld [vmem:[%s218 + $0x290] sm:$0xff]
        %v1449 = vld [vmem:[%s218 + $0x298] sm:$0xff]
        %v1450 = vld [vmem:[%s218 + $0x2a0] sm:$0xff]
        %v1451 = vld [vmem:[%s218 + $0x2a8] sm:$0xff]
        %v1452 = vld [vmem:[%s218 + $0x2b0] sm:$0xff]
        %v1453 = vld [vmem:[%s218 + $0x2b8] sm:$0xff]
        %v1454 = vld [vmem:[%s218 + $0x2c0] sm:$0xff]
        %v1455 = vld [vmem:[%s218 + $0x2c8] sm:$0xff]
        %v1456 = vld [vmem:[%s218 + $0x2d0] sm:$0xff]
        %v1457 = vld [vmem:[%s218 + $0x2d8] sm:$0xff]
        %v1458 = vld [vmem:[%s218 + $0x2e0] sm:$0xff]
        %v1459 = vld [vmem:[%s218 + $0x2e8] sm:$0xff]
        %v1460 = vld [vmem:[%s218 + $0x2f0] sm:$0xff]
        %v1461 = vld [vmem:[%s218 + $0x2f8] sm:$0xff]
        %v1462 = vld [vmem:[%s218 + $0x300] sm:$0xff]
        %v1463 = vld [vmem:[%s218 + $0x308] sm:$0xff]
        %v1464 = vld [vmem:[%s218 + $0x310] sm:$0xff]
        %v1465 = vld [vmem:[%s218 + $0x318] sm:$0xff]
        %s1466 = scalar_lea.vmem %s1, 1072
        %v1467 = vld [vmem:[%s1466] sm:$0xff]
        %v1468 = vld [vmem:[%s1466 + $0x8] sm:$0xff]
        %v1469 = vld [vmem:[%s1466 + $0x10] sm:$0xff]
        %v1470 = vld [vmem:[%s1466 + $0x18] sm:$0xff]
        %v1471 = vld [vmem:[%s1466 + $0x20] sm:$0xff]
        %v1472 = vld [vmem:[%s1466 + $0x28] sm:$0xff]
        %v1473 = vld [vmem:[%s1466 + $0x30] sm:$0xff]
        %v1474 = vld [vmem:[%s1466 + $0x38] sm:$0xff]
        %v1475 = vld [vmem:[%s1466 + $0x40] sm:$0xff]
        %v1476 = vld [vmem:[%s1466 + $0x48] sm:$0xff]
        %v1477 = vld [vmem:[%s1466 + $0x50] sm:$0xff]
        %v1478 = vld [vmem:[%s1466 + $0x58] sm:$0xff]
        %v1479 = vld [vmem:[%s1466 + $0x60] sm:$0xff]
        %v1480 = vld [vmem:[%s1466 + $0x68] sm:$0xff]
        %v1481 = vld [vmem:[%s1466 + $0x70] sm:$0xff]
        %v1482 = vld [vmem:[%s1466 + $0x78] sm:$0xff]
        %v1483 = vld [vmem:[%s1466 + $0x80] sm:$0xff]
        %v1484 = vld [vmem:[%s1466 + $0x88] sm:$0xff]
        %v1485 = vld [vmem:[%s1466 + $0x90] sm:$0xff]
        %v1486 = vld [vmem:[%s1466 + $0x98] sm:$0xff]
        %v1487 = vld [vmem:[%s1466 + $0xa0] sm:$0xff]
        %v1488 = vld [vmem:[%s1466 + $0xa8] sm:$0xff]
        %v1489 = vld [vmem:[%s1466 + $0xb0] sm:$0xff]
        %v1490 = vld [vmem:[%s1466 + $0xb8] sm:$0xff]
        %v1491 = vld [vmem:[%s1466 + $0xc0] sm:$0xff]
        %v1492 = vld [vmem:[%s1466 + $0xc8] sm:$0xff]
        %v1493 = vld [vmem:[%s1466 + $0xd0] sm:$0xff]
        %v1494 = vld [vmem:[%s1466 + $0xd8] sm:$0xff]
        %v1495 = vld [vmem:[%s1466 + $0xe0] sm:$0xff]
        %v1496 = vld [vmem:[%s1466 + $0xe8] sm:$0xff]
        %v1497 = vld [vmem:[%s1466 + $0xf0] sm:$0xff]
        %v1498 = vld [vmem:[%s1466 + $0xf8] sm:$0xff]
        %v1499 = vld [vmem:[%s1466 + $0x100] sm:$0xff]
        %v1500 = vld [vmem:[%s1466 + $0x108] sm:$0xff]
        %v1501 = vld [vmem:[%s1466 + $0x110] sm:$0xff]
        %v1502 = vld [vmem:[%s1466 + $0x118] sm:$0xff]
        %v1503 = vld [vmem:[%s1466 + $0x120] sm:$0xff]
        %v1504 = vld [vmem:[%s1466 + $0x128] sm:$0xff]
        %v1505 = vld [vmem:[%s1466 + $0x130] sm:$0xff]
        %v1506 = vld [vmem:[%s1466 + $0x138] sm:$0xff]
        %v1507 = vld [vmem:[%s1466 + $0x140] sm:$0xff]
        %v1508 = vld [vmem:[%s1466 + $0x148] sm:$0xff]
        %v1509 = vld [vmem:[%s1466 + $0x150] sm:$0xff]
        %v1510 = vld [vmem:[%s1466 + $0x158] sm:$0xff]
        %v1511 = vld [vmem:[%s1466 + $0x160] sm:$0xff]
        %v1512 = vld [vmem:[%s1466 + $0x168] sm:$0xff]
        %v1513 = vld [vmem:[%s1466 + $0x170] sm:$0xff]
        %v1514 = vld [vmem:[%s1466 + $0x178] sm:$0xff]
        %v1515 = vld [vmem:[%s1466 + $0x180] sm:$0xff]
        %v1516 = vld [vmem:[%s1466 + $0x188] sm:$0xff]
        %v1517 = vld [vmem:[%s1466 + $0x190] sm:$0xff]
        %v1518 = vld [vmem:[%s1466 + $0x198] sm:$0xff]
        %v1519 = vld [vmem:[%s1466 + $0x1a0] sm:$0xff]
        %v1520 = vld [vmem:[%s1466 + $0x1a8] sm:$0xff]
        %v1521 = vld [vmem:[%s1466 + $0x1b0] sm:$0xff]
        %v1522 = vld [vmem:[%s1466 + $0x1b8] sm:$0xff]
        %v1523 = vld [vmem:[%s1466 + $0x1c0] sm:$0xff]
        %v1524 = vld [vmem:[%s1466 + $0x1c8] sm:$0xff]
        %v1525 = vld [vmem:[%s1466 + $0x1d0] sm:$0xff]
        %v1526 = vld [vmem:[%s1466 + $0x1d8] sm:$0xff]
        %v1527 = vld [vmem:[%s1466 + $0x1e0] sm:$0xff]
        %v1528 = vld [vmem:[%s1466 + $0x1e8] sm:$0xff]
        %v1529 = vld [vmem:[%s1466 + $0x1f0] sm:$0xff]
        %v1530 = vld [vmem:[%s1466 + $0x1f8] sm:$0xff]
        %v1531 = vld [vmem:[%s1466 + $0x200] sm:$0xff]
        %v1532 = vld [vmem:[%s1466 + $0x208] sm:$0xff]
        %v1533 = vld [vmem:[%s1466 + $0x210] sm:$0xf]
        %v1535 = vsel %vm454, %v1390, 0
        %v1538 = vsel %vm454, %v1395, 0
        %v1541 = vsel %vm454, %v1400, 0
        %v1544 = vsel %vm454, %v1405, 0
        %v1547 = vsel %vm454, %v1410, 0
        %v1550 = vsel %vm454, %v1415, 0
        %v1553 = vsel %vm454, %v1420, 0
        %v1556 = vsel %vm454, %v1425, 0
        %v1559 = vsel %vm454, %v1430, 0
        %v1562 = vsel %vm454, %v1435, 0
        %v1565 = vsel %vm454, %v1440, 0
        %v1568 = vsel %vm454, %v1445, 0
        %v1571 = vsel %vm454, %v1450, 0
        %v1574 = vsel %vm454, %v1455, 0
        %v1577 = vsel %vm454, %v1460, 0
        %v1580 = vsel %vm454, %v1465, 0
        %v1583 = vsel %vm503, %v1533, 0
        %1585 = vmatprep.subr.mxu0 0.0
        %1586 = vmatpush1.msra.mxu0 %v1467
        %1587 = vmatprep.subr.mxu0 0.0
        %1588 = vmatpush1.msra.mxu0 %v1468
        %1589 = vmatprep.subr.mxu0 0.0
        %1590 = vmatpush1.msra.mxu0 %v1469
        %1591 = vmatprep.subr.mxu0 0.0
        %1592 = vmatpush1.msra.mxu0 %v1470
        %1593 = vmatprep.subr.mxu0 0.0
        %1594 = vmatpush1.msra.mxu0 %v1471
        %1595 = vmatprep.subr.mxu0 0.0
        %1596 = vmatpush1.msra.mxu0 %v1472
        %1597 = vmatprep.subr.mxu0 0.0
        %1598 = vmatpush1.msra.mxu0 %v1473
        %1599 = vmatprep.subr.mxu0 0.0
        %1600 = vmatpush1.msra.mxu0 %v1474
        %1601 = vmatprep.subr.mxu0 0.0
        %1602 = vmatpush1.msra.mxu0 %v1475
        %1603 = vmatprep.subr.mxu0 0.0
        %1604 = vmatpush1.msra.mxu0 %v1476
        %1605 = vmatprep.subr.mxu0 0.0
        %1606 = vmatpush1.msra.mxu0 %v1477
        %1607 = vmatprep.subr.mxu0 0.0
        %1608 = vmatpush1.msra.mxu0 %v1478
        %1609 = vmatprep.subr.mxu0 0.0
        %1610 = vmatpush1.msra.mxu0 %v1479
        %1611 = vmatprep.subr.mxu0 0.0
        %1612 = vmatpush1.msra.mxu0 %v1480
        %1613 = vmatprep.subr.mxu0 0.0
        %1614 = vmatpush1.msra.mxu0 %v1481
        %1615 = vmatprep.subr.mxu0 0.0
        %1616 = vmatpush1.msra.mxu0 %v1482
        %1617 = vmatprep.subr.mxu0 0.0
        %1618 = vmatpush1.msra.mxu0 %v1483
        %1619 = vmatprep.subr.mxu0 0.0
        %1620 = vmatpush1.msra.mxu0 %v1484
        %1621 = vmatprep.subr.mxu0 0.0
        %1622 = vmatpush1.msra.mxu0 %v1485
        %1623 = vmatprep.subr.mxu0 0.0
        %1624 = vmatpush1.msra.mxu0 %v1486
        %1625 = vmatprep.subr.mxu0 0.0
        %1626 = vmatpush1.msra.mxu0 %v1487
        %1627 = vmatprep.subr.mxu0 0.0
        %1628 = vmatpush1.msra.mxu0 %v1488
        %1629 = vmatprep.subr.mxu0 0.0
        %1630 = vmatpush1.msra.mxu0 %v1489
        %1631 = vmatprep.subr.mxu0 0.0
        %1632 = vmatpush1.msra.mxu0 %v1490
        %1633 = vmatprep.subr.mxu0 0.0
        %1634 = vmatpush1.msra.mxu0 %v1491
        %1635 = vmatprep.subr.mxu0 0.0
        %1636 = vmatpush1.msra.mxu0 %v1492
        %1637 = vmatprep.subr.mxu0 0.0
        %1638 = vmatpush1.msra.mxu0 %v1493
        %1639 = vmatprep.subr.mxu0 0.0
        %1640 = vmatpush1.msra.mxu0 %v1494
        %1641 = vmatprep.subr.mxu0 0.0
        %1642 = vmatpush1.msra.mxu0 %v1495
        %1643 = vmatprep.subr.mxu0 0.0
        %1644 = vmatpush1.msra.mxu0 %v1496
        %1645 = vmatprep.subr.mxu0 0.0
        %1646 = vmatpush1.msra.mxu0 %v1497
        %1647 = vmatprep.subr.mxu0 0.0
        %1648 = vmatpush1.msra.mxu0 %v1498
        %1649 = vmatprep.mubr.f32.mxu0 %v1387
        %1650 = vmatmul.mubr.f32.gmra.mrb[0].mxu0 %v1386
        %v1651 = vpop.f32.mrb[0].mxu0
        %v1652 = vadd.f32 0.0, %v1651
        %v1653 = vpop.f32.mrb[0].mxu0
        %1654 = vmatprep.mubr.f32.mxu0 %v1392
        %1655 = vmatmul.mubr.f32.gmra.mrb[0].mxu0 %v1391
        %v1656 = vpop.f32.mrb[0].mxu0
        %v1657 = vadd.f32 0.0, %v1656
        %v1658 = vpop.f32.mrb[0].mxu0
        %1659 = vmatprep.mubr.f32.mxu0 %v1397
        %1660 = vmatmul.mubr.f32.gmra.mrb[0].mxu0 %v1396
        %v1661 = vpop.f32.mrb[0].mxu0
        %v1662 = vadd.f32 0.0, %v1661
        %v1663 = vpop.f32.mrb[0].mxu0
        %1664 = vmatprep.mubr.f32.mxu0 %v1402
        %1665 = vmatmul.mubr.f32.gmra.mrb[0].mxu0 %v1401
        %v1666 = vpop.f32.mrb[0].mxu0
        %v1667 = vadd.f32 0.0, %v1666
        %v1668 = vpop.f32.mrb[0].mxu0
        %1669 = vmatprep.mubr.f32.mxu0 %v1407
        %1670 = vmatmul.mubr.f32.gmra.mrb[0].mxu0 %v1406
        %v1671 = vpop.f32.mrb[0].mxu0
        %v1672 = vadd.f32 0.0, %v1671
        %v1673 = vpop.f32.mrb[0].mxu0
        %1674 = vmatprep.mubr.f32.mxu0 %v1412
        %1675 = vmatmul.mubr.f32.gmra.mrb[0].mxu0 %v1411
        %v1676 = vpop.f32.mrb[0].mxu0
        %v1677 = vadd.f32 0.0, %v1676
        %v1678 = vpop.f32.mrb[0].mxu0
        %1679 = vmatprep.mubr.f32.mxu0 %v1417
        %1680 = vmatmul.mubr.f32.gmra.mrb[0].mxu0 %v1416
        %v1681 = vpop.f32.mrb[0].mxu0
        %v1682 = vadd.f32 0.0, %v1681
        %v1683 = vpop.f32.mrb[0].mxu0
        %1684 = vmatprep.mubr.f32.mxu0 %v1422
        %1685 = vmatmul.mubr.f32.gmra.mrb[0].mxu0 %v1421
        %v1686 = vpop.f32.mrb[0].mxu0
        %v1687 = vadd.f32 0.0, %v1686
        %v1688 = vpop.f32.mrb[0].mxu0
        %1689 = vmatprep.mubr.f32.mxu0 %v1427
        %1690 = vmatmul.mubr.f32.gmra.mrb[0].mxu0 %v1426
        %v1691 = vpop.f32.mrb[0].mxu0
        %v1692 = vadd.f32 0.0, %v1691
        %v1693 = vpop.f32.mrb[0].mxu0
        %1694 = vmatprep.mubr.f32.mxu0 %v1432
        %1695 = vmatmul.mubr.f32.gmra.mrb[0].mxu0 %v1431
        %v1696 = vpop.f32.mrb[0].mxu0
        %v1697 = vadd.f32 0.0, %v1696
        %v1698 = vpop.f32.mrb[0].mxu0
        %1699 = vmatprep.mubr.f32.mxu0 %v1437
        %1700 = vmatmul.mubr.f32.gmra.mrb[0].mxu0 %v1436
        %v1701 = vpop.f32.mrb[0].mxu0
        %v1702 = vadd.f32 0.0, %v1701
        %v1703 = vpop.f32.mrb[0].mxu0
        %1704 = vmatprep.mubr.f32.mxu0 %v1442
        %1705 = vmatmul.mubr.f32.gmra.mrb[0].mxu0 %v1441
        %v1706 = vpop.f32.mrb[0].mxu0
        %v1707 = vadd.f32 0.0, %v1706
        %v1708 = vpop.f32.mrb[0].mxu0
        %1709 = vmatprep.mubr.f32.mxu0 %v1447
        %1710 = vmatmul.mubr.f32.gmra.mrb[0].mxu0 %v1446
        %v1711 = vpop.f32.mrb[0].mxu0
        %v1712 = vadd.f32 0.0, %v1711
        %v1713 = vpop.f32.mrb[0].mxu0
        %1714 = vmatprep.mubr.f32.mxu0 %v1452
        %1715 = vmatmul.mubr.f32.gmra.mrb[0].mxu0 %v1451
        %v1716 = vpop.f32.mrb[0].mxu0
        %v1717 = vadd.f32 0.0, %v1716
        %v1718 = vpop.f32.mrb[0].mxu0
        %1719 = vmatprep.mubr.f32.mxu0 %v1457
        %1720 = vmatmul.mubr.f32.gmra.mrb[0].mxu0 %v1456
        %v1721 = vpop.f32.mrb[0].mxu0
        %v1722 = vadd.f32 0.0, %v1721
        %v1723 = vpop.f32.mrb[0].mxu0
        %1724 = vmatprep.mubr.f32.mxu0 %v1462
        %1725 = vmatmul.mubr.f32.gmra.mrb[0].mxu0 %v1461
        %v1726 = vpop.f32.mrb[0].mxu0
        %v1727 = vadd.f32 0.0, %v1726
        %v1728 = vpop.f32.mrb[0].mxu0
        %1729 = vdwg.mxu0
        %1730 = vmatprep.subr.mxu0 0.0
        %1731 = vmatpush1.msra.mxu0 %v1499
        %1732 = vmatprep.subr.mxu0 0.0
        %1733 = vmatpush1.msra.mxu0 %v1500
        %1734 = vmatprep.subr.mxu0 0.0
        %1735 = vmatpush1.msra.mxu0 %v1501
        %1736 = vmatprep.subr.mxu0 0.0
        %1737 = vmatpush1.msra.mxu0 %v1502
        %1738 = vmatprep.subr.mxu0 0.0
        %1739 = vmatpush1.msra.mxu0 %v1503
        %1740 = vmatprep.subr.mxu0 0.0
        %1741 = vmatpush1.msra.mxu0 %v1504
        %1742 = vmatprep.subr.mxu0 0.0
        %1743 = vmatpush1.msra.mxu0 %v1505
        %1744 = vmatprep.subr.mxu0 0.0
        %1745 = vmatpush1.msra.mxu0 %v1506
        %1746 = vmatprep.subr.mxu0 0.0
        %1747 = vmatpush1.msra.mxu0 %v1507
        %1748 = vmatprep.subr.mxu0 0.0
        %1749 = vmatpush1.msra.mxu0 %v1508
        %1750 = vmatprep.subr.mxu0 0.0
        %1751 = vmatpush1.msra.mxu0 %v1509
        %1752 = vmatprep.subr.mxu0 0.0
        %1753 = vmatpush1.msra.mxu0 %v1510
        %1754 = vmatprep.subr.mxu0 0.0
        %1755 = vmatpush1.msra.mxu0 %v1511
        %1756 = vmatprep.subr.mxu0 0.0
        %1757 = vmatpush1.msra.mxu0 %v1512
        %1758 = vmatprep.subr.mxu0 0.0
        %1759 = vmatpush1.msra.mxu0 %v1513
        %1760 = vmatprep.subr.mxu0 0.0
        %1761 = vmatpush1.msra.mxu0 %v1514
        %1762 = vmatprep.subr.mxu0 0.0
        %1763 = vmatpush1.msra.mxu0 %v1515
        %1764 = vmatprep.subr.mxu0 0.0
        %1765 = vmatpush1.msra.mxu0 %v1516
        %1766 = vmatprep.subr.mxu0 0.0
        %1767 = vmatpush1.msra.mxu0 %v1517
        %1768 = vmatprep.subr.mxu0 0.0
        %1769 = vmatpush1.msra.mxu0 %v1518
        %1770 = vmatprep.subr.mxu0 0.0
        %1771 = vmatpush1.msra.mxu0 %v1519
        %1772 = vmatprep.subr.mxu0 0.0
        %1773 = vmatpush1.msra.mxu0 %v1520
        %1774 = vmatprep.subr.mxu0 0.0
        %1775 = vmatpush1.msra.mxu0 %v1521
        %1776 = vmatprep.subr.mxu0 0.0
        %1777 = vmatpush1.msra.mxu0 %v1522
        %1778 = vmatprep.subr.mxu0 0.0
        %1779 = vmatpush1.msra.mxu0 %v1523
        %1780 = vmatprep.subr.mxu0 0.0
        %1781 = vmatpush1.msra.mxu0 %v1524
        %1782 = vmatprep.subr.mxu0 0.0
        %1783 = vmatpush1.msra.mxu0 %v1525
        %1784 = vmatprep.subr.mxu0 0.0
        %1785 = vmatpush1.msra.mxu0 %v1526
        %1786 = vmatprep.subr.mxu0 0.0
        %1787 = vmatpush1.msra.mxu0 %v1527
        %1788 = vmatprep.subr.mxu0 0.0
        %1789 = vmatpush1.msra.mxu0 %v1528
        %1790 = vmatprep.subr.mxu0 0.0
        %1791 = vmatpush1.msra.mxu0 %v1529
        %1792 = vmatprep.subr.mxu0 0.0
        %1793 = vmatpush1.msra.mxu0 %v1530
        %1794 = vmatprep.mubr.f32.mxu0 %v1389
        %1795 = vmatmul.mubr.f32.gmra.mrb[0].mxu0 %v1388
        %v1796 = vpop.f32.mrb[0].mxu0
        %v1797 = vadd.f32 %v1652, %v1796
        %v1798 = vpop.f32.mrb[0].mxu0
        %1799 = vmatprep.mubr.f32.mxu0 %v1394
        %1800 = vmatmul.mubr.f32.gmra.mrb[0].mxu0 %v1393
        %v1801 = vpop.f32.mrb[0].mxu0
        %v1802 = vadd.f32 %v1657, %v1801
        %v1803 = vpop.f32.mrb[0].mxu0
        %1804 = vmatprep.mubr.f32.mxu0 %v1399
        %1805 = vmatmul.mubr.f32.gmra.mrb[0].mxu0 %v1398
        %v1806 = vpop.f32.mrb[0].mxu0
        %v1807 = vadd.f32 %v1662, %v1806
        %v1808 = vpop.f32.mrb[0].mxu0
        %1809 = vmatprep.mubr.f32.mxu0 %v1404
        %1810 = vmatmul.mubr.f32.gmra.mrb[0].mxu0 %v1403
        %v1811 = vpop.f32.mrb[0].mxu0
        %v1812 = vadd.f32 %v1667, %v1811
        %v1813 = vpop.f32.mrb[0].mxu0
        %1814 = vmatprep.mubr.f32.mxu0 %v1409
        %1815 = vmatmul.mubr.f32.gmra.mrb[0].mxu0 %v1408
        %v1816 = vpop.f32.mrb[0].mxu0
        %v1817 = vadd.f32 %v1672, %v1816
        %v1818 = vpop.f32.mrb[0].mxu0
        %1819 = vmatprep.mubr.f32.mxu0 %v1414
        %1820 = vmatmul.mubr.f32.gmra.mrb[0].mxu0 %v1413
        %v1821 = vpop.f32.mrb[0].mxu0
        %v1822 = vadd.f32 %v1677, %v1821
        %v1823 = vpop.f32.mrb[0].mxu0
        %1824 = vmatprep.mubr.f32.mxu0 %v1419
        %1825 = vmatmul.mubr.f32.gmra.mrb[0].mxu0 %v1418
        %v1826 = vpop.f32.mrb[0].mxu0
        %v1827 = vadd.f32 %v1682, %v1826
        %v1828 = vpop.f32.mrb[0].mxu0
        %1829 = vmatprep.mubr.f32.mxu0 %v1424
        %1830 = vmatmul.mubr.f32.gmra.mrb[0].mxu0 %v1423
        %v1831 = vpop.f32.mrb[0].mxu0
        %v1832 = vadd.f32 %v1687, %v1831
        %v1833 = vpop.f32.mrb[0].mxu0
        %1834 = vmatprep.mubr.f32.mxu0 %v1429
        %1835 = vmatmul.mubr.f32.gmra.mrb[0].mxu0 %v1428
        %v1836 = vpop.f32.mrb[0].mxu0
        %v1837 = vadd.f32 %v1692, %v1836
        %v1838 = vpop.f32.mrb[0].mxu0
        %1839 = vmatprep.mubr.f32.mxu0 %v1434
        %1840 = vmatmul.mubr.f32.gmra.mrb[0].mxu0 %v1433
        %v1841 = vpop.f32.mrb[0].mxu0
        %v1842 = vadd.f32 %v1697, %v1841
        %v1843 = vpop.f32.mrb[0].mxu0
        %1844 = vmatprep.mubr.f32.mxu0 %v1439
        %1845 = vmatmul.mubr.f32.gmra.mrb[0].mxu0 %v1438
        %v1846 = vpop.f32.mrb[0].mxu0
        %v1847 = vadd.f32 %v1702, %v1846
        %v1848 = vpop.f32.mrb[0].mxu0
        %1849 = vmatprep.mubr.f32.mxu0 %v1444
        %1850 = vmatmul.mubr.f32.gmra.mrb[0].mxu0 %v1443
        %v1851 = vpop.f32.mrb[0].mxu0
        %v1852 = vadd.f32 %v1707, %v1851
        %v1853 = vpop.f32.mrb[0].mxu0
        %1854 = vmatprep.mubr.f32.mxu0 %v1449
        %1855 = vmatmul.mubr.f32.gmra.mrb[0].mxu0 %v1448
        %v1856 = vpop.f32.mrb[0].mxu0
        %v1857 = vadd.f32 %v1712, %v1856
        %v1858 = vpop.f32.mrb[0].mxu0
        %1859 = vmatprep.mubr.f32.mxu0 %v1454
        %1860 = vmatmul.mubr.f32.gmra.mrb[0].mxu0 %v1453
        %v1861 = vpop.f32.mrb[0].mxu0
        %v1862 = vadd.f32 %v1717, %v1861
        %v1863 = vpop.f32.mrb[0].mxu0
        %1864 = vmatprep.mubr.f32.mxu0 %v1459
        %1865 = vmatmul.mubr.f32.gmra.mrb[0].mxu0 %v1458
        %v1866 = vpop.f32.mrb[0].mxu0
        %v1867 = vadd.f32 %v1722, %v1866
        %v1868 = vpop.f32.mrb[0].mxu0
        %1869 = vmatprep.mubr.f32.mxu0 %v1464
        %1870 = vmatmul.mubr.f32.gmra.mrb[0].mxu0 %v1463
        %v1871 = vpop.f32.mrb[0].mxu0
        %v1872 = vadd.f32 %v1727, %v1871
        %v1873 = vpop.f32.mrb[0].mxu0
        %1874 = vdwg.mxu0
        %1875 = vmatprep.subr.mxu0 0.0
        %1876 = vmatpush1.msra.mxu0 %v1531
        %1877 = vmatprep.subr.mxu0 0.0
        %1878 = vmatpush1.msra.mxu0 %v1532
        %1879 = vmatprep.subr.mxu0 0.0
        %1880 = vmatpush1.msra.mxu0 %v1583
        %1881 = vmatprep.subr.mxu0 0.0
        %1882 = vmatpush1.msra.mxu0 0.0
        %1883 = vmatprep.subr.mxu0 0.0
        %1884 = vmatpush1.msra.mxu0 0.0
        %1885 = vmatprep.subr.mxu0 0.0
        %1886 = vmatpush1.msra.mxu0 0.0
        %1887 = vmatprep.subr.mxu0 0.0
        %1888 = vmatpush1.msra.mxu0 0.0
        %1889 = vmatprep.subr.mxu0 0.0
        %1890 = vmatpush1.msra.mxu0 0.0
        %1891 = vmatprep.subr.mxu0 0.0
        %1892 = vmatpush1.msra.mxu0 0.0
        %1893 = vmatprep.subr.mxu0 0.0
        %1894 = vmatpush1.msra.mxu0 0.0
        %1895 = vmatprep.subr.mxu0 0.0
        %1896 = vmatpush1.msra.mxu0 0.0
        %1897 = vmatprep.subr.mxu0 0.0
        %1898 = vmatpush1.msra.mxu0 0.0
        %1899 = vmatprep.subr.mxu0 0.0
        %1900 = vmatpush1.msra.mxu0 0.0
        %1901 = vmatprep.subr.mxu0 0.0
        %1902 = vmatpush1.msra.mxu0 0.0
        %1903 = vmatprep.subr.mxu0 0.0
        %1904 = vmatpush1.msra.mxu0 0.0
        %1905 = vmatprep.subr.mxu0 0.0
        %1906 = vmatpush1.msra.mxu0 0.0
        %1907 = vmatprep.subr.mxu0 0.0
        %1908 = vmatpush1.msra.mxu0 0.0
        %1909 = vmatprep.subr.mxu0 0.0
        %1910 = vmatpush1.msra.mxu0 0.0
        %1911 = vmatprep.subr.mxu0 0.0
        %1912 = vmatpush1.msra.mxu0 0.0
        %1913 = vmatprep.subr.mxu0 0.0
        %1914 = vmatpush1.msra.mxu0 0.0
        %1915 = vmatprep.subr.mxu0 0.0
        %1916 = vmatpush1.msra.mxu0 0.0
        %1917 = vmatprep.subr.mxu0 0.0
        %1918 = vmatpush1.msra.mxu0 0.0
        %1919 = vmatprep.subr.mxu0 0.0
        %1920 = vmatpush1.msra.mxu0 0.0
        %1921 = vmatprep.subr.mxu0 0.0
        %1922 = vmatpush1.msra.mxu0 0.0
        %1923 = vmatprep.subr.mxu0 0.0
        %1924 = vmatpush1.msra.mxu0 0.0
        %1925 = vmatprep.subr.mxu0 0.0
        %1926 = vmatpush1.msra.mxu0 0.0
        %1927 = vmatprep.subr.mxu0 0.0
        %1928 = vmatpush1.msra.mxu0 0.0
        %1929 = vmatprep.subr.mxu0 0.0
        %1930 = vmatpush1.msra.mxu0 0.0
        %1931 = vmatprep.subr.mxu0 0.0
        %1932 = vmatpush1.msra.mxu0 0.0
        %1933 = vmatprep.subr.mxu0 0.0
        %1934 = vmatpush1.msra.mxu0 0.0
        %1935 = vmatprep.subr.mxu0 0.0
        %1936 = vmatpush1.msra.mxu0 0.0
        %1937 = vmatprep.subr.mxu0 0.0
        %1938 = vmatpush1.msra.mxu0 0.0
        %1939 = vmatprep.mubr.f32.mxu0 0.0
        %1940 = vmatmul.mubr.f32.gmra.mrb[0].mxu0 %v1535
        %v1941 = vpop.f32.mrb[0].mxu0
        %v1942 = vadd.f32 %v1797, %v1941
        %v1943 = vpop.f32.mrb[0].mxu0
        %1944 = vmatprep.mubr.f32.mxu0 0.0
        %1945 = vmatmul.mubr.f32.gmra.mrb[0].mxu0 %v1538
        %v1946 = vpop.f32.mrb[0].mxu0
        %v1947 = vadd.f32 %v1802, %v1946
        %v1948 = vpop.f32.mrb[0].mxu0
        %1949 = vmatprep.mubr.f32.mxu0 0.0
        %1950 = vmatmul.mubr.f32.gmra.mrb[0].mxu0 %v1541
        %v1951 = vpop.f32.mrb[0].mxu0
        %v1952 = vadd.f32 %v1807, %v1951
        %v1953 = vpop.f32.mrb[0].mxu0
        %1954 = vmatprep.mubr.f32.mxu0 0.0
        %1955 = vmatmul.mubr.f32.gmra.mrb[0].mxu0 %v1544
        %v1956 = vpop.f32.mrb[0].mxu0
        %v1957 = vadd.f32 %v1812, %v1956
        %v1958 = vpop.f32.mrb[0].mxu0
        %1959 = vmatprep.mubr.f32.mxu0 0.0
        %1960 = vmatmul.mubr.f32.gmra.mrb[0].mxu0 %v1547
        %v1961 = vpop.f32.mrb[0].mxu0
        %v1962 = vadd.f32 %v1817, %v1961
        %v1963 = vpop.f32.mrb[0].mxu0
        %1964 = vmatprep.mubr.f32.mxu0 0.0
        %1965 = vmatmul.mubr.f32.gmra.mrb[0].mxu0 %v1550
        %v1966 = vpop.f32.mrb[0].mxu0
        %v1967 = vadd.f32 %v1822, %v1966
        %v1968 = vpop.f32.mrb[0].mxu0
        %1969 = vmatprep.mubr.f32.mxu0 0.0
        %1970 = vmatmul.mubr.f32.gmra.mrb[0].mxu0 %v1553
        %v1971 = vpop.f32.mrb[0].mxu0
        %v1972 = vadd.f32 %v1827, %v1971
        %v1973 = vpop.f32.mrb[0].mxu0
        %1974 = vmatprep.mubr.f32.mxu0 0.0
        %1975 = vmatmul.mubr.f32.gmra.mrb[0].mxu0 %v1556
        %v1976 = vpop.f32.mrb[0].mxu0
        %v1977 = vadd.f32 %v1832, %v1976
        %v1978 = vpop.f32.mrb[0].mxu0
        %1979 = vmatprep.mubr.f32.mxu0 0.0
        %1980 = vmatmul.mubr.f32.gmra.mrb[0].mxu0 %v1559
        %v1981 = vpop.f32.mrb[0].mxu0
        %v1982 = vadd.f32 %v1837, %v1981
        %v1983 = vpop.f32.mrb[0].mxu0
        %1984 = vmatprep.mubr.f32.mxu0 0.0
        %1985 = vmatmul.mubr.f32.gmra.mrb[0].mxu0 %v1562
        %v1986 = vpop.f32.mrb[0].mxu0
        %v1987 = vadd.f32 %v1842, %v1986
        %v1988 = vpop.f32.mrb[0].mxu0
        %1989 = vmatprep.mubr.f32.mxu0 0.0
        %1990 = vmatmul.mubr.f32.gmra.mrb[0].mxu0 %v1565
        %v1991 = vpop.f32.mrb[0].mxu0
        %v1992 = vadd.f32 %v1847, %v1991
        %v1993 = vpop.f32.mrb[0].mxu0
        %1994 = vmatprep.mubr.f32.mxu0 0.0
        %1995 = vmatmul.mubr.f32.gmra.mrb[0].mxu0 %v1568
        %v1996 = vpop.f32.mrb[0].mxu0
        %v1997 = vadd.f32 %v1852, %v1996
        %v1998 = vpop.f32.mrb[0].mxu0
        %1999 = vmatprep.mubr.f32.mxu0 0.0
        %2000 = vmatmul.mubr.f32.gmra.mrb[0].mxu0 %v1571
        %v2001 = vpop.f32.mrb[0].mxu0
        %v2002 = vadd.f32 %v1857, %v2001
        %v2003 = vpop.f32.mrb[0].mxu0
        %2004 = vmatprep.mubr.f32.mxu0 0.0
        %2005 = vmatmul.mubr.f32.gmra.mrb[0].mxu0 %v1574
        %v2006 = vpop.f32.mrb[0].mxu0
        %v2007 = vadd.f32 %v1862, %v2006
        %v2008 = vpop.f32.mrb[0].mxu0
        %2009 = vmatprep.mubr.f32.mxu0 0.0
        %2010 = vmatmul.mubr.f32.gmra.mrb[0].mxu0 %v1577
        %v2011 = vpop.f32.mrb[0].mxu0
        %v2012 = vadd.f32 %v1867, %v2011
        %v2013 = vpop.f32.mrb[0].mxu0
        %2014 = vmatprep.mubr.f32.mxu0 0.0
        %2015 = vmatmul.mubr.f32.gmra.mrb[0].mxu0 %v1580
        %v2016 = vpop.f32.mrb[0].mxu0
        %v2017 = vadd.f32 %v1872, %v2016
        %v2018 = vpop.f32.mrb[0].mxu0
        %2019 = vdwg.mxu0
        %v2020 = vadd.f32 %v1308, %v1942
        %v2021 = vadd.f32 %v1313, %v1947
        %v2022 = vadd.f32 %v1318, %v1952
        %v2023 = vadd.f32 %v1323, %v1957
        %v2024 = vadd.f32 %v1328, %v1962
        %v2025 = vadd.f32 %v1333, %v1967
        %v2026 = vadd.f32 %v1338, %v1972
        %v2027 = vadd.f32 %v1343, %v1977
        %v2028 = vadd.f32 %v1348, %v1982
        %v2029 = vadd.f32 %v1353, %v1987
        %v2030 = vadd.f32 %v1358, %v1992
        %v2031 = vadd.f32 %v1363, %v1997
        %v2032 = vadd.f32 %v1368, %v2002
        %v2033 = vadd.f32 %v1373, %v2007
        %v2034 = vadd.f32 %v1378, %v2012
        %v2035 = vadd.f32 %v1383, %v2017
        %v2036 = vld [vmem:[%s218 + $0xf0] sm:$0xff]
        %v2037 = vld [vmem:[%s218 + $0xf8] sm:$0xff]
        %v2038 = vld [vmem:[%s218 + $0x100] sm:$0xff]
        %v2039 = vld [vmem:[%s218 + $0x108] sm:$0xff]
        %v2040 = vld [vmem:[%s218 + $0x110] sm:$0xff]
        %v2041 = vld [vmem:[%s218 + $0x118] sm:$0xff]
        %v2042 = vld [vmem:[%s218 + $0x120] sm:$0xff]
        %v2043 = vld [vmem:[%s218 + $0x128] sm:$0xff]
        %v2044 = vld [vmem:[%s218 + $0x130] sm:$0xff]
        %v2045 = vld [vmem:[%s218 + $0x138] sm:$0xff]
        %v2046 = vld [vmem:[%s218 + $0x140] sm:$0xff]
        %v2047 = vld [vmem:[%s218 + $0x148] sm:$0xff]
        %v2048 = vld [vmem:[%s218 + $0x150] sm:$0xff]
        %v2049 = vld [vmem:[%s218 + $0x158] sm:$0xff]
        %v2050 = vld [vmem:[%s218 + $0x160] sm:$0xff]
        %v2051 = vld [vmem:[%s218 + $0x168] sm:$0xff]
        %v2052 = vld [vmem:[%s218 + $0x170] sm:$0xff]
        %v2053 = vld [vmem:[%s218 + $0x178] sm:$0xff]
        %v2054 = vld [vmem:[%s218 + $0x180] sm:$0xff]
        %v2055 = vld [vmem:[%s218 + $0x188] sm:$0xff]
        %v2056 = vld [vmem:[%s218 + $0x190] sm:$0xff]
        %v2057 = vld [vmem:[%s218 + $0x198] sm:$0xff]
        %v2058 = vld [vmem:[%s218 + $0x1a0] sm:$0xff]
        %v2059 = vld [vmem:[%s218 + $0x1a8] sm:$0xff]
        %v2060 = vld [vmem:[%s218 + $0x1b0] sm:$0xff]
        %v2061 = vld [vmem:[%s218 + $0x1b8] sm:$0xff]
        %v2062 = vld [vmem:[%s218 + $0x1c0] sm:$0xff]
        %v2063 = vld [vmem:[%s218 + $0x1c8] sm:$0xff]
        %v2064 = vld [vmem:[%s218 + $0x1d0] sm:$0xff]
        %v2065 = vld [vmem:[%s218 + $0x1d8] sm:$0xff]
        %v2066 = vld [vmem:[%s218 + $0x1e0] sm:$0xff]
        %v2067 = vld [vmem:[%s218 + $0x1e8] sm:$0xff]
        %v2068 = vld [vmem:[%s218 + $0x1f0] sm:$0xff]
        %v2069 = vld [vmem:[%s218 + $0x1f8] sm:$0xff]
        %v2070 = vld [vmem:[%s218 + $0x200] sm:$0xff]
        %v2071 = vld [vmem:[%s218 + $0x208] sm:$0xff]
        %v2072 = vld [vmem:[%s218 + $0x210] sm:$0xff]
        %v2073 = vld [vmem:[%s218 + $0x218] sm:$0xff]
        %v2074 = vld [vmem:[%s218 + $0x220] sm:$0xff]
        %v2075 = vld [vmem:[%s218 + $0x228] sm:$0xff]
        %v2076 = vld [vmem:[%s218 + $0x230] sm:$0xff]
        %v2077 = vld [vmem:[%s218 + $0x238] sm:$0xff]
        %v2078 = vld [vmem:[%s218 + $0x240] sm:$0xff]
        %v2079 = vld [vmem:[%s218 + $0x248] sm:$0xff]
        %v2080 = vld [vmem:[%s218 + $0x250] sm:$0xff]
        %v2081 = vld [vmem:[%s218 + $0x258] sm:$0xff]
        %v2082 = vld [vmem:[%s218 + $0x260] sm:$0xff]
        %v2083 = vld [vmem:[%s218 + $0x268] sm:$0xff]
        %v2084 = vld [vmem:[%s218 + $0x270] sm:$0xff]
        %v2085 = vld [vmem:[%s218 + $0x278] sm:$0xff]
        %v2086 = vld [vmem:[%s218 + $0x280] sm:$0xff]
        %v2087 = vld [vmem:[%s218 + $0x288] sm:$0xff]
        %v2088 = vld [vmem:[%s218 + $0x290] sm:$0xff]
        %v2089 = vld [vmem:[%s218 + $0x298] sm:$0xff]
        %v2090 = vld [vmem:[%s218 + $0x2a0] sm:$0xff]
        %v2091 = vld [vmem:[%s218 + $0x2a8] sm:$0xff]
        %v2092 = vld [vmem:[%s218 + $0x2b0] sm:$0xff]
        %v2093 = vld [vmem:[%s218 + $0x2b8] sm:$0xff]
        %v2094 = vld [vmem:[%s218 + $0x2c0] sm:$0xff]
        %v2095 = vld [vmem:[%s218 + $0x2c8] sm:$0xff]
        %v2096 = vld [vmem:[%s218 + $0x2d0] sm:$0xff]
        %v2097 = vld [vmem:[%s218 + $0x2d8] sm:$0xff]
        %v2098 = vld [vmem:[%s218 + $0x2e0] sm:$0xff]
        %v2099 = vld [vmem:[%s218 + $0x2e8] sm:$0xff]
        %v2100 = vld [vmem:[%s218 + $0x2f0] sm:$0xff]
        %v2101 = vld [vmem:[%s218 + $0x2f8] sm:$0xff]
        %v2102 = vld [vmem:[%s218 + $0x300] sm:$0xff]
        %v2103 = vld [vmem:[%s218 + $0x308] sm:$0xff]
        %v2104 = vld [vmem:[%s218 + $0x310] sm:$0xff]
        %v2105 = vld [vmem:[%s218 + $0x318] sm:$0xff]
        %v2106 = vld [vmem:[%s218 + $0x320] sm:$0xff]
        %v2107 = vld [vmem:[%s218 + $0x328] sm:$0xff]
        %v2108 = vld [vmem:[%s218 + $0x330] sm:$0xff]
        %v2109 = vld [vmem:[%s218 + $0x338] sm:$0xff]
        %v2110 = vld [vmem:[%s218 + $0x340] sm:$0xff]
        %v2111 = vld [vmem:[%s218 + $0x348] sm:$0xff]
        %v2112 = vld [vmem:[%s218 + $0x350] sm:$0xff]
        %v2113 = vld [vmem:[%s218 + $0x358] sm:$0xff]
        %v2114 = vld [vmem:[%s218 + $0x360] sm:$0xff]
        %v2115 = vld [vmem:[%s218 + $0x368] sm:$0xff]
        %s2116 = scalar_lea.vmem %s1, 1608
        %v2117 = vld [vmem:[%s2116] sm:$0xff]
        %v2118 = vld [vmem:[%s2116 + $0x8] sm:$0xff]
        %v2119 = vld [vmem:[%s2116 + $0x10] sm:$0xff]
        %v2120 = vld [vmem:[%s2116 + $0x18] sm:$0xff]
        %v2121 = vld [vmem:[%s2116 + $0x20] sm:$0xff]
        %v2122 = vld [vmem:[%s2116 + $0x28] sm:$0xff]
        %v2123 = vld [vmem:[%s2116 + $0x30] sm:$0xff]
        %v2124 = vld [vmem:[%s2116 + $0x38] sm:$0xff]
        %v2125 = vld [vmem:[%s2116 + $0x40] sm:$0xff]
        %v2126 = vld [vmem:[%s2116 + $0x48] sm:$0xff]
        %v2127 = vld [vmem:[%s2116 + $0x50] sm:$0xff]
        %v2128 = vld [vmem:[%s2116 + $0x58] sm:$0xff]
        %v2129 = vld [vmem:[%s2116 + $0x60] sm:$0xff]
        %v2130 = vld [vmem:[%s2116 + $0x68] sm:$0xff]
        %v2131 = vld [vmem:[%s2116 + $0x70] sm:$0xff]
        %v2132 = vld [vmem:[%s2116 + $0x78] sm:$0xff]
        %v2133 = vld [vmem:[%s2116 + $0x80] sm:$0xff]
        %v2134 = vld [vmem:[%s2116 + $0x88] sm:$0xff]
        %v2135 = vld [vmem:[%s2116 + $0x90] sm:$0xff]
        %v2136 = vld [vmem:[%s2116 + $0x98] sm:$0xff]
        %v2137 = vld [vmem:[%s2116 + $0xa0] sm:$0xff]
        %v2138 = vld [vmem:[%s2116 + $0xa8] sm:$0xff]
        %v2139 = vld [vmem:[%s2116 + $0xb0] sm:$0xff]
        %v2140 = vld [vmem:[%s2116 + $0xb8] sm:$0xff]
        %v2141 = vld [vmem:[%s2116 + $0xc0] sm:$0xff]
        %v2142 = vld [vmem:[%s2116 + $0xc8] sm:$0xff]
        %v2143 = vld [vmem:[%s2116 + $0xd0] sm:$0xff]
        %v2144 = vld [vmem:[%s2116 + $0xd8] sm:$0xff]
        %v2145 = vld [vmem:[%s2116 + $0xe0] sm:$0xff]
        %v2146 = vld [vmem:[%s2116 + $0xe8] sm:$0xff]
        %v2147 = vld [vmem:[%s2116 + $0xf0] sm:$0xff]
        %v2148 = vld [vmem:[%s2116 + $0xf8] sm:$0xff]
        %v2149 = vld [vmem:[%s2116 + $0x100] sm:$0xff]
        %v2150 = vld [vmem:[%s2116 + $0x108] sm:$0xff]
        %v2151 = vld [vmem:[%s2116 + $0x110] sm:$0xff]
        %v2152 = vld [vmem:[%s2116 + $0x118] sm:$0xff]
        %v2153 = vld [vmem:[%s2116 + $0x120] sm:$0xff]
        %v2154 = vld [vmem:[%s2116 + $0x128] sm:$0xff]
        %v2155 = vld [vmem:[%s2116 + $0x130] sm:$0xff]
        %v2156 = vld [vmem:[%s2116 + $0x138] sm:$0xff]
        %v2157 = vld [vmem:[%s2116 + $0x140] sm:$0xff]
        %v2158 = vld [vmem:[%s2116 + $0x148] sm:$0xff]
        %v2159 = vld [vmem:[%s2116 + $0x150] sm:$0xff]
        %v2160 = vld [vmem:[%s2116 + $0x158] sm:$0xff]
        %v2161 = vld [vmem:[%s2116 + $0x160] sm:$0xff]
        %v2162 = vld [vmem:[%s2116 + $0x168] sm:$0xff]
        %v2163 = vld [vmem:[%s2116 + $0x170] sm:$0xff]
        %v2164 = vld [vmem:[%s2116 + $0x178] sm:$0xff]
        %v2165 = vld [vmem:[%s2116 + $0x180] sm:$0xff]
        %v2166 = vld [vmem:[%s2116 + $0x188] sm:$0xff]
        %v2167 = vld [vmem:[%s2116 + $0x190] sm:$0xff]
        %v2168 = vld [vmem:[%s2116 + $0x198] sm:$0xff]
        %v2169 = vld [vmem:[%s2116 + $0x1a0] sm:$0xff]
        %v2170 = vld [vmem:[%s2116 + $0x1a8] sm:$0xff]
        %v2171 = vld [vmem:[%s2116 + $0x1b0] sm:$0xff]
        %v2172 = vld [vmem:[%s2116 + $0x1b8] sm:$0xff]
        %v2173 = vld [vmem:[%s2116 + $0x1c0] sm:$0xff]
        %v2174 = vld [vmem:[%s2116 + $0x1c8] sm:$0xff]
        %v2175 = vld [vmem:[%s2116 + $0x1d0] sm:$0xff]
        %v2176 = vld [vmem:[%s2116 + $0x1d8] sm:$0xff]
        %v2177 = vld [vmem:[%s2116 + $0x1e0] sm:$0xff]
        %v2178 = vld [vmem:[%s2116 + $0x1e8] sm:$0xff]
        %v2179 = vld [vmem:[%s2116 + $0x1f0] sm:$0xff]
        %v2180 = vld [vmem:[%s2116 + $0x1f8] sm:$0xff]
        %v2181 = vld [vmem:[%s2116 + $0x200] sm:$0xff]
        %v2182 = vld [vmem:[%s2116 + $0x208] sm:$0xff]
        %v2183 = vld [vmem:[%s2116 + $0x210] sm:$0xf]
        %v2185 = vsel %vm454, %v2040, 0
        %v2188 = vsel %vm454, %v2045, 0
        %v2191 = vsel %vm454, %v2050, 0
        %v2194 = vsel %vm454, %v2055, 0
        %v2197 = vsel %vm454, %v2060, 0
        %v2200 = vsel %vm454, %v2065, 0
        %v2203 = vsel %vm454, %v2070, 0
        %v2206 = vsel %vm454, %v2075, 0
        %v2209 = vsel %vm454, %v2080, 0
        %v2212 = vsel %vm454, %v2085, 0
        %v2215 = vsel %vm454, %v2090, 0
        %v2218 = vsel %vm454, %v2095, 0
        %v2221 = vsel %vm454, %v2100, 0
        %v2224 = vsel %vm454, %v2105, 0
        %v2227 = vsel %vm454, %v2110, 0
        %v2230 = vsel %vm454, %v2115, 0
        %v2233 = vsel %vm503, %v2183, 0
        %2235 = vmatprep.subr.mxu0 0.0
        %2236 = vmatpush1.msra.mxu0 %v2117
        %2237 = vmatprep.subr.mxu0 0.0
        %2238 = vmatpush1.msra.mxu0 %v2118
        %2239 = vmatprep.subr.mxu0 0.0
        %2240 = vmatpush1.msra.mxu0 %v2119
        %2241 = vmatprep.subr.mxu0 0.0
        %2242 = vmatpush1.msra.mxu0 %v2120
        %2243 = vmatprep.subr.mxu0 0.0
        %2244 = vmatpush1.msra.mxu0 %v2121
        %2245 = vmatprep.subr.mxu0 0.0
        %2246 = vmatpush1.msra.mxu0 %v2122
        %2247 = vmatprep.subr.mxu0 0.0
        %2248 = vmatpush1.msra.mxu0 %v2123
        %2249 = vmatprep.subr.mxu0 0.0
        %2250 = vmatpush1.msra.mxu0 %v2124
        %2251 = vmatprep.subr.mxu0 0.0
        %2252 = vmatpush1.msra.mxu0 %v2125
        %2253 = vmatprep.subr.mxu0 0.0
        %2254 = vmatpush1.msra.mxu0 %v2126
        %2255 = vmatprep.subr.mxu0 0.0
        %2256 = vmatpush1.msra.mxu0 %v2127
        %2257 = vmatprep.subr.mxu0 0.0
        %2258 = vmatpush1.msra.mxu0 %v2128
        %2259 = vmatprep.subr.mxu0 0.0
        %2260 = vmatpush1.msra.mxu0 %v2129
        %2261 = vmatprep.subr.mxu0 0.0
        %2262 = vmatpush1.msra.mxu0 %v2130
        %2263 = vmatprep.subr.mxu0 0.0
        %2264 = vmatpush1.msra.mxu0 %v2131
        %2265 = vmatprep.subr.mxu0 0.0
        %2266 = vmatpush1.msra.mxu0 %v2132
        %2267 = vmatprep.subr.mxu0 0.0
        %2268 = vmatpush1.msra.mxu0 %v2133
        %2269 = vmatprep.subr.mxu0 0.0
        %2270 = vmatpush1.msra.mxu0 %v2134
        %2271 = vmatprep.subr.mxu0 0.0
        %2272 = vmatpush1.msra.mxu0 %v2135
        %2273 = vmatprep.subr.mxu0 0.0
        %2274 = vmatpush1.msra.mxu0 %v2136
        %2275 = vmatprep.subr.mxu0 0.0
        %2276 = vmatpush1.msra.mxu0 %v2137
        %2277 = vmatprep.subr.mxu0 0.0
        %2278 = vmatpush1.msra.mxu0 %v2138
        %2279 = vmatprep.subr.mxu0 0.0
        %2280 = vmatpush1.msra.mxu0 %v2139
        %2281 = vmatprep.subr.mxu0 0.0
        %2282 = vmatpush1.msra.mxu0 %v2140
        %2283 = vmatprep.subr.mxu0 0.0
        %2284 = vmatpush1.msra.mxu0 %v2141
        %2285 = vmatprep.subr.mxu0 0.0
        %2286 = vmatpush1.msra.mxu0 %v2142
        %2287 = vmatprep.subr.mxu0 0.0
        %2288 = vmatpush1.msra.mxu0 %v2143
        %2289 = vmatprep.subr.mxu0 0.0
        %2290 = vmatpush1.msra.mxu0 %v2144
        %2291 = vmatprep.subr.mxu0 0.0
        %2292 = vmatpush1.msra.mxu0 %v2145
        %2293 = vmatprep.subr.mxu0 0.0
        %2294 = vmatpush1.msra.mxu0 %v2146
        %2295 = vmatprep.subr.mxu0 0.0
        %2296 = vmatpush1.msra.mxu0 %v2147
        %2297 = vmatprep.subr.mxu0 0.0
        %2298 = vmatpush1.msra.mxu0 %v2148
        %2299 = vmatprep.mubr.f32.mxu0 %v2037
        %2300 = vmatmul.mubr.f32.gmra.mrb[0].mxu0 %v2036
        %v2301 = vpop.f32.mrb[0].mxu0
        %v2302 = vadd.f32 0.0, %v2301
        %v2303 = vpop.f32.mrb[0].mxu0
        %2304 = vmatprep.mubr.f32.mxu0 %v2042
        %2305 = vmatmul.mubr.f32.gmra.mrb[0].mxu0 %v2041
        %v2306 = vpop.f32.mrb[0].mxu0
        %v2307 = vadd.f32 0.0, %v2306
        %v2308 = vpop.f32.mrb[0].mxu0
        %2309 = vmatprep.mubr.f32.mxu0 %v2047
        %2310 = vmatmul.mubr.f32.gmra.mrb[0].mxu0 %v2046
        %v2311 = vpop.f32.mrb[0].mxu0
        %v2312 = vadd.f32 0.0, %v2311
        %v2313 = vpop.f32.mrb[0].mxu0
        %2314 = vmatprep.mubr.f32.mxu0 %v2052
        %2315 = vmatmul.mubr.f32.gmra.mrb[0].mxu0 %v2051
        %v2316 = vpop.f32.mrb[0].mxu0
        %v2317 = vadd.f32 0.0, %v2316
        %v2318 = vpop.f32.mrb[0].mxu0
        %2319 = vmatprep.mubr.f32.mxu0 %v2057
        %2320 = vmatmul.mubr.f32.gmra.mrb[0].mxu0 %v2056
        %v2321 = vpop.f32.mrb[0].mxu0
        %v2322 = vadd.f32 0.0, %v2321
        %v2323 = vpop.f32.mrb[0].mxu0
        %2324 = vmatprep.mubr.f32.mxu0 %v2062
        %2325 = vmatmul.mubr.f32.gmra.mrb[0].mxu0 %v2061
        %v2326 = vpop.f32.mrb[0].mxu0
        %v2327 = vadd.f32 0.0, %v2326
        %v2328 = vpop.f32.mrb[0].mxu0
        %2329 = vmatprep.mubr.f32.mxu0 %v2067
        %2330 = vmatmul.mubr.f32.gmra.mrb[0].mxu0 %v2066
        %v2331 = vpop.f32.mrb[0].mxu0
        %v2332 = vadd.f32 0.0, %v2331
        %v2333 = vpop.f32.mrb[0].mxu0
        %2334 = vmatprep.mubr.f32.mxu0 %v2072
        %2335 = vmatmul.mubr.f32.gmra.mrb[0].mxu0 %v2071
        %v2336 = vpop.f32.mrb[0].mxu0
        %v2337 = vadd.f32 0.0, %v2336
        %v2338 = vpop.f32.mrb[0].mxu0
        %2339 = vmatprep.mubr.f32.mxu0 %v2077
        %2340 = vmatmul.mubr.f32.gmra.mrb[0].mxu0 %v2076
        %v2341 = vpop.f32.mrb[0].mxu0
        %v2342 = vadd.f32 0.0, %v2341
        %v2343 = vpop.f32.mrb[0].mxu0
        %2344 = vmatprep.mubr.f32.mxu0 %v2082
        %2345 = vmatmul.mubr.f32.gmra.mrb[0].mxu0 %v2081
        %v2346 = vpop.f32.mrb[0].mxu0
        %v2347 = vadd.f32 0.0, %v2346
        %v2348 = vpop.f32.mrb[0].mxu0
        %2349 = vmatprep.mubr.f32.mxu0 %v2087
        %2350 = vmatmul.mubr.f32.gmra.mrb[0].mxu0 %v2086
        %v2351 = vpop.f32.mrb[0].mxu0
        %v2352 = vadd.f32 0.0, %v2351
        %v2353 = vpop.f32.mrb[0].mxu0
        %2354 = vmatprep.mubr.f32.mxu0 %v2092
        %2355 = vmatmul.mubr.f32.gmra.mrb[0].mxu0 %v2091
        %v2356 = vpop.f32.mrb[0].mxu0
        %v2357 = vadd.f32 0.0, %v2356
        %v2358 = vpop.f32.mrb[0].mxu0
        %2359 = vmatprep.mubr.f32.mxu0 %v2097
        %2360 = vmatmul.mubr.f32.gmra.mrb[0].mxu0 %v2096
        %v2361 = vpop.f32.mrb[0].mxu0
        %v2362 = vadd.f32 0.0, %v2361
        %v2363 = vpop.f32.mrb[0].mxu0
        %2364 = vmatprep.mubr.f32.mxu0 %v2102
        %2365 = vmatmul.mubr.f32.gmra.mrb[0].mxu0 %v2101
        %v2366 = vpop.f32.mrb[0].mxu0
        %v2367 = vadd.f32 0.0, %v2366
        %v2368 = vpop.f32.mrb[0].mxu0
        %2369 = vmatprep.mubr.f32.mxu0 %v2107
        %2370 = vmatmul.mubr.f32.gmra.mrb[0].mxu0 %v2106
        %v2371 = vpop.f32.mrb[0].mxu0
        %v2372 = vadd.f32 0.0, %v2371
        %v2373 = vpop.f32.mrb[0].mxu0
        %2374 = vmatprep.mubr.f32.mxu0 %v2112
        %2375 = vmatmul.mubr.f32.gmra.mrb[0].mxu0 %v2111
        %v2376 = vpop.f32.mrb[0].mxu0
        %v2377 = vadd.f32 0.0, %v2376
        %v2378 = vpop.f32.mrb[0].mxu0
        %2379 = vdwg.mxu0
        %2380 = vmatprep.subr.mxu0 0.0
        %2381 = vmatpush1.msra.mxu0 %v2149
        %2382 = vmatprep.subr.mxu0 0.0
        %2383 = vmatpush1.msra.mxu0 %v2150
        %2384 = vmatprep.subr.mxu0 0.0
        %2385 = vmatpush1.msra.mxu0 %v2151
        %2386 = vmatprep.subr.mxu0 0.0
        %2387 = vmatpush1.msra.mxu0 %v2152
        %2388 = vmatprep.subr.mxu0 0.0
        %2389 = vmatpush1.msra.mxu0 %v2153
        %2390 = vmatprep.subr.mxu0 0.0
        %2391 = vmatpush1.msra.mxu0 %v2154
        %2392 = vmatprep.subr.mxu0 0.0
        %2393 = vmatpush1.msra.mxu0 %v2155
        %2394 = vmatprep.subr.mxu0 0.0
        %2395 = vmatpush1.msra.mxu0 %v2156
        %2396 = vmatprep.subr.mxu0 0.0
        %2397 = vmatpush1.msra.mxu0 %v2157
        %2398 = vmatprep.subr.mxu0 0.0
        %2399 = vmatpush1.msra.mxu0 %v2158
        %2400 = vmatprep.subr.mxu0 0.0
        %2401 = vmatpush1.msra.mxu0 %v2159
        %2402 = vmatprep.subr.mxu0 0.0
        %2403 = vmatpush1.msra.mxu0 %v2160
        %2404 = vmatprep.subr.mxu0 0.0
        %2405 = vmatpush1.msra.mxu0 %v2161
        %2406 = vmatprep.subr.mxu0 0.0
        %2407 = vmatpush1.msra.mxu0 %v2162
        %2408 = vmatprep.subr.mxu0 0.0
        %2409 = vmatpush1.msra.mxu0 %v2163
        %2410 = vmatprep.subr.mxu0 0.0
        %2411 = vmatpush1.msra.mxu0 %v2164
        %2412 = vmatprep.subr.mxu0 0.0
        %2413 = vmatpush1.msra.mxu0 %v2165
        %2414 = vmatprep.subr.mxu0 0.0
        %2415 = vmatpush1.msra.mxu0 %v2166
        %2416 = vmatprep.subr.mxu0 0.0
        %2417 = vmatpush1.msra.mxu0 %v2167
        %2418 = vmatprep.subr.mxu0 0.0
        %2419 = vmatpush1.msra.mxu0 %v2168
        %2420 = vmatprep.subr.mxu0 0.0
        %2421 = vmatpush1.msra.mxu0 %v2169
        %2422 = vmatprep.subr.mxu0 0.0
        %2423 = vmatpush1.msra.mxu0 %v2170
        %2424 = vmatprep.subr.mxu0 0.0
        %2425 = vmatpush1.msra.mxu0 %v2171
        %2426 = vmatprep.subr.mxu0 0.0
        %2427 = vmatpush1.msra.mxu0 %v2172
        %2428 = vmatprep.subr.mxu0 0.0
        %2429 = vmatpush1.msra.mxu0 %v2173
        %2430 = vmatprep.subr.mxu0 0.0
        %2431 = vmatpush1.msra.mxu0 %v2174
        %2432 = vmatprep.subr.mxu0 0.0
        %2433 = vmatpush1.msra.mxu0 %v2175
        %2434 = vmatprep.subr.mxu0 0.0
        %2435 = vmatpush1.msra.mxu0 %v2176
        %2436 = vmatprep.subr.mxu0 0.0
        %2437 = vmatpush1.msra.mxu0 %v2177
        %2438 = vmatprep.subr.mxu0 0.0
        %2439 = vmatpush1.msra.mxu0 %v2178
        %2440 = vmatprep.subr.mxu0 0.0
        %2441 = vmatpush1.msra.mxu0 %v2179
        %2442 = vmatprep.subr.mxu0 0.0
        %2443 = vmatpush1.msra.mxu0 %v2180
        %2444 = vmatprep.mubr.f32.mxu0 %v2039
        %2445 = vmatmul.mubr.f32.gmra.mrb[0].mxu0 %v2038
        %v2446 = vpop.f32.mrb[0].mxu0
        %v2447 = vadd.f32 %v2302, %v2446
        %v2448 = vpop.f32.mrb[0].mxu0
        %2449 = vmatprep.mubr.f32.mxu0 %v2044
        %2450 = vmatmul.mubr.f32.gmra.mrb[0].mxu0 %v2043
        %v2451 = vpop.f32.mrb[0].mxu0
        %v2452 = vadd.f32 %v2307, %v2451
        %v2453 = vpop.f32.mrb[0].mxu0
        %2454 = vmatprep.mubr.f32.mxu0 %v2049
        %2455 = vmatmul.mubr.f32.gmra.mrb[0].mxu0 %v2048
        %v2456 = vpop.f32.mrb[0].mxu0
        %v2457 = vadd.f32 %v2312, %v2456
        %v2458 = vpop.f32.mrb[0].mxu0
        %2459 = vmatprep.mubr.f32.mxu0 %v2054
        %2460 = vmatmul.mubr.f32.gmra.mrb[0].mxu0 %v2053
        %v2461 = vpop.f32.mrb[0].mxu0
        %v2462 = vadd.f32 %v2317, %v2461
        %v2463 = vpop.f32.mrb[0].mxu0
        %2464 = vmatprep.mubr.f32.mxu0 %v2059
        %2465 = vmatmul.mubr.f32.gmra.mrb[0].mxu0 %v2058
        %v2466 = vpop.f32.mrb[0].mxu0
        %v2467 = vadd.f32 %v2322, %v2466
        %v2468 = vpop.f32.mrb[0].mxu0
        %2469 = vmatprep.mubr.f32.mxu0 %v2064
        %2470 = vmatmul.mubr.f32.gmra.mrb[0].mxu0 %v2063
        %v2471 = vpop.f32.mrb[0].mxu0
        %v2472 = vadd.f32 %v2327, %v2471
        %v2473 = vpop.f32.mrb[0].mxu0
        %2474 = vmatprep.mubr.f32.mxu0 %v2069
        %2475 = vmatmul.mubr.f32.gmra.mrb[0].mxu0 %v2068
        %v2476 = vpop.f32.mrb[0].mxu0
        %v2477 = vadd.f32 %v2332, %v2476
        %v2478 = vpop.f32.mrb[0].mxu0
        %2479 = vmatprep.mubr.f32.mxu0 %v2074
        %2480 = vmatmul.mubr.f32.gmra.mrb[0].mxu0 %v2073
        %v2481 = vpop.f32.mrb[0].mxu0
        %v2482 = vadd.f32 %v2337, %v2481
        %v2483 = vpop.f32.mrb[0].mxu0
        %2484 = vmatprep.mubr.f32.mxu0 %v2079
        %2485 = vmatmul.mubr.f32.gmra.mrb[0].mxu0 %v2078
        %v2486 = vpop.f32.mrb[0].mxu0
        %v2487 = vadd.f32 %v2342, %v2486
        %v2488 = vpop.f32.mrb[0].mxu0
        %2489 = vmatprep.mubr.f32.mxu0 %v2084
        %2490 = vmatmul.mubr.f32.gmra.mrb[0].mxu0 %v2083
        %v2491 = vpop.f32.mrb[0].mxu0
        %v2492 = vadd.f32 %v2347, %v2491
        %v2493 = vpop.f32.mrb[0].mxu0
        %2494 = vmatprep.mubr.f32.mxu0 %v2089
        %2495 = vmatmul.mubr.f32.gmra.mrb[0].mxu0 %v2088
        %v2496 = vpop.f32.mrb[0].mxu0
        %v2497 = vadd.f32 %v2352, %v2496
        %v2498 = vpop.f32.mrb[0].mxu0
        %2499 = vmatprep.mubr.f32.mxu0 %v2094
        %2500 = vmatmul.mubr.f32.gmra.mrb[0].mxu0 %v2093
        %v2501 = vpop.f32.mrb[0].mxu0
        %v2502 = vadd.f32 %v2357, %v2501
        %v2503 = vpop.f32.mrb[0].mxu0
        %2504 = vmatprep.mubr.f32.mxu0 %v2099
        %2505 = vmatmul.mubr.f32.gmra.mrb[0].mxu0 %v2098
        %v2506 = vpop.f32.mrb[0].mxu0
        %v2507 = vadd.f32 %v2362, %v2506
        %v2508 = vpop.f32.mrb[0].mxu0
        %2509 = vmatprep.mubr.f32.mxu0 %v2104
        %2510 = vmatmul.mubr.f32.gmra.mrb[0].mxu0 %v2103
        %v2511 = vpop.f32.mrb[0].mxu0
        %v2512 = vadd.f32 %v2367, %v2511
        %v2513 = vpop.f32.mrb[0].mxu0
        %2514 = vmatprep.mubr.f32.mxu0 %v2109
        %2515 = vmatmul.mubr.f32.gmra.mrb[0].mxu0 %v2108
        %v2516 = vpop.f32.mrb[0].mxu0
        %v2517 = vadd.f32 %v2372, %v2516
        %v2518 = vpop.f32.mrb[0].mxu0
        %2519 = vmatprep.mubr.f32.mxu0 %v2114
        %2520 = vmatmul.mubr.f32.gmra.mrb[0].mxu0 %v2113
        %v2521 = vpop.f32.mrb[0].mxu0
        %v2522 = vadd.f32 %v2377, %v2521
        %v2523 = vpop.f32.mrb[0].mxu0
        %2524 = vdwg.mxu0
        %2525 = vmatprep.subr.mxu0 0.0
        %2526 = vmatpush1.msra.mxu0 %v2181
        %2527 = vmatprep.subr.mxu0 0.0
        %2528 = vmatpush1.msra.mxu0 %v2182
        %2529 = vmatprep.subr.mxu0 0.0
        %2530 = vmatpush1.msra.mxu0 %v2233
        %2531 = vmatprep.subr.mxu0 0.0
        %2532 = vmatpush1.msra.mxu0 0.0
        %2533 = vmatprep.subr.mxu0 0.0
        %2534 = vmatpush1.msra.mxu0 0.0
        %2535 = vmatprep.subr.mxu0 0.0
        %2536 = vmatpush1.msra.mxu0 0.0
        %2537 = vmatprep.subr.mxu0 0.0
        %2538 = vmatpush1.msra.mxu0 0.0
        %2539 = vmatprep.subr.mxu0 0.0
        %2540 = vmatpush1.msra.mxu0 0.0
        %2541 = vmatprep.subr.mxu0 0.0
        %2542 = vmatpush1.msra.mxu0 0.0
        %2543 = vmatprep.subr.mxu0 0.0
        %2544 = vmatpush1.msra.mxu0 0.0
        %2545 = vmatprep.subr.mxu0 0.0
        %2546 = vmatpush1.msra.mxu0 0.0
        %2547 = vmatprep.subr.mxu0 0.0
        %2548 = vmatpush1.msra.mxu0 0.0
        %2549 = vmatprep.subr.mxu0 0.0
        %2550 = vmatpush1.msra.mxu0 0.0
        %2551 = vmatprep.subr.mxu0 0.0
        %2552 = vmatpush1.msra.mxu0 0.0
        %2553 = vmatprep.subr.mxu0 0.0
        %2554 = vmatpush1.msra.mxu0 0.0
        %2555 = vmatprep.subr.mxu0 0.0
        %2556 = vmatpush1.msra.mxu0 0.0
        %2557 = vmatprep.subr.mxu0 0.0
        %2558 = vmatpush1.msra.mxu0 0.0
        %2559 = vmatprep.subr.mxu0 0.0
        %2560 = vmatpush1.msra.mxu0 0.0
        %2561 = vmatprep.subr.mxu0 0.0
        %2562 = vmatpush1.msra.mxu0 0.0
        %2563 = vmatprep.subr.mxu0 0.0
        %2564 = vmatpush1.msra.mxu0 0.0
        %2565 = vmatprep.subr.mxu0 0.0
        %2566 = vmatpush1.msra.mxu0 0.0
        %2567 = vmatprep.subr.mxu0 0.0
        %2568 = vmatpush1.msra.mxu0 0.0
        %2569 = vmatprep.subr.mxu0 0.0
        %2570 = vmatpush1.msra.mxu0 0.0
        %2571 = vmatprep.subr.mxu0 0.0
        %2572 = vmatpush1.msra.mxu0 0.0
        %2573 = vmatprep.subr.mxu0 0.0
        %2574 = vmatpush1.msra.mxu0 0.0
        %2575 = vmatprep.subr.mxu0 0.0
        %2576 = vmatpush1.msra.mxu0 0.0
        %2577 = vmatprep.subr.mxu0 0.0
        %2578 = vmatpush1.msra.mxu0 0.0
        %2579 = vmatprep.subr.mxu0 0.0
        %2580 = vmatpush1.msra.mxu0 0.0
        %2581 = vmatprep.subr.mxu0 0.0
        %2582 = vmatpush1.msra.mxu0 0.0
        %2583 = vmatprep.subr.mxu0 0.0
        %2584 = vmatpush1.msra.mxu0 0.0
        %2585 = vmatprep.subr.mxu0 0.0
        %2586 = vmatpush1.msra.mxu0 0.0
        %2587 = vmatprep.subr.mxu0 0.0
        %2588 = vmatpush1.msra.mxu0 0.0
        %2589 = vmatprep.mubr.f32.mxu0 0.0
        %2590 = vmatmul.mubr.f32.gmra.mrb[0].mxu0 %v2185
        %v2591 = vpop.f32.mrb[0].mxu0
        %v2592 = vadd.f32 %v2447, %v2591
        %v2593 = vpop.f32.mrb[0].mxu0
        %2594 = vmatprep.mubr.f32.mxu0 0.0
        %2595 = vmatmul.mubr.f32.gmra.mrb[0].mxu0 %v2188
        %v2596 = vpop.f32.mrb[0].mxu0
        %v2597 = vadd.f32 %v2452, %v2596
        %v2598 = vpop.f32.mrb[0].mxu0
        %2599 = vmatprep.mubr.f32.mxu0 0.0
        %2600 = vmatmul.mubr.f32.gmra.mrb[0].mxu0 %v2191
        %v2601 = vpop.f32.mrb[0].mxu0
        %v2602 = vadd.f32 %v2457, %v2601
        %v2603 = vpop.f32.mrb[0].mxu0
        %2604 = vmatprep.mubr.f32.mxu0 0.0
        %2605 = vmatmul.mubr.f32.gmra.mrb[0].mxu0 %v2194
        %v2606 = vpop.f32.mrb[0].mxu0
        %v2607 = vadd.f32 %v2462, %v2606
        %v2608 = vpop.f32.mrb[0].mxu0
        %2609 = vmatprep.mubr.f32.mxu0 0.0
        %2610 = vmatmul.mubr.f32.gmra.mrb[0].mxu0 %v2197
        %v2611 = vpop.f32.mrb[0].mxu0
        %v2612 = vadd.f32 %v2467, %v2611
        %v2613 = vpop.f32.mrb[0].mxu0
        %2614 = vmatprep.mubr.f32.mxu0 0.0
        %2615 = vmatmul.mubr.f32.gmra.mrb[0].mxu0 %v2200
        %v2616 = vpop.f32.mrb[0].mxu0
        %v2617 = vadd.f32 %v2472, %v2616
        %v2618 = vpop.f32.mrb[0].mxu0
        %2619 = vmatprep.mubr.f32.mxu0 0.0
        %2620 = vmatmul.mubr.f32.gmra.mrb[0].mxu0 %v2203
        %v2621 = vpop.f32.mrb[0].mxu0
        %v2622 = vadd.f32 %v2477, %v2621
        %v2623 = vpop.f32.mrb[0].mxu0
        %2624 = vmatprep.mubr.f32.mxu0 0.0
        %2625 = vmatmul.mubr.f32.gmra.mrb[0].mxu0 %v2206
        %v2626 = vpop.f32.mrb[0].mxu0
        %v2627 = vadd.f32 %v2482, %v2626
        %v2628 = vpop.f32.mrb[0].mxu0
        %2629 = vmatprep.mubr.f32.mxu0 0.0
        %2630 = vmatmul.mubr.f32.gmra.mrb[0].mxu0 %v2209
        %v2631 = vpop.f32.mrb[0].mxu0
        %v2632 = vadd.f32 %v2487, %v2631
        %v2633 = vpop.f32.mrb[0].mxu0
        %2634 = vmatprep.mubr.f32.mxu0 0.0
        %2635 = vmatmul.mubr.f32.gmra.mrb[0].mxu0 %v2212
        %v2636 = vpop.f32.mrb[0].mxu0
        %v2637 = vadd.f32 %v2492, %v2636
        %v2638 = vpop.f32.mrb[0].mxu0
        %2639 = vmatprep.mubr.f32.mxu0 0.0
        %2640 = vmatmul.mubr.f32.gmra.mrb[0].mxu0 %v2215
        %v2641 = vpop.f32.mrb[0].mxu0
        %v2642 = vadd.f32 %v2497, %v2641
        %v2643 = vpop.f32.mrb[0].mxu0
        %2644 = vmatprep.mubr.f32.mxu0 0.0
        %2645 = vmatmul.mubr.f32.gmra.mrb[0].mxu0 %v2218
        %v2646 = vpop.f32.mrb[0].mxu0
        %v2647 = vadd.f32 %v2502, %v2646
        %v2648 = vpop.f32.mrb[0].mxu0
        %2649 = vmatprep.mubr.f32.mxu0 0.0
        %2650 = vmatmul.mubr.f32.gmra.mrb[0].mxu0 %v2221
        %v2651 = vpop.f32.mrb[0].mxu0
        %v2652 = vadd.f32 %v2507, %v2651
        %v2653 = vpop.f32.mrb[0].mxu0
        %2654 = vmatprep.mubr.f32.mxu0 0.0
        %2655 = vmatmul.mubr.f32.gmra.mrb[0].mxu0 %v2224
        %v2656 = vpop.f32.mrb[0].mxu0
        %v2657 = vadd.f32 %v2512, %v2656
        %v2658 = vpop.f32.mrb[0].mxu0
        %2659 = vmatprep.mubr.f32.mxu0 0.0
        %2660 = vmatmul.mubr.f32.gmra.mrb[0].mxu0 %v2227
        %v2661 = vpop.f32.mrb[0].mxu0
        %v2662 = vadd.f32 %v2517, %v2661
        %v2663 = vpop.f32.mrb[0].mxu0
        %2664 = vmatprep.mubr.f32.mxu0 0.0
        %2665 = vmatmul.mubr.f32.gmra.mrb[0].mxu0 %v2230
        %v2666 = vpop.f32.mrb[0].mxu0
        %v2667 = vadd.f32 %v2522, %v2666
        %v2668 = vpop.f32.mrb[0].mxu0
        %2669 = vdwg.mxu0
        %v2670 = vadd.f32 %v2020, %v2592
        %v2671 = vadd.f32 %v2021, %v2597
        %v2672 = vadd.f32 %v2022, %v2602
        %v2673 = vadd.f32 %v2023, %v2607
        %v2674 = vadd.f32 %v2024, %v2612
        %v2675 = vadd.f32 %v2025, %v2617
        %v2676 = vadd.f32 %v2026, %v2622
        %v2677 = vadd.f32 %v2027, %v2627
        %v2678 = vadd.f32 %v2028, %v2632
        %v2679 = vadd.f32 %v2029, %v2637
        %v2680 = vadd.f32 %v2030, %v2642
        %v2681 = vadd.f32 %v2031, %v2647
        %v2682 = vadd.f32 %v2032, %v2652
        %v2683 = vadd.f32 %v2033, %v2657
        %v2684 = vadd.f32 %v2034, %v2662
        %v2685 = vadd.f32 %v2035, %v2667
        %v2686 = vld [vmem:[%s218 + $0x140] sm:$0xff]
        %v2687 = vld [vmem:[%s218 + $0x148] sm:$0xff]
        %v2688 = vld [vmem:[%s218 + $0x150] sm:$0xff]
        %v2689 = vld [vmem:[%s218 + $0x158] sm:$0xff]
        %v2690 = vld [vmem:[%s218 + $0x160] sm:$0xff]
        %v2691 = vld [vmem:[%s218 + $0x168] sm:$0xff]
        %v2692 = vld [vmem:[%s218 + $0x170] sm:$0xff]
        %v2693 = vld [vmem:[%s218 + $0x178] sm:$0xff]
        %v2694 = vld [vmem:[%s218 + $0x180] sm:$0xff]
        %v2695 = vld [vmem:[%s218 + $0x188] sm:$0xff]
        %v2696 = vld [vmem:[%s218 + $0x190] sm:$0xff]
        %v2697 = vld [vmem:[%s218 + $0x198] sm:$0xff]
        %v2698 = vld [vmem:[%s218 + $0x1a0] sm:$0xff]
        %v2699 = vld [vmem:[%s218 + $0x1a8] sm:$0xff]
        %v2700 = vld [vmem:[%s218 + $0x1b0] sm:$0xff]
        %v2701 = vld [vmem:[%s218 + $0x1b8] sm:$0xff]
        %v2702 = vld [vmem:[%s218 + $0x1c0] sm:$0xff]
        %v2703 = vld [vmem:[%s218 + $0x1c8] sm:$0xff]
        %v2704 = vld [vmem:[%s218 + $0x1d0] sm:$0xff]
        %v2705 = vld [vmem:[%s218 + $0x1d8] sm:$0xff]
        %v2706 = vld [vmem:[%s218 + $0x1e0] sm:$0xff]
        %v2707 = vld [vmem:[%s218 + $0x1e8] sm:$0xff]
        %v2708 = vld [vmem:[%s218 + $0x1f0] sm:$0xff]
        %v2709 = vld [vmem:[%s218 + $0x1f8] sm:$0xff]
        %v2710 = vld [vmem:[%s218 + $0x200] sm:$0xff]
        %v2711 = vld [vmem:[%s218 + $0x208] sm:$0xff]
        %v2712 = vld [vmem:[%s218 + $0x210] sm:$0xff]
        %v2713 = vld [vmem:[%s218 + $0x218] sm:$0xff]
        %v2714 = vld [vmem:[%s218 + $0x220] sm:$0xff]
        %v2715 = vld [vmem:[%s218 + $0x228] sm:$0xff]
        %v2716 = vld [vmem:[%s218 + $0x230] sm:$0xff]
        %v2717 = vld [vmem:[%s218 + $0x238] sm:$0xff]
        %v2718 = vld [vmem:[%s218 + $0x240] sm:$0xff]
        %v2719 = vld [vmem:[%s218 + $0x248] sm:$0xff]
        %v2720 = vld [vmem:[%s218 + $0x250] sm:$0xff]
        %v2721 = vld [vmem:[%s218 + $0x258] sm:$0xff]
        %v2722 = vld [vmem:[%s218 + $0x260] sm:$0xff]
        %v2723 = vld [vmem:[%s218 + $0x268] sm:$0xff]
        %v2724 = vld [vmem:[%s218 + $0x270] sm:$0xff]
        %v2725 = vld [vmem:[%s218 + $0x278] sm:$0xff]
        %v2726 = vld [vmem:[%s218 + $0x280] sm:$0xff]
        %v2727 = vld [vmem:[%s218 + $0x288] sm:$0xff]
        %v2728 = vld [vmem:[%s218 + $0x290] sm:$0xff]
        %v2729 = vld [vmem:[%s218 + $0x298] sm:$0xff]
        %v2730 = vld [vmem:[%s218 + $0x2a0] sm:$0xff]
        %v2731 = vld [vmem:[%s218 + $0x2a8] sm:$0xff]
        %v2732 = vld [vmem:[%s218 + $0x2b0] sm:$0xff]
        %v2733 = vld [vmem:[%s218 + $0x2b8] sm:$0xff]
        %v2734 = vld [vmem:[%s218 + $0x2c0] sm:$0xff]
        %v2735 = vld [vmem:[%s218 + $0x2c8] sm:$0xff]
        %v2736 = vld [vmem:[%s218 + $0x2d0] sm:$0xff]
        %v2737 = vld [vmem:[%s218 + $0x2d8] sm:$0xff]
        %v2738 = vld [vmem:[%s218 + $0x2e0] sm:$0xff]
        %v2739 = vld [vmem:[%s218 + $0x2e8] sm:$0xff]
        %v2740 = vld [vmem:[%s218 + $0x2f0] sm:$0xff]
        %v2741 = vld [vmem:[%s218 + $0x2f8] sm:$0xff]
        %v2742 = vld [vmem:[%s218 + $0x300] sm:$0xff]
        %v2743 = vld [vmem:[%s218 + $0x308] sm:$0xff]
        %v2744 = vld [vmem:[%s218 + $0x310] sm:$0xff]
        %v2745 = vld [vmem:[%s218 + $0x318] sm:$0xff]
        %v2746 = vld [vmem:[%s218 + $0x320] sm:$0xff]
        %v2747 = vld [vmem:[%s218 + $0x328] sm:$0xff]
        %v2748 = vld [vmem:[%s218 + $0x330] sm:$0xff]
        %v2749 = vld [vmem:[%s218 + $0x338] sm:$0xff]
        %v2750 = vld [vmem:[%s218 + $0x340] sm:$0xff]
        %v2751 = vld [vmem:[%s218 + $0x348] sm:$0xff]
        %v2752 = vld [vmem:[%s218 + $0x350] sm:$0xff]
        %v2753 = vld [vmem:[%s218 + $0x358] sm:$0xff]
        %v2754 = vld [vmem:[%s218 + $0x360] sm:$0xff]
        %v2755 = vld [vmem:[%s218 + $0x368] sm:$0xff]
        %v2756 = vld [vmem:[%s218 + $0x370] sm:$0xff]
        %v2757 = vld [vmem:[%s218 + $0x378] sm:$0xff]
        %v2758 = vld [vmem:[%s218 + $0x380] sm:$0xff]
        %v2759 = vld [vmem:[%s218 + $0x388] sm:$0xff]
        %v2760 = vld [vmem:[%s218 + $0x390] sm:$0xff]
        %v2761 = vld [vmem:[%s218 + $0x398] sm:$0xff]
        %v2762 = vld [vmem:[%s218 + $0x3a0] sm:$0xff]
        %v2763 = vld [vmem:[%s218 + $0x3a8] sm:$0xff]
        %v2764 = vld [vmem:[%s218 + $0x3b0] sm:$0xff]
        %v2765 = vld [vmem:[%s218 + $0x3b8] sm:$0xff]
        %s2766 = scalar_lea.vmem %s1, 2144
        %v2767 = vld [vmem:[%s2766] sm:$0xff]
        %v2768 = vld [vmem:[%s2766 + $0x8] sm:$0xff]
        %v2769 = vld [vmem:[%s2766 + $0x10] sm:$0xff]
        %v2770 = vld [vmem:[%s2766 + $0x18] sm:$0xff]
        %v2771 = vld [vmem:[%s2766 + $0x20] sm:$0xff]
        %v2772 = vld [vmem:[%s2766 + $0x28] sm:$0xff]
        %v2773 = vld [vmem:[%s2766 + $0x30] sm:$0xff]
        %v2774 = vld [vmem:[%s2766 + $0x38] sm:$0xff]
        %v2775 = vld [vmem:[%s2766 + $0x40] sm:$0xff]
        %v2776 = vld [vmem:[%s2766 + $0x48] sm:$0xff]
        %v2777 = vld [vmem:[%s2766 + $0x50] sm:$0xff]
        %v2778 = vld [vmem:[%s2766 + $0x58] sm:$0xff]
        %v2779 = vld [vmem:[%s2766 + $0x60] sm:$0xff]
        %v2780 = vld [vmem:[%s2766 + $0x68] sm:$0xff]
        %v2781 = vld [vmem:[%s2766 + $0x70] sm:$0xff]
        %v2782 = vld [vmem:[%s2766 + $0x78] sm:$0xff]
        %v2783 = vld [vmem:[%s2766 + $0x80] sm:$0xff]
        %v2784 = vld [vmem:[%s2766 + $0x88] sm:$0xff]
        %v2785 = vld [vmem:[%s2766 + $0x90] sm:$0xff]
        %v2786 = vld [vmem:[%s2766 + $0x98] sm:$0xff]
        %v2787 = vld [vmem:[%s2766 + $0xa0] sm:$0xff]
        %v2788 = vld [vmem:[%s2766 + $0xa8] sm:$0xff]
        %v2789 = vld [vmem:[%s2766 + $0xb0] sm:$0xff]
        %v2790 = vld [vmem:[%s2766 + $0xb8] sm:$0xff]
        %v2791 = vld [vmem:[%s2766 + $0xc0] sm:$0xff]
        %v2792 = vld [vmem:[%s2766 + $0xc8] sm:$0xff]
        %v2793 = vld [vmem:[%s2766 + $0xd0] sm:$0xff]
        %v2794 = vld [vmem:[%s2766 + $0xd8] sm:$0xff]
        %v2795 = vld [vmem:[%s2766 + $0xe0] sm:$0xff]
        %v2796 = vld [vmem:[%s2766 + $0xe8] sm:$0xff]
        %v2797 = vld [vmem:[%s2766 + $0xf0] sm:$0xff]
        %v2798 = vld [vmem:[%s2766 + $0xf8] sm:$0xff]
        %v2799 = vld [vmem:[%s2766 + $0x100] sm:$0xff]
        %v2800 = vld [vmem:[%s2766 + $0x108] sm:$0xff]
        %v2801 = vld [vmem:[%s2766 + $0x110] sm:$0xff]
        %v2802 = vld [vmem:[%s2766 + $0x118] sm:$0xff]
        %v2803 = vld [vmem:[%s2766 + $0x120] sm:$0xff]
        %v2804 = vld [vmem:[%s2766 + $0x128] sm:$0xff]
        %v2805 = vld [vmem:[%s2766 + $0x130] sm:$0xff]
        %v2806 = vld [vmem:[%s2766 + $0x138] sm:$0xff]
        %v2807 = vld [vmem:[%s2766 + $0x140] sm:$0xff]
        %v2808 = vld [vmem:[%s2766 + $0x148] sm:$0xff]
        %v2809 = vld [vmem:[%s2766 + $0x150] sm:$0xff]
        %v2810 = vld [vmem:[%s2766 + $0x158] sm:$0xff]
        %v2811 = vld [vmem:[%s2766 + $0x160] sm:$0xff]
        %v2812 = vld [vmem:[%s2766 + $0x168] sm:$0xff]
        %v2813 = vld [vmem:[%s2766 + $0x170] sm:$0xff]
        %v2814 = vld [vmem:[%s2766 + $0x178] sm:$0xff]
        %v2815 = vld [vmem:[%s2766 + $0x180] sm:$0xff]
        %v2816 = vld [vmem:[%s2766 + $0x188] sm:$0xff]
        %v2817 = vld [vmem:[%s2766 + $0x190] sm:$0xff]
        %v2818 = vld [vmem:[%s2766 + $0x198] sm:$0xff]
        %v2819 = vld [vmem:[%s2766 + $0x1a0] sm:$0xff]
        %v2820 = vld [vmem:[%s2766 + $0x1a8] sm:$0xff]
        %v2821 = vld [vmem:[%s2766 + $0x1b0] sm:$0xff]
        %v2822 = vld [vmem:[%s2766 + $0x1b8] sm:$0xff]
        %v2823 = vld [vmem:[%s2766 + $0x1c0] sm:$0xff]
        %v2824 = vld [vmem:[%s2766 + $0x1c8] sm:$0xff]
        %v2825 = vld [vmem:[%s2766 + $0x1d0] sm:$0xff]
        %v2826 = vld [vmem:[%s2766 + $0x1d8] sm:$0xff]
        %v2827 = vld [vmem:[%s2766 + $0x1e0] sm:$0xff]
        %v2828 = vld [vmem:[%s2766 + $0x1e8] sm:$0xff]
        %v2829 = vld [vmem:[%s2766 + $0x1f0] sm:$0xff]
        %v2830 = vld [vmem:[%s2766 + $0x1f8] sm:$0xff]
        %v2831 = vld [vmem:[%s2766 + $0x200] sm:$0xff]
        %v2832 = vld [vmem:[%s2766 + $0x208] sm:$0xff]
        %v2833 = vld [vmem:[%s2766 + $0x210] sm:$0xf]
        %v2835 = vsel %vm454, %v2690, 0
        %v2838 = vsel %vm454, %v2695, 0
        %v2841 = vsel %vm454, %v2700, 0
        %v2844 = vsel %vm454, %v2705, 0
        %v2847 = vsel %vm454, %v2710, 0
        %v2850 = vsel %vm454, %v2715, 0
        %v2853 = vsel %vm454, %v2720, 0
        %v2856 = vsel %vm454, %v2725, 0
        %v2859 = vsel %vm454, %v2730, 0
        %v2862 = vsel %vm454, %v2735, 0
        %v2865 = vsel %vm454, %v2740, 0
        %v2868 = vsel %vm454, %v2745, 0
        %v2871 = vsel %vm454, %v2750, 0
        %v2874 = vsel %vm454, %v2755, 0
        %v2877 = vsel %vm454, %v2760, 0
        %v2880 = vsel %vm454, %v2765, 0
        %v2883 = vsel %vm503, %v2833, 0
        %2885 = vmatprep.subr.mxu0 0.0
        %2886 = vmatpush1.msra.mxu0 %v2767
        %2887 = vmatprep.subr.mxu0 0.0
        %2888 = vmatpush1.msra.mxu0 %v2768
        %2889 = vmatprep.subr.mxu0 0.0
        %2890 = vmatpush1.msra.mxu0 %v2769
        %2891 = vmatprep.subr.mxu0 0.0
        %2892 = vmatpush1.msra.mxu0 %v2770
        %2893 = vmatprep.subr.mxu0 0.0
        %2894 = vmatpush1.msra.mxu0 %v2771
        %2895 = vmatprep.subr.mxu0 0.0
        %2896 = vmatpush1.msra.mxu0 %v2772
        %2897 = vmatprep.subr.mxu0 0.0
        %2898 = vmatpush1.msra.mxu0 %v2773
        %2899 = vmatprep.subr.mxu0 0.0
        %2900 = vmatpush1.msra.mxu0 %v2774
        %2901 = vmatprep.subr.mxu0 0.0
        %2902 = vmatpush1.msra.mxu0 %v2775
        %2903 = vmatprep.subr.mxu0 0.0
        %2904 = vmatpush1.msra.mxu0 %v2776
        %2905 = vmatprep.subr.mxu0 0.0
        %2906 = vmatpush1.msra.mxu0 %v2777
        %2907 = vmatprep.subr.mxu0 0.0
        %2908 = vmatpush1.msra.mxu0 %v2778
        %2909 = vmatprep.subr.mxu0 0.0
        %2910 = vmatpush1.msra.mxu0 %v2779
        %2911 = vmatprep.subr.mxu0 0.0
        %2912 = vmatpush1.msra.mxu0 %v2780
        %2913 = vmatprep.subr.mxu0 0.0
        %2914 = vmatpush1.msra.mxu0 %v2781
        %2915 = vmatprep.subr.mxu0 0.0
        %2916 = vmatpush1.msra.mxu0 %v2782
        %2917 = vmatprep.subr.mxu0 0.0
        %2918 = vmatpush1.msra.mxu0 %v2783
        %2919 = vmatprep.subr.mxu0 0.0
        %2920 = vmatpush1.msra.mxu0 %v2784
        %2921 = vmatprep.subr.mxu0 0.0
        %2922 = vmatpush1.msra.mxu0 %v2785
        %2923 = vmatprep.subr.mxu0 0.0
        %2924 = vmatpush1.msra.mxu0 %v2786
        %2925 = vmatprep.subr.mxu0 0.0
        %2926 = vmatpush1.msra.mxu0 %v2787
        %2927 = vmatprep.subr.mxu0 0.0
        %2928 = vmatpush1.msra.mxu0 %v2788
        %2929 = vmatprep.subr.mxu0 0.0
        %2930 = vmatpush1.msra.mxu0 %v2789
        %2931 = vmatprep.subr.mxu0 0.0
        %2932 = vmatpush1.msra.mxu0 %v2790
        %2933 = vmatprep.subr.mxu0 0.0
        %2934 = vmatpush1.msra.mxu0 %v2791
        %2935 = vmatprep.subr.mxu0 0.0
        %2936 = vmatpush1.msra.mxu0 %v2792
        %2937 = vmatprep.subr.mxu0 0.0
        %2938 = vmatpush1.msra.mxu0 %v2793
        %2939 = vmatprep.subr.mxu0 0.0
        %2940 = vmatpush1.msra.mxu0 %v2794
        %2941 = vmatprep.subr.mxu0 0.0
        %2942 = vmatpush1.msra.mxu0 %v2795
        %2943 = vmatprep.subr.mxu0 0.0
        %2944 = vmatpush1.msra.mxu0 %v2796
        %2945 = vmatprep.subr.mxu0 0.0
        %2946 = vmatpush1.msra.mxu0 %v2797
        %2947 = vmatprep.subr.mxu0 0.0
        %2948 = vmatpush1.msra.mxu0 %v2798
        %2949 = vmatprep.mubr.f32.mxu0 %v2687
        %2950 = vmatmul.mubr.f32.gmra.mrb[0].mxu0 %v2686
        %v2951 = vpop.f32.mrb[0].mxu0
        %v2952 = vadd.f32 0.0, %v2951
        %v2953 = vpop.f32.mrb[0].mxu0
        %2954 = vmatprep.mubr.f32.mxu0 %v2692
        %2955 = vmatmul.mubr.f32.gmra.mrb[0].mxu0 %v2691
        %v2956 = vpop.f32.mrb[0].mxu0
        %v2957 = vadd.f32 0.0, %v2956
        %v2958 = vpop.f32.mrb[0].mxu0
        %2959 = vmatprep.mubr.f32.mxu0 %v2697
        %2960 = vmatmul.mubr.f32.gmra.mrb[0].mxu0 %v2696
        %v2961 = vpop.f32.mrb[0].mxu0
        %v2962 = vadd.f32 0.0, %v2961
        %v2963 = vpop.f32.mrb[0].mxu0
        %2964 = vmatprep.mubr.f32.mxu0 %v2702
        %2965 = vmatmul.mubr.f32.gmra.mrb[0].mxu0 %v2701
        %v2966 = vpop.f32.mrb[0].mxu0
        %v2967 = vadd.f32 0.0, %v2966
        %v2968 = vpop.f32.mrb[0].mxu0
        %2969 = vmatprep.mubr.f32.mxu0 %v2707
        %2970 = vmatmul.mubr.f32.gmra.mrb[0].mxu0 %v2706
        %v2971 = vpop.f32.mrb[0].mxu0
        %v2972 = vadd.f32 0.0, %v2971
        %v2973 = vpop.f32.mrb[0].mxu0
        %2974 = vmatprep.mubr.f32.mxu0 %v2712
        %2975 = vmatmul.mubr.f32.gmra.mrb[0].mxu0 %v2711
        %v2976 = vpop.f32.mrb[0].mxu0
        %v2977 = vadd.f32 0.0, %v2976
        %v2978 = vpop.f32.mrb[0].mxu0
        %2979 = vmatprep.mubr.f32.mxu0 %v2717
        %2980 = vmatmul.mubr.f32.gmra.mrb[0].mxu0 %v2716
        %v2981 = vpop.f32.mrb[0].mxu0
        %v2982 = vadd.f32 0.0, %v2981
        %v2983 = vpop.f32.mrb[0].mxu0
        %2984 = vmatprep.mubr.f32.mxu0 %v2722
        %2985 = vmatmul.mubr.f32.gmra.mrb[0].mxu0 %v2721
        %v2986 = vpop.f32.mrb[0].mxu0
        %v2987 = vadd.f32 0.0, %v2986
        %v2988 = vpop.f32.mrb[0].mxu0
        %2989 = vmatprep.mubr.f32.mxu0 %v2727
        %2990 = vmatmul.mubr.f32.gmra.mrb[0].mxu0 %v2726
        %v2991 = vpop.f32.mrb[0].mxu0
        %v2992 = vadd.f32 0.0, %v2991
        %v2993 = vpop.f32.mrb[0].mxu0
        %2994 = vmatprep.mubr.f32.mxu0 %v2732
        %2995 = vmatmul.mubr.f32.gmra.mrb[0].mxu0 %v2731
        %v2996 = vpop.f32.mrb[0].mxu0
        %v2997 = vadd.f32 0.0, %v2996
        %v2998 = vpop.f32.mrb[0].mxu0
        %2999 = vmatprep.mubr.f32.mxu0 %v2737
        %3000 = vmatmul.mubr.f32.gmra.mrb[0].mxu0 %v2736
        %v3001 = vpop.f32.mrb[0].mxu0
        %v3002 = vadd.f32 0.0, %v3001
        %v3003 = vpop.f32.mrb[0].mxu0
        %3004 = vmatprep.mubr.f32.mxu0 %v2742
        %3005 = vmatmul.mubr.f32.gmra.mrb[0].mxu0 %v2741
        %v3006 = vpop.f32.mrb[0].mxu0
        %v3007 = vadd.f32 0.0, %v3006
        %v3008 = vpop.f32.mrb[0].mxu0
        %3009 = vmatprep.mubr.f32.mxu0 %v2747
        %3010 = vmatmul.mubr.f32.gmra.mrb[0].mxu0 %v2746
        %v3011 = vpop.f32.mrb[0].mxu0
        %v3012 = vadd.f32 0.0, %v3011
        %v3013 = vpop.f32.mrb[0].mxu0
        %3014 = vmatprep.mubr.f32.mxu0 %v2752
        %3015 = vmatmul.mubr.f32.gmra.mrb[0].mxu0 %v2751
        %v3016 = vpop.f32.mrb[0].mxu0
        %v3017 = vadd.f32 0.0, %v3016
        %v3018 = vpop.f32.mrb[0].mxu0
        %3019 = vmatprep.mubr.f32.mxu0 %v2757
        %3020 = vmatmul.mubr.f32.gmra.mrb[0].mxu0 %v2756
        %v3021 = vpop.f32.mrb[0].mxu0
        %v3022 = vadd.f32 0.0, %v3021
        %v3023 = vpop.f32.mrb[0].mxu0
        %3024 = vmatprep.mubr.f32.mxu0 %v2762
        %3025 = vmatmul.mubr.f32.gmra.mrb[0].mxu0 %v2761
        %v3026 = vpop.f32.mrb[0].mxu0
        %v3027 = vadd.f32 0.0, %v3026
        %v3028 = vpop.f32.mrb[0].mxu0
        %3029 = vdwg.mxu0
        %3030 = vmatprep.subr.mxu0 0.0
        %3031 = vmatpush1.msra.mxu0 %v2799
        %3032 = vmatprep.subr.mxu0 0.0
        %3033 = vmatpush1.msra.mxu0 %v2800
        %3034 = vmatprep.subr.mxu0 0.0
        %3035 = vmatpush1.msra.mxu0 %v2801
        %3036 = vmatprep.subr.mxu0 0.0
        %3037 = vmatpush1.msra.mxu0 %v2802
        %3038 = vmatprep.subr.mxu0 0.0
        %3039 = vmatpush1.msra.mxu0 %v2803
        %3040 = vmatprep.subr.mxu0 0.0
        %3041 = vmatpush1.msra.mxu0 %v2804
        %3042 = vmatprep.subr.mxu0 0.0
        %3043 = vmatpush1.msra.mxu0 %v2805
        %3044 = vmatprep.subr.mxu0 0.0
        %3045 = vmatpush1.msra.mxu0 %v2806
        %3046 = vmatprep.subr.mxu0 0.0
        %3047 = vmatpush1.msra.mxu0 %v2807
        %3048 = vmatprep.subr.mxu0 0.0
        %3049 = vmatpush1.msra.mxu0 %v2808
        %3050 = vmatprep.subr.mxu0 0.0
        %3051 = vmatpush1.msra.mxu0 %v2809
        %3052 = vmatprep.subr.mxu0 0.0
        %3053 = vmatpush1.msra.mxu0 %v2810
        %3054 = vmatprep.subr.mxu0 0.0
        %3055 = vmatpush1.msra.mxu0 %v2811
        %3056 = vmatprep.subr.mxu0 0.0
        %3057 = vmatpush1.msra.mxu0 %v2812
        %3058 = vmatprep.subr.mxu0 0.0
        %3059 = vmatpush1.msra.mxu0 %v2813
        %3060 = vmatprep.subr.mxu0 0.0
        %3061 = vmatpush1.msra.mxu0 %v2814
        %3062 = vmatprep.subr.mxu0 0.0
        %3063 = vmatpush1.msra.mxu0 %v2815
        %3064 = vmatprep.subr.mxu0 0.0
        %3065 = vmatpush1.msra.mxu0 %v2816
        %3066 = vmatprep.subr.mxu0 0.0
        %3067 = vmatpush1.msra.mxu0 %v2817
        %3068 = vmatprep.subr.mxu0 0.0
        %3069 = vmatpush1.msra.mxu0 %v2818
        %3070 = vmatprep.subr.mxu0 0.0
        %3071 = vmatpush1.msra.mxu0 %v2819
        %3072 = vmatprep.subr.mxu0 0.0
        %3073 = vmatpush1.msra.mxu0 %v2820
        %3074 = vmatprep.subr.mxu0 0.0
        %3075 = vmatpush1.msra.mxu0 %v2821
        %3076 = vmatprep.subr.mxu0 0.0
        %3077 = vmatpush1.msra.mxu0 %v2822
        %3078 = vmatprep.subr.mxu0 0.0
        %3079 = vmatpush1.msra.mxu0 %v2823
        %3080 = vmatprep.subr.mxu0 0.0
        %3081 = vmatpush1.msra.mxu0 %v2824
        %3082 = vmatprep.subr.mxu0 0.0
        %3083 = vmatpush1.msra.mxu0 %v2825
        %3084 = vmatprep.subr.mxu0 0.0
        %3085 = vmatpush1.msra.mxu0 %v2826
        %3086 = vmatprep.subr.mxu0 0.0
        %3087 = vmatpush1.msra.mxu0 %v2827
        %3088 = vmatprep.subr.mxu0 0.0
        %3089 = vmatpush1.msra.mxu0 %v2828
        %3090 = vmatprep.subr.mxu0 0.0
        %3091 = vmatpush1.msra.mxu0 %v2829
        %3092 = vmatprep.subr.mxu0 0.0
        %3093 = vmatpush1.msra.mxu0 %v2830
        %3094 = vmatprep.mubr.f32.mxu0 %v2689
        %3095 = vmatmul.mubr.f32.gmra.mrb[0].mxu0 %v2688
        %v3096 = vpop.f32.mrb[0].mxu0
        %v3097 = vadd.f32 %v2952, %v3096
        %v3098 = vpop.f32.mrb[0].mxu0
        %3099 = vmatprep.mubr.f32.mxu0 %v2694
        %3100 = vmatmul.mubr.f32.gmra.mrb[0].mxu0 %v2693
        %v3101 = vpop.f32.mrb[0].mxu0
        %v3102 = vadd.f32 %v2957, %v3101
        %v3103 = vpop.f32.mrb[0].mxu0
        %3104 = vmatprep.mubr.f32.mxu0 %v2699
        %3105 = vmatmul.mubr.f32.gmra.mrb[0].mxu0 %v2698
        %v3106 = vpop.f32.mrb[0].mxu0
        %v3107 = vadd.f32 %v2962, %v3106
        %v3108 = vpop.f32.mrb[0].mxu0
        %3109 = vmatprep.mubr.f32.mxu0 %v2704
        %3110 = vmatmul.mubr.f32.gmra.mrb[0].mxu0 %v2703
        %v3111 = vpop.f32.mrb[0].mxu0
        %v3112 = vadd.f32 %v2967, %v3111
        %v3113 = vpop.f32.mrb[0].mxu0
        %3114 = vmatprep.mubr.f32.mxu0 %v2709
        %3115 = vmatmul.mubr.f32.gmra.mrb[0].mxu0 %v2708
        %v3116 = vpop.f32.mrb[0].mxu0
        %v3117 = vadd.f32 %v2972, %v3116
        %v3118 = vpop.f32.mrb[0].mxu0
        %3119 = vmatprep.mubr.f32.mxu0 %v2714
        %3120 = vmatmul.mubr.f32.gmra.mrb[0].mxu0 %v2713
        %v3121 = vpop.f32.mrb[0].mxu0
        %v3122 = vadd.f32 %v2977, %v3121
        %v3123 = vpop.f32.mrb[0].mxu0
        %3124 = vmatprep.mubr.f32.mxu0 %v2719
        %3125 = vmatmul.mubr.f32.gmra.mrb[0].mxu0 %v2718
        %v3126 = vpop.f32.mrb[0].mxu0
        %v3127 = vadd.f32 %v2982, %v3126
        %v3128 = vpop.f32.mrb[0].mxu0
        %3129 = vmatprep.mubr.f32.mxu0 %v2724
        %3130 = vmatmul.mubr.f32.gmra.mrb[0].mxu0 %v2723
        %v3131 = vpop.f32.mrb[0].mxu0
        %v3132 = vadd.f32 %v2987, %v3131
        %v3133 = vpop.f32.mrb[0].mxu0
        %3134 = vmatprep.mubr.f32.mxu0 %v2729
        %3135 = vmatmul.mubr.f32.gmra.mrb[0].mxu0 %v2728
        %v3136 = vpop.f32.mrb[0].mxu0
        %v3137 = vadd.f32 %v2992, %v3136
        %v3138 = vpop.f32.mrb[0].mxu0
        %3139 = vmatprep.mubr.f32.mxu0 %v2734
        %3140 = vmatmul.mubr.f32.gmra.mrb[0].mxu0 %v2733
        %v3141 = vpop.f32.mrb[0].mxu0
        %v3142 = vadd.f32 %v2997, %v3141
        %v3143 = vpop.f32.mrb[0].mxu0
        %3144 = vmatprep.mubr.f32.mxu0 %v2739
        %3145 = vmatmul.mubr.f32.gmra.mrb[0].mxu0 %v2738
        %v3146 = vpop.f32.mrb[0].mxu0
        %v3147 = vadd.f32 %v3002, %v3146
        %v3148 = vpop.f32.mrb[0].mxu0
        %3149 = vmatprep.mubr.f32.mxu0 %v2744
        %3150 = vmatmul.mubr.f32.gmra.mrb[0].mxu0 %v2743
        %v3151 = vpop.f32.mrb[0].mxu0
        %v3152 = vadd.f32 %v3007, %v3151
        %v3153 = vpop.f32.mrb[0].mxu0
        %3154 = vmatprep.mubr.f32.mxu0 %v2749
        %3155 = vmatmul.mubr.f32.gmra.mrb[0].mxu0 %v2748
        %v3156 = vpop.f32.mrb[0].mxu0
        %v3157 = vadd.f32 %v3012, %v3156
        %v3158 = vpop.f32.mrb[0].mxu0
        %3159 = vmatprep.mubr.f32.mxu0 %v2754
        %3160 = vmatmul.mubr.f32.gmra.mrb[0].mxu0 %v2753
        %v3161 = vpop.f32.mrb[0].mxu0
        %v3162 = vadd.f32 %v3017, %v3161
        %v3163 = vpop.f32.mrb[0].mxu0
        %3164 = vmatprep.mubr.f32.mxu0 %v2759
        %3165 = vmatmul.mubr.f32.gmra.mrb[0].mxu0 %v2758
        %v3166 = vpop.f32.mrb[0].mxu0
        %v3167 = vadd.f32 %v3022, %v3166
        %v3168 = vpop.f32.mrb[0].mxu0
        %3169 = vmatprep.mubr.f32.mxu0 %v2764
        %3170 = vmatmul.mubr.f32.gmra.mrb[0].mxu0 %v2763
        %v3171 = vpop.f32.mrb[0].mxu0
        %v3172 = vadd.f32 %v3027, %v3171
        %v3173 = vpop.f32.mrb[0].mxu0
        %3174 = vdwg.mxu0
        %3175 = vmatprep.subr.mxu0 0.0
        %3176 = vmatpush1.msra.mxu0 %v2831
        %3177 = vmatprep.subr.mxu0 0.0
        %3178 = vmatpush1.msra.mxu0 %v2832
        %3179 = vmatprep.subr.mxu0 0.0
        %3180 = vmatpush1.msra.mxu0 %v2883
        %3181 = vmatprep.subr.mxu0 0.0
        %3182 = vmatpush1.msra.mxu0 0.0
        %3183 = vmatprep.subr.mxu0 0.0
        %3184 = vmatpush1.msra.mxu0 0.0
        %3185 = vmatprep.subr.mxu0 0.0
        %3186 = vmatpush1.msra.mxu0 0.0
        %3187 = vmatprep.subr.mxu0 0.0
        %3188 = vmatpush1.msra.mxu0 0.0
        %3189 = vmatprep.subr.mxu0 0.0
        %3190 = vmatpush1.msra.mxu0 0.0
        %3191 = vmatprep.subr.mxu0 0.0
        %3192 = vmatpush1.msra.mxu0 0.0
        %3193 = vmatprep.subr.mxu0 0.0
        %3194 = vmatpush1.msra.mxu0 0.0
        %3195 = vmatprep.subr.mxu0 0.0
        %3196 = vmatpush1.msra.mxu0 0.0
        %3197 = vmatprep.subr.mxu0 0.0
        %3198 = vmatpush1.msra.mxu0 0.0
        %3199 = vmatprep.subr.mxu0 0.0
        %3200 = vmatpush1.msra.mxu0 0.0
        %3201 = vmatprep.subr.mxu0 0.0
        %3202 = vmatpush1.msra.mxu0 0.0
        %3203 = vmatprep.subr.mxu0 0.0
        %3204 = vmatpush1.msra.mxu0 0.0
        %3205 = vmatprep.subr.mxu0 0.0
        %3206 = vmatpush1.msra.mxu0 0.0
        %3207 = vmatprep.subr.mxu0 0.0
        %3208 = vmatpush1.msra.mxu0 0.0
        %3209 = vmatprep.subr.mxu0 0.0
        %3210 = vmatpush1.msra.mxu0 0.0
        %3211 = vmatprep.subr.mxu0 0.0
        %3212 = vmatpush1.msra.mxu0 0.0
        %3213 = vmatprep.subr.mxu0 0.0
        %3214 = vmatpush1.msra.mxu0 0.0
        %3215 = vmatprep.subr.mxu0 0.0
        %3216 = vmatpush1.msra.mxu0 0.0
        %3217 = vmatprep.subr.mxu0 0.0
        %3218 = vmatpush1.msra.mxu0 0.0
        %3219 = vmatprep.subr.mxu0 0.0
        %3220 = vmatpush1.msra.mxu0 0.0
        %3221 = vmatprep.subr.mxu0 0.0
        %3222 = vmatpush1.msra.mxu0 0.0
        %3223 = vmatprep.subr.mxu0 0.0
        %3224 = vmatpush1.msra.mxu0 0.0
        %3225 = vmatprep.subr.mxu0 0.0
        %3226 = vmatpush1.msra.mxu0 0.0
        %3227 = vmatprep.subr.mxu0 0.0
        %3228 = vmatpush1.msra.mxu0 0.0
        %3229 = vmatprep.subr.mxu0 0.0
        %3230 = vmatpush1.msra.mxu0 0.0
        %3231 = vmatprep.subr.mxu0 0.0
        %3232 = vmatpush1.msra.mxu0 0.0
        %3233 = vmatprep.subr.mxu0 0.0
        %3234 = vmatpush1.msra.mxu0 0.0
        %3235 = vmatprep.subr.mxu0 0.0
        %3236 = vmatpush1.msra.mxu0 0.0
        %3237 = vmatprep.subr.mxu0 0.0
        %3238 = vmatpush1.msra.mxu0 0.0
        %3239 = vmatprep.mubr.f32.mxu0 0.0
        %3240 = vmatmul.mubr.f32.gmra.mrb[0].mxu0 %v2835
        %v3241 = vpop.f32.mrb[0].mxu0
        %v3242 = vadd.f32 %v3097, %v3241
        %v3243 = vpop.f32.mrb[0].mxu0
        %3244 = vmatprep.mubr.f32.mxu0 0.0
        %3245 = vmatmul.mubr.f32.gmra.mrb[0].mxu0 %v2838
        %v3246 = vpop.f32.mrb[0].mxu0
        %v3247 = vadd.f32 %v3102, %v3246
        %v3248 = vpop.f32.mrb[0].mxu0
        %3249 = vmatprep.mubr.f32.mxu0 0.0
        %3250 = vmatmul.mubr.f32.gmra.mrb[0].mxu0 %v2841
        %v3251 = vpop.f32.mrb[0].mxu0
        %v3252 = vadd.f32 %v3107, %v3251
        %v3253 = vpop.f32.mrb[0].mxu0
        %3254 = vmatprep.mubr.f32.mxu0 0.0
        %3255 = vmatmul.mubr.f32.gmra.mrb[0].mxu0 %v2844
        %v3256 = vpop.f32.mrb[0].mxu0
        %v3257 = vadd.f32 %v3112, %v3256
        %v3258 = vpop.f32.mrb[0].mxu0
        %3259 = vmatprep.mubr.f32.mxu0 0.0
        %3260 = vmatmul.mubr.f32.gmra.mrb[0].mxu0 %v2847
        %v3261 = vpop.f32.mrb[0].mxu0
        %v3262 = vadd.f32 %v3117, %v3261
        %v3263 = vpop.f32.mrb[0].mxu0
        %3264 = vmatprep.mubr.f32.mxu0 0.0
        %3265 = vmatmul.mubr.f32.gmra.mrb[0].mxu0 %v2850
        %v3266 = vpop.f32.mrb[0].mxu0
        %v3267 = vadd.f32 %v3122, %v3266
        %v3268 = vpop.f32.mrb[0].mxu0
        %3269 = vmatprep.mubr.f32.mxu0 0.0
        %3270 = vmatmul.mubr.f32.gmra.mrb[0].mxu0 %v2853
        %v3271 = vpop.f32.mrb[0].mxu0
        %v3272 = vadd.f32 %v3127, %v3271
        %v3273 = vpop.f32.mrb[0].mxu0
        %3274 = vmatprep.mubr.f32.mxu0 0.0
        %3275 = vmatmul.mubr.f32.gmra.mrb[0].mxu0 %v2856
        %v3276 = vpop.f32.mrb[0].mxu0
        %v3277 = vadd.f32 %v3132, %v3276
        %v3278 = vpop.f32.mrb[0].mxu0
        %3279 = vmatprep.mubr.f32.mxu0 0.0
        %3280 = vmatmul.mubr.f32.gmra.mrb[0].mxu0 %v2859
        %v3281 = vpop.f32.mrb[0].mxu0
        %v3282 = vadd.f32 %v3137, %v3281
        %v3283 = vpop.f32.mrb[0].mxu0
        %3284 = vmatprep.mubr.f32.mxu0 0.0
        %3285 = vmatmul.mubr.f32.gmra.mrb[0].mxu0 %v2862
        %v3286 = vpop.f32.mrb[0].mxu0
        %v3287 = vadd.f32 %v3142, %v3286
        %v3288 = vpop.f32.mrb[0].mxu0
        %3289 = vmatprep.mubr.f32.mxu0 0.0
        %3290 = vmatmul.mubr.f32.gmra.mrb[0].mxu0 %v2865
        %v3291 = vpop.f32.mrb[0].mxu0
        %v3292 = vadd.f32 %v3147, %v3291
        %v3293 = vpop.f32.mrb[0].mxu0
        %3294 = vmatprep.mubr.f32.mxu0 0.0
        %3295 = vmatmul.mubr.f32.gmra.mrb[0].mxu0 %v2868
        %v3296 = vpop.f32.mrb[0].mxu0
        %v3297 = vadd.f32 %v3152, %v3296
        %v3298 = vpop.f32.mrb[0].mxu0
        %3299 = vmatprep.mubr.f32.mxu0 0.0
        %3300 = vmatmul.mubr.f32.gmra.mrb[0].mxu0 %v2871
        %v3301 = vpop.f32.mrb[0].mxu0
        %v3302 = vadd.f32 %v3157, %v3301
        %v3303 = vpop.f32.mrb[0].mxu0
        %3304 = vmatprep.mubr.f32.mxu0 0.0
        %3305 = vmatmul.mubr.f32.gmra.mrb[0].mxu0 %v2874
        %v3306 = vpop.f32.mrb[0].mxu0
        %v3307 = vadd.f32 %v3162, %v3306
        %v3308 = vpop.f32.mrb[0].mxu0
        %3309 = vmatprep.mubr.f32.mxu0 0.0
        %3310 = vmatmul.mubr.f32.gmra.mrb[0].mxu0 %v2877
        %v3311 = vpop.f32.mrb[0].mxu0
        %v3312 = vadd.f32 %v3167, %v3311
        %v3313 = vpop.f32.mrb[0].mxu0
        %3314 = vmatprep.mubr.f32.mxu0 0.0
        %3315 = vmatmul.mubr.f32.gmra.mrb[0].mxu0 %v2880
        %v3316 = vpop.f32.mrb[0].mxu0
        %v3317 = vadd.f32 %v3172, %v3316
        %v3318 = vpop.f32.mrb[0].mxu0
        %3319 = vdwg.mxu0
        %v3320 = vadd.f32 %v2670, %v3242
        %v3321 = vadd.f32 %v2671, %v3247
        %v3322 = vadd.f32 %v2672, %v3252
        %v3323 = vadd.f32 %v2673, %v3257
        %v3324 = vadd.f32 %v2674, %v3262
        %v3325 = vadd.f32 %v2675, %v3267
        %v3326 = vadd.f32 %v2676, %v3272
        %v3327 = vadd.f32 %v2677, %v3277
        %v3328 = vadd.f32 %v2678, %v3282
        %v3329 = vadd.f32 %v2679, %v3287
        %v3330 = vadd.f32 %v2680, %v3292
        %v3331 = vadd.f32 %v2681, %v3297
        %v3332 = vadd.f32 %v2682, %v3302
        %v3333 = vadd.f32 %v2683, %v3307
        %v3334 = vadd.f32 %v2684, %v3312
        %v3335 = vadd.f32 %v2685, %v3317
        %v3336 = vld [vmem:[%s218 + $0x190] sm:$0xff]
        %v3337 = vld [vmem:[%s218 + $0x198] sm:$0xff]
        %v3338 = vld [vmem:[%s218 + $0x1a0] sm:$0xff]
        %v3339 = vld [vmem:[%s218 + $0x1a8] sm:$0xff]
        %v3340 = vld [vmem:[%s218 + $0x1b0] sm:$0xff]
        %v3341 = vld [vmem:[%s218 + $0x1b8] sm:$0xff]
        %v3342 = vld [vmem:[%s218 + $0x1c0] sm:$0xff]
        %v3343 = vld [vmem:[%s218 + $0x1c8] sm:$0xff]
        %v3344 = vld [vmem:[%s218 + $0x1d0] sm:$0xff]
        %v3345 = vld [vmem:[%s218 + $0x1d8] sm:$0xff]
        %v3346 = vld [vmem:[%s218 + $0x1e0] sm:$0xff]
        %v3347 = vld [vmem:[%s218 + $0x1e8] sm:$0xff]
        %v3348 = vld [vmem:[%s218 + $0x1f0] sm:$0xff]
        %v3349 = vld [vmem:[%s218 + $0x1f8] sm:$0xff]
        %v3350 = vld [vmem:[%s218 + $0x200] sm:$0xff]
        %v3351 = vld [vmem:[%s218 + $0x208] sm:$0xff]
        %v3352 = vld [vmem:[%s218 + $0x210] sm:$0xff]
        %v3353 = vld [vmem:[%s218 + $0x218] sm:$0xff]
        %v3354 = vld [vmem:[%s218 + $0x220] sm:$0xff]
        %v3355 = vld [vmem:[%s218 + $0x228] sm:$0xff]
        %v3356 = vld [vmem:[%s218 + $0x230] sm:$0xff]
        %v3357 = vld [vmem:[%s218 + $0x238] sm:$0xff]
        %v3358 = vld [vmem:[%s218 + $0x240] sm:$0xff]
        %v3359 = vld [vmem:[%s218 + $0x248] sm:$0xff]
        %v3360 = vld [vmem:[%s218 + $0x250] sm:$0xff]
        %v3361 = vld [vmem:[%s218 + $0x258] sm:$0xff]
        %v3362 = vld [vmem:[%s218 + $0x260] sm:$0xff]
        %v3363 = vld [vmem:[%s218 + $0x268] sm:$0xff]
        %v3364 = vld [vmem:[%s218 + $0x270] sm:$0xff]
        %v3365 = vld [vmem:[%s218 + $0x278] sm:$0xff]
        %v3366 = vld [vmem:[%s218 + $0x280] sm:$0xff]
        %v3367 = vld [vmem:[%s218 + $0x288] sm:$0xff]
        %v3368 = vld [vmem:[%s218 + $0x290] sm:$0xff]
        %v3369 = vld [vmem:[%s218 + $0x298] sm:$0xff]
        %v3370 = vld [vmem:[%s218 + $0x2a0] sm:$0xff]
        %v3371 = vld [vmem:[%s218 + $0x2a8] sm:$0xff]
        %v3372 = vld [vmem:[%s218 + $0x2b0] sm:$0xff]
        %v3373 = vld [vmem:[%s218 + $0x2b8] sm:$0xff]
        %v3374 = vld [vmem:[%s218 + $0x2c0] sm:$0xff]
        %v3375 = vld [vmem:[%s218 + $0x2c8] sm:$0xff]
        %v3376 = vld [vmem:[%s218 + $0x2d0] sm:$0xff]
        %v3377 = vld [vmem:[%s218 + $0x2d8] sm:$0xff]
        %v3378 = vld [vmem:[%s218 + $0x2e0] sm:$0xff]
        %v3379 = vld [vmem:[%s218 + $0x2e8] sm:$0xff]
        %v3380 = vld [vmem:[%s218 + $0x2f0] sm:$0xff]
        %v3381 = vld [vmem:[%s218 + $0x2f8] sm:$0xff]
        %v3382 = vld [vmem:[%s218 + $0x300] sm:$0xff]
        %v3383 = vld [vmem:[%s218 + $0x308] sm:$0xff]
        %v3384 = vld [vmem:[%s218 + $0x310] sm:$0xff]
        %v3385 = vld [vmem:[%s218 + $0x318] sm:$0xff]
        %v3386 = vld [vmem:[%s218 + $0x320] sm:$0xff]
        %v3387 = vld [vmem:[%s218 + $0x328] sm:$0xff]
        %v3388 = vld [vmem:[%s218 + $0x330] sm:$0xff]
        %v3389 = vld [vmem:[%s218 + $0x338] sm:$0xff]
        %v3390 = vld [vmem:[%s218 + $0x340] sm:$0xff]
        %v3391 = vld [vmem:[%s218 + $0x348] sm:$0xff]
        %v3392 = vld [vmem:[%s218 + $0x350] sm:$0xff]
        %v3393 = vld [vmem:[%s218 + $0x358] sm:$0xff]
        %v3394 = vld [vmem:[%s218 + $0x360] sm:$0xff]
        %v3395 = vld [vmem:[%s218 + $0x368] sm:$0xff]
        %v3396 = vld [vmem:[%s218 + $0x370] sm:$0xff]
        %v3397 = vld [vmem:[%s218 + $0x378] sm:$0xff]
        %v3398 = vld [vmem:[%s218 + $0x380] sm:$0xff]
        %v3399 = vld [vmem:[%s218 + $0x388] sm:$0xff]
        %v3400 = vld [vmem:[%s218 + $0x390] sm:$0xff]
        %v3401 = vld [vmem:[%s218 + $0x398] sm:$0xff]
        %v3402 = vld [vmem:[%s218 + $0x3a0] sm:$0xff]
        %v3403 = vld [vmem:[%s218 + $0x3a8] sm:$0xff]
        %v3404 = vld [vmem:[%s218 + $0x3b0] sm:$0xff]
        %v3405 = vld [vmem:[%s218 + $0x3b8] sm:$0xff]
        %v3406 = vld [vmem:[%s218 + $0x3c0] sm:$0xff]
        %v3407 = vld [vmem:[%s218 + $0x3c8] sm:$0xff]
        %v3408 = vld [vmem:[%s218 + $0x3d0] sm:$0xff]
        %v3409 = vld [vmem:[%s218 + $0x3d8] sm:$0xff]
        %v3410 = vld [vmem:[%s218 + $0x3e0] sm:$0xff]
        %v3411 = vld [vmem:[%s218 + $0x3e8] sm:$0xff]
        %v3412 = vld [vmem:[%s218 + $0x3f0] sm:$0xff]
        %v3413 = vld [vmem:[%s218 + $0x3f8] sm:$0xff]
        %v3414 = vld [vmem:[%s218 + $0x400] sm:$0xff]
        %v3415 = vld [vmem:[%s218 + $0x408] sm:$0xff]
        %s3416 = scalar_lea.vmem %s1, 2680
        %v3417 = vld [vmem:[%s3416] sm:$0xff]
        %v3418 = vld [vmem:[%s3416 + $0x8] sm:$0xff]
        %v3419 = vld [vmem:[%s3416 + $0x10] sm:$0xff]
        %v3420 = vld [vmem:[%s3416 + $0x18] sm:$0xff]
        %v3421 = vld [vmem:[%s3416 + $0x20] sm:$0xff]
        %v3422 = vld [vmem:[%s3416 + $0x28] sm:$0xff]
        %v3423 = vld [vmem:[%s3416 + $0x30] sm:$0xff]
        %v3424 = vld [vmem:[%s3416 + $0x38] sm:$0xff]
        %v3425 = vld [vmem:[%s3416 + $0x40] sm:$0xff]
        %v3426 = vld [vmem:[%s3416 + $0x48] sm:$0xff]
        %v3427 = vld [vmem:[%s3416 + $0x50] sm:$0xff]
        %v3428 = vld [vmem:[%s3416 + $0x58] sm:$0xff]
        %v3429 = vld [vmem:[%s3416 + $0x60] sm:$0xff]
        %v3430 = vld [vmem:[%s3416 + $0x68] sm:$0xff]
        %v3431 = vld [vmem:[%s3416 + $0x70] sm:$0xff]
        %v3432 = vld [vmem:[%s3416 + $0x78] sm:$0xff]
        %v3433 = vld [vmem:[%s3416 + $0x80] sm:$0xff]
        %v3434 = vld [vmem:[%s3416 + $0x88] sm:$0xff]
        %v3435 = vld [vmem:[%s3416 + $0x90] sm:$0xff]
        %v3436 = vld [vmem:[%s3416 + $0x98] sm:$0xff]
        %v3437 = vld [vmem:[%s3416 + $0xa0] sm:$0xff]
        %v3438 = vld [vmem:[%s3416 + $0xa8] sm:$0xff]
        %v3439 = vld [vmem:[%s3416 + $0xb0] sm:$0xff]
        %v3440 = vld [vmem:[%s3416 + $0xb8] sm:$0xff]
        %v3441 = vld [vmem:[%s3416 + $0xc0] sm:$0xff]
        %v3442 = vld [vmem:[%s3416 + $0xc8] sm:$0xff]
        %v3443 = vld [vmem:[%s3416 + $0xd0] sm:$0xff]
        %v3444 = vld [vmem:[%s3416 + $0xd8] sm:$0xff]
        %v3445 = vld [vmem:[%s3416 + $0xe0] sm:$0xff]
        %v3446 = vld [vmem:[%s3416 + $0xe8] sm:$0xff]
        %v3447 = vld [vmem:[%s3416 + $0xf0] sm:$0xff]
        %v3448 = vld [vmem:[%s3416 + $0xf8] sm:$0xff]
        %v3449 = vld [vmem:[%s3416 + $0x100] sm:$0xff]
        %v3450 = vld [vmem:[%s3416 + $0x108] sm:$0xff]
        %v3451 = vld [vmem:[%s3416 + $0x110] sm:$0xff]
        %v3452 = vld [vmem:[%s3416 + $0x118] sm:$0xff]
        %v3453 = vld [vmem:[%s3416 + $0x120] sm:$0xff]
        %v3454 = vld [vmem:[%s3416 + $0x128] sm:$0xff]
        %v3455 = vld [vmem:[%s3416 + $0x130] sm:$0xff]
        %v3456 = vld [vmem:[%s3416 + $0x138] sm:$0xff]
        %v3457 = vld [vmem:[%s3416 + $0x140] sm:$0xff]
        %v3458 = vld [vmem:[%s3416 + $0x148] sm:$0xff]
        %v3459 = vld [vmem:[%s3416 + $0x150] sm:$0xff]
        %v3460 = vld [vmem:[%s3416 + $0x158] sm:$0xff]
        %v3461 = vld [vmem:[%s3416 + $0x160] sm:$0xff]
        %v3462 = vld [vmem:[%s3416 + $0x168] sm:$0xff]
        %v3463 = vld [vmem:[%s3416 + $0x170] sm:$0xff]
        %v3464 = vld [vmem:[%s3416 + $0x178] sm:$0xff]
        %v3465 = vld [vmem:[%s3416 + $0x180] sm:$0xff]
        %v3466 = vld [vmem:[%s3416 + $0x188] sm:$0xff]
        %v3467 = vld [vmem:[%s3416 + $0x190] sm:$0xff]
        %v3468 = vld [vmem:[%s3416 + $0x198] sm:$0xff]
        %v3469 = vld [vmem:[%s3416 + $0x1a0] sm:$0xff]
        %v3470 = vld [vmem:[%s3416 + $0x1a8] sm:$0xff]
        %v3471 = vld [vmem:[%s3416 + $0x1b0] sm:$0xff]
        %v3472 = vld [vmem:[%s3416 + $0x1b8] sm:$0xff]
        %v3473 = vld [vmem:[%s3416 + $0x1c0] sm:$0xff]
        %v3474 = vld [vmem:[%s3416 + $0x1c8] sm:$0xff]
        %v3475 = vld [vmem:[%s3416 + $0x1d0] sm:$0xff]
        %v3476 = vld [vmem:[%s3416 + $0x1d8] sm:$0xff]
        %v3477 = vld [vmem:[%s3416 + $0x1e0] sm:$0xff]
        %v3478 = vld [vmem:[%s3416 + $0x1e8] sm:$0xff]
        %v3479 = vld [vmem:[%s3416 + $0x1f0] sm:$0xff]
        %v3480 = vld [vmem:[%s3416 + $0x1f8] sm:$0xff]
        %v3481 = vld [vmem:[%s3416 + $0x200] sm:$0xff]
        %v3482 = vld [vmem:[%s3416 + $0x208] sm:$0xff]
        %v3483 = vld [vmem:[%s3416 + $0x210] sm:$0xf]
        %v3485 = vsel %vm454, %v3340, 0
        %v3488 = vsel %vm454, %v3345, 0
        %v3491 = vsel %vm454, %v3350, 0
        %v3494 = vsel %vm454, %v3355, 0
        %v3497 = vsel %vm454, %v3360, 0
        %v3500 = vsel %vm454, %v3365, 0
        %v3503 = vsel %vm454, %v3370, 0
        %v3506 = vsel %vm454, %v3375, 0
        %v3509 = vsel %vm454, %v3380, 0
        %v3512 = vsel %vm454, %v3385, 0
        %v3515 = vsel %vm454, %v3390, 0
        %v3518 = vsel %vm454, %v3395, 0
        %v3521 = vsel %vm454, %v3400, 0
        %v3524 = vsel %vm454, %v3405, 0
        %v3527 = vsel %vm454, %v3410, 0
        %v3530 = vsel %vm454, %v3415, 0
        %v3533 = vsel %vm503, %v3483, 0
        %3535 = vmatprep.subr.mxu0 0.0
        %3536 = vmatpush1.msra.mxu0 %v3417
        %3537 = vmatprep.subr.mxu0 0.0
        %3538 = vmatpush1.msra.mxu0 %v3418
        %3539 = vmatprep.subr.mxu0 0.0
        %3540 = vmatpush1.msra.mxu0 %v3419
        %3541 = vmatprep.subr.mxu0 0.0
        %3542 = vmatpush1.msra.mxu0 %v3420
        %3543 = vmatprep.subr.mxu0 0.0
        %3544 = vmatpush1.msra.mxu0 %v3421
        %3545 = vmatprep.subr.mxu0 0.0
        %3546 = vmatpush1.msra.mxu0 %v3422
        %3547 = vmatprep.subr.mxu0 0.0
        %3548 = vmatpush1.msra.mxu0 %v3423
        %3549 = vmatprep.subr.mxu0 0.0
        %3550 = vmatpush1.msra.mxu0 %v3424
        %3551 = vmatprep.subr.mxu0 0.0
        %3552 = vmatpush1.msra.mxu0 %v3425
        %3553 = vmatprep.subr.mxu0 0.0
        %3554 = vmatpush1.msra.mxu0 %v3426
        %3555 = vmatprep.subr.mxu0 0.0
        %3556 = vmatpush1.msra.mxu0 %v3427
        %3557 = vmatprep.subr.mxu0 0.0
        %3558 = vmatpush1.msra.mxu0 %v3428
        %3559 = vmatprep.subr.mxu0 0.0
        %3560 = vmatpush1.msra.mxu0 %v3429
        %3561 = vmatprep.subr.mxu0 0.0
        %3562 = vmatpush1.msra.mxu0 %v3430
        %3563 = vmatprep.subr.mxu0 0.0
        %3564 = vmatpush1.msra.mxu0 %v3431
        %3565 = vmatprep.subr.mxu0 0.0
        %3566 = vmatpush1.msra.mxu0 %v3432
        %3567 = vmatprep.subr.mxu0 0.0
        %3568 = vmatpush1.msra.mxu0 %v3433
        %3569 = vmatprep.subr.mxu0 0.0
        %3570 = vmatpush1.msra.mxu0 %v3434
        %3571 = vmatprep.subr.mxu0 0.0
        %3572 = vmatpush1.msra.mxu0 %v3435
        %3573 = vmatprep.subr.mxu0 0.0
        %3574 = vmatpush1.msra.mxu0 %v3436
        %3575 = vmatprep.subr.mxu0 0.0
        %3576 = vmatpush1.msra.mxu0 %v3437
        %3577 = vmatprep.subr.mxu0 0.0
        %3578 = vmatpush1.msra.mxu0 %v3438
        %3579 = vmatprep.subr.mxu0 0.0
        %3580 = vmatpush1.msra.mxu0 %v3439
        %3581 = vmatprep.subr.mxu0 0.0
        %3582 = vmatpush1.msra.mxu0 %v3440
        %3583 = vmatprep.subr.mxu0 0.0
        %3584 = vmatpush1.msra.mxu0 %v3441
        %3585 = vmatprep.subr.mxu0 0.0
        %3586 = vmatpush1.msra.mxu0 %v3442
        %3587 = vmatprep.subr.mxu0 0.0
        %3588 = vmatpush1.msra.mxu0 %v3443
        %3589 = vmatprep.subr.mxu0 0.0
        %3590 = vmatpush1.msra.mxu0 %v3444
        %3591 = vmatprep.subr.mxu0 0.0
        %3592 = vmatpush1.msra.mxu0 %v3445
        %3593 = vmatprep.subr.mxu0 0.0
        %3594 = vmatpush1.msra.mxu0 %v3446
        %3595 = vmatprep.subr.mxu0 0.0
        %3596 = vmatpush1.msra.mxu0 %v3447
        %3597 = vmatprep.subr.mxu0 0.0
        %3598 = vmatpush1.msra.mxu0 %v3448
        %3599 = vmatprep.mubr.f32.mxu0 %v3337
        %3600 = vmatmul.mubr.f32.gmra.mrb[0].mxu0 %v3336
        %v3601 = vpop.f32.mrb[0].mxu0
        %v3602 = vadd.f32 0.0, %v3601
        %v3603 = vpop.f32.mrb[0].mxu0
        %3604 = vmatprep.mubr.f32.mxu0 %v3342
        %3605 = vmatmul.mubr.f32.gmra.mrb[0].mxu0 %v3341
        %v3606 = vpop.f32.mrb[0].mxu0
        %v3607 = vadd.f32 0.0, %v3606
        %v3608 = vpop.f32.mrb[0].mxu0
        %3609 = vmatprep.mubr.f32.mxu0 %v3347
        %3610 = vmatmul.mubr.f32.gmra.mrb[0].mxu0 %v3346
        %v3611 = vpop.f32.mrb[0].mxu0
        %v3612 = vadd.f32 0.0, %v3611
        %v3613 = vpop.f32.mrb[0].mxu0
        %3614 = vmatprep.mubr.f32.mxu0 %v3352
        %3615 = vmatmul.mubr.f32.gmra.mrb[0].mxu0 %v3351
        %v3616 = vpop.f32.mrb[0].mxu0
        %v3617 = vadd.f32 0.0, %v3616
        %v3618 = vpop.f32.mrb[0].mxu0
        %3619 = vmatprep.mubr.f32.mxu0 %v3357
        %3620 = vmatmul.mubr.f32.gmra.mrb[0].mxu0 %v3356
        %v3621 = vpop.f32.mrb[0].mxu0
        %v3622 = vadd.f32 0.0, %v3621
        %v3623 = vpop.f32.mrb[0].mxu0
        %3624 = vmatprep.mubr.f32.mxu0 %v3362
        %3625 = vmatmul.mubr.f32.gmra.mrb[0].mxu0 %v3361
        %v3626 = vpop.f32.mrb[0].mxu0
        %v3627 = vadd.f32 0.0, %v3626
        %v3628 = vpop.f32.mrb[0].mxu0
        %3629 = vmatprep.mubr.f32.mxu0 %v3367
        %3630 = vmatmul.mubr.f32.gmra.mrb[0].mxu0 %v3366
        %v3631 = vpop.f32.mrb[0].mxu0
        %v3632 = vadd.f32 0.0, %v3631
        %v3633 = vpop.f32.mrb[0].mxu0
        %3634 = vmatprep.mubr.f32.mxu0 %v3372
        %3635 = vmatmul.mubr.f32.gmra.mrb[0].mxu0 %v3371
        %v3636 = vpop.f32.mrb[0].mxu0
        %v3637 = vadd.f32 0.0, %v3636
        %v3638 = vpop.f32.mrb[0].mxu0
        %3639 = vmatprep.mubr.f32.mxu0 %v3377
        %3640 = vmatmul.mubr.f32.gmra.mrb[0].mxu0 %v3376
        %v3641 = vpop.f32.mrb[0].mxu0
        %v3642 = vadd.f32 0.0, %v3641
        %v3643 = vpop.f32.mrb[0].mxu0
        %3644 = vmatprep.mubr.f32.mxu0 %v3382
        %3645 = vmatmul.mubr.f32.gmra.mrb[0].mxu0 %v3381
        %v3646 = vpop.f32.mrb[0].mxu0
        %v3647 = vadd.f32 0.0, %v3646
        %v3648 = vpop.f32.mrb[0].mxu0
        %3649 = vmatprep.mubr.f32.mxu0 %v3387
        %3650 = vmatmul.mubr.f32.gmra.mrb[0].mxu0 %v3386
        %v3651 = vpop.f32.mrb[0].mxu0
        %v3652 = vadd.f32 0.0, %v3651
        %v3653 = vpop.f32.mrb[0].mxu0
        %3654 = vmatprep.mubr.f32.mxu0 %v3392
        %3655 = vmatmul.mubr.f32.gmra.mrb[0].mxu0 %v3391
        %v3656 = vpop.f32.mrb[0].mxu0
        %v3657 = vadd.f32 0.0, %v3656
        %v3658 = vpop.f32.mrb[0].mxu0
        %3659 = vmatprep.mubr.f32.mxu0 %v3397
        %3660 = vmatmul.mubr.f32.gmra.mrb[0].mxu0 %v3396
        %v3661 = vpop.f32.mrb[0].mxu0
        %v3662 = vadd.f32 0.0, %v3661
        %v3663 = vpop.f32.mrb[0].mxu0
        %3664 = vmatprep.mubr.f32.mxu0 %v3402
        %3665 = vmatmul.mubr.f32.gmra.mrb[0].mxu0 %v3401
        %v3666 = vpop.f32.mrb[0].mxu0
        %v3667 = vadd.f32 0.0, %v3666
        %v3668 = vpop.f32.mrb[0].mxu0
        %3669 = vmatprep.mubr.f32.mxu0 %v3407
        %3670 = vmatmul.mubr.f32.gmra.mrb[0].mxu0 %v3406
        %v3671 = vpop.f32.mrb[0].mxu0
        %v3672 = vadd.f32 0.0, %v3671
        %v3673 = vpop.f32.mrb[0].mxu0
        %3674 = vmatprep.mubr.f32.mxu0 %v3412
        %3675 = vmatmul.mubr.f32.gmra.mrb[0].mxu0 %v3411
        %v3676 = vpop.f32.mrb[0].mxu0
        %v3677 = vadd.f32 0.0, %v3676
        %v3678 = vpop.f32.mrb[0].mxu0
        %3679 = vdwg.mxu0
        %3680 = vmatprep.subr.mxu0 0.0
        %3681 = vmatpush1.msra.mxu0 %v3449
        %3682 = vmatprep.subr.mxu0 0.0
        %3683 = vmatpush1.msra.mxu0 %v3450
        %3684 = vmatprep.subr.mxu0 0.0
        %3685 = vmatpush1.msra.mxu0 %v3451
        %3686 = vmatprep.subr.mxu0 0.0
        %3687 = vmatpush1.msra.mxu0 %v3452
        %3688 = vmatprep.subr.mxu0 0.0
        %3689 = vmatpush1.msra.mxu0 %v3453
        %3690 = vmatprep.subr.mxu0 0.0
        %3691 = vmatpush1.msra.mxu0 %v3454
        %3692 = vmatprep.subr.mxu0 0.0
        %3693 = vmatpush1.msra.mxu0 %v3455
        %3694 = vmatprep.subr.mxu0 0.0
        %3695 = vmatpush1.msra.mxu0 %v3456
        %3696 = vmatprep.subr.mxu0 0.0
        %3697 = vmatpush1.msra.mxu0 %v3457
        %3698 = vmatprep.subr.mxu0 0.0
        %3699 = vmatpush1.msra.mxu0 %v3458
        %3700 = vmatprep.subr.mxu0 0.0
        %3701 = vmatpush1.msra.mxu0 %v3459
        %3702 = vmatprep.subr.mxu0 0.0
        %3703 = vmatpush1.msra.mxu0 %v3460
        %3704 = vmatprep.subr.mxu0 0.0
        %3705 = vmatpush1.msra.mxu0 %v3461
        %3706 = vmatprep.subr.mxu0 0.0
        %3707 = vmatpush1.msra.mxu0 %v3462
        %3708 = vmatprep.subr.mxu0 0.0
        %3709 = vmatpush1.msra.mxu0 %v3463
        %3710 = vmatprep.subr.mxu0 0.0
        %3711 = vmatpush1.msra.mxu0 %v3464
        %3712 = vmatprep.subr.mxu0 0.0
        %3713 = vmatpush1.msra.mxu0 %v3465
        %3714 = vmatprep.subr.mxu0 0.0
        %3715 = vmatpush1.msra.mxu0 %v3466
        %3716 = vmatprep.subr.mxu0 0.0
        %3717 = vmatpush1.msra.mxu0 %v3467
        %3718 = vmatprep.subr.mxu0 0.0
        %3719 = vmatpush1.msra.mxu0 %v3468
        %3720 = vmatprep.subr.mxu0 0.0
        %3721 = vmatpush1.msra.mxu0 %v3469
        %3722 = vmatprep.subr.mxu0 0.0
        %3723 = vmatpush1.msra.mxu0 %v3470
        %3724 = vmatprep.subr.mxu0 0.0
        %3725 = vmatpush1.msra.mxu0 %v3471
        %3726 = vmatprep.subr.mxu0 0.0
        %3727 = vmatpush1.msra.mxu0 %v3472
        %3728 = vmatprep.subr.mxu0 0.0
        %3729 = vmatpush1.msra.mxu0 %v3473
        %3730 = vmatprep.subr.mxu0 0.0
        %3731 = vmatpush1.msra.mxu0 %v3474
        %3732 = vmatprep.subr.mxu0 0.0
        %3733 = vmatpush1.msra.mxu0 %v3475
        %3734 = vmatprep.subr.mxu0 0.0
        %3735 = vmatpush1.msra.mxu0 %v3476
        %3736 = vmatprep.subr.mxu0 0.0
        %3737 = vmatpush1.msra.mxu0 %v3477
        %3738 = vmatprep.subr.mxu0 0.0
        %3739 = vmatpush1.msra.mxu0 %v3478
        %3740 = vmatprep.subr.mxu0 0.0
        %3741 = vmatpush1.msra.mxu0 %v3479
        %3742 = vmatprep.subr.mxu0 0.0
        %3743 = vmatpush1.msra.mxu0 %v3480
        %3744 = vmatprep.mubr.f32.mxu0 %v3339
        %3745 = vmatmul.mubr.f32.gmra.mrb[0].mxu0 %v3338
        %v3746 = vpop.f32.mrb[0].mxu0
        %v3747 = vadd.f32 %v3602, %v3746
        %v3748 = vpop.f32.mrb[0].mxu0
        %3749 = vmatprep.mubr.f32.mxu0 %v3344
        %3750 = vmatmul.mubr.f32.gmra.mrb[0].mxu0 %v3343
        %v3751 = vpop.f32.mrb[0].mxu0
        %v3752 = vadd.f32 %v3607, %v3751
        %v3753 = vpop.f32.mrb[0].mxu0
        %3754 = vmatprep.mubr.f32.mxu0 %v3349
        %3755 = vmatmul.mubr.f32.gmra.mrb[0].mxu0 %v3348
        %v3756 = vpop.f32.mrb[0].mxu0
        %v3757 = vadd.f32 %v3612, %v3756
        %v3758 = vpop.f32.mrb[0].mxu0
        %3759 = vmatprep.mubr.f32.mxu0 %v3354
        %3760 = vmatmul.mubr.f32.gmra.mrb[0].mxu0 %v3353
        %v3761 = vpop.f32.mrb[0].mxu0
        %v3762 = vadd.f32 %v3617, %v3761
        %v3763 = vpop.f32.mrb[0].mxu0
        %3764 = vmatprep.mubr.f32.mxu0 %v3359
        %3765 = vmatmul.mubr.f32.gmra.mrb[0].mxu0 %v3358
        %v3766 = vpop.f32.mrb[0].mxu0
        %v3767 = vadd.f32 %v3622, %v3766
        %v3768 = vpop.f32.mrb[0].mxu0
        %3769 = vmatprep.mubr.f32.mxu0 %v3364
        %3770 = vmatmul.mubr.f32.gmra.mrb[0].mxu0 %v3363
        %v3771 = vpop.f32.mrb[0].mxu0
        %v3772 = vadd.f32 %v3627, %v3771
        %v3773 = vpop.f32.mrb[0].mxu0
        %3774 = vmatprep.mubr.f32.mxu0 %v3369
        %3775 = vmatmul.mubr.f32.gmra.mrb[0].mxu0 %v3368
        %v3776 = vpop.f32.mrb[0].mxu0
        %v3777 = vadd.f32 %v3632, %v3776
        %v3778 = vpop.f32.mrb[0].mxu0
        %3779 = vmatprep.mubr.f32.mxu0 %v3374
        %3780 = vmatmul.mubr.f32.gmra.mrb[0].mxu0 %v3373
        %v3781 = vpop.f32.mrb[0].mxu0
        %v3782 = vadd.f32 %v3637, %v3781
        %v3783 = vpop.f32.mrb[0].mxu0
        %3784 = vmatprep.mubr.f32.mxu0 %v3379
        %3785 = vmatmul.mubr.f32.gmra.mrb[0].mxu0 %v3378
        %v3786 = vpop.f32.mrb[0].mxu0
        %v3787 = vadd.f32 %v3642, %v3786
        %v3788 = vpop.f32.mrb[0].mxu0
        %3789 = vmatprep.mubr.f32.mxu0 %v3384
        %3790 = vmatmul.mubr.f32.gmra.mrb[0].mxu0 %v3383
        %v3791 = vpop.f32.mrb[0].mxu0
        %v3792 = vadd.f32 %v3647, %v3791
        %v3793 = vpop.f32.mrb[0].mxu0
        %3794 = vmatprep.mubr.f32.mxu0 %v3389
        %3795 = vmatmul.mubr.f32.gmra.mrb[0].mxu0 %v3388
        %v3796 = vpop.f32.mrb[0].mxu0
        %v3797 = vadd.f32 %v3652, %v3796
        %v3798 = vpop.f32.mrb[0].mxu0
        %3799 = vmatprep.mubr.f32.mxu0 %v3394
        %3800 = vmatmul.mubr.f32.gmra.mrb[0].mxu0 %v3393
        %v3801 = vpop.f32.mrb[0].mxu0
        %v3802 = vadd.f32 %v3657, %v3801
        %v3803 = vpop.f32.mrb[0].mxu0
        %3804 = vmatprep.mubr.f32.mxu0 %v3399
        %3805 = vmatmul.mubr.f32.gmra.mrb[0].mxu0 %v3398
        %v3806 = vpop.f32.mrb[0].mxu0
        %v3807 = vadd.f32 %v3662, %v3806
        %v3808 = vpop.f32.mrb[0].mxu0
        %3809 = vmatprep.mubr.f32.mxu0 %v3404
        %3810 = vmatmul.mubr.f32.gmra.mrb[0].mxu0 %v3403
        %v3811 = vpop.f32.mrb[0].mxu0
        %v3812 = vadd.f32 %v3667, %v3811
        %v3813 = vpop.f32.mrb[0].mxu0
        %3814 = vmatprep.mubr.f32.mxu0 %v3409
        %3815 = vmatmul.mubr.f32.gmra.mrb[0].mxu0 %v3408
        %v3816 = vpop.f32.mrb[0].mxu0
        %v3817 = vadd.f32 %v3672, %v3816
        %v3818 = vpop.f32.mrb[0].mxu0
        %3819 = vmatprep.mubr.f32.mxu0 %v3414
        %3820 = vmatmul.mubr.f32.gmra.mrb[0].mxu0 %v3413
        %v3821 = vpop.f32.mrb[0].mxu0
        %v3822 = vadd.f32 %v3677, %v3821
        %v3823 = vpop.f32.mrb[0].mxu0
        %3824 = vdwg.mxu0
        %3825 = vmatprep.subr.mxu0 0.0
        %3826 = vmatpush1.msra.mxu0 %v3481
        %3827 = vmatprep.subr.mxu0 0.0
        %3828 = vmatpush1.msra.mxu0 %v3482
        %3829 = vmatprep.subr.mxu0 0.0
        %3830 = vmatpush1.msra.mxu0 %v3533
        %3831 = vmatprep.subr.mxu0 0.0
        %3832 = vmatpush1.msra.mxu0 0.0
        %3833 = vmatprep.subr.mxu0 0.0
        %3834 = vmatpush1.msra.mxu0 0.0
        %3835 = vmatprep.subr.mxu0 0.0
        %3836 = vmatpush1.msra.mxu0 0.0
        %3837 = vmatprep.subr.mxu0 0.0
        %3838 = vmatpush1.msra.mxu0 0.0
        %3839 = vmatprep.subr.mxu0 0.0
        %3840 = vmatpush1.msra.mxu0 0.0
        %3841 = vmatprep.subr.mxu0 0.0
        %3842 = vmatpush1.msra.mxu0 0.0
        %3843 = vmatprep.subr.mxu0 0.0
        %3844 = vmatpush1.msra.mxu0 0.0
        %3845 = vmatprep.subr.mxu0 0.0
        %3846 = vmatpush1.msra.mxu0 0.0
        %3847 = vmatprep.subr.mxu0 0.0
        %3848 = vmatpush1.msra.mxu0 0.0
        %3849 = vmatprep.subr.mxu0 0.0
        %3850 = vmatpush1.msra.mxu0 0.0
        %3851 = vmatprep.subr.mxu0 0.0
        %3852 = vmatpush1.msra.mxu0 0.0
        %3853 = vmatprep.subr.mxu0 0.0
        %3854 = vmatpush1.msra.mxu0 0.0
        %3855 = vmatprep.subr.mxu0 0.0
        %3856 = vmatpush1.msra.mxu0 0.0
        %3857 = vmatprep.subr.mxu0 0.0
        %3858 = vmatpush1.msra.mxu0 0.0
        %3859 = vmatprep.subr.mxu0 0.0
        %3860 = vmatpush1.msra.mxu0 0.0
        %3861 = vmatprep.subr.mxu0 0.0
        %3862 = vmatpush1.msra.mxu0 0.0
        %3863 = vmatprep.subr.mxu0 0.0
        %3864 = vmatpush1.msra.mxu0 0.0
        %3865 = vmatprep.subr.mxu0 0.0
        %3866 = vmatpush1.msra.mxu0 0.0
        %3867 = vmatprep.subr.mxu0 0.0
        %3868 = vmatpush1.msra.mxu0 0.0
        %3869 = vmatprep.subr.mxu0 0.0
        %3870 = vmatpush1.msra.mxu0 0.0
        %3871 = vmatprep.subr.mxu0 0.0
        %3872 = vmatpush1.msra.mxu0 0.0
        %3873 = vmatprep.subr.mxu0 0.0
        %3874 = vmatpush1.msra.mxu0 0.0
        %3875 = vmatprep.subr.mxu0 0.0
        %3876 = vmatpush1.msra.mxu0 0.0
        %3877 = vmatprep.subr.mxu0 0.0
        %3878 = vmatpush1.msra.mxu0 0.0
        %3879 = vmatprep.subr.mxu0 0.0
        %3880 = vmatpush1.msra.mxu0 0.0
        %3881 = vmatprep.subr.mxu0 0.0
        %3882 = vmatpush1.msra.mxu0 0.0
        %3883 = vmatprep.subr.mxu0 0.0
        %3884 = vmatpush1.msra.mxu0 0.0
        %3885 = vmatprep.subr.mxu0 0.0
        %3886 = vmatpush1.msra.mxu0 0.0
        %3887 = vmatprep.subr.mxu0 0.0
        %3888 = vmatpush1.msra.mxu0 0.0
        %3889 = vmatprep.mubr.f32.mxu0 0.0
        %3890 = vmatmul.mubr.f32.gmra.mrb[0].mxu0 %v3485
        %v3891 = vpop.f32.mrb[0].mxu0
        %v3892 = vadd.f32 %v3747, %v3891
        %v3893 = vpop.f32.mrb[0].mxu0
        %3894 = vmatprep.mubr.f32.mxu0 0.0
        %3895 = vmatmul.mubr.f32.gmra.mrb[0].mxu0 %v3488
        %v3896 = vpop.f32.mrb[0].mxu0
        %v3897 = vadd.f32 %v3752, %v3896
        %v3898 = vpop.f32.mrb[0].mxu0
        %3899 = vmatprep.mubr.f32.mxu0 0.0
        %3900 = vmatmul.mubr.f32.gmra.mrb[0].mxu0 %v3491
        %v3901 = vpop.f32.mrb[0].mxu0
        %v3902 = vadd.f32 %v3757, %v3901
        %v3903 = vpop.f32.mrb[0].mxu0
        %3904 = vmatprep.mubr.f32.mxu0 0.0
        %3905 = vmatmul.mubr.f32.gmra.mrb[0].mxu0 %v3494
        %v3906 = vpop.f32.mrb[0].mxu0
        %v3907 = vadd.f32 %v3762, %v3906
        %v3908 = vpop.f32.mrb[0].mxu0
        %3909 = vmatprep.mubr.f32.mxu0 0.0
        %3910 = vmatmul.mubr.f32.gmra.mrb[0].mxu0 %v3497
        %v3911 = vpop.f32.mrb[0].mxu0
        %v3912 = vadd.f32 %v3767, %v3911
        %v3913 = vpop.f32.mrb[0].mxu0
        %3914 = vmatprep.mubr.f32.mxu0 0.0
        %3915 = vmatmul.mubr.f32.gmra.mrb[0].mxu0 %v3500
        %v3916 = vpop.f32.mrb[0].mxu0
        %v3917 = vadd.f32 %v3772, %v3916
        %v3918 = vpop.f32.mrb[0].mxu0
        %3919 = vmatprep.mubr.f32.mxu0 0.0
        %3920 = vmatmul.mubr.f32.gmra.mrb[0].mxu0 %v3503
        %v3921 = vpop.f32.mrb[0].mxu0
        %v3922 = vadd.f32 %v3777, %v3921
        %v3923 = vpop.f32.mrb[0].mxu0
        %3924 = vmatprep.mubr.f32.mxu0 0.0
        %3925 = vmatmul.mubr.f32.gmra.mrb[0].mxu0 %v3506
        %v3926 = vpop.f32.mrb[0].mxu0
        %v3927 = vadd.f32 %v3782, %v3926
        %v3928 = vpop.f32.mrb[0].mxu0
        %3929 = vmatprep.mubr.f32.mxu0 0.0
        %3930 = vmatmul.mubr.f32.gmra.mrb[0].mxu0 %v3509
        %v3931 = vpop.f32.mrb[0].mxu0
        %v3932 = vadd.f32 %v3787, %v3931
        %v3933 = vpop.f32.mrb[0].mxu0
        %3934 = vmatprep.mubr.f32.mxu0 0.0
        %3935 = vmatmul.mubr.f32.gmra.mrb[0].mxu0 %v3512
        %v3936 = vpop.f32.mrb[0].mxu0
        %v3937 = vadd.f32 %v3792, %v3936
        %v3938 = vpop.f32.mrb[0].mxu0
        %3939 = vmatprep.mubr.f32.mxu0 0.0
        %3940 = vmatmul.mubr.f32.gmra.mrb[0].mxu0 %v3515
        %v3941 = vpop.f32.mrb[0].mxu0
        %v3942 = vadd.f32 %v3797, %v3941
        %v3943 = vpop.f32.mrb[0].mxu0
        %3944 = vmatprep.mubr.f32.mxu0 0.0
        %3945 = vmatmul.mubr.f32.gmra.mrb[0].mxu0 %v3518
        %v3946 = vpop.f32.mrb[0].mxu0
        %v3947 = vadd.f32 %v3802, %v3946
        %v3948 = vpop.f32.mrb[0].mxu0
        %3949 = vmatprep.mubr.f32.mxu0 0.0
        %3950 = vmatmul.mubr.f32.gmra.mrb[0].mxu0 %v3521
        %v3951 = vpop.f32.mrb[0].mxu0
        %v3952 = vadd.f32 %v3807, %v3951
        %v3953 = vpop.f32.mrb[0].mxu0
        %3954 = vmatprep.mubr.f32.mxu0 0.0
        %3955 = vmatmul.mubr.f32.gmra.mrb[0].mxu0 %v3524
        %v3956 = vpop.f32.mrb[0].mxu0
        %v3957 = vadd.f32 %v3812, %v3956
        %v3958 = vpop.f32.mrb[0].mxu0
        %3959 = vmatprep.mubr.f32.mxu0 0.0
        %3960 = vmatmul.mubr.f32.gmra.mrb[0].mxu0 %v3527
        %v3961 = vpop.f32.mrb[0].mxu0
        %v3962 = vadd.f32 %v3817, %v3961
        %v3963 = vpop.f32.mrb[0].mxu0
        %3964 = vmatprep.mubr.f32.mxu0 0.0
        %3965 = vmatmul.mubr.f32.gmra.mrb[0].mxu0 %v3530
        %v3966 = vpop.f32.mrb[0].mxu0
        %v3967 = vadd.f32 %v3822, %v3966
        %v3968 = vpop.f32.mrb[0].mxu0
        %3969 = vdwg.mxu0
        %v3970 = vadd.f32 %v3320, %v3892
        %v3971 = vadd.f32 %v3321, %v3897
        %v3972 = vadd.f32 %v3322, %v3902
        %v3973 = vadd.f32 %v3323, %v3907
        %v3974 = vadd.f32 %v3324, %v3912
        %v3975 = vadd.f32 %v3325, %v3917
        %v3976 = vadd.f32 %v3326, %v3922
        %v3977 = vadd.f32 %v3327, %v3927
        %v3978 = vadd.f32 %v3328, %v3932
        %v3979 = vadd.f32 %v3329, %v3937
        %v3980 = vadd.f32 %v3330, %v3942
        %v3981 = vadd.f32 %v3331, %v3947
        %v3982 = vadd.f32 %v3332, %v3952
        %v3983 = vadd.f32 %v3333, %v3957
        %v3984 = vadd.f32 %v3334, %v3962
        %v3985 = vadd.f32 %v3335, %v3967
        %v3986 = vld [vmem:[%s218 + $0x1e0] sm:$0xff]
        %v3987 = vld [vmem:[%s218 + $0x1e8] sm:$0xff]
        %v3988 = vld [vmem:[%s218 + $0x1f0] sm:$0xff]
        %v3989 = vld [vmem:[%s218 + $0x1f8] sm:$0xff]
        %v3990 = vld [vmem:[%s218 + $0x200] sm:$0xff]
        %v3991 = vld [vmem:[%s218 + $0x208] sm:$0xff]
        %v3992 = vld [vmem:[%s218 + $0x210] sm:$0xff]
        %v3993 = vld [vmem:[%s218 + $0x218] sm:$0xff]
        %v3994 = vld [vmem:[%s218 + $0x220] sm:$0xff]
        %v3995 = vld [vmem:[%s218 + $0x228] sm:$0xff]
        %v3996 = vld [vmem:[%s218 + $0x230] sm:$0xff]
        %v3997 = vld [vmem:[%s218 + $0x238] sm:$0xff]
        %v3998 = vld [vmem:[%s218 + $0x240] sm:$0xff]
        %v3999 = vld [vmem:[%s218 + $0x248] sm:$0xff]
        %v4000 = vld [vmem:[%s218 + $0x250] sm:$0xff]
        %v4001 = vld [vmem:[%s218 + $0x258] sm:$0xff]
        %v4002 = vld [vmem:[%s218 + $0x260] sm:$0xff]
        %v4003 = vld [vmem:[%s218 + $0x268] sm:$0xff]
        %v4004 = vld [vmem:[%s218 + $0x270] sm:$0xff]
        %v4005 = vld [vmem:[%s218 + $0x278] sm:$0xff]
        %v4006 = vld [vmem:[%s218 + $0x280] sm:$0xff]
        %v4007 = vld [vmem:[%s218 + $0x288] sm:$0xff]
        %v4008 = vld [vmem:[%s218 + $0x290] sm:$0xff]
        %v4009 = vld [vmem:[%s218 + $0x298] sm:$0xff]
        %v4010 = vld [vmem:[%s218 + $0x2a0] sm:$0xff]
        %v4011 = vld [vmem:[%s218 + $0x2a8] sm:$0xff]
        %v4012 = vld [vmem:[%s218 + $0x2b0] sm:$0xff]
        %v4013 = vld [vmem:[%s218 + $0x2b8] sm:$0xff]
        %v4014 = vld [vmem:[%s218 + $0x2c0] sm:$0xff]
        %v4015 = vld [vmem:[%s218 + $0x2c8] sm:$0xff]
        %v4016 = vld [vmem:[%s218 + $0x2d0] sm:$0xff]
        %v4017 = vld [vmem:[%s218 + $0x2d8] sm:$0xff]
        %v4018 = vld [vmem:[%s218 + $0x2e0] sm:$0xff]
        %v4019 = vld [vmem:[%s218 + $0x2e8] sm:$0xff]
        %v4020 = vld [vmem:[%s218 + $0x2f0] sm:$0xff]
        %v4021 = vld [vmem:[%s218 + $0x2f8] sm:$0xff]
        %v4022 = vld [vmem:[%s218 + $0x300] sm:$0xff]
        %v4023 = vld [vmem:[%s218 + $0x308] sm:$0xff]
        %v4024 = vld [vmem:[%s218 + $0x310] sm:$0xff]
        %v4025 = vld [vmem:[%s218 + $0x318] sm:$0xff]
        %v4026 = vld [vmem:[%s218 + $0x320] sm:$0xff]
        %v4027 = vld [vmem:[%s218 + $0x328] sm:$0xff]
        %v4028 = vld [vmem:[%s218 + $0x330] sm:$0xff]
        %v4029 = vld [vmem:[%s218 + $0x338] sm:$0xff]
        %v4030 = vld [vmem:[%s218 + $0x340] sm:$0xff]
        %v4031 = vld [vmem:[%s218 + $0x348] sm:$0xff]
        %v4032 = vld [vmem:[%s218 + $0x350] sm:$0xff]
        %v4033 = vld [vmem:[%s218 + $0x358] sm:$0xff]
        %v4034 = vld [vmem:[%s218 + $0x360] sm:$0xff]
        %v4035 = vld [vmem:[%s218 + $0x368] sm:$0xff]
        %v4036 = vld [vmem:[%s218 + $0x370] sm:$0xff]
        %v4037 = vld [vmem:[%s218 + $0x378] sm:$0xff]
        %v4038 = vld [vmem:[%s218 + $0x380] sm:$0xff]
        %v4039 = vld [vmem:[%s218 + $0x388] sm:$0xff]
        %v4040 = vld [vmem:[%s218 + $0x390] sm:$0xff]
        %v4041 = vld [vmem:[%s218 + $0x398] sm:$0xff]
        %v4042 = vld [vmem:[%s218 + $0x3a0] sm:$0xff]
        %v4043 = vld [vmem:[%s218 + $0x3a8] sm:$0xff]
        %v4044 = vld [vmem:[%s218 + $0x3b0] sm:$0xff]
        %v4045 = vld [vmem:[%s218 + $0x3b8] sm:$0xff]
        %v4046 = vld [vmem:[%s218 + $0x3c0] sm:$0xff]
        %v4047 = vld [vmem:[%s218 + $0x3c8] sm:$0xff]
        %v4048 = vld [vmem:[%s218 + $0x3d0] sm:$0xff]
        %v4049 = vld [vmem:[%s218 + $0x3d8] sm:$0xff]
        %v4050 = vld [vmem:[%s218 + $0x3e0] sm:$0xff]
        %v4051 = vld [vmem:[%s218 + $0x3e8] sm:$0xff]
        %v4052 = vld [vmem:[%s218 + $0x3f0] sm:$0xff]
        %v4053 = vld [vmem:[%s218 + $0x3f8] sm:$0xff]
        %v4054 = vld [vmem:[%s218 + $0x400] sm:$0xff]
        %v4055 = vld [vmem:[%s218 + $0x408] sm:$0xff]
        %v4056 = vld [vmem:[%s218 + $0x410] sm:$0xff]
        %v4057 = vld [vmem:[%s218 + $0x418] sm:$0xff]
        %v4058 = vld [vmem:[%s218 + $0x420] sm:$0xff]
        %v4059 = vld [vmem:[%s218 + $0x428] sm:$0xff]
        %v4060 = vld [vmem:[%s218 + $0x430] sm:$0xff]
        %v4061 = vld [vmem:[%s218 + $0x438] sm:$0xff]
        %v4062 = vld [vmem:[%s218 + $0x440] sm:$0xff]
        %v4063 = vld [vmem:[%s218 + $0x448] sm:$0xff]
        %v4064 = vld [vmem:[%s218 + $0x450] sm:$0xff]
        %v4065 = vld [vmem:[%s218 + $0x458] sm:$0xff]
        %s4066 = scalar_lea.vmem %s1, 3216
        %v4067 = vld [vmem:[%s4066] sm:$0xff]
        %v4068 = vld [vmem:[%s4066 + $0x8] sm:$0xff]
        %v4069 = vld [vmem:[%s4066 + $0x10] sm:$0xff]
        %v4070 = vld [vmem:[%s4066 + $0x18] sm:$0xff]
        %v4071 = vld [vmem:[%s4066 + $0x20] sm:$0xff]
        %v4072 = vld [vmem:[%s4066 + $0x28] sm:$0xff]
        %v4073 = vld [vmem:[%s4066 + $0x30] sm:$0xff]
        %v4074 = vld [vmem:[%s4066 + $0x38] sm:$0xff]
        %v4075 = vld [vmem:[%s4066 + $0x40] sm:$0xff]
        %v4076 = vld [vmem:[%s4066 + $0x48] sm:$0xff]
        %v4077 = vld [vmem:[%s4066 + $0x50] sm:$0xff]
        %v4078 = vld [vmem:[%s4066 + $0x58] sm:$0xff]
        %v4079 = vld [vmem:[%s4066 + $0x60] sm:$0xff]
        %v4080 = vld [vmem:[%s4066 + $0x68] sm:$0xff]
        %v4081 = vld [vmem:[%s4066 + $0x70] sm:$0xff]
        %v4082 = vld [vmem:[%s4066 + $0x78] sm:$0xff]
        %v4083 = vld [vmem:[%s4066 + $0x80] sm:$0xff]
        %v4084 = vld [vmem:[%s4066 + $0x88] sm:$0xff]
        %v4085 = vld [vmem:[%s4066 + $0x90] sm:$0xff]
        %v4086 = vld [vmem:[%s4066 + $0x98] sm:$0xff]
        %v4087 = vld [vmem:[%s4066 + $0xa0] sm:$0xff]
        %v4088 = vld [vmem:[%s4066 + $0xa8] sm:$0xff]
        %v4089 = vld [vmem:[%s4066 + $0xb0] sm:$0xff]
        %v4090 = vld [vmem:[%s4066 + $0xb8] sm:$0xff]
        %v4091 = vld [vmem:[%s4066 + $0xc0] sm:$0xff]
        %v4092 = vld [vmem:[%s4066 + $0xc8] sm:$0xff]
        %v4093 = vld [vmem:[%s4066 + $0xd0] sm:$0xff]
        %v4094 = vld [vmem:[%s4066 + $0xd8] sm:$0xff]
        %v4095 = vld [vmem:[%s4066 + $0xe0] sm:$0xff]
        %v4096 = vld [vmem:[%s4066 + $0xe8] sm:$0xff]
        %v4097 = vld [vmem:[%s4066 + $0xf0] sm:$0xff]
        %v4098 = vld [vmem:[%s4066 + $0xf8] sm:$0xff]
        %v4099 = vld [vmem:[%s4066 + $0x100] sm:$0xff]
        %v4100 = vld [vmem:[%s4066 + $0x108] sm:$0xff]
        %v4101 = vld [vmem:[%s4066 + $0x110] sm:$0xff]
        %v4102 = vld [vmem:[%s4066 + $0x118] sm:$0xff]
        %v4103 = vld [vmem:[%s4066 + $0x120] sm:$0xff]
        %v4104 = vld [vmem:[%s4066 + $0x128] sm:$0xff]
        %v4105 = vld [vmem:[%s4066 + $0x130] sm:$0xff]
        %v4106 = vld [vmem:[%s4066 + $0x138] sm:$0xff]
        %v4107 = vld [vmem:[%s4066 + $0x140] sm:$0xff]
        %v4108 = vld [vmem:[%s4066 + $0x148] sm:$0xff]
        %v4109 = vld [vmem:[%s4066 + $0x150] sm:$0xff]
        %v4110 = vld [vmem:[%s4066 + $0x158] sm:$0xff]
        %v4111 = vld [vmem:[%s4066 + $0x160] sm:$0xff]
        %v4112 = vld [vmem:[%s4066 + $0x168] sm:$0xff]
        %v4113 = vld [vmem:[%s4066 + $0x170] sm:$0xff]
        %v4114 = vld [vmem:[%s4066 + $0x178] sm:$0xff]
        %v4115 = vld [vmem:[%s4066 + $0x180] sm:$0xff]
        %v4116 = vld [vmem:[%s4066 + $0x188] sm:$0xff]
        %v4117 = vld [vmem:[%s4066 + $0x190] sm:$0xff]
        %v4118 = vld [vmem:[%s4066 + $0x198] sm:$0xff]
        %v4119 = vld [vmem:[%s4066 + $0x1a0] sm:$0xff]
        %v4120 = vld [vmem:[%s4066 + $0x1a8] sm:$0xff]
        %v4121 = vld [vmem:[%s4066 + $0x1b0] sm:$0xff]
        %v4122 = vld [vmem:[%s4066 + $0x1b8] sm:$0xff]
        %v4123 = vld [vmem:[%s4066 + $0x1c0] sm:$0xff]
        %v4124 = vld [vmem:[%s4066 + $0x1c8] sm:$0xff]
        %v4125 = vld [vmem:[%s4066 + $0x1d0] sm:$0xff]
        %v4126 = vld [vmem:[%s4066 + $0x1d8] sm:$0xff]
        %v4127 = vld [vmem:[%s4066 + $0x1e0] sm:$0xff]
        %v4128 = vld [vmem:[%s4066 + $0x1e8] sm:$0xff]
        %v4129 = vld [vmem:[%s4066 + $0x1f0] sm:$0xff]
        %v4130 = vld [vmem:[%s4066 + $0x1f8] sm:$0xff]
        %v4131 = vld [vmem:[%s4066 + $0x200] sm:$0xff]
        %v4132 = vld [vmem:[%s4066 + $0x208] sm:$0xff]
        %v4133 = vld [vmem:[%s4066 + $0x210] sm:$0xf]
        %v4135 = vsel %vm454, %v3990, 0
        %v4138 = vsel %vm454, %v3995, 0
        %v4141 = vsel %vm454, %v4000, 0
        %v4144 = vsel %vm454, %v4005, 0
        %v4147 = vsel %vm454, %v4010, 0
        %v4150 = vsel %vm454, %v4015, 0
        %v4153 = vsel %vm454, %v4020, 0
        %v4156 = vsel %vm454, %v4025, 0
        %v4159 = vsel %vm454, %v4030, 0
        %v4162 = vsel %vm454, %v4035, 0
        %v4165 = vsel %vm454, %v4040, 0
        %v4168 = vsel %vm454, %v4045, 0
        %v4171 = vsel %vm454, %v4050, 0
        %v4174 = vsel %vm454, %v4055, 0
        %v4177 = vsel %vm454, %v4060, 0
        %v4180 = vsel %vm454, %v4065, 0
        %v4183 = vsel %vm503, %v4133, 0
        %4185 = vmatprep.subr.mxu0 0.0
        %4186 = vmatpush1.msra.mxu0 %v4067
        %4187 = vmatprep.subr.mxu0 0.0
        %4188 = vmatpush1.msra.mxu0 %v4068
        %4189 = vmatprep.subr.mxu0 0.0
        %4190 = vmatpush1.msra.mxu0 %v4069
        %4191 = vmatprep.subr.mxu0 0.0
        %4192 = vmatpush1.msra.mxu0 %v4070
        %4193 = vmatprep.subr.mxu0 0.0
        %4194 = vmatpush1.msra.mxu0 %v4071
        %4195 = vmatprep.subr.mxu0 0.0
        %4196 = vmatpush1.msra.mxu0 %v4072
        %4197 = vmatprep.subr.mxu0 0.0
        %4198 = vmatpush1.msra.mxu0 %v4073
        %4199 = vmatprep.subr.mxu0 0.0
        %4200 = vmatpush1.msra.mxu0 %v4074
        %4201 = vmatprep.subr.mxu0 0.0
        %4202 = vmatpush1.msra.mxu0 %v4075
        %4203 = vmatprep.subr.mxu0 0.0
        %4204 = vmatpush1.msra.mxu0 %v4076
        %4205 = vmatprep.subr.mxu0 0.0
        %4206 = vmatpush1.msra.mxu0 %v4077
        %4207 = vmatprep.subr.mxu0 0.0
        %4208 = vmatpush1.msra.mxu0 %v4078
        %4209 = vmatprep.subr.mxu0 0.0
        %4210 = vmatpush1.msra.mxu0 %v4079
        %4211 = vmatprep.subr.mxu0 0.0
        %4212 = vmatpush1.msra.mxu0 %v4080
        %4213 = vmatprep.subr.mxu0 0.0
        %4214 = vmatpush1.msra.mxu0 %v4081
        %4215 = vmatprep.subr.mxu0 0.0
        %4216 = vmatpush1.msra.mxu0 %v4082
        %4217 = vmatprep.subr.mxu0 0.0
        %4218 = vmatpush1.msra.mxu0 %v4083
        %4219 = vmatprep.subr.mxu0 0.0
        %4220 = vmatpush1.msra.mxu0 %v4084
        %4221 = vmatprep.subr.mxu0 0.0
        %4222 = vmatpush1.msra.mxu0 %v4085
        %4223 = vmatprep.subr.mxu0 0.0
        %4224 = vmatpush1.msra.mxu0 %v4086
        %4225 = vmatprep.subr.mxu0 0.0
        %4226 = vmatpush1.msra.mxu0 %v4087
        %4227 = vmatprep.subr.mxu0 0.0
        %4228 = vmatpush1.msra.mxu0 %v4088
        %4229 = vmatprep.subr.mxu0 0.0
        %4230 = vmatpush1.msra.mxu0 %v4089
        %4231 = vmatprep.subr.mxu0 0.0
        %4232 = vmatpush1.msra.mxu0 %v4090
        %4233 = vmatprep.subr.mxu0 0.0
        %4234 = vmatpush1.msra.mxu0 %v4091
        %4235 = vmatprep.subr.mxu0 0.0
        %4236 = vmatpush1.msra.mxu0 %v4092
        %4237 = vmatprep.subr.mxu0 0.0
        %4238 = vmatpush1.msra.mxu0 %v4093
        %4239 = vmatprep.subr.mxu0 0.0
        %4240 = vmatpush1.msra.mxu0 %v4094
        %4241 = vmatprep.subr.mxu0 0.0
        %4242 = vmatpush1.msra.mxu0 %v4095
        %4243 = vmatprep.subr.mxu0 0.0
        %4244 = vmatpush1.msra.mxu0 %v4096
        %4245 = vmatprep.subr.mxu0 0.0
        %4246 = vmatpush1.msra.mxu0 %v4097
        %4247 = vmatprep.subr.mxu0 0.0
        %4248 = vmatpush1.msra.mxu0 %v4098
        %4249 = vmatprep.mubr.f32.mxu0 %v3987
        %4250 = vmatmul.mubr.f32.gmra.mrb[0].mxu0 %v3986
        %v4251 = vpop.f32.mrb[0].mxu0
        %v4252 = vadd.f32 0.0, %v4251
        %v4253 = vpop.f32.mrb[0].mxu0
        %4254 = vmatprep.mubr.f32.mxu0 %v3992
        %4255 = vmatmul.mubr.f32.gmra.mrb[0].mxu0 %v3991
        %v4256 = vpop.f32.mrb[0].mxu0
        %v4257 = vadd.f32 0.0, %v4256
        %v4258 = vpop.f32.mrb[0].mxu0
        %4259 = vmatprep.mubr.f32.mxu0 %v3997
        %4260 = vmatmul.mubr.f32.gmra.mrb[0].mxu0 %v3996
        %v4261 = vpop.f32.mrb[0].mxu0
        %v4262 = vadd.f32 0.0, %v4261
        %v4263 = vpop.f32.mrb[0].mxu0
        %4264 = vmatprep.mubr.f32.mxu0 %v4002
        %4265 = vmatmul.mubr.f32.gmra.mrb[0].mxu0 %v4001
        %v4266 = vpop.f32.mrb[0].mxu0
        %v4267 = vadd.f32 0.0, %v4266
        %v4268 = vpop.f32.mrb[0].mxu0
        %4269 = vmatprep.mubr.f32.mxu0 %v4007
        %4270 = vmatmul.mubr.f32.gmra.mrb[0].mxu0 %v4006
        %v4271 = vpop.f32.mrb[0].mxu0
        %v4272 = vadd.f32 0.0, %v4271
        %v4273 = vpop.f32.mrb[0].mxu0
        %4274 = vmatprep.mubr.f32.mxu0 %v4012
        %4275 = vmatmul.mubr.f32.gmra.mrb[0].mxu0 %v4011
        %v4276 = vpop.f32.mrb[0].mxu0
        %v4277 = vadd.f32 0.0, %v4276
        %v4278 = vpop.f32.mrb[0].mxu0
        %4279 = vmatprep.mubr.f32.mxu0 %v4017
        %4280 = vmatmul.mubr.f32.gmra.mrb[0].mxu0 %v4016
        %v4281 = vpop.f32.mrb[0].mxu0
        %v4282 = vadd.f32 0.0, %v4281
        %v4283 = vpop.f32.mrb[0].mxu0
        %4284 = vmatprep.mubr.f32.mxu0 %v4022
        %4285 = vmatmul.mubr.f32.gmra.mrb[0].mxu0 %v4021
        %v4286 = vpop.f32.mrb[0].mxu0
        %v4287 = vadd.f32 0.0, %v4286
        %v4288 = vpop.f32.mrb[0].mxu0
        %4289 = vmatprep.mubr.f32.mxu0 %v4027
        %4290 = vmatmul.mubr.f32.gmra.mrb[0].mxu0 %v4026
        %v4291 = vpop.f32.mrb[0].mxu0
        %v4292 = vadd.f32 0.0, %v4291
        %v4293 = vpop.f32.mrb[0].mxu0
        %4294 = vmatprep.mubr.f32.mxu0 %v4032
        %4295 = vmatmul.mubr.f32.gmra.mrb[0].mxu0 %v4031
        %v4296 = vpop.f32.mrb[0].mxu0
        %v4297 = vadd.f32 0.0, %v4296
        %v4298 = vpop.f32.mrb[0].mxu0
        %4299 = vmatprep.mubr.f32.mxu0 %v4037
        %4300 = vmatmul.mubr.f32.gmra.mrb[0].mxu0 %v4036
        %v4301 = vpop.f32.mrb[0].mxu0
        %v4302 = vadd.f32 0.0, %v4301
        %v4303 = vpop.f32.mrb[0].mxu0
        %4304 = vmatprep.mubr.f32.mxu0 %v4042
        %4305 = vmatmul.mubr.f32.gmra.mrb[0].mxu0 %v4041
        %v4306 = vpop.f32.mrb[0].mxu0
        %v4307 = vadd.f32 0.0, %v4306
        %v4308 = vpop.f32.mrb[0].mxu0
        %4309 = vmatprep.mubr.f32.mxu0 %v4047
        %4310 = vmatmul.mubr.f32.gmra.mrb[0].mxu0 %v4046
        %v4311 = vpop.f32.mrb[0].mxu0
        %v4312 = vadd.f32 0.0, %v4311
        %v4313 = vpop.f32.mrb[0].mxu0
        %4314 = vmatprep.mubr.f32.mxu0 %v4052
        %4315 = vmatmul.mubr.f32.gmra.mrb[0].mxu0 %v4051
        %v4316 = vpop.f32.mrb[0].mxu0
        %v4317 = vadd.f32 0.0, %v4316
        %v4318 = vpop.f32.mrb[0].mxu0
        %4319 = vmatprep.mubr.f32.mxu0 %v4057
        %4320 = vmatmul.mubr.f32.gmra.mrb[0].mxu0 %v4056
        %v4321 = vpop.f32.mrb[0].mxu0
        %v4322 = vadd.f32 0.0, %v4321
        %v4323 = vpop.f32.mrb[0].mxu0
        %4324 = vmatprep.mubr.f32.mxu0 %v4062
        %4325 = vmatmul.mubr.f32.gmra.mrb[0].mxu0 %v4061
        %v4326 = vpop.f32.mrb[0].mxu0
        %v4327 = vadd.f32 0.0, %v4326
        %v4328 = vpop.f32.mrb[0].mxu0
        %4329 = vdwg.mxu0
        %4330 = vmatprep.subr.mxu0 0.0
        %4331 = vmatpush1.msra.mxu0 %v4099
        %4332 = vmatprep.subr.mxu0 0.0
        %4333 = vmatpush1.msra.mxu0 %v4100
        %4334 = vmatprep.subr.mxu0 0.0
        %4335 = vmatpush1.msra.mxu0 %v4101
        %4336 = vmatprep.subr.mxu0 0.0
        %4337 = vmatpush1.msra.mxu0 %v4102
        %4338 = vmatprep.subr.mxu0 0.0
        %4339 = vmatpush1.msra.mxu0 %v4103
        %4340 = vmatprep.subr.mxu0 0.0
        %4341 = vmatpush1.msra.mxu0 %v4104
        %4342 = vmatprep.subr.mxu0 0.0
        %4343 = vmatpush1.msra.mxu0 %v4105
        %4344 = vmatprep.subr.mxu0 0.0
        %4345 = vmatpush1.msra.mxu0 %v4106
        %4346 = vmatprep.subr.mxu0 0.0
        %4347 = vmatpush1.msra.mxu0 %v4107
        %4348 = vmatprep.subr.mxu0 0.0
        %4349 = vmatpush1.msra.mxu0 %v4108
        %4350 = vmatprep.subr.mxu0 0.0
        %4351 = vmatpush1.msra.mxu0 %v4109
        %4352 = vmatprep.subr.mxu0 0.0
        %4353 = vmatpush1.msra.mxu0 %v4110
        %4354 = vmatprep.subr.mxu0 0.0
        %4355 = vmatpush1.msra.mxu0 %v4111
        %4356 = vmatprep.subr.mxu0 0.0
        %4357 = vmatpush1.msra.mxu0 %v4112
        %4358 = vmatprep.subr.mxu0 0.0
        %4359 = vmatpush1.msra.mxu0 %v4113
        %4360 = vmatprep.subr.mxu0 0.0
        %4361 = vmatpush1.msra.mxu0 %v4114
        %4362 = vmatprep.subr.mxu0 0.0
        %4363 = vmatpush1.msra.mxu0 %v4115
        %4364 = vmatprep.subr.mxu0 0.0
        %4365 = vmatpush1.msra.mxu0 %v4116
        %4366 = vmatprep.subr.mxu0 0.0
        %4367 = vmatpush1.msra.mxu0 %v4117
        %4368 = vmatprep.subr.mxu0 0.0
        %4369 = vmatpush1.msra.mxu0 %v4118
        %4370 = vmatprep.subr.mxu0 0.0
        %4371 = vmatpush1.msra.mxu0 %v4119
        %4372 = vmatprep.subr.mxu0 0.0
        %4373 = vmatpush1.msra.mxu0 %v4120
        %4374 = vmatprep.subr.mxu0 0.0
        %4375 = vmatpush1.msra.mxu0 %v4121
        %4376 = vmatprep.subr.mxu0 0.0
        %4377 = vmatpush1.msra.mxu0 %v4122
        %4378 = vmatprep.subr.mxu0 0.0
        %4379 = vmatpush1.msra.mxu0 %v4123
        %4380 = vmatprep.subr.mxu0 0.0
        %4381 = vmatpush1.msra.mxu0 %v4124
        %4382 = vmatprep.subr.mxu0 0.0
        %4383 = vmatpush1.msra.mxu0 %v4125
        %4384 = vmatprep.subr.mxu0 0.0
        %4385 = vmatpush1.msra.mxu0 %v4126
        %4386 = vmatprep.subr.mxu0 0.0
        %4387 = vmatpush1.msra.mxu0 %v4127
        %4388 = vmatprep.subr.mxu0 0.0
        %4389 = vmatpush1.msra.mxu0 %v4128
        %4390 = vmatprep.subr.mxu0 0.0
        %4391 = vmatpush1.msra.mxu0 %v4129
        %4392 = vmatprep.subr.mxu0 0.0
        %4393 = vmatpush1.msra.mxu0 %v4130
        %4394 = vmatprep.mubr.f32.mxu0 %v3989
        %4395 = vmatmul.mubr.f32.gmra.mrb[0].mxu0 %v3988
        %v4396 = vpop.f32.mrb[0].mxu0
        %v4397 = vadd.f32 %v4252, %v4396
        %v4398 = vpop.f32.mrb[0].mxu0
        %4399 = vmatprep.mubr.f32.mxu0 %v3994
        %4400 = vmatmul.mubr.f32.gmra.mrb[0].mxu0 %v3993
        %v4401 = vpop.f32.mrb[0].mxu0
        %v4402 = vadd.f32 %v4257, %v4401
        %v4403 = vpop.f32.mrb[0].mxu0
        %4404 = vmatprep.mubr.f32.mxu0 %v3999
        %4405 = vmatmul.mubr.f32.gmra.mrb[0].mxu0 %v3998
        %v4406 = vpop.f32.mrb[0].mxu0
        %v4407 = vadd.f32 %v4262, %v4406
        %v4408 = vpop.f32.mrb[0].mxu0
        %4409 = vmatprep.mubr.f32.mxu0 %v4004
        %4410 = vmatmul.mubr.f32.gmra.mrb[0].mxu0 %v4003
        %v4411 = vpop.f32.mrb[0].mxu0
        %v4412 = vadd.f32 %v4267, %v4411
        %v4413 = vpop.f32.mrb[0].mxu0
        %4414 = vmatprep.mubr.f32.mxu0 %v4009
        %4415 = vmatmul.mubr.f32.gmra.mrb[0].mxu0 %v4008
        %v4416 = vpop.f32.mrb[0].mxu0
        %v4417 = vadd.f32 %v4272, %v4416
        %v4418 = vpop.f32.mrb[0].mxu0
        %4419 = vmatprep.mubr.f32.mxu0 %v4014
        %4420 = vmatmul.mubr.f32.gmra.mrb[0].mxu0 %v4013
        %v4421 = vpop.f32.mrb[0].mxu0
        %v4422 = vadd.f32 %v4277, %v4421
        %v4423 = vpop.f32.mrb[0].mxu0
        %4424 = vmatprep.mubr.f32.mxu0 %v4019
        %4425 = vmatmul.mubr.f32.gmra.mrb[0].mxu0 %v4018
        %v4426 = vpop.f32.mrb[0].mxu0
        %v4427 = vadd.f32 %v4282, %v4426
        %v4428 = vpop.f32.mrb[0].mxu0
        %4429 = vmatprep.mubr.f32.mxu0 %v4024
        %4430 = vmatmul.mubr.f32.gmra.mrb[0].mxu0 %v4023
        %v4431 = vpop.f32.mrb[0].mxu0
        %v4432 = vadd.f32 %v4287, %v4431
        %v4433 = vpop.f32.mrb[0].mxu0
        %4434 = vmatprep.mubr.f32.mxu0 %v4029
        %4435 = vmatmul.mubr.f32.gmra.mrb[0].mxu0 %v4028
        %v4436 = vpop.f32.mrb[0].mxu0
        %v4437 = vadd.f32 %v4292, %v4436
        %v4438 = vpop.f32.mrb[0].mxu0
        %4439 = vmatprep.mubr.f32.mxu0 %v4034
        %4440 = vmatmul.mubr.f32.gmra.mrb[0].mxu0 %v4033
        %v4441 = vpop.f32.mrb[0].mxu0
        %v4442 = vadd.f32 %v4297, %v4441
        %v4443 = vpop.f32.mrb[0].mxu0
        %4444 = vmatprep.mubr.f32.mxu0 %v4039
        %4445 = vmatmul.mubr.f32.gmra.mrb[0].mxu0 %v4038
        %v4446 = vpop.f32.mrb[0].mxu0
        %v4447 = vadd.f32 %v4302, %v4446
        %v4448 = vpop.f32.mrb[0].mxu0
        %4449 = vmatprep.mubr.f32.mxu0 %v4044
        %4450 = vmatmul.mubr.f32.gmra.mrb[0].mxu0 %v4043
        %v4451 = vpop.f32.mrb[0].mxu0
        %v4452 = vadd.f32 %v4307, %v4451
        %v4453 = vpop.f32.mrb[0].mxu0
        %4454 = vmatprep.mubr.f32.mxu0 %v4049
        %4455 = vmatmul.mubr.f32.gmra.mrb[0].mxu0 %v4048
        %v4456 = vpop.f32.mrb[0].mxu0
        %v4457 = vadd.f32 %v4312, %v4456
        %v4458 = vpop.f32.mrb[0].mxu0
        %4459 = vmatprep.mubr.f32.mxu0 %v4054
        %4460 = vmatmul.mubr.f32.gmra.mrb[0].mxu0 %v4053
        %v4461 = vpop.f32.mrb[0].mxu0
        %v4462 = vadd.f32 %v4317, %v4461
        %v4463 = vpop.f32.mrb[0].mxu0
        %4464 = vmatprep.mubr.f32.mxu0 %v4059
        %4465 = vmatmul.mubr.f32.gmra.mrb[0].mxu0 %v4058
        %v4466 = vpop.f32.mrb[0].mxu0
        %v4467 = vadd.f32 %v4322, %v4466
        %v4468 = vpop.f32.mrb[0].mxu0
        %4469 = vmatprep.mubr.f32.mxu0 %v4064
        %4470 = vmatmul.mubr.f32.gmra.mrb[0].mxu0 %v4063
        %v4471 = vpop.f32.mrb[0].mxu0
        %v4472 = vadd.f32 %v4327, %v4471
        %v4473 = vpop.f32.mrb[0].mxu0
        %4474 = vdwg.mxu0
        %4475 = vmatprep.subr.mxu0 0.0
        %4476 = vmatpush1.msra.mxu0 %v4131
        %4477 = vmatprep.subr.mxu0 0.0
        %4478 = vmatpush1.msra.mxu0 %v4132
        %4479 = vmatprep.subr.mxu0 0.0
        %4480 = vmatpush1.msra.mxu0 %v4183
        %4481 = vmatprep.subr.mxu0 0.0
        %4482 = vmatpush1.msra.mxu0 0.0
        %4483 = vmatprep.subr.mxu0 0.0
        %4484 = vmatpush1.msra.mxu0 0.0
        %4485 = vmatprep.subr.mxu0 0.0
        %4486 = vmatpush1.msra.mxu0 0.0
        %4487 = vmatprep.subr.mxu0 0.0
        %4488 = vmatpush1.msra.mxu0 0.0
        %4489 = vmatprep.subr.mxu0 0.0
        %4490 = vmatpush1.msra.mxu0 0.0
        %4491 = vmatprep.subr.mxu0 0.0
        %4492 = vmatpush1.msra.mxu0 0.0
        %4493 = vmatprep.subr.mxu0 0.0
        %4494 = vmatpush1.msra.mxu0 0.0
        %4495 = vmatprep.subr.mxu0 0.0
        %4496 = vmatpush1.msra.mxu0 0.0
        %4497 = vmatprep.subr.mxu0 0.0
        %4498 = vmatpush1.msra.mxu0 0.0
        %4499 = vmatprep.subr.mxu0 0.0
        %4500 = vmatpush1.msra.mxu0 0.0
        %4501 = vmatprep.subr.mxu0 0.0
        %4502 = vmatpush1.msra.mxu0 0.0
        %4503 = vmatprep.subr.mxu0 0.0
        %4504 = vmatpush1.msra.mxu0 0.0
        %4505 = vmatprep.subr.mxu0 0.0
        %4506 = vmatpush1.msra.mxu0 0.0
        %4507 = vmatprep.subr.mxu0 0.0
        %4508 = vmatpush1.msra.mxu0 0.0
        %4509 = vmatprep.subr.mxu0 0.0
        %4510 = vmatpush1.msra.mxu0 0.0
        %4511 = vmatprep.subr.mxu0 0.0
        %4512 = vmatpush1.msra.mxu0 0.0
        %4513 = vmatprep.subr.mxu0 0.0
        %4514 = vmatpush1.msra.mxu0 0.0
        %4515 = vmatprep.subr.mxu0 0.0
        %4516 = vmatpush1.msra.mxu0 0.0
        %4517 = vmatprep.subr.mxu0 0.0
        %4518 = vmatpush1.msra.mxu0 0.0
        %4519 = vmatprep.subr.mxu0 0.0
        %4520 = vmatpush1.msra.mxu0 0.0
        %4521 = vmatprep.subr.mxu0 0.0
        %4522 = vmatpush1.msra.mxu0 0.0
        %4523 = vmatprep.subr.mxu0 0.0
        %4524 = vmatpush1.msra.mxu0 0.0
        %4525 = vmatprep.subr.mxu0 0.0
        %4526 = vmatpush1.msra.mxu0 0.0
        %4527 = vmatprep.subr.mxu0 0.0
        %4528 = vmatpush1.msra.mxu0 0.0
        %4529 = vmatprep.subr.mxu0 0.0
        %4530 = vmatpush1.msra.mxu0 0.0
        %4531 = vmatprep.subr.mxu0 0.0
        %4532 = vmatpush1.msra.mxu0 0.0
        %4533 = vmatprep.subr.mxu0 0.0
        %4534 = vmatpush1.msra.mxu0 0.0
        %4535 = vmatprep.subr.mxu0 0.0
        %4536 = vmatpush1.msra.mxu0 0.0
        %4537 = vmatprep.subr.mxu0 0.0
        %4538 = vmatpush1.msra.mxu0 0.0
        %4539 = vmatprep.mubr.f32.mxu0 0.0
        %4540 = vmatmul.mubr.f32.gmra.mrb[0].mxu0 %v4135
        %v4541 = vpop.f32.mrb[0].mxu0
        %v4542 = vadd.f32 %v4397, %v4541
        %v4543 = vpop.f32.mrb[0].mxu0
        %4544 = vmatprep.mubr.f32.mxu0 0.0
        %4545 = vmatmul.mubr.f32.gmra.mrb[0].mxu0 %v4138
        %v4546 = vpop.f32.mrb[0].mxu0
        %v4547 = vadd.f32 %v4402, %v4546
        %v4548 = vpop.f32.mrb[0].mxu0
        %4549 = vmatprep.mubr.f32.mxu0 0.0
        %4550 = vmatmul.mubr.f32.gmra.mrb[0].mxu0 %v4141
        %v4551 = vpop.f32.mrb[0].mxu0
        %v4552 = vadd.f32 %v4407, %v4551
        %v4553 = vpop.f32.mrb[0].mxu0
        %4554 = vmatprep.mubr.f32.mxu0 0.0
        %4555 = vmatmul.mubr.f32.gmra.mrb[0].mxu0 %v4144
        %v4556 = vpop.f32.mrb[0].mxu0
        %v4557 = vadd.f32 %v4412, %v4556
        %v4558 = vpop.f32.mrb[0].mxu0
        %4559 = vmatprep.mubr.f32.mxu0 0.0
        %4560 = vmatmul.mubr.f32.gmra.mrb[0].mxu0 %v4147
        %v4561 = vpop.f32.mrb[0].mxu0
        %v4562 = vadd.f32 %v4417, %v4561
        %v4563 = vpop.f32.mrb[0].mxu0
        %4564 = vmatprep.mubr.f32.mxu0 0.0
        %4565 = vmatmul.mubr.f32.gmra.mrb[0].mxu0 %v4150
        %v4566 = vpop.f32.mrb[0].mxu0
        %v4567 = vadd.f32 %v4422, %v4566
        %v4568 = vpop.f32.mrb[0].mxu0
        %4569 = vmatprep.mubr.f32.mxu0 0.0
        %4570 = vmatmul.mubr.f32.gmra.mrb[0].mxu0 %v4153
        %v4571 = vpop.f32.mrb[0].mxu0
        %v4572 = vadd.f32 %v4427, %v4571
        %v4573 = vpop.f32.mrb[0].mxu0
        %4574 = vmatprep.mubr.f32.mxu0 0.0
        %4575 = vmatmul.mubr.f32.gmra.mrb[0].mxu0 %v4156
        %v4576 = vpop.f32.mrb[0].mxu0
        %v4577 = vadd.f32 %v4432, %v4576
        %v4578 = vpop.f32.mrb[0].mxu0
        %4579 = vmatprep.mubr.f32.mxu0 0.0
        %4580 = vmatmul.mubr.f32.gmra.mrb[0].mxu0 %v4159
        %v4581 = vpop.f32.mrb[0].mxu0
        %v4582 = vadd.f32 %v4437, %v4581
        %v4583 = vpop.f32.mrb[0].mxu0
        %4584 = vmatprep.mubr.f32.mxu0 0.0
        %4585 = vmatmul.mubr.f32.gmra.mrb[0].mxu0 %v4162
        %v4586 = vpop.f32.mrb[0].mxu0
        %v4587 = vadd.f32 %v4442, %v4586
        %v4588 = vpop.f32.mrb[0].mxu0
        %4589 = vmatprep.mubr.f32.mxu0 0.0
        %4590 = vmatmul.mubr.f32.gmra.mrb[0].mxu0 %v4165
        %v4591 = vpop.f32.mrb[0].mxu0
        %v4592 = vadd.f32 %v4447, %v4591
        %v4593 = vpop.f32.mrb[0].mxu0
        %4594 = vmatprep.mubr.f32.mxu0 0.0
        %4595 = vmatmul.mubr.f32.gmra.mrb[0].mxu0 %v4168
        %v4596 = vpop.f32.mrb[0].mxu0
        %v4597 = vadd.f32 %v4452, %v4596
        %v4598 = vpop.f32.mrb[0].mxu0
        %4599 = vmatprep.mubr.f32.mxu0 0.0
        %4600 = vmatmul.mubr.f32.gmra.mrb[0].mxu0 %v4171
        %v4601 = vpop.f32.mrb[0].mxu0
        %v4602 = vadd.f32 %v4457, %v4601
        %v4603 = vpop.f32.mrb[0].mxu0
        %4604 = vmatprep.mubr.f32.mxu0 0.0
        %4605 = vmatmul.mubr.f32.gmra.mrb[0].mxu0 %v4174
        %v4606 = vpop.f32.mrb[0].mxu0
        %v4607 = vadd.f32 %v4462, %v4606
        %v4608 = vpop.f32.mrb[0].mxu0
        %4609 = vmatprep.mubr.f32.mxu0 0.0
        %4610 = vmatmul.mubr.f32.gmra.mrb[0].mxu0 %v4177
        %v4611 = vpop.f32.mrb[0].mxu0
        %v4612 = vadd.f32 %v4467, %v4611
        %v4613 = vpop.f32.mrb[0].mxu0
        %4614 = vmatprep.mubr.f32.mxu0 0.0
        %4615 = vmatmul.mubr.f32.gmra.mrb[0].mxu0 %v4180
        %v4616 = vpop.f32.mrb[0].mxu0
        %v4617 = vadd.f32 %v4472, %v4616
        %v4618 = vpop.f32.mrb[0].mxu0
        %4619 = vdwg.mxu0
        %v4620 = vadd.f32 %v3970, %v4542
        %v4621 = vadd.f32 %v3971, %v4547
        %v4622 = vadd.f32 %v3972, %v4552
        %v4623 = vadd.f32 %v3973, %v4557
        %v4624 = vadd.f32 %v3974, %v4562
        %v4625 = vadd.f32 %v3975, %v4567
        %v4626 = vadd.f32 %v3976, %v4572
        %v4627 = vadd.f32 %v3977, %v4577
        %v4628 = vadd.f32 %v3978, %v4582
        %v4629 = vadd.f32 %v3979, %v4587
        %v4630 = vadd.f32 %v3980, %v4592
        %v4631 = vadd.f32 %v3981, %v4597
        %v4632 = vadd.f32 %v3982, %v4602
        %v4633 = vadd.f32 %v3983, %v4607
        %v4634 = vadd.f32 %v3984, %v4612
        %v4635 = vadd.f32 %v3985, %v4617
        %v4636 = vxor.u32 %v4620, 2147483648
        %v4637 = vxor.u32 %v4621, 2147483648
        %v4638 = vxor.u32 %v4622, 2147483648
        %v4639 = vxor.u32 %v4623, 2147483648
        %v4640 = vxor.u32 %v4624, 2147483648
        %v4641 = vxor.u32 %v4625, 2147483648
        %v4642 = vxor.u32 %v4626, 2147483648
        %v4643 = vxor.u32 %v4627, 2147483648
        %v4644 = vxor.u32 %v4628, 2147483648
        %v4645 = vxor.u32 %v4629, 2147483648
        %v4646 = vxor.u32 %v4630, 2147483648
        %v4647 = vxor.u32 %v4631, 2147483648
        %v4648 = vxor.u32 %v4632, 2147483648
        %v4649 = vxor.u32 %v4633, 2147483648
        %v4650 = vxor.u32 %v4634, 2147483648
        %v4651 = vxor.u32 %v4635, 2147483648
        %v4652 = vmul.f32 %v4636, 1.442695
        %v4653 = vpow.pop %v4652
        %v4654 = vmul.f32 %v4637, 1.442695
        %v4655 = vpow.pop %v4654
        %v4656 = vmul.f32 %v4638, 1.442695
        %v4657 = vpow.pop %v4656
        %v4658 = vmul.f32 %v4639, 1.442695
        %v4659 = vpow.pop %v4658
        %v4660 = vmul.f32 %v4640, 1.442695
        %v4661 = vpow.pop %v4660
        %v4662 = vmul.f32 %v4641, 1.442695
        %v4663 = vpow.pop %v4662
        %v4664 = vmul.f32 %v4642, 1.442695
        %v4665 = vpow.pop %v4664
        %v4666 = vmul.f32 %v4643, 1.442695
        %v4667 = vpow.pop %v4666
        %v4668 = vmul.f32 %v4644, 1.442695
        %v4669 = vpow.pop %v4668
        %v4670 = vmul.f32 %v4645, 1.442695
        %v4671 = vpow.pop %v4670
        %v4672 = vmul.f32 %v4646, 1.442695
        %v4673 = vpow.pop %v4672
        %v4674 = vmul.f32 %v4647, 1.442695
        %v4675 = vpow.pop %v4674
        %v4676 = vmul.f32 %v4648, 1.442695
        %v4677 = vpow.pop %v4676
        %v4678 = vmul.f32 %v4649, 1.442695
        %v4679 = vpow.pop %v4678
        %v4680 = vmul.f32 %v4650, 1.442695
        %v4681 = vpow.pop %v4680
        %v4682 = vmul.f32 %v4651, 1.442695
        %v4683 = vpow.pop %v4682
        %v4684 = vadd.f32 %v4653, 1.0
        %v4685 = vadd.f32 %v4655, 1.0
        %v4686 = vadd.f32 %v4657, 1.0
        %v4687 = vadd.f32 %v4659, 1.0
        %v4688 = vadd.f32 %v4661, 1.0
        %v4689 = vadd.f32 %v4663, 1.0
        %v4690 = vadd.f32 %v4665, 1.0
        %v4691 = vadd.f32 %v4667, 1.0
        %v4692 = vadd.f32 %v4669, 1.0
        %v4693 = vadd.f32 %v4671, 1.0
        %v4694 = vadd.f32 %v4673, 1.0
        %v4695 = vadd.f32 %v4675, 1.0
        %v4696 = vadd.f32 %v4677, 1.0
        %v4697 = vadd.f32 %v4679, 1.0
        %v4698 = vadd.f32 %v4681, 1.0
        %v4699 = vadd.f32 %v4683, 1.0
        %v4700 = vrcp.pop %v4684
        %v4701 = vmul.f32 1.0, %v4700
        %v4702 = vrcp.pop %v4685
        %v4703 = vmul.f32 1.0, %v4702
        %v4704 = vrcp.pop %v4686
        %v4705 = vmul.f32 1.0, %v4704
        %v4706 = vrcp.pop %v4687
        %v4707 = vmul.f32 1.0, %v4706
        %v4708 = vrcp.pop %v4688
        %v4709 = vmul.f32 1.0, %v4708
        %v4710 = vrcp.pop %v4689
        %v4711 = vmul.f32 1.0, %v4710
        %v4712 = vrcp.pop %v4690
        %v4713 = vmul.f32 1.0, %v4712
        %v4714 = vrcp.pop %v4691
        %v4715 = vmul.f32 1.0, %v4714
        %v4716 = vrcp.pop %v4692
        %v4717 = vmul.f32 1.0, %v4716
        %v4718 = vrcp.pop %v4693
        %v4719 = vmul.f32 1.0, %v4718
        %v4720 = vrcp.pop %v4694
        %v4721 = vmul.f32 1.0, %v4720
        %v4722 = vrcp.pop %v4695
        %v4723 = vmul.f32 1.0, %v4722
        %v4724 = vrcp.pop %v4696
        %v4725 = vmul.f32 1.0, %v4724
        %v4726 = vrcp.pop %v4697
        %v4727 = vmul.f32 1.0, %v4726
        %v4728 = vrcp.pop %v4698
        %v4729 = vmul.f32 1.0, %v4728
        %v4730 = vrcp.pop %v4699
        %v4731 = vmul.f32 1.0, %v4730
        %vm4732 = vcmask 261120
        %4733 = vst.msk [vmem:[%s228] sm:$0xff] %vm4732, %v4701
        %4734 = vst.msk [vmem:[%s228 + $0x8] sm:$0xff] %vm4732, %v4703
        %4735 = vst.msk [vmem:[%s228 + $0x10] sm:$0xff] %vm4732, %v4705
        %4736 = vst.msk [vmem:[%s228 + $0x18] sm:$0xff] %vm4732, %v4707
        %4737 = vst.msk [vmem:[%s228 + $0x20] sm:$0xff] %vm4732, %v4709
        %4738 = vst.msk [vmem:[%s228 + $0x28] sm:$0xff] %vm4732, %v4711
        %4739 = vst.msk [vmem:[%s228 + $0x30] sm:$0xff] %vm4732, %v4713
        %4740 = vst.msk [vmem:[%s228 + $0x38] sm:$0xff] %vm4732, %v4715
        %4741 = vst.msk [vmem:[%s228 + $0x40] sm:$0xff] %vm4732, %v4717
        %4742 = vst.msk [vmem:[%s228 + $0x48] sm:$0xff] %vm4732, %v4719
        %4743 = vst.msk [vmem:[%s228 + $0x50] sm:$0xff] %vm4732, %v4721
        %4744 = vst.msk [vmem:[%s228 + $0x58] sm:$0xff] %vm4732, %v4723
        %4745 = vst.msk [vmem:[%s228 + $0x60] sm:$0xff] %vm4732, %v4725
        %4746 = vst.msk [vmem:[%s228 + $0x68] sm:$0xff] %vm4732, %v4727
        %4747 = vst.msk [vmem:[%s228 + $0x70] sm:$0xff] %vm4732, %v4729
        %4748 = vst.msk [vmem:[%s228 + $0x78] sm:$0xff] %vm4732, %v4731
        %v4749 = vld [vmem:[%s223] sm:$0xff]
        %v4750 = vld [vmem:[%s223 + $0x8] sm:$0xff]
        %v4751 = vld [vmem:[%s223 + $0x10] sm:$0xff]
        %v4752 = vld [vmem:[%s223 + $0x18] sm:$0xff]
        %v4753 = vld [vmem:[%s223 + $0x20] sm:$0xff]
        %v4754 = vld [vmem:[%s223 + $0x28] sm:$0xff]
        %v4755 = vld [vmem:[%s223 + $0x30] sm:$0xff]
        %v4756 = vld [vmem:[%s223 + $0x38] sm:$0xff]
        %v4757 = vld [vmem:[%s223 + $0x40] sm:$0xff]
        %v4758 = vld [vmem:[%s223 + $0x48] sm:$0xff]
        %v4759 = vld [vmem:[%s223 + $0x50] sm:$0xff]
        %v4760 = vld [vmem:[%s223 + $0x58] sm:$0xff]
        %v4761 = vld [vmem:[%s223 + $0x60] sm:$0xff]
        %v4762 = vld [vmem:[%s223 + $0x68] sm:$0xff]
        %v4763 = vld [vmem:[%s223 + $0x70] sm:$0xff]
        %v4764 = vld [vmem:[%s223 + $0x78] sm:$0xff]
        %v4765 = vmul.f32 %v4749, %v4701
        %v4766 = vmul.f32 %v4750, %v4703
        %v4767 = vmul.f32 %v4751, %v4705
        %v4768 = vmul.f32 %v4752, %v4707
        %v4769 = vmul.f32 %v4753, %v4709
        %v4770 = vmul.f32 %v4754, %v4711
        %v4771 = vmul.f32 %v4755, %v4713
        %v4772 = vmul.f32 %v4756, %v4715
        %v4773 = vmul.f32 %v4757, %v4717
        %v4774 = vmul.f32 %v4758, %v4719
        %v4775 = vmul.f32 %v4759, %v4721
        %v4776 = vmul.f32 %v4760, %v4723
        %v4777 = vmul.f32 %v4761, %v4725
        %v4778 = vmul.f32 %v4762, %v4727
        %v4779 = vmul.f32 %v4763, %v4729
        %v4780 = vmul.f32 %v4764, %v4731
        %4781 = vst.msk [vmem:[%s213] sm:$0xff] %vm4732, %v4765
        %4782 = vst.msk [vmem:[%s213 + $0x8] sm:$0xff] %vm4732, %v4766
        %4783 = vst.msk [vmem:[%s213 + $0x10] sm:$0xff] %vm4732, %v4767
        %4784 = vst.msk [vmem:[%s213 + $0x18] sm:$0xff] %vm4732, %v4768
        %4785 = vst.msk [vmem:[%s213 + $0x20] sm:$0xff] %vm4732, %v4769
        %4786 = vst.msk [vmem:[%s213 + $0x28] sm:$0xff] %vm4732, %v4770
        %4787 = vst.msk [vmem:[%s213 + $0x30] sm:$0xff] %vm4732, %v4771
        %4788 = vst.msk [vmem:[%s213 + $0x38] sm:$0xff] %vm4732, %v4772
        %4789 = vst.msk [vmem:[%s213 + $0x40] sm:$0xff] %vm4732, %v4773
        %4790 = vst.msk [vmem:[%s213 + $0x48] sm:$0xff] %vm4732, %v4774
        %4791 = vst.msk [vmem:[%s213 + $0x50] sm:$0xff] %vm4732, %v4775
        %4792 = vst.msk [vmem:[%s213 + $0x58] sm:$0xff] %vm4732, %v4776
        %4793 = vst.msk [vmem:[%s213 + $0x60] sm:$0xff] %vm4732, %v4777
        %4794 = vst.msk [vmem:[%s213 + $0x68] sm:$0xff] %vm4732, %v4778
        %4795 = vst.msk [vmem:[%s213 + $0x70] sm:$0xff] %vm4732, %v4779
        %4796 = vst.msk [vmem:[%s213 + $0x78] sm:$0xff] %vm4732, %v4780
        %p4797 = scmp.lt.s32.totalorder %s19, 1
        %s4798 = scalar_select %p4797, %s19, 1
        %s4799 = smul.addr %s4798, 16
        %s4800 = smul.addr %s4799, 8
        %s4801 = scalar_lea.vmem %s3, %s4800
        %s4802 = sand.u32 %s126, 1
        %s4803 = scalar_lea.sflag [#allocation3], %s4802
        %s4804 = sand.u32 %s126, 1
        %s4805 = smul.addr %s4804, 128
        %s4806 = scalar_lea.vmem [#allocation2], %s4805
        // Predicated region
        $region33: #{cbam3d_forward.6} parent=31 // pred_check
          %p4807 = pneg %p110
        $region34: #{cbam3d_forward.6} parent=31 // pred_check_branch
          %4809 = sbr.rel (%p4807) target = $region36
        $region35: #{cbam3d_forward.6} parent=31 // pred_region
          _
        $region36: #{cbam3d_forward.6} parent=31 // pred_fallthru
          _
        // Predicated region
        $region37: #{cbam3d_forward.6} parent=31 // pred_check
          %p4810 = pneg %p136
        $region38: #{cbam3d_forward.6} parent=31 // pred_check_branch
          %4812 = sbr.rel (%p4810) target = $region40
        $region39: #{cbam3d_forward.6} parent=31 // pred_region
          %s4814 = ssub.s32 2048, 2048
          %4815 = vsyncadd %s4803, %s4814
          %s4816 = smul.addr %s19, 16
          %s4817 = smul.addr %s4816, 128
          %s4818 = scalar_lea.hbm %s4, %s4817
          %s4819 = sshll.u32 %s4806, 4
          %s4820 = int_to_ptr.vmem [resolvable:$true] %s4819
          %4825 = dma.vmem_to_hbm [thread:$0]  %s4820, 2048, %s4818, %s4803, 128, 128, 8
        $region40: #{cbam3d_forward.6} parent=31 // pred_fallthru
          _
      $region32: #{cbam3d_forward.6} parent=5 // pred_fallthru
        _
      %p4826 = scmp.le.s32.totalorder 2, %s14
      // Predicated region
      $region41: #{cbam3d_forward.6} parent=5 // pred_check
        %p4827 = pneg %p4826
      $region42: #{cbam3d_forward.6} parent=5 // pred_check_branch
        %4829 = sbr.rel (%p4827) target = $region44
      $region43: #{cbam3d_forward.6} parent=5 // pred_region
        %s4830 = ssub.s32 %s14, 2
        // Predicated region
        $region45: #{cbam3d_forward.6} parent=43 // pred_check
          %p4831 = pneg %p116
        $region46: #{cbam3d_forward.6} parent=43 // pred_check_branch
          %4833 = sbr.rel (%p4831) target = $region48
        $region47: #{cbam3d_forward.6} parent=43 // pred_region
          %p4834 = scmp.lt.s32.totalorder %s20, 1
          %s4835 = scalar_select %p4834, %s20, 1
          %s4836 = smul.addr %s4835, 16
          %s4837 = smul.addr %s4836, 8
          %s4838 = scalar_lea.vmem %s3, %s4837
        $region48: #{cbam3d_forward.6} parent=43 // pred_fallthru
          _
        // Predicated region
        $region49: #{cbam3d_forward.6} parent=43 // pred_check
          %p4839 = pneg %p142
        $region50: #{cbam3d_forward.6} parent=43 // pred_check_branch
          %4841 = sbr.rel (%p4839) target = $region52
        $region51: #{cbam3d_forward.6} parent=43 // pred_region
          %s4842 = sand.u32 %s127, 1
          %s4843 = scalar_lea.sflag [#allocation3], %s4842
          %s4844 = sand.u32 %s127, 1
          %s4845 = smul.addr %s4844, 128
          %s4846 = scalar_lea.vmem [#allocation2], %s4845
          %4847 = dma.done %s4843, 2048
        $region52: #{cbam3d_forward.6} parent=43 // pred_fallthru
          _
      $region44: #{cbam3d_forward.6} parent=5 // pred_fallthru
        _
    $region6: #{cbam3d_forward.6} parent=1 // loop_footer
      %s18 = sadd.s32 1, %s14
    $region7: #{cbam3d_forward.6} parent=1 // loop_footer_branch
      %13 = sbr.rel target = $region3
    $region8: #{cbam3d_forward.6} parent=1 // loop_exit
      _
    %4848 = vsyncpa [#allocation3], 1
    %s4849 = scalar_lea.sflag [#allocation3], 1
    %4850 = vsyncpa %s4849, 1

</llo_original>
